<compile_context>
chip_gen: v6e
topology: v6e:2x2x1
jax: 0.10.0
libtpu: 0.0.40
codegen_flags: <defaults>
</compile_context>

<pallas_src>
import numpy as np
import jax
import jax.numpy as jnp
from jax import lax
from jax.experimental import pallas as pl
from jax.experimental.pallas import tpu as pltpu


# ----------------------------- fused Pallas kernel ------------------------------

def _fused_cnn_kernel(p1_ref, w1_ref, b1_ref, w2_ref, b2_ref,
                      wf1_ref, bf1_ref, wf2_ref, bf2_ref,
                      o_ref, h1_ref, p2_ref, c2_ref, feat_ref):
    """Whole CNN forward for one batch tile, everything resident in VMEM.

    p1_ref  : (Bt, 576, 32)  bf16  conv1 im2col patches, rows=(b, pool_off, y*12+x), K pad 25->32
    w1_ref  : (32, 20)       bf16  conv1 weights (rows 25..31 zero)
    b1_ref  : (1, 20)        f32
    w2_ref  : (512, 50)      bf16  conv2 weights, row = (kh*5+kw)*20 + c (pad 500->512)
    b2_ref  : (1, 50)        f32
    wf1_ref : (1024, 512)    bf16  fc1 weights, row = s*64 + c (torch flatten order folded in)
    bf1_ref : (1, 512)       f32
    wf2_ref : (512, 128)     bf16  fc2 weights (cols 10..127 zero)
    bf2_ref : (1, 128)       f32
    o_ref   : (Bt, 128)      f32   logits (cols 10..127 zero)
    h1_ref  : (Bt, 152, 20)  bf16  scratch: pooled conv1 activations (rows 144..151 zero pad)
    p2_ref  : (Bt, 96, 512)  bf16  scratch: conv2 im2col patch matrix (row = y2*12 + x2)
    c2_ref  : (Bt, 96, 50)   f32   scratch: raw conv2 matmul output
    feat_ref: (Bt, 1024)     bf16  scratch: flattened features, slot s at lanes [s*64, s*64+50)
    """
    Bt = o_ref.shape[0]
    f32, bf16 = jnp.float32, jnp.bfloat16

    # ---- conv1: one stacked im2col matmul, max-pool over the 4 offsets, bias + relu ----
    z = jnp.dot(p1_ref[...].reshape(Bt * 576, 32), w1_ref[...],
                preferred_element_type=f32)                                 # (Bt*576, 20)
    z = z.reshape(Bt, 4, 144, 20)
    z = jnp.maximum(jnp.maximum(z[:, 0], z[:, 1]),
                    jnp.maximum(z[:, 2], z[:, 3]))                          # 2x2 pool (offsets)
    z = jnp.maximum(z + b1_ref[...], 0.0)                                   # bias + relu
    h1_ref[:, pl.ds(0, 144), :] = z.astype(bf16)
    h1_ref[:, pl.ds(144, 8), :] = jnp.zeros((Bt, 8, 20), bf16)              # tail pad rows

    # ---- conv2 im2col: 25 contiguous 96-row slabs -> (Bt, 96, 512) patch matrix ----
    # Row r = y2*12 + x2 (y2 in 0..7, x2 in 0..11; x2 >= 8 is over-compute, never read back).
    for kh in range(5):
        for kw in range(5):
            k = kh * 5 + kw
            p2_ref[:, :, pl.ds(k * 20, 20)] = h1_ref[:, pl.ds(kh * 12 + kw, 96), :]
    p2_ref[:, :, pl.ds(500, 12)] = jnp.zeros((Bt, 96, 12), bf16)            # K pad columns

    # ---- conv2: single K=512 matmul ----
    r = jnp.dot(p2_ref[...].reshape(Bt * 96, 512), w2_ref[...],
                preferred_element_type=f32)                                 # (Bt*96, 50)
    c2_ref[...] = r.reshape(Bt, 96, 50)

    # ---- 2x2 max-pool + bias + relu (post-pool) + flatten into 64-aligned lane slots ----
    feat_ref[...] = jnp.zeros((Bt, 1024), bf16)                             # zero pad lanes
    for ph in range(4):
        ya = c2_ref[:, pl.ds(ph * 24, 8), :]                                # y2 = 2ph,   x2 = 0..7
        yb = c2_ref[:, pl.ds(ph * 24 + 12, 8), :]                           # y2 = 2ph+1, x2 = 0..7
        m = jnp.maximum(ya, yb)                                             # (Bt, 8, 50)
        mx = jnp.maximum(m[:, 0:7, :], m[:, 1:8, :])                        # x-pairs at rows 0,2,4,6
        mx = jnp.maximum(mx + b2_ref[...], 0.0).astype(bf16)                # bias + relu
        for pw in range(4):
            s = ph * 4 + pw
            feat_ref[:, pl.ds(s * 64, 50)] = mx[:, 2 * pw, :]

    # ---- fc1 + relu + fc2 ----
    h = jnp.dot(feat_ref[...], wf1_ref[...], preferred_element_type=f32) + bf1_ref[...]
    h = jnp.maximum(h, 0.0).astype(bf16)
    logits = jnp.dot(h, wf2_ref[...], preferred_element_type=f32) + bf2_ref[...]
    o_ref[...] = logits


# ------------------------------- JAX wrappers ------------------------------------

def _conv1_patches(img):
    """Host-side im2col for conv1, 4 pool offsets stacked per sample: (B, 576, 32) bf16."""
    B = img.shape[0]
    per_off = []
    for dy, dx in ((0, 0), (0, 1), (1, 0), (1, 1)):
        cols = [img[:, dy + kh: dy + kh + 24: 2, dx + kw: dx + kw + 24: 2].reshape(B, 144, 1)
                for kh in range(5) for kw in range(5)]
        per_off.append(jnp.concatenate(cols, axis=-1))                      # (B, 144, 25)
    p = jnp.stack(per_off, axis=1)                                          # (B, 4, 144, 25)
    p = jnp.pad(p, ((0, 0), (0, 0), (0, 0), (0, 7)))                        # K 25 -> 32
    return p.reshape(B, 4 * 144, 32).astype(jnp.bfloat16)


def prepare_params(params):
    """One-time host-side repack of PyTorch-layout params into kernel layout."""
    bf16, f32 = jnp.bfloat16, jnp.float32
    # conv1: (20,1,5,5) -> (25,20), pad K to 32.
    w1 = jnp.pad(params["conv1_w"].reshape(20, 25).T, ((0, 7), (0, 0))).astype(bf16)
    # conv2: (50,20,5,5) -> rows ordered (kh, kw, c), pad 500 -> 512.
    w2 = jnp.transpose(params["conv2_w"], (2, 3, 1, 0)).reshape(500, 50)
    w2 = jnp.pad(w2, ((0, 12), (0, 0))).astype(bf16)
    # fc1: torch feature index c*16 + s  ->  kernel lane index s*64 + c (14 zero rows / slot).
    perm = np.array([c * 16 + s for s in range(16) for c in range(50)], dtype=np.int32)
    wf1 = params["fc1_w"].T[perm].reshape(16, 50, 512)
    wf1 = jnp.pad(wf1, ((0, 0), (0, 14), (0, 0))).reshape(1024, 512).astype(bf16)
    # fc2: pad output classes 10 -> 128 lanes (unmasked final store).
    wf2 = jnp.pad(params["fc2_w"].T, ((0, 0), (0, 118))).astype(bf16)
    bf2 = jnp.pad(params["fc2_b"], ((0, 118),)).reshape(1, 128).astype(f32)
    return {
        "w1": w1, "b1": params["conv1_b"].reshape(1, 20).astype(f32),
        "w2": w2, "b2": params["conv2_b"].reshape(1, 50).astype(f32),
        "wf1": wf1, "bf1": params["fc1_b"].reshape(1, 512).astype(f32),
        "wf2": wf2, "bf2": bf2,
    }


def _choose_block_b(B):
    """Per-grid-step batch tile: multiple of 8 with a modest VMEM footprint (v7x-safe),
    falling back to the full (small) batch in a single grid step."""
    for bt in (16, 8):
        if B % bt == 0:
            return bt
    return B


def cnn_forward(x, kp, block_b=None):
    """x: (B, 1, 28, 28) float32 NCHW -> logits (B, 10) float32."""
    B = x.shape[0]
    Bt = block_b if block_b is not None else _choose_block_b(B)
    assert B % Bt == 0
    p1 = _conv1_patches(x[:, 0])                                            # (B, 576, 32) bf16
    out = pl.pallas_call(
        _fused_cnn_kernel,
        out_shape=jax.ShapeDtypeStruct((B, 128), jnp.float32),
        grid_spec=pltpu.PrefetchScalarGridSpec(
            num_scalar_prefetch=0,
            grid=(B // Bt,),
            in_specs=[
                pl.BlockSpec((Bt, 576, 32), lambda i: (i, 0, 0)),
                pl.BlockSpec((32, 20),     lambda i: (0, 0)),
                pl.BlockSpec((1, 20),      lambda i: (0, 0)),
                pl.BlockSpec((512, 50),    lambda i: (0, 0)),
                pl.BlockSpec((1, 50),      lambda i: (0, 0)),
                pl.BlockSpec((1024, 512),  lambda i: (0, 0)),
                pl.BlockSpec((1, 512),     lambda i: (0, 0)),
                pl.BlockSpec((512, 128),   lambda i: (0, 0)),
                pl.BlockSpec((1, 128),     lambda i: (0, 0)),
            ],
            out_specs=pl.BlockSpec((Bt, 128), lambda i: (i, 0)),
            scratch_shapes=[
                pltpu.VMEM((Bt, 152, 20), jnp.bfloat16),   # pooled conv1 activations
                pltpu.VMEM((Bt, 96, 512), jnp.bfloat16),   # conv2 im2col patch matrix
                pltpu.VMEM((Bt, 96, 50), jnp.float32),     # raw conv2 matmul output
                pltpu.VMEM((Bt, 1024), jnp.bfloat16),      # flattened features
            ]),
        compiler_params=pltpu.CompilerParams(dimension_semantics=("parallel",)),
    )(p1, kp["w1"], kp["b1"], kp["w2"], kp["b2"],
      kp["wf1"], kp["bf1"], kp["wf2"], kp["bf2"])
    return out[:, :10]


# ----------------------------- pure-JAX reference --------------------------------

def cnn_reference(x, params):
    dn = ("NCHW", "OIHW", "NCHW")
    y = lax.conv_general_dilated(x, params["conv1_w"], (1, 1), "VALID",
                                 dimension_numbers=dn)
    y = jax.nn.relu(y + params["conv1_b"][None, :, None, None])
    y = lax.reduce_window(y, -jnp.inf, lax.max, (1, 1, 2, 2), (1, 1, 2, 2), "VALID")
    y = lax.conv_general_dilated(y, params["conv2_w"], (1, 1), "VALID",
                                 dimension_numbers=dn)
    y = jax.nn.relu(y + params["conv2_b"][None, :, None, None])
    y = lax.reduce_window(y, -jnp.inf, lax.max, (1, 1, 2, 2), (1, 1, 2, 2), "VALID")
    y = y.reshape(x.shape[0], -1)
    y = jax.nn.relu(y @ params["fc1_w"].T + params["fc1_b"])
    return y @ params["fc2_w"].T + params["fc2_b"]


# ----------------------------------- main ----------------------------------------

def make_params(key):
    ks = jax.random.split(key, 8)
    f32 = jnp.float32
    return {
        "conv1_w": 0.10 * jax.random.normal(ks[0], (20, 1, 5, 5), f32),
        "conv1_b": 0.10 * jax.random.normal(ks[1], (20,), f32),
        "conv2_w": 0.05 * jax.random.normal(ks[2], (50, 20, 5, 5), f32),
        "conv2_b": 0.05 * jax.random.normal(ks[3], (50,), f32),
        "fc1_w":   0.03 * jax.random.normal(ks[4], (512, 800), f32),
        "fc1_b":   0.03 * jax.random.normal(ks[5], (512,), f32),
        "fc2_w":   0.05 * jax.random.normal(ks[6], (10, 512), f32),
        "fc2_b":   0.05 * jax.random.normal(ks[7], (10,), f32),
    }


if __name__ == "__main__":
    key = jax.random.PRNGKey(0)
    k_param, k_x = jax.random.split(key)
    params = make_params(k_param)
    kparams = prepare_params(params)          # one-time host-side weight repack

    # dataset='mnist' => 1 channel, 28x28 input, 10 classes.
    x = jax.random.normal(k_x, (2, 1, 28, 28), jnp.float32)

    fwd = jax.jit(cnn_forward)
    logits = jax.block_until_ready(fwd(x, kparams))
    assert logits.shape == (2, 10) and logits.dtype == jnp.float32

    ref = jax.block_until_ready(jax.jit(cnn_reference)(x, params))
    np.testing.assert_allclose(np.asarray(logits), np.asarray(ref), rtol=2e-2, atol=2e-2)

    print("KERNEL_OK")
</pallas_src>

<mosaic_0001>
module attributes {stable_mosaic.version = 11 : i64} {
  func.func @_fused_cnn_kernel(%arg0: i32, %arg1: memref<2x576x32xbf16, #tpu.memory_space<vmem>>, %arg2: memref<32x20xbf16, #tpu.memory_space<vmem>>, %arg3: memref<1x20xf32, #tpu.memory_space<vmem>>, %arg4: memref<512x50xbf16, #tpu.memory_space<vmem>>, %arg5: memref<1x50xf32, #tpu.memory_space<vmem>>, %arg6: memref<1024x512xbf16, #tpu.memory_space<vmem>>, %arg7: memref<1x512xf32, #tpu.memory_space<vmem>>, %arg8: memref<512x128xbf16, #tpu.memory_space<vmem>>, %arg9: memref<1x128xf32, #tpu.memory_space<vmem>>, %arg10: memref<2x128xf32, #tpu.memory_space<vmem>>, %arg11: memref<2x152x20xbf16, #tpu.memory_space<vmem>>, %arg12: memref<2x96x512xbf16, #tpu.memory_space<vmem>>, %arg13: memref<2x96x50xf32, #tpu.memory_space<vmem>>, %arg14: memref<2x1024xbf16, #tpu.memory_space<vmem>>) attributes {dimension_semantics = [#tpu.dimension_semantics<parallel>], iteration_bounds = array<i64: 1>, scalar_prefetch = 0 : i64, scratch_operands = 4 : i64, tpu.core_type = #tpu.core_type<tc>, window_params = [{transform_indices = @transform_0, window_bounds = array<i64: 2, 576, 32>}, {pipeline_mode = #tpu.pipeline_mode<synchronous>, transform_indices = @transform_1, window_bounds = array<i64: 32, 20>}, {pipeline_mode = #tpu.pipeline_mode<synchronous>, transform_indices = @transform_2, window_bounds = array<i64: 1, 20>}, {pipeline_mode = #tpu.pipeline_mode<synchronous>, transform_indices = @transform_3, window_bounds = array<i64: 512, 50>}, {pipeline_mode = #tpu.pipeline_mode<synchronous>, transform_indices = @transform_4, window_bounds = array<i64: 1, 50>}, {pipeline_mode = #tpu.pipeline_mode<synchronous>, transform_indices = @transform_5, window_bounds = array<i64: 1024, 512>}, {pipeline_mode = #tpu.pipeline_mode<synchronous>, transform_indices = @transform_6, window_bounds = array<i64: 1, 512>}, {pipeline_mode = #tpu.pipeline_mode<synchronous>, transform_indices = @transform_7, window_bounds = array<i64: 512, 128>}, {pipeline_mode = #tpu.pipeline_mode<synchronous>, transform_indices = @transform_8, window_bounds = array<i64: 1, 128>}, {transform_indices = @transform_9, window_bounds = array<i64: 2, 128>}]} {
    %c0 = arith.constant 0 : index
    %c0_0 = arith.constant 0 : index
    %c0_1 = arith.constant 0 : index
    %0 = vector.load %arg1[%c0, %c0_0, %c0_1] : memref<2x576x32xbf16, #tpu.memory_space<vmem>>, vector<2x576x32xbf16>
    %1 = vector.shape_cast %0 : vector<2x576x32xbf16> to vector<1152x32xbf16>
    %c0_2 = arith.constant 0 : index
    %c0_3 = arith.constant 0 : index
    %2 = vector.load %arg2[%c0_2, %c0_3] : memref<32x20xbf16, #tpu.memory_space<vmem>>, vector<32x20xbf16>
    %cst = arith.constant dense<0.000000e+00> : vector<1152x20xf32>
    %3 = tpu.matmul %1, %2, %cst {dimension_numbers = #tpu.dot_dimension_numbers<[1], [0], [0], [1], [0, 0, 1, 1], [], []>} : vector<1152x32xbf16>, vector<32x20xbf16>, vector<1152x20xf32> -> vector<1152x20xf32>
    %4 = vector.shape_cast %3 : vector<1152x20xf32> to vector<2x4x144x20xf32>
    %5 = vector.extract_strided_slice %4 {offsets = [0, 0, 0, 0], sizes = [2, 1, 144, 20], strides = [1, 1, 1, 1]} : vector<2x4x144x20xf32> to vector<2x1x144x20xf32>
    %6 = vector.shape_cast %5 : vector<2x1x144x20xf32> to vector<2x144x20xf32>
    %7 = vector.extract_strided_slice %4 {offsets = [0, 1, 0, 0], sizes = [2, 1, 144, 20], strides = [1, 1, 1, 1]} : vector<2x4x144x20xf32> to vector<2x1x144x20xf32>
    %8 = vector.shape_cast %7 : vector<2x1x144x20xf32> to vector<2x144x20xf32>
    %9 = arith.maximumf %6, %8 : vector<2x144x20xf32>
    %10 = vector.extract_strided_slice %4 {offsets = [0, 2, 0, 0], sizes = [2, 1, 144, 20], strides = [1, 1, 1, 1]} : vector<2x4x144x20xf32> to vector<2x1x144x20xf32>
    %11 = vector.shape_cast %10 : vector<2x1x144x20xf32> to vector<2x144x20xf32>
    %12 = vector.extract_strided_slice %4 {offsets = [0, 3, 0, 0], sizes = [2, 1, 144, 20], strides = [1, 1, 1, 1]} : vector<2x4x144x20xf32> to vector<2x1x144x20xf32>
    %13 = vector.shape_cast %12 : vector<2x1x144x20xf32> to vector<2x144x20xf32>
    %14 = arith.maximumf %11, %13 : vector<2x144x20xf32>
    %15 = arith.maximumf %9, %14 : vector<2x144x20xf32>
    %c0_4 = arith.constant 0 : index
    %c0_5 = arith.constant 0 : index
    %16 = vector.load %arg3[%c0_4, %c0_5] : memref<1x20xf32, #tpu.memory_space<vmem>>, vector<1x20xf32>
    %17 = vector.shape_cast %16 : vector<1x20xf32> to vector<1x1x20xf32>
    %18 = vector.broadcast %17 : vector<1x1x20xf32> to vector<2x144x20xf32>
    %19 = arith.addf %15, %18 : vector<2x144x20xf32>
    %cst_6 = arith.constant 0.000000e+00 : f32
    %20 = vector.broadcast %cst_6 : f32 to vector<2x144x20xf32>
    %21 = arith.maximumf %19, %20 : vector<2x144x20xf32>
    %22 = arith.truncf %21 : vector<2x144x20xf32> to vector<2x144x20xbf16>
    %c0_7 = arith.constant 0 : index
    %c0_8 = arith.constant 0 : index
    %c0_9 = arith.constant 0 : index
    %23 = vector.load %arg11[%c0_7, %c0_8, %c0_9] : memref<2x152x20xbf16, #tpu.memory_space<vmem>>, vector<2x144x20xbf16>
    tpu.vector_store %arg11[%c0_7, %c0_8, %c0_9], %22 {strides = array<i32>} : memref<2x152x20xbf16, #tpu.memory_space<vmem>>, vector<2x144x20xbf16>,
    %cst_10 = arith.constant 0.000000e+00 : bf16
    %24 = vector.broadcast %cst_10 : bf16 to vector<2x8x20xbf16>
    %c0_11 = arith.constant 0 : index
    %c144 = arith.constant 144 : index
    %c0_12 = arith.constant 0 : index
    %25 = vector.load %arg11[%c0_11, %c144, %c0_12] : memref<2x152x20xbf16, #tpu.memory_space<vmem>>, vector<2x8x20xbf16>
    tpu.vector_store %arg11[%c0_11, %c144, %c0_12], %24 {strides = array<i32>} : memref<2x152x20xbf16, #tpu.memory_space<vmem>>, vector<2x8x20xbf16>,
    %c0_13 = arith.constant 0 : index
    %c0_14 = arith.constant 0 : index
    %c0_15 = arith.constant 0 : index
    %26 = vector.load %arg11[%c0_13, %c0_14, %c0_15] : memref<2x152x20xbf16, #tpu.memory_space<vmem>>, vector<2x96x20xbf16>
    %c0_16 = arith.constant 0 : index
    %c0_17 = arith.constant 0 : index
    %c0_18 = arith.constant 0 : index
    %27 = vector.load %arg12[%c0_16, %c0_17, %c0_18] : memref<2x96x512xbf16, #tpu.memory_space<vmem>>, vector<2x96x20xbf16>
    tpu.vector_store %arg12[%c0_16, %c0_17, %c0_18], %26 {strides = array<i32>} : memref<2x96x512xbf16, #tpu.memory_space<vmem>>, vector<2x96x20xbf16>,
    %c0_19 = arith.constant 0 : index
    %c1 = arith.constant 1 : index
    %c0_20 = arith.constant 0 : index
    %28 = vector.load %arg11[%c0_19, %c1, %c0_20] : memref<2x152x20xbf16, #tpu.memory_space<vmem>>, vector<2x96x20xbf16>
    %c0_21 = arith.constant 0 : index
    %c0_22 = arith.constant 0 : index
    %c20 = arith.constant 20 : index
    %29 = vector.load %arg12[%c0_21, %c0_22, %c20] : memref<2x96x512xbf16, #tpu.memory_space<vmem>>, vector<2x96x20xbf16>
    tpu.vector_store %arg12[%c0_21, %c0_22, %c20], %28 {strides = array<i32>} : memref<2x96x512xbf16, #tpu.memory_space<vmem>>, vector<2x96x20xbf16>,
    %c0_23 = arith.constant 0 : index
    %c2 = arith.constant 2 : index
    %c0_24 = arith.constant 0 : index
    %30 = vector.load %arg11[%c0_23, %c2, %c0_24] : memref<2x152x20xbf16, #tpu.memory_space<vmem>>, vector<2x96x20xbf16>
    %c0_25 = arith.constant 0 : index
    %c0_26 = arith.constant 0 : index
    %c40 = arith.constant 40 : index
    %31 = vector.load %arg12[%c0_25, %c0_26, %c40] : memref<2x96x512xbf16, #tpu.memory_space<vmem>>, vector<2x96x20xbf16>
    tpu.vector_store %arg12[%c0_25, %c0_26, %c40], %30 {strides = array<i32>} : memref<2x96x512xbf16, #tpu.memory_space<vmem>>, vector<2x96x20xbf16>,
    %c0_27 = arith.constant 0 : index
    %c3 = arith.constant 3 : index
    %c0_28 = arith.constant 0 : index
    %32 = vector.load %arg11[%c0_27, %c3, %c0_28] : memref<2x152x20xbf16, #tpu.memory_space<vmem>>, vector<2x96x20xbf16>
    %c0_29 = arith.constant 0 : index
    %c0_30 = arith.constant 0 : index
    %c60 = arith.constant 60 : index
    %33 = vector.load %arg12[%c0_29, %c0_30, %c60] : memref<2x96x512xbf16, #tpu.memory_space<vmem>>, vector<2x96x20xbf16>
    tpu.vector_store %arg12[%c0_29, %c0_30, %c60], %32 {strides = array<i32>} : memref<2x96x512xbf16, #tpu.memory_space<vmem>>, vector<2x96x20xbf16>,
    %c0_31 = arith.constant 0 : index
    %c4 = arith.constant 4 : index
    %c0_32 = arith.constant 0 : index
    %34 = vector.load %arg11[%c0_31, %c4, %c0_32] : memref<2x152x20xbf16, #tpu.memory_space<vmem>>, vector<2x96x20xbf16>
    %c0_33 = arith.constant 0 : index
    %c0_34 = arith.constant 0 : index
    %c80 = arith.constant 80 : index
    %35 = vector.load %arg12[%c0_33, %c0_34, %c80] : memref<2x96x512xbf16, #tpu.memory_space<vmem>>, vector<2x96x20xbf16>
    tpu.vector_store %arg12[%c0_33, %c0_34, %c80], %34 {strides = array<i32>} : memref<2x96x512xbf16, #tpu.memory_space<vmem>>, vector<2x96x20xbf16>,
    %c0_35 = arith.constant 0 : index
    %c12 = arith.constant 12 : index
    %c0_36 = arith.constant 0 : index
    %36 = vector.load %arg11[%c0_35, %c12, %c0_36] : memref<2x152x20xbf16, #tpu.memory_space<vmem>>, vector<2x96x20xbf16>
    %c0_37 = arith.constant 0 : index
    %c0_38 = arith.constant 0 : index
    %c100 = arith.constant 100 : index
    %37 = vector.load %arg12[%c0_37, %c0_38, %c100] : memref<2x96x512xbf16, #tpu.memory_space<vmem>>, vector<2x96x20xbf16>
    tpu.vector_store %arg12[%c0_37, %c0_38, %c100], %36 {strides = array<i32>} : memref<2x96x512xbf16, #tpu.memory_space<vmem>>, vector<2x96x20xbf16>,
    %c0_39 = arith.constant 0 : index
    %c13 = arith.constant 13 : index
    %c0_40 = arith.constant 0 : index
    %38 = vector.load %arg11[%c0_39, %c13, %c0_40] : memref<2x152x20xbf16, #tpu.memory_space<vmem>>, vector<2x96x20xbf16>
    %c0_41 = arith.constant 0 : index
    %c0_42 = arith.constant 0 : index
    %c120 = arith.constant 120 : index
    %39 = vector.load %arg12[%c0_41, %c0_42, %c120] : memref<2x96x512xbf16, #tpu.memory_space<vmem>>, vector<2x96x20xbf16>
    tpu.vector_store %arg12[%c0_41, %c0_42, %c120], %38 {strides = array<i32>} : memref<2x96x512xbf16, #tpu.memory_space<vmem>>, vector<2x96x20xbf16>,
    %c0_43 = arith.constant 0 : index
    %c14 = arith.constant 14 : index
    %c0_44 = arith.constant 0 : index
    %40 = vector.load %arg11[%c0_43, %c14, %c0_44] : memref<2x152x20xbf16, #tpu.memory_space<vmem>>, vector<2x96x20xbf16>
    %c0_45 = arith.constant 0 : index
    %c0_46 = arith.constant 0 : index
    %c140 = arith.constant 140 : index
    %41 = vector.load %arg12[%c0_45, %c0_46, %c140] : memref<2x96x512xbf16, #tpu.memory_space<vmem>>, vector<2x96x20xbf16>
    tpu.vector_store %arg12[%c0_45, %c0_46, %c140], %40 {strides = array<i32>} : memref<2x96x512xbf16, #tpu.memory_space<vmem>>, vector<2x96x20xbf16>,
    %c0_47 = arith.constant 0 : index
    %c15 = arith.constant 15 : index
    %c0_48 = arith.constant 0 : index
    %42 = vector.load %arg11[%c0_47, %c15, %c0_48] : memref<2x152x20xbf16, #tpu.memory_space<vmem>>, vector<2x96x20xbf16>
    %c0_49 = arith.constant 0 : index
    %c0_50 = arith.constant 0 : index
    %c160 = arith.constant 160 : index
    %43 = vector.load %arg12[%c0_49, %c0_50, %c160] : memref<2x96x512xbf16, #tpu.memory_space<vmem>>, vector<2x96x20xbf16>
    tpu.vector_store %arg12[%c0_49, %c0_50, %c160], %42 {strides = array<i32>} : memref<2x96x512xbf16, #tpu.memory_space<vmem>>, vector<2x96x20xbf16>,
    %c0_51 = arith.constant 0 : index
    %c16 = arith.constant 16 : index
    %c0_52 = arith.constant 0 : index
    %44 = vector.load %arg11[%c0_51, %c16, %c0_52] : memref<2x152x20xbf16, #tpu.memory_space<vmem>>, vector<2x96x20xbf16>
    %c0_53 = arith.constant 0 : index
    %c0_54 = arith.constant 0 : index
    %c180 = arith.constant 180 : index
    %45 = vector.load %arg12[%c0_53, %c0_54, %c180] : memref<2x96x512xbf16, #tpu.memory_space<vmem>>, vector<2x96x20xbf16>
    tpu.vector_store %arg12[%c0_53, %c0_54, %c180], %44 {strides = array<i32>} : memref<2x96x512xbf16, #tpu.memory_space<vmem>>, vector<2x96x20xbf16>,
    %c0_55 = arith.constant 0 : index
    %c24 = arith.constant 24 : index
    %c0_56 = arith.constant 0 : index
    %46 = vector.load %arg11[%c0_55, %c24, %c0_56] : memref<2x152x20xbf16, #tpu.memory_space<vmem>>, vector<2x96x20xbf16>
    %c0_57 = arith.constant 0 : index
    %c0_58 = arith.constant 0 : index
    %c200 = arith.constant 200 : index
    %47 = vector.load %arg12[%c0_57, %c0_58, %c200] : memref<2x96x512xbf16, #tpu.memory_space<vmem>>, vector<2x96x20xbf16>
    tpu.vector_store %arg12[%c0_57, %c0_58, %c200], %46 {strides = array<i32>} : memref<2x96x512xbf16, #tpu.memory_space<vmem>>, vector<2x96x20xbf16>,
    %c0_59 = arith.constant 0 : index
    %c25 = arith.constant 25 : index
    %c0_60 = arith.constant 0 : index
    %48 = vector.load %arg11[%c0_59, %c25, %c0_60] : memref<2x152x20xbf16, #tpu.memory_space<vmem>>, vector<2x96x20xbf16>
    %c0_61 = arith.constant 0 : index
    %c0_62 = arith.constant 0 : index
    %c220 = arith.constant 220 : index
    %49 = vector.load %arg12[%c0_61, %c0_62, %c220] : memref<2x96x512xbf16, #tpu.memory_space<vmem>>, vector<2x96x20xbf16>
    tpu.vector_store %arg12[%c0_61, %c0_62, %c220], %48 {strides = array<i32>} : memref<2x96x512xbf16, #tpu.memory_space<vmem>>, vector<2x96x20xbf16>,
    %c0_63 = arith.constant 0 : index
    %c26 = arith.constant 26 : index
    %c0_64 = arith.constant 0 : index
    %50 = vector.load %arg11[%c0_63, %c26, %c0_64] : memref<2x152x20xbf16, #tpu.memory_space<vmem>>, vector<2x96x20xbf16>
    %c0_65 = arith.constant 0 : index
    %c0_66 = arith.constant 0 : index
    %c240 = arith.constant 240 : index
    %51 = vector.load %arg12[%c0_65, %c0_66, %c240] : memref<2x96x512xbf16, #tpu.memory_space<vmem>>, vector<2x96x20xbf16>
    tpu.vector_store %arg12[%c0_65, %c0_66, %c240], %50 {strides = array<i32>} : memref<2x96x512xbf16, #tpu.memory_space<vmem>>, vector<2x96x20xbf16>,
    %c0_67 = arith.constant 0 : index
    %c27 = arith.constant 27 : index
    %c0_68 = arith.constant 0 : index
    %52 = vector.load %arg11[%c0_67, %c27, %c0_68] : memref<2x152x20xbf16, #tpu.memory_space<vmem>>, vector<2x96x20xbf16>
    %c0_69 = arith.constant 0 : index
    %c0_70 = arith.constant 0 : index
    %c260 = arith.constant 260 : index
    %53 = vector.load %arg12[%c0_69, %c0_70, %c260] : memref<2x96x512xbf16, #tpu.memory_space<vmem>>, vector<2x96x20xbf16>
    tpu.vector_store %arg12[%c0_69, %c0_70, %c260], %52 {strides = array<i32>} : memref<2x96x512xbf16, #tpu.memory_space<vmem>>, vector<2x96x20xbf16>,
    %c0_71 = arith.constant 0 : index
    %c28 = arith.constant 28 : index
    %c0_72 = arith.constant 0 : index
    %54 = vector.load %arg11[%c0_71, %c28, %c0_72] : memref<2x152x20xbf16, #tpu.memory_space<vmem>>, vector<2x96x20xbf16>
    %c0_73 = arith.constant 0 : index
    %c0_74 = arith.constant 0 : index
    %c280 = arith.constant 280 : index
    %55 = vector.load %arg12[%c0_73, %c0_74, %c280] : memref<2x96x512xbf16, #tpu.memory_space<vmem>>, vector<2x96x20xbf16>
    tpu.vector_store %arg12[%c0_73, %c0_74, %c280], %54 {strides = array<i32>} : memref<2x96x512xbf16, #tpu.memory_space<vmem>>, vector<2x96x20xbf16>,
    %c0_75 = arith.constant 0 : index
    %c36 = arith.constant 36 : index
    %c0_76 = arith.constant 0 : index
    %56 = vector.load %arg11[%c0_75, %c36, %c0_76] : memref<2x152x20xbf16, #tpu.memory_space<vmem>>, vector<2x96x20xbf16>
    %c0_77 = arith.constant 0 : index
    %c0_78 = arith.constant 0 : index
    %c300 = arith.constant 300 : index
    %57 = vector.load %arg12[%c0_77, %c0_78, %c300] : memref<2x96x512xbf16, #tpu.memory_space<vmem>>, vector<2x96x20xbf16>
    tpu.vector_store %arg12[%c0_77, %c0_78, %c300], %56 {strides = array<i32>} : memref<2x96x512xbf16, #tpu.memory_space<vmem>>, vector<2x96x20xbf16>,
    %c0_79 = arith.constant 0 : index
    %c37 = arith.constant 37 : index
    %c0_80 = arith.constant 0 : index
    %58 = vector.load %arg11[%c0_79, %c37, %c0_80] : memref<2x152x20xbf16, #tpu.memory_space<vmem>>, vector<2x96x20xbf16>
    %c0_81 = arith.constant 0 : index
    %c0_82 = arith.constant 0 : index
    %c320 = arith.constant 320 : index
    %59 = vector.load %arg12[%c0_81, %c0_82, %c320] : memref<2x96x512xbf16, #tpu.memory_space<vmem>>, vector<2x96x20xbf16>
    tpu.vector_store %arg12[%c0_81, %c0_82, %c320], %58 {strides = array<i32>} : memref<2x96x512xbf16, #tpu.memory_space<vmem>>, vector<2x96x20xbf16>,
    %c0_83 = arith.constant 0 : index
    %c38 = arith.constant 38 : index
    %c0_84 = arith.constant 0 : index
    %60 = vector.load %arg11[%c0_83, %c38, %c0_84] : memref<2x152x20xbf16, #tpu.memory_space<vmem>>, vector<2x96x20xbf16>
    %c0_85 = arith.constant 0 : index
    %c0_86 = arith.constant 0 : index
    %c340 = arith.constant 340 : index
    %61 = vector.load %arg12[%c0_85, %c0_86, %c340] : memref<2x96x512xbf16, #tpu.memory_space<vmem>>, vector<2x96x20xbf16>
    tpu.vector_store %arg12[%c0_85, %c0_86, %c340], %60 {strides = array<i32>} : memref<2x96x512xbf16, #tpu.memory_space<vmem>>, vector<2x96x20xbf16>,
    %c0_87 = arith.constant 0 : index
    %c39 = arith.constant 39 : index
    %c0_88 = arith.constant 0 : index
    %62 = vector.load %arg11[%c0_87, %c39, %c0_88] : memref<2x152x20xbf16, #tpu.memory_space<vmem>>, vector<2x96x20xbf16>
    %c0_89 = arith.constant 0 : index
    %c0_90 = arith.constant 0 : index
    %c360 = arith.constant 360 : index
    %63 = vector.load %arg12[%c0_89, %c0_90, %c360] : memref<2x96x512xbf16, #tpu.memory_space<vmem>>, vector<2x96x20xbf16>
    tpu.vector_store %arg12[%c0_89, %c0_90, %c360], %62 {strides = array<i32>} : memref<2x96x512xbf16, #tpu.memory_space<vmem>>, vector<2x96x20xbf16>,
    %c0_91 = arith.constant 0 : index
    %c40_92 = arith.constant 40 : index
    %c0_93 = arith.constant 0 : index
    %64 = vector.load %arg11[%c0_91, %c40_92, %c0_93] : memref<2x152x20xbf16, #tpu.memory_space<vmem>>, vector<2x96x20xbf16>
    %c0_94 = arith.constant 0 : index
    %c0_95 = arith.constant 0 : index
    %c380 = arith.constant 380 : index
    %65 = vector.load %arg12[%c0_94, %c0_95, %c380] : memref<2x96x512xbf16, #tpu.memory_space<vmem>>, vector<2x96x20xbf16>
    tpu.vector_store %arg12[%c0_94, %c0_95, %c380], %64 {strides = array<i32>} : memref<2x96x512xbf16, #tpu.memory_space<vmem>>, vector<2x96x20xbf16>,
    %c0_96 = arith.constant 0 : index
    %c48 = arith.constant 48 : index
    %c0_97 = arith.constant 0 : index
    %66 = vector.load %arg11[%c0_96, %c48, %c0_97] : memref<2x152x20xbf16, #tpu.memory_space<vmem>>, vector<2x96x20xbf16>
    %c0_98 = arith.constant 0 : index
    %c0_99 = arith.constant 0 : index
    %c400 = arith.constant 400 : index
    %67 = vector.load %arg12[%c0_98, %c0_99, %c400] : memref<2x96x512xbf16, #tpu.memory_space<vmem>>, vector<2x96x20xbf16>
    tpu.vector_store %arg12[%c0_98, %c0_99, %c400], %66 {strides = array<i32>} : memref<2x96x512xbf16, #tpu.memory_space<vmem>>, vector<2x96x20xbf16>,
    %c0_100 = arith.constant 0 : index
    %c49 = arith.constant 49 : index
    %c0_101 = arith.constant 0 : index
    %68 = vector.load %arg11[%c0_100, %c49, %c0_101] : memref<2x152x20xbf16, #tpu.memory_space<vmem>>, vector<2x96x20xbf16>
    %c0_102 = arith.constant 0 : index
    %c0_103 = arith.constant 0 : index
    %c420 = arith.constant 420 : index
    %69 = vector.load %arg12[%c0_102, %c0_103, %c420] : memref<2x96x512xbf16, #tpu.memory_space<vmem>>, vector<2x96x20xbf16>
    tpu.vector_store %arg12[%c0_102, %c0_103, %c420], %68 {strides = array<i32>} : memref<2x96x512xbf16, #tpu.memory_space<vmem>>, vector<2x96x20xbf16>,
    %c0_104 = arith.constant 0 : index
    %c50 = arith.constant 50 : index
    %c0_105 = arith.constant 0 : index
    %70 = vector.load %arg11[%c0_104, %c50, %c0_105] : memref<2x152x20xbf16, #tpu.memory_space<vmem>>, vector<2x96x20xbf16>
    %c0_106 = arith.constant 0 : index
    %c0_107 = arith.constant 0 : index
    %c440 = arith.constant 440 : index
    %71 = vector.load %arg12[%c0_106, %c0_107, %c440] : memref<2x96x512xbf16, #tpu.memory_space<vmem>>, vector<2x96x20xbf16>
    tpu.vector_store %arg12[%c0_106, %c0_107, %c440], %70 {strides = array<i32>} : memref<2x96x512xbf16, #tpu.memory_space<vmem>>, vector<2x96x20xbf16>,
    %c0_108 = arith.constant 0 : index
    %c51 = arith.constant 51 : index
    %c0_109 = arith.constant 0 : index
    %72 = vector.load %arg11[%c0_108, %c51, %c0_109] : memref<2x152x20xbf16, #tpu.memory_space<vmem>>, vector<2x96x20xbf16>
    %c0_110 = arith.constant 0 : index
    %c0_111 = arith.constant 0 : index
    %c460 = arith.constant 460 : index
    %73 = vector.load %arg12[%c0_110, %c0_111, %c460] : memref<2x96x512xbf16, #tpu.memory_space<vmem>>, vector<2x96x20xbf16>
    tpu.vector_store %arg12[%c0_110, %c0_111, %c460], %72 {strides = array<i32>} : memref<2x96x512xbf16, #tpu.memory_space<vmem>>, vector<2x96x20xbf16>,
    %c0_112 = arith.constant 0 : index
    %c52 = arith.constant 52 : index
    %c0_113 = arith.constant 0 : index
    %74 = vector.load %arg11[%c0_112, %c52, %c0_113] : memref<2x152x20xbf16, #tpu.memory_space<vmem>>, vector<2x96x20xbf16>
    %c0_114 = arith.constant 0 : index
    %c0_115 = arith.constant 0 : index
    %c480 = arith.constant 480 : index
    %75 = vector.load %arg12[%c0_114, %c0_115, %c480] : memref<2x96x512xbf16, #tpu.memory_space<vmem>>, vector<2x96x20xbf16>
    tpu.vector_store %arg12[%c0_114, %c0_115, %c480], %74 {strides = array<i32>} : memref<2x96x512xbf16, #tpu.memory_space<vmem>>, vector<2x96x20xbf16>,
    %cst_116 = arith.constant 0.000000e+00 : bf16
    %76 = vector.broadcast %cst_116 : bf16 to vector<2x96x12xbf16>
    %c0_117 = arith.constant 0 : index
    %c0_118 = arith.constant 0 : index
    %c500 = arith.constant 500 : index
    %77 = vector.load %arg12[%c0_117, %c0_118, %c500] : memref<2x96x512xbf16, #tpu.memory_space<vmem>>, vector<2x96x12xbf16>
    tpu.vector_store %arg12[%c0_117, %c0_118, %c500], %76 {strides = array<i32>} : memref<2x96x512xbf16, #tpu.memory_space<vmem>>, vector<2x96x12xbf16>,
    %c0_119 = arith.constant 0 : index
    %c0_120 = arith.constant 0 : index
    %c0_121 = arith.constant 0 : index
    %78 = vector.load %arg12[%c0_119, %c0_120, %c0_121] : memref<2x96x512xbf16, #tpu.memory_space<vmem>>, vector<2x96x512xbf16>
    %79 = vector.shape_cast %78 : vector<2x96x512xbf16> to vector<192x512xbf16>
    %c0_122 = arith.constant 0 : index
    %c0_123 = arith.constant 0 : index
    %80 = vector.load %arg4[%c0_122, %c0_123] : memref<512x50xbf16, #tpu.memory_space<vmem>>, vector<512x50xbf16>
    %cst_124 = arith.constant dense<0.000000e+00> : vector<192x50xf32>
    %81 = tpu.matmul %79, %80, %cst_124 {dimension_numbers = #tpu.dot_dimension_numbers<[1], [0], [0], [1], [0, 0, 1, 1], [], []>} : vector<192x512xbf16>, vector<512x50xbf16>, vector<192x50xf32> -> vector<192x50xf32>
    %82 = vector.shape_cast %81 : vector<192x50xf32> to vector<2x96x50xf32>
    %c0_125 = arith.constant 0 : index
    %c0_126 = arith.constant 0 : index
    %c0_127 = arith.constant 0 : index
    %83 = vector.load %arg13[%c0_125, %c0_126, %c0_127] : memref<2x96x50xf32, #tpu.memory_space<vmem>>, vector<2x96x50xf32>
    tpu.vector_store %arg13[%c0_125, %c0_126, %c0_127], %82 {strides = array<i32>} : memref<2x96x50xf32, #tpu.memory_space<vmem>>, vector<2x96x50xf32>,
    %cst_128 = arith.constant 0.000000e+00 : bf16
    %84 = vector.broadcast %cst_128 : bf16 to vector<2x1024xbf16>
    %c0_129 = arith.constant 0 : index
    %c0_130 = arith.constant 0 : index
    %85 = vector.load %arg14[%c0_129, %c0_130] : memref<2x1024xbf16, #tpu.memory_space<vmem>>, vector<2x1024xbf16>
    tpu.vector_store %arg14[%c0_129, %c0_130], %84 {strides = array<i32>} : memref<2x1024xbf16, #tpu.memory_space<vmem>>, vector<2x1024xbf16>,
    %c0_131 = arith.constant 0 : index
    %c0_132 = arith.constant 0 : index
    %c0_133 = arith.constant 0 : index
    %86 = vector.load %arg13[%c0_131, %c0_132, %c0_133] : memref<2x96x50xf32, #tpu.memory_space<vmem>>, vector<2x8x50xf32>
    %c0_134 = arith.constant 0 : index
    %c12_135 = arith.constant 12 : index
    %c0_136 = arith.constant 0 : index
    %87 = vector.load %arg13[%c0_134, %c12_135, %c0_136] : memref<2x96x50xf32, #tpu.memory_space<vmem>>, vector<2x8x50xf32>
    %88 = arith.maximumf %86, %87 : vector<2x8x50xf32>
    %89 = vector.extract_strided_slice %88 {offsets = [0, 0, 0], sizes = [2, 7, 50], strides = [1, 1, 1]} : vector<2x8x50xf32> to vector<2x7x50xf32>
    %90 = vector.extract_strided_slice %88 {offsets = [0, 1, 0], sizes = [2, 7, 50], strides = [1, 1, 1]} : vector<2x8x50xf32> to vector<2x7x50xf32>
    %91 = arith.maximumf %89, %90 : vector<2x7x50xf32>
    %c0_137 = arith.constant 0 : index
    %c0_138 = arith.constant 0 : index
    %92 = vector.load %arg5[%c0_137, %c0_138] : memref<1x50xf32, #tpu.memory_space<vmem>>, vector<1x50xf32>
    %93 = vector.shape_cast %92 : vector<1x50xf32> to vector<1x1x50xf32>
    %94 = vector.broadcast %93 : vector<1x1x50xf32> to vector<2x7x50xf32>
    %95 = arith.addf %91, %94 : vector<2x7x50xf32>
    %cst_139 = arith.constant 0.000000e+00 : f32
    %96 = vector.broadcast %cst_139 : f32 to vector<2x7x50xf32>
    %97 = arith.maximumf %95, %96 : vector<2x7x50xf32>
    %98 = arith.truncf %97 : vector<2x7x50xf32> to vector<2x7x50xbf16>
    %99 = vector.extract_strided_slice %98 {offsets = [0, 0, 0], sizes = [2, 1, 50], strides = [1, 1, 1]} : vector<2x7x50xbf16> to vector<2x1x50xbf16>
    %100 = vector.shape_cast %99 : vector<2x1x50xbf16> to vector<2x50xbf16>
    %c0_140 = arith.constant 0 : index
    %c0_141 = arith.constant 0 : index
    %101 = vector.load %arg14[%c0_140, %c0_141] : memref<2x1024xbf16, #tpu.memory_space<vmem>>, vector<2x50xbf16>
    tpu.vector_store %arg14[%c0_140, %c0_141], %100 {strides = array<i32>} : memref<2x1024xbf16, #tpu.memory_space<vmem>>, vector<2x50xbf16>,
    %102 = vector.extract_strided_slice %98 {offsets = [0, 2, 0], sizes = [2, 1, 50], strides = [1, 1, 1]} : vector<2x7x50xbf16> to vector<2x1x50xbf16>
    %103 = vector.shape_cast %102 : vector<2x1x50xbf16> to vector<2x50xbf16>
    %c0_142 = arith.constant 0 : index
    %c64 = arith.constant 64 : index
    %104 = vector.load %arg14[%c0_142, %c64] : memref<2x1024xbf16, #tpu.memory_space<vmem>>, vector<2x50xbf16>
    tpu.vector_store %arg14[%c0_142, %c64], %103 {strides = array<i32>} : memref<2x1024xbf16, #tpu.memory_space<vmem>>, vector<2x50xbf16>,
    %105 = vector.extract_strided_slice %98 {offsets = [0, 4, 0], sizes = [2, 1, 50], strides = [1, 1, 1]} : vector<2x7x50xbf16> to vector<2x1x50xbf16>
    %106 = vector.shape_cast %105 : vector<2x1x50xbf16> to vector<2x50xbf16>
    %c0_143 = arith.constant 0 : index
    %c128 = arith.constant 128 : index
    %107 = vector.load %arg14[%c0_143, %c128] : memref<2x1024xbf16, #tpu.memory_space<vmem>>, vector<2x50xbf16>
    tpu.vector_store %arg14[%c0_143, %c128], %106 {strides = array<i32>} : memref<2x1024xbf16, #tpu.memory_space<vmem>>, vector<2x50xbf16>,
    %108 = vector.extract_strided_slice %98 {offsets = [0, 6, 0], sizes = [2, 1, 50], strides = [1, 1, 1]} : vector<2x7x50xbf16> to vector<2x1x50xbf16>
    %109 = vector.shape_cast %108 : vector<2x1x50xbf16> to vector<2x50xbf16>
    %c0_144 = arith.constant 0 : index
    %c192 = arith.constant 192 : index
    %110 = vector.load %arg14[%c0_144, %c192] : memref<2x1024xbf16, #tpu.memory_space<vmem>>, vector<2x50xbf16>
    tpu.vector_store %arg14[%c0_144, %c192], %109 {strides = array<i32>} : memref<2x1024xbf16, #tpu.memory_space<vmem>>, vector<2x50xbf16>,
    %c0_145 = arith.constant 0 : index
    %c24_146 = arith.constant 24 : index
    %c0_147 = arith.constant 0 : index
    %111 = vector.load %arg13[%c0_145, %c24_146, %c0_147] : memref<2x96x50xf32, #tpu.memory_space<vmem>>, vector<2x8x50xf32>
    %c0_148 = arith.constant 0 : index
    %c36_149 = arith.constant 36 : index
    %c0_150 = arith.constant 0 : index
    %112 = vector.load %arg13[%c0_148, %c36_149, %c0_150] : memref<2x96x50xf32, #tpu.memory_space<vmem>>, vector<2x8x50xf32>
    %113 = arith.maximumf %111, %112 : vector<2x8x50xf32>
    %114 = vector.extract_strided_slice %113 {offsets = [0, 0, 0], sizes = [2, 7, 50], strides = [1, 1, 1]} : vector<2x8x50xf32> to vector<2x7x50xf32>
    %115 = vector.extract_strided_slice %113 {offsets = [0, 1, 0], sizes = [2, 7, 50], strides = [1, 1, 1]} : vector<2x8x50xf32> to vector<2x7x50xf32>
    %116 = arith.maximumf %114, %115 : vector<2x7x50xf32>
    %c0_151 = arith.constant 0 : index
    %c0_152 = arith.constant 0 : index
    %117 = vector.load %arg5[%c0_151, %c0_152] : memref<1x50xf32, #tpu.memory_space<vmem>>, vector<1x50xf32>
    %118 = vector.shape_cast %117 : vector<1x50xf32> to vector<1x1x50xf32>
    %119 = vector.broadcast %118 : vector<1x1x50xf32> to vector<2x7x50xf32>
    %120 = arith.addf %116, %119 : vector<2x7x50xf32>
    %cst_153 = arith.constant 0.000000e+00 : f32
    %121 = vector.broadcast %cst_153 : f32 to vector<2x7x50xf32>
    %122 = arith.maximumf %120, %121 : vector<2x7x50xf32>
    %123 = arith.truncf %122 : vector<2x7x50xf32> to vector<2x7x50xbf16>
    %124 = vector.extract_strided_slice %123 {offsets = [0, 0, 0], sizes = [2, 1, 50], strides = [1, 1, 1]} : vector<2x7x50xbf16> to vector<2x1x50xbf16>
    %125 = vector.shape_cast %124 : vector<2x1x50xbf16> to vector<2x50xbf16>
    %c0_154 = arith.constant 0 : index
    %c256 = arith.constant 256 : index
    %126 = vector.load %arg14[%c0_154, %c256] : memref<2x1024xbf16, #tpu.memory_space<vmem>>, vector<2x50xbf16>
    tpu.vector_store %arg14[%c0_154, %c256], %125 {strides = array<i32>} : memref<2x1024xbf16, #tpu.memory_space<vmem>>, vector<2x50xbf16>,
    %127 = vector.extract_strided_slice %123 {offsets = [0, 2, 0], sizes = [2, 1, 50], strides = [1, 1, 1]} : vector<2x7x50xbf16> to vector<2x1x50xbf16>
    %128 = vector.shape_cast %127 : vector<2x1x50xbf16> to vector<2x50xbf16>
    %c0_155 = arith.constant 0 : index
    %c320_156 = arith.constant 320 : index
    %129 = vector.load %arg14[%c0_155, %c320_156] : memref<2x1024xbf16, #tpu.memory_space<vmem>>, vector<2x50xbf16>
    tpu.vector_store %arg14[%c0_155, %c320_156], %128 {strides = array<i32>} : memref<2x1024xbf16, #tpu.memory_space<vmem>>, vector<2x50xbf16>,
    %130 = vector.extract_strided_slice %123 {offsets = [0, 4, 0], sizes = [2, 1, 50], strides = [1, 1, 1]} : vector<2x7x50xbf16> to vector<2x1x50xbf16>
    %131 = vector.shape_cast %130 : vector<2x1x50xbf16> to vector<2x50xbf16>
    %c0_157 = arith.constant 0 : index
    %c384 = arith.constant 384 : index
    %132 = vector.load %arg14[%c0_157, %c384] : memref<2x1024xbf16, #tpu.memory_space<vmem>>, vector<2x50xbf16>
    tpu.vector_store %arg14[%c0_157, %c384], %131 {strides = array<i32>} : memref<2x1024xbf16, #tpu.memory_space<vmem>>, vector<2x50xbf16>,
    %133 = vector.extract_strided_slice %123 {offsets = [0, 6, 0], sizes = [2, 1, 50], strides = [1, 1, 1]} : vector<2x7x50xbf16> to vector<2x1x50xbf16>
    %134 = vector.shape_cast %133 : vector<2x1x50xbf16> to vector<2x50xbf16>
    %c0_158 = arith.constant 0 : index
    %c448 = arith.constant 448 : index
    %135 = vector.load %arg14[%c0_158, %c448] : memref<2x1024xbf16, #tpu.memory_space<vmem>>, vector<2x50xbf16>
    tpu.vector_store %arg14[%c0_158, %c448], %134 {strides = array<i32>} : memref<2x1024xbf16, #tpu.memory_space<vmem>>, vector<2x50xbf16>,
    %c0_159 = arith.constant 0 : index
    %c48_160 = arith.constant 48 : index
    %c0_161 = arith.constant 0 : index
    %136 = vector.load %arg13[%c0_159, %c48_160, %c0_161] : memref<2x96x50xf32, #tpu.memory_space<vmem>>, vector<2x8x50xf32>
    %c0_162 = arith.constant 0 : index
    %c60_163 = arith.constant 60 : index
    %c0_164 = arith.constant 0 : index
    %137 = vector.load %arg13[%c0_162, %c60_163, %c0_164] : memref<2x96x50xf32, #tpu.memory_space<vmem>>, vector<2x8x50xf32>
    %138 = arith.maximumf %136, %137 : vector<2x8x50xf32>
    %139 = vector.extract_strided_slice %138 {offsets = [0, 0, 0], sizes = [2, 7, 50], strides = [1, 1, 1]} : vector<2x8x50xf32> to vector<2x7x50xf32>
    %140 = vector.extract_strided_slice %138 {offsets = [0, 1, 0], sizes = [2, 7, 50], strides = [1, 1, 1]} : vector<2x8x50xf32> to vector<2x7x50xf32>
    %141 = arith.maximumf %139, %140 : vector<2x7x50xf32>
    %c0_165 = arith.constant 0 : index
    %c0_166 = arith.constant 0 : index
    %142 = vector.load %arg5[%c0_165, %c0_166] : memref<1x50xf32, #tpu.memory_space<vmem>>, vector<1x50xf32>
    %143 = vector.shape_cast %142 : vector<1x50xf32> to vector<1x1x50xf32>
    %144 = vector.broadcast %143 : vector<1x1x50xf32> to vector<2x7x50xf32>
    %145 = arith.addf %141, %144 : vector<2x7x50xf32>
    %cst_167 = arith.constant 0.000000e+00 : f32
    %146 = vector.broadcast %cst_167 : f32 to vector<2x7x50xf32>
    %147 = arith.maximumf %145, %146 : vector<2x7x50xf32>
    %148 = arith.truncf %147 : vector<2x7x50xf32> to vector<2x7x50xbf16>
    %149 = vector.extract_strided_slice %148 {offsets = [0, 0, 0], sizes = [2, 1, 50], strides = [1, 1, 1]} : vector<2x7x50xbf16> to vector<2x1x50xbf16>
    %150 = vector.shape_cast %149 : vector<2x1x50xbf16> to vector<2x50xbf16>
    %c0_168 = arith.constant 0 : index
    %c512 = arith.constant 512 : index
    %151 = vector.load %arg14[%c0_168, %c512] : memref<2x1024xbf16, #tpu.memory_space<vmem>>, vector<2x50xbf16>
    tpu.vector_store %arg14[%c0_168, %c512], %150 {strides = array<i32>} : memref<2x1024xbf16, #tpu.memory_space<vmem>>, vector<2x50xbf16>,
    %152 = vector.extract_strided_slice %148 {offsets = [0, 2, 0], sizes = [2, 1, 50], strides = [1, 1, 1]} : vector<2x7x50xbf16> to vector<2x1x50xbf16>
    %153 = vector.shape_cast %152 : vector<2x1x50xbf16> to vector<2x50xbf16>
    %c0_169 = arith.constant 0 : index
    %c576 = arith.constant 576 : index
    %154 = vector.load %arg14[%c0_169, %c576] : memref<2x1024xbf16, #tpu.memory_space<vmem>>, vector<2x50xbf16>
    tpu.vector_store %arg14[%c0_169, %c576], %153 {strides = array<i32>} : memref<2x1024xbf16, #tpu.memory_space<vmem>>, vector<2x50xbf16>,
    %155 = vector.extract_strided_slice %148 {offsets = [0, 4, 0], sizes = [2, 1, 50], strides = [1, 1, 1]} : vector<2x7x50xbf16> to vector<2x1x50xbf16>
    %156 = vector.shape_cast %155 : vector<2x1x50xbf16> to vector<2x50xbf16>
    %c0_170 = arith.constant 0 : index
    %c640 = arith.constant 640 : index
    %157 = vector.load %arg14[%c0_170, %c640] : memref<2x1024xbf16, #tpu.memory_space<vmem>>, vector<2x50xbf16>
    tpu.vector_store %arg14[%c0_170, %c640], %156 {strides = array<i32>} : memref<2x1024xbf16, #tpu.memory_space<vmem>>, vector<2x50xbf16>,
    %158 = vector.extract_strided_slice %148 {offsets = [0, 6, 0], sizes = [2, 1, 50], strides = [1, 1, 1]} : vector<2x7x50xbf16> to vector<2x1x50xbf16>
    %159 = vector.shape_cast %158 : vector<2x1x50xbf16> to vector<2x50xbf16>
    %c0_171 = arith.constant 0 : index
    %c704 = arith.constant 704 : index
    %160 = vector.load %arg14[%c0_171, %c704] : memref<2x1024xbf16, #tpu.memory_space<vmem>>, vector<2x50xbf16>
    tpu.vector_store %arg14[%c0_171, %c704], %159 {strides = array<i32>} : memref<2x1024xbf16, #tpu.memory_space<vmem>>, vector<2x50xbf16>,
    %c0_172 = arith.constant 0 : index
    %c72 = arith.constant 72 : index
    %c0_173 = arith.constant 0 : index
    %161 = vector.load %arg13[%c0_172, %c72, %c0_173] : memref<2x96x50xf32, #tpu.memory_space<vmem>>, vector<2x8x50xf32>
    %c0_174 = arith.constant 0 : index
    %c84 = arith.constant 84 : index
    %c0_175 = arith.constant 0 : index
    %162 = vector.load %arg13[%c0_174, %c84, %c0_175] : memref<2x96x50xf32, #tpu.memory_space<vmem>>, vector<2x8x50xf32>
    %163 = arith.maximumf %161, %162 : vector<2x8x50xf32>
    %164 = vector.extract_strided_slice %163 {offsets = [0, 0, 0], sizes = [2, 7, 50], strides = [1, 1, 1]} : vector<2x8x50xf32> to vector<2x7x50xf32>
    %165 = vector.extract_strided_slice %163 {offsets = [0, 1, 0], sizes = [2, 7, 50], strides = [1, 1, 1]} : vector<2x8x50xf32> to vector<2x7x50xf32>
    %166 = arith.maximumf %164, %165 : vector<2x7x50xf32>
    %c0_176 = arith.constant 0 : index
    %c0_177 = arith.constant 0 : index
    %167 = vector.load %arg5[%c0_176, %c0_177] : memref<1x50xf32, #tpu.memory_space<vmem>>, vector<1x50xf32>
    %168 = vector.shape_cast %167 : vector<1x50xf32> to vector<1x1x50xf32>
    %169 = vector.broadcast %168 : vector<1x1x50xf32> to vector<2x7x50xf32>
    %170 = arith.addf %166, %169 : vector<2x7x50xf32>
    %cst_178 = arith.constant 0.000000e+00 : f32
    %171 = vector.broadcast %cst_178 : f32 to vector<2x7x50xf32>
    %172 = arith.maximumf %170, %171 : vector<2x7x50xf32>
    %173 = arith.truncf %172 : vector<2x7x50xf32> to vector<2x7x50xbf16>
    %174 = vector.extract_strided_slice %173 {offsets = [0, 0, 0], sizes = [2, 1, 50], strides = [1, 1, 1]} : vector<2x7x50xbf16> to vector<2x1x50xbf16>
    %175 = vector.shape_cast %174 : vector<2x1x50xbf16> to vector<2x50xbf16>
    %c0_179 = arith.constant 0 : index
    %c768 = arith.constant 768 : index
    %176 = vector.load %arg14[%c0_179, %c768] : memref<2x1024xbf16, #tpu.memory_space<vmem>>, vector<2x50xbf16>
    tpu.vector_store %arg14[%c0_179, %c768], %175 {strides = array<i32>} : memref<2x1024xbf16, #tpu.memory_space<vmem>>, vector<2x50xbf16>,
    %177 = vector.extract_strided_slice %173 {offsets = [0, 2, 0], sizes = [2, 1, 50], strides = [1, 1, 1]} : vector<2x7x50xbf16> to vector<2x1x50xbf16>
    %178 = vector.shape_cast %177 : vector<2x1x50xbf16> to vector<2x50xbf16>
    %c0_180 = arith.constant 0 : index
    %c832 = arith.constant 832 : index
    %179 = vector.load %arg14[%c0_180, %c832] : memref<2x1024xbf16, #tpu.memory_space<vmem>>, vector<2x50xbf16>
    tpu.vector_store %arg14[%c0_180, %c832], %178 {strides = array<i32>} : memref<2x1024xbf16, #tpu.memory_space<vmem>>, vector<2x50xbf16>,
    %180 = vector.extract_strided_slice %173 {offsets = [0, 4, 0], sizes = [2, 1, 50], strides = [1, 1, 1]} : vector<2x7x50xbf16> to vector<2x1x50xbf16>
    %181 = vector.shape_cast %180 : vector<2x1x50xbf16> to vector<2x50xbf16>
    %c0_181 = arith.constant 0 : index
    %c896 = arith.constant 896 : index
    %182 = vector.load %arg14[%c0_181, %c896] : memref<2x1024xbf16, #tpu.memory_space<vmem>>, vector<2x50xbf16>
    tpu.vector_store %arg14[%c0_181, %c896], %181 {strides = array<i32>} : memref<2x1024xbf16, #tpu.memory_space<vmem>>, vector<2x50xbf16>,
    %183 = vector.extract_strided_slice %173 {offsets = [0, 6, 0], sizes = [2, 1, 50], strides = [1, 1, 1]} : vector<2x7x50xbf16> to vector<2x1x50xbf16>
    %184 = vector.shape_cast %183 : vector<2x1x50xbf16> to vector<2x50xbf16>
    %c0_182 = arith.constant 0 : index
    %c960 = arith.constant 960 : index
    %185 = vector.load %arg14[%c0_182, %c960] : memref<2x1024xbf16, #tpu.memory_space<vmem>>, vector<2x50xbf16>
    tpu.vector_store %arg14[%c0_182, %c960], %184 {strides = array<i32>} : memref<2x1024xbf16, #tpu.memory_space<vmem>>, vector<2x50xbf16>,
    %c0_183 = arith.constant 0 : index
    %c0_184 = arith.constant 0 : index
    %186 = vector.load %arg14[%c0_183, %c0_184] : memref<2x1024xbf16, #tpu.memory_space<vmem>>, vector<2x1024xbf16>
    %c0_185 = arith.constant 0 : index
    %c0_186 = arith.constant 0 : index
    %187 = vector.load %arg6[%c0_185, %c0_186] : memref<1024x512xbf16, #tpu.memory_space<vmem>>, vector<1024x512xbf16>
    %cst_187 = arith.constant dense<0.000000e+00> : vector<2x512xf32>
    %188 = tpu.matmul %186, %187, %cst_187 {dimension_numbers = #tpu.dot_dimension_numbers<[1], [0], [0], [1], [0, 0, 1, 1], [], []>} : vector<2x1024xbf16>, vector<1024x512xbf16>, vector<2x512xf32> -> vector<2x512xf32>
    %c0_188 = arith.constant 0 : index
    %c0_189 = arith.constant 0 : index
    %189 = vector.load %arg7[%c0_188, %c0_189] : memref<1x512xf32, #tpu.memory_space<vmem>>, vector<1x512xf32>
    %190 = vector.broadcast %189 : vector<1x512xf32> to vector<2x512xf32>
    %191 = arith.addf %188, %190 : vector<2x512xf32>
    %cst_190 = arith.constant 0.000000e+00 : f32
    %192 = vector.broadcast %cst_190 : f32 to vector<2x512xf32>
    %193 = arith.maximumf %191, %192 : vector<2x512xf32>
    %194 = arith.truncf %193 : vector<2x512xf32> to vector<2x512xbf16>
    %c0_191 = arith.constant 0 : index
    %c0_192 = arith.constant 0 : index
    %195 = vector.load %arg8[%c0_191, %c0_192] : memref<512x128xbf16, #tpu.memory_space<vmem>>, vector<512x128xbf16>
    %cst_193 = arith.constant dense<0.000000e+00> : vector<2x128xf32>
    %196 = tpu.matmul %194, %195, %cst_193 {dimension_numbers = #tpu.dot_dimension_numbers<[1], [0], [0], [1], [0, 0, 1, 1], [], []>} : vector<2x512xbf16>, vector<512x128xbf16>, vector<2x128xf32> -> vector<2x128xf32>
    %c0_194 = arith.constant 0 : index
    %c0_195 = arith.constant 0 : index
    %197 = vector.load %arg9[%c0_194, %c0_195] : memref<1x128xf32, #tpu.memory_space<vmem>>, vector<1x128xf32>
    %198 = vector.broadcast %197 : vector<1x128xf32> to vector<2x128xf32>
    %199 = arith.addf %196, %198 : vector<2x128xf32>
    %c0_196 = arith.constant 0 : index
    %c0_197 = arith.constant 0 : index
    %200 = vector.load %arg10[%c0_196, %c0_197] : memref<2x128xf32, #tpu.memory_space<vmem>>, vector<2x128xf32>
    tpu.vector_store %arg10[%c0_196, %c0_197], %199 {strides = array<i32>} : memref<2x128xf32, #tpu.memory_space<vmem>>, vector<2x128xf32>,
    return
  }
  func.func @transform_0(%arg0: i32) -> (i32, i32, i32) {
    %c0_i32 = arith.constant 0 : i32
    %c0_i32_0 = arith.constant 0 : i32
    %c0_i32_1 = arith.constant 0 : i32
    return %arg0, %c0_i32, %c0_i32_0 : i32, i32, i32
  }
  func.func @transform_1(%arg0: i32) -> (i32, i32) {
    %c0_i32 = arith.constant 0 : i32
    %c0_i32_0 = arith.constant 0 : i32
    %c0_i32_1 = arith.constant 0 : i32
    return %c0_i32, %c0_i32_0 : i32, i32
  }
  func.func @transform_2(%arg0: i32) -> (i32, i32) {
    %c0_i32 = arith.constant 0 : i32
    %c0_i32_0 = arith.constant 0 : i32
    %c0_i32_1 = arith.constant 0 : i32
    return %c0_i32, %c0_i32_0 : i32, i32
  }
  func.func @transform_3(%arg0: i32) -> (i32, i32) {
    %c0_i32 = arith.constant 0 : i32
    %c0_i32_0 = arith.constant 0 : i32
    %c0_i32_1 = arith.constant 0 : i32
    return %c0_i32, %c0_i32_0 : i32, i32
  }
  func.func @transform_4(%arg0: i32) -> (i32, i32) {
    %c0_i32 = arith.constant 0 : i32
    %c0_i32_0 = arith.constant 0 : i32
    %c0_i32_1 = arith.constant 0 : i32
    return %c0_i32, %c0_i32_0 : i32, i32
  }
  func.func @transform_5(%arg0: i32) -> (i32, i32) {
    %c0_i32 = arith.constant 0 : i32
    %c0_i32_0 = arith.constant 0 : i32
    %c0_i32_1 = arith.constant 0 : i32
    return %c0_i32, %c0_i32_0 : i32, i32
  }
  func.func @transform_6(%arg0: i32) -> (i32, i32) {
    %c0_i32 = arith.constant 0 : i32
    %c0_i32_0 = arith.constant 0 : i32
    %c0_i32_1 = arith.constant 0 : i32
    return %c0_i32, %c0_i32_0 : i32, i32
  }
  func.func @transform_7(%arg0: i32) -> (i32, i32) {
    %c0_i32 = arith.constant 0 : i32
    %c0_i32_0 = arith.constant 0 : i32
    %c0_i32_1 = arith.constant 0 : i32
    return %c0_i32, %c0_i32_0 : i32, i32
  }
  func.func @transform_8(%arg0: i32) -> (i32, i32) {
    %c0_i32 = arith.constant 0 : i32
    %c0_i32_0 = arith.constant 0 : i32
    %c0_i32_1 = arith.constant 0 : i32
    return %c0_i32, %c0_i32_0 : i32, i32
  }
  func.func @transform_9(%arg0: i32) -> (i32, i32) {
    %c0_i32 = arith.constant 0 : i32
    %c0_i32_0 = arith.constant 0 : i32
    return %arg0, %c0_i32 : i32, i32
  }
}

</mosaic_0001>

<llo_original>
// kernel: cnn_forward.1
$region0: #{cnn_forward.1}
  #allocation0 [shape = 'u32[]', space=smem, size = 0x4, offset = 0x4, fixed_abs, tag = 'smem constant byte address 0x4 - core index']
  #allocation1 [shape = 'u32[144,128]{1,0:T(1,128)}', space=vmem, size = 0x12000, scoped, tag = 'internal scratch']
  #allocation2 [shape = 'bf16[2,152,20]{2,1,0:T(8,128)(2,1)}', space=vmem, size = 0x13000, scoped, tag = 'scratch operand']
  #allocation3 [shape = 'bf16[2,96,512]{2,1,0:T(8,128)(2,1)}', space=vmem, size = 0x30000, scoped, tag = 'scratch operand']
  #allocation4 [shape = 'f32[2,96,50]{2,1,0:T(8,128)}', space=vmem, size = 0x18000, scoped, tag = 'scratch operand']
  #allocation5 [shape = 'bf16[2,1024]{1,0:T(2,128)(2,1)}', space=vmem, size = 0x1000, scoped, tag = 'scratch operand']
  %s0 = inlined_call_operand.vmem [shape: bf16[2,576,32], index: 0, kind: input, shape index: {}]
  %s1 = inlined_call_operand.vmem [shape: bf16[32,20], index: 1, kind: input, shape index: {}]
  %s2 = inlined_call_operand.vmem [shape: f32[1,20], index: 2, kind: input, shape index: {}]
  %s3 = inlined_call_operand.vmem [shape: bf16[512,50], index: 3, kind: input, shape index: {}]
  %s4 = inlined_call_operand.vmem [shape: f32[1,50], index: 4, kind: input, shape index: {}]
  %s5 = inlined_call_operand.vmem [shape: bf16[1024,512], index: 5, kind: input, shape index: {}]
  %s6 = inlined_call_operand.vmem [shape: f32[1,512], index: 6, kind: input, shape index: {}]
  %s7 = inlined_call_operand.vmem [shape: bf16[512,128], index: 7, kind: input, shape index: {}]
  %s8 = inlined_call_operand.vmem [shape: f32[1,128], index: 8, kind: input, shape index: {}]
  %s9 = inlined_call_operand.hbm [shape: f32[2,128], index: 9, kind: output, shape index: {}]
  %s10 = sld [smem:[#allocation0]]
  $region46: #{cnn_forward.1} parent=0
    _
  %s12 = ssub.s32 1, %s10
  %s13 = scalar_select 0, %s12, %s10
  $region1: #{cnn_forward.1} parent=0
    #allocation6 [shape = 'u8[1024]{0}', space=vmem, size = 0x400, scoped, tag = 'output window, operand 0, single buffered']
    #allocation7 [shape = 's32[1]{0}', space=sflag, size = 0x4, scoped, tag = 'scoped memory for cnn_forward.1']
    %14 = vsyncpa [#allocation7], 0
    // Predicated region
    $region2: #{cnn_forward.1} parent=1 // pred_check
      _
    $region3: #{cnn_forward.1} parent=1 // pred_check_branch
      %16 = sbr.rel (0) target = $region5
    $region4: #{cnn_forward.1} parent=1 // pred_region
      _
    $region5: #{cnn_forward.1} parent=1 // pred_fallthru
      _
    // Predicated region
    $region6: #{cnn_forward.1} parent=1 // pred_check
      _
    $region7: #{cnn_forward.1} parent=1 // pred_check_branch
      %18 = sbr.rel (0) target = $region9
    $region8: #{cnn_forward.1} parent=1 // pred_region
      _
    $region9: #{cnn_forward.1} parent=1 // pred_fallthru
      _
    // Predicated region
    $region10: #{cnn_forward.1} parent=1 // pred_check
      _
    $region11: #{cnn_forward.1} parent=1 // pred_check_branch
      %20 = sbr.rel (0) target = $region13
    $region12: #{cnn_forward.1} parent=1 // pred_region
      _
    $region13: #{cnn_forward.1} parent=1 // pred_fallthru
      _
    // Predicated region
    $region14: #{cnn_forward.1} parent=1 // pred_check
      _
    $region15: #{cnn_forward.1} parent=1 // pred_check_branch
      %22 = sbr.rel (0) target = $region17
    $region16: #{cnn_forward.1} parent=1 // pred_region
      _
    $region17: #{cnn_forward.1} parent=1 // pred_fallthru
      _
    // Predicated region
    $region18: #{cnn_forward.1} parent=1 // pred_check
      _
    $region19: #{cnn_forward.1} parent=1 // pred_check_branch
      %24 = sbr.rel (0) target = $region21
    $region20: #{cnn_forward.1} parent=1 // pred_region
      _
    $region21: #{cnn_forward.1} parent=1 // pred_fallthru
      _
    // Predicated region
    $region22: #{cnn_forward.1} parent=1 // pred_check
      _
    $region23: #{cnn_forward.1} parent=1 // pred_check_branch
      %26 = sbr.rel (0) target = $region25
    $region24: #{cnn_forward.1} parent=1 // pred_region
      _
    $region25: #{cnn_forward.1} parent=1 // pred_fallthru
      _
    // Predicated region
    $region26: #{cnn_forward.1} parent=1 // pred_check
      _
    $region27: #{cnn_forward.1} parent=1 // pred_check_branch
      %28 = sbr.rel (0) target = $region29
    $region28: #{cnn_forward.1} parent=1 // pred_region
      _
    $region29: #{cnn_forward.1} parent=1 // pred_fallthru
      _
    // Predicated region
    $region30: #{cnn_forward.1} parent=1 // pred_check
      _
    $region31: #{cnn_forward.1} parent=1 // pred_check_branch
      %30 = sbr.rel (0) target = $region33
    $region32: #{cnn_forward.1} parent=1 // pred_region
      _
    $region33: #{cnn_forward.1} parent=1 // pred_fallthru
      _
    // Predicated region
    $region34: #{cnn_forward.1} parent=1 // pred_check
      _
    $region35: #{cnn_forward.1} parent=1 // pred_check_branch
      %32 = sbr.rel (0) target = $region37
    $region36: #{cnn_forward.1} parent=1 // pred_region
      _
    $region37: #{cnn_forward.1} parent=1 // pred_fallthru
      _
    %v34 = vld [vmem:[%s0] sm:$0xf]
    %v35 = vld [vmem:[%s0 + $0x4] sm:$0xf]
    %v36 = vld [vmem:[%s0 + $0x8] sm:$0xf]
    %v37 = vld [vmem:[%s0 + $0xc] sm:$0xf]
    %v38 = vld [vmem:[%s0 + $0x10] sm:$0xf]
    %v39 = vld [vmem:[%s0 + $0x14] sm:$0xf]
    %v40 = vld [vmem:[%s0 + $0x18] sm:$0xf]
    %v41 = vld [vmem:[%s0 + $0x1c] sm:$0xf]
    %v42 = vld [vmem:[%s0 + $0x20] sm:$0xf]
    %v43 = vld [vmem:[%s0 + $0x24] sm:$0xf]
    %v44 = vld [vmem:[%s0 + $0x28] sm:$0xf]
    %v45 = vld [vmem:[%s0 + $0x2c] sm:$0xf]
    %v46 = vld [vmem:[%s0 + $0x30] sm:$0xf]
    %v47 = vld [vmem:[%s0 + $0x34] sm:$0xf]
    %v48 = vld [vmem:[%s0 + $0x38] sm:$0xf]
    %v49 = vld [vmem:[%s0 + $0x3c] sm:$0xf]
    %v50 = vld [vmem:[%s0 + $0x40] sm:$0xf]
    %v51 = vld [vmem:[%s0 + $0x44] sm:$0xf]
    %v52 = vld [vmem:[%s0 + $0x48] sm:$0xf]
    %v53 = vld [vmem:[%s0 + $0x4c] sm:$0xf]
    %v54 = vld [vmem:[%s0 + $0x50] sm:$0xf]
    %v55 = vld [vmem:[%s0 + $0x54] sm:$0xf]
    %v56 = vld [vmem:[%s0 + $0x58] sm:$0xf]
    %v57 = vld [vmem:[%s0 + $0x5c] sm:$0xf]
    %v58 = vld [vmem:[%s0 + $0x60] sm:$0xf]
    %v59 = vld [vmem:[%s0 + $0x64] sm:$0xf]
    %v60 = vld [vmem:[%s0 + $0x68] sm:$0xf]
    %v61 = vld [vmem:[%s0 + $0x6c] sm:$0xf]
    %v62 = vld [vmem:[%s0 + $0x70] sm:$0xf]
    %v63 = vld [vmem:[%s0 + $0x74] sm:$0xf]
    %v64 = vld [vmem:[%s0 + $0x78] sm:$0xf]
    %v65 = vld [vmem:[%s0 + $0x7c] sm:$0xf]
    %v66 = vld [vmem:[%s0 + $0x80] sm:$0xf]
    %v67 = vld [vmem:[%s0 + $0x84] sm:$0xf]
    %v68 = vld [vmem:[%s0 + $0x88] sm:$0xf]
    %v69 = vld [vmem:[%s0 + $0x8c] sm:$0xf]
    %v70 = vld [vmem:[%s0 + $0x90] sm:$0xf]
    %v71 = vld [vmem:[%s0 + $0x94] sm:$0xf]
    %v72 = vld [vmem:[%s0 + $0x98] sm:$0xf]
    %v73 = vld [vmem:[%s0 + $0x9c] sm:$0xf]
    %v74 = vld [vmem:[%s0 + $0xa0] sm:$0xf]
    %v75 = vld [vmem:[%s0 + $0xa4] sm:$0xf]
    %v76 = vld [vmem:[%s0 + $0xa8] sm:$0xf]
    %v77 = vld [vmem:[%s0 + $0xac] sm:$0xf]
    %v78 = vld [vmem:[%s0 + $0xb0] sm:$0xf]
    %v79 = vld [vmem:[%s0 + $0xb4] sm:$0xf]
    %v80 = vld [vmem:[%s0 + $0xb8] sm:$0xf]
    %v81 = vld [vmem:[%s0 + $0xbc] sm:$0xf]
    %v82 = vld [vmem:[%s0 + $0xc0] sm:$0xf]
    %v83 = vld [vmem:[%s0 + $0xc4] sm:$0xf]
    %v84 = vld [vmem:[%s0 + $0xc8] sm:$0xf]
    %v85 = vld [vmem:[%s0 + $0xcc] sm:$0xf]
    %v86 = vld [vmem:[%s0 + $0xd0] sm:$0xf]
    %v87 = vld [vmem:[%s0 + $0xd4] sm:$0xf]
    %v88 = vld [vmem:[%s0 + $0xd8] sm:$0xf]
    %v89 = vld [vmem:[%s0 + $0xdc] sm:$0xf]
    %v90 = vld [vmem:[%s0 + $0xe0] sm:$0xf]
    %v91 = vld [vmem:[%s0 + $0xe4] sm:$0xf]
    %v92 = vld [vmem:[%s0 + $0xe8] sm:$0xf]
    %v93 = vld [vmem:[%s0 + $0xec] sm:$0xf]
    %v94 = vld [vmem:[%s0 + $0xf0] sm:$0xf]
    %v95 = vld [vmem:[%s0 + $0xf4] sm:$0xf]
    %v96 = vld [vmem:[%s0 + $0xf8] sm:$0xf]
    %v97 = vld [vmem:[%s0 + $0xfc] sm:$0xf]
    %v98 = vld [vmem:[%s0 + $0x100] sm:$0xf]
    %v99 = vld [vmem:[%s0 + $0x104] sm:$0xf]
    %v100 = vld [vmem:[%s0 + $0x108] sm:$0xf]
    %v101 = vld [vmem:[%s0 + $0x10c] sm:$0xf]
    %v102 = vld [vmem:[%s0 + $0x110] sm:$0xf]
    %v103 = vld [vmem:[%s0 + $0x114] sm:$0xf]
    %v104 = vld [vmem:[%s0 + $0x118] sm:$0xf]
    %v105 = vld [vmem:[%s0 + $0x11c] sm:$0xf]
    %v106 = vld [vmem:[%s0 + $0x120] sm:$0xf]
    %v107 = vld [vmem:[%s0 + $0x124] sm:$0xf]
    %v108 = vld [vmem:[%s0 + $0x128] sm:$0xf]
    %v109 = vld [vmem:[%s0 + $0x12c] sm:$0xf]
    %v110 = vld [vmem:[%s0 + $0x130] sm:$0xf]
    %v111 = vld [vmem:[%s0 + $0x134] sm:$0xf]
    %v112 = vld [vmem:[%s0 + $0x138] sm:$0xf]
    %v113 = vld [vmem:[%s0 + $0x13c] sm:$0xf]
    %v114 = vld [vmem:[%s0 + $0x140] sm:$0xf]
    %v115 = vld [vmem:[%s0 + $0x144] sm:$0xf]
    %v116 = vld [vmem:[%s0 + $0x148] sm:$0xf]
    %v117 = vld [vmem:[%s0 + $0x14c] sm:$0xf]
    %v118 = vld [vmem:[%s0 + $0x150] sm:$0xf]
    %v119 = vld [vmem:[%s0 + $0x154] sm:$0xf]
    %v120 = vld [vmem:[%s0 + $0x158] sm:$0xf]
    %v121 = vld [vmem:[%s0 + $0x15c] sm:$0xf]
    %v122 = vld [vmem:[%s0 + $0x160] sm:$0xf]
    %v123 = vld [vmem:[%s0 + $0x164] sm:$0xf]
    %v124 = vld [vmem:[%s0 + $0x168] sm:$0xf]
    %v125 = vld [vmem:[%s0 + $0x16c] sm:$0xf]
    %v126 = vld [vmem:[%s0 + $0x170] sm:$0xf]
    %v127 = vld [vmem:[%s0 + $0x174] sm:$0xf]
    %v128 = vld [vmem:[%s0 + $0x178] sm:$0xf]
    %v129 = vld [vmem:[%s0 + $0x17c] sm:$0xf]
    %v130 = vld [vmem:[%s0 + $0x180] sm:$0xf]
    %v131 = vld [vmem:[%s0 + $0x184] sm:$0xf]
    %v132 = vld [vmem:[%s0 + $0x188] sm:$0xf]
    %v133 = vld [vmem:[%s0 + $0x18c] sm:$0xf]
    %v134 = vld [vmem:[%s0 + $0x190] sm:$0xf]
    %v135 = vld [vmem:[%s0 + $0x194] sm:$0xf]
    %v136 = vld [vmem:[%s0 + $0x198] sm:$0xf]
    %v137 = vld [vmem:[%s0 + $0x19c] sm:$0xf]
    %v138 = vld [vmem:[%s0 + $0x1a0] sm:$0xf]
    %v139 = vld [vmem:[%s0 + $0x1a4] sm:$0xf]
    %v140 = vld [vmem:[%s0 + $0x1a8] sm:$0xf]
    %v141 = vld [vmem:[%s0 + $0x1ac] sm:$0xf]
    %v142 = vld [vmem:[%s0 + $0x1b0] sm:$0xf]
    %v143 = vld [vmem:[%s0 + $0x1b4] sm:$0xf]
    %v144 = vld [vmem:[%s0 + $0x1b8] sm:$0xf]
    %v145 = vld [vmem:[%s0 + $0x1bc] sm:$0xf]
    %v146 = vld [vmem:[%s0 + $0x1c0] sm:$0xf]
    %v147 = vld [vmem:[%s0 + $0x1c4] sm:$0xf]
    %v148 = vld [vmem:[%s0 + $0x1c8] sm:$0xf]
    %v149 = vld [vmem:[%s0 + $0x1cc] sm:$0xf]
    %v150 = vld [vmem:[%s0 + $0x1d0] sm:$0xf]
    %v151 = vld [vmem:[%s0 + $0x1d4] sm:$0xf]
    %v152 = vld [vmem:[%s0 + $0x1d8] sm:$0xf]
    %v153 = vld [vmem:[%s0 + $0x1dc] sm:$0xf]
    %v154 = vld [vmem:[%s0 + $0x1e0] sm:$0xf]
    %v155 = vld [vmem:[%s0 + $0x1e4] sm:$0xf]
    %v156 = vld [vmem:[%s0 + $0x1e8] sm:$0xf]
    %v157 = vld [vmem:[%s0 + $0x1ec] sm:$0xf]
    %v158 = vld [vmem:[%s0 + $0x1f0] sm:$0xf]
    %v159 = vld [vmem:[%s0 + $0x1f4] sm:$0xf]
    %v160 = vld [vmem:[%s0 + $0x1f8] sm:$0xf]
    %v161 = vld [vmem:[%s0 + $0x1fc] sm:$0xf]
    %v162 = vld [vmem:[%s0 + $0x200] sm:$0xf]
    %v163 = vld [vmem:[%s0 + $0x204] sm:$0xf]
    %v164 = vld [vmem:[%s0 + $0x208] sm:$0xf]
    %v165 = vld [vmem:[%s0 + $0x20c] sm:$0xf]
    %v166 = vld [vmem:[%s0 + $0x210] sm:$0xf]
    %v167 = vld [vmem:[%s0 + $0x214] sm:$0xf]
    %v168 = vld [vmem:[%s0 + $0x218] sm:$0xf]
    %v169 = vld [vmem:[%s0 + $0x21c] sm:$0xf]
    %v170 = vld [vmem:[%s0 + $0x220] sm:$0xf]
    %v171 = vld [vmem:[%s0 + $0x224] sm:$0xf]
    %v172 = vld [vmem:[%s0 + $0x228] sm:$0xf]
    %v173 = vld [vmem:[%s0 + $0x22c] sm:$0xf]
    %v174 = vld [vmem:[%s0 + $0x230] sm:$0xf]
    %v175 = vld [vmem:[%s0 + $0x234] sm:$0xf]
    %v176 = vld [vmem:[%s0 + $0x238] sm:$0xf]
    %v177 = vld [vmem:[%s0 + $0x23c] sm:$0xf]
    %v178 = vld [vmem:[%s1] sm:$0xf]
    %v179 = vld [vmem:[%s1 + $0x4] sm:$0xf]
    %v180 = vld [vmem:[%s1 + $0x8] sm:$0xf]
    %v181 = vld [vmem:[%s1 + $0xc] sm:$0xf]
    %v326 = vunpack.c.l.b16 %v34
    %v327 = vunpack.c.l.b16 %v35
    %v328 = vunpack.c.l.b16 %v36
    %v329 = vunpack.c.l.b16 %v37
    %v330 = vunpack.c.l.b16 %v38
    %v331 = vunpack.c.l.b16 %v39
    %v332 = vunpack.c.l.b16 %v40
    %v333 = vunpack.c.l.b16 %v41
    %v334 = vunpack.c.l.b16 %v42
    %v335 = vunpack.c.l.b16 %v43
    %v336 = vunpack.c.l.b16 %v44
    %v337 = vunpack.c.l.b16 %v45
    %v338 = vunpack.c.l.b16 %v46
    %v339 = vunpack.c.l.b16 %v47
    %v340 = vunpack.c.l.b16 %v48
    %v341 = vunpack.c.l.b16 %v49
    %v342 = vunpack.c.l.b16 %v50
    %v343 = vunpack.c.l.b16 %v51
    %v344 = vunpack.c.l.b16 %v52
    %v345 = vunpack.c.l.b16 %v53
    %v346 = vunpack.c.l.b16 %v54
    %v347 = vunpack.c.l.b16 %v55
    %v348 = vunpack.c.l.b16 %v56
    %v349 = vunpack.c.l.b16 %v57
    %v350 = vunpack.c.l.b16 %v58
    %v351 = vunpack.c.l.b16 %v59
    %v352 = vunpack.c.l.b16 %v60
    %v353 = vunpack.c.l.b16 %v61
    %v354 = vunpack.c.l.b16 %v62
    %v355 = vunpack.c.l.b16 %v63
    %v356 = vunpack.c.l.b16 %v64
    %v357 = vunpack.c.l.b16 %v65
    %v358 = vunpack.c.l.b16 %v66
    %v359 = vunpack.c.l.b16 %v67
    %v360 = vunpack.c.l.b16 %v68
    %v361 = vunpack.c.l.b16 %v69
    %v362 = vunpack.c.l.b16 %v70
    %v363 = vunpack.c.l.b16 %v71
    %v364 = vunpack.c.l.b16 %v72
    %v365 = vunpack.c.l.b16 %v73
    %v366 = vunpack.c.l.b16 %v74
    %v367 = vunpack.c.l.b16 %v75
    %v368 = vunpack.c.l.b16 %v76
    %v369 = vunpack.c.l.b16 %v77
    %v370 = vunpack.c.l.b16 %v78
    %v371 = vunpack.c.l.b16 %v79
    %v372 = vunpack.c.l.b16 %v80
    %v373 = vunpack.c.l.b16 %v81
    %v374 = vunpack.c.l.b16 %v82
    %v375 = vunpack.c.l.b16 %v83
    %v376 = vunpack.c.l.b16 %v84
    %v377 = vunpack.c.l.b16 %v85
    %v378 = vunpack.c.l.b16 %v86
    %v379 = vunpack.c.l.b16 %v87
    %v380 = vunpack.c.l.b16 %v88
    %v381 = vunpack.c.l.b16 %v89
    %v382 = vunpack.c.l.b16 %v90
    %v383 = vunpack.c.l.b16 %v91
    %v384 = vunpack.c.l.b16 %v92
    %v385 = vunpack.c.l.b16 %v93
    %v386 = vunpack.c.l.b16 %v94
    %v387 = vunpack.c.l.b16 %v95
    %v388 = vunpack.c.l.b16 %v96
    %v389 = vunpack.c.l.b16 %v97
    %v390 = vunpack.c.l.b16 %v98
    %v391 = vunpack.c.l.b16 %v99
    %v392 = vunpack.c.l.b16 %v100
    %v393 = vunpack.c.l.b16 %v101
    %v394 = vunpack.c.l.b16 %v102
    %v395 = vunpack.c.l.b16 %v103
    %v396 = vunpack.c.l.b16 %v104
    %v397 = vunpack.c.l.b16 %v105
    %v398 = vunpack.c.l.b16 %v106
    %v399 = vunpack.c.l.b16 %v107
    %v400 = vunpack.c.l.b16 %v108
    %v401 = vunpack.c.l.b16 %v109
    %v402 = vunpack.c.l.b16 %v110
    %v403 = vunpack.c.l.b16 %v111
    %v404 = vunpack.c.l.b16 %v112
    %v405 = vunpack.c.l.b16 %v113
    %v406 = vunpack.c.l.b16 %v114
    %v407 = vunpack.c.l.b16 %v115
    %v408 = vunpack.c.l.b16 %v116
    %v409 = vunpack.c.l.b16 %v117
    %v410 = vunpack.c.l.b16 %v118
    %v411 = vunpack.c.l.b16 %v119
    %v412 = vunpack.c.l.b16 %v120
    %v413 = vunpack.c.l.b16 %v121
    %v414 = vunpack.c.l.b16 %v122
    %v415 = vunpack.c.l.b16 %v123
    %v416 = vunpack.c.l.b16 %v124
    %v417 = vunpack.c.l.b16 %v125
    %v418 = vunpack.c.l.b16 %v126
    %v419 = vunpack.c.l.b16 %v127
    %v420 = vunpack.c.l.b16 %v128
    %v421 = vunpack.c.l.b16 %v129
    %v422 = vunpack.c.l.b16 %v130
    %v423 = vunpack.c.l.b16 %v131
    %v424 = vunpack.c.l.b16 %v132
    %v425 = vunpack.c.l.b16 %v133
    %v426 = vunpack.c.l.b16 %v134
    %v427 = vunpack.c.l.b16 %v135
    %v428 = vunpack.c.l.b16 %v136
    %v429 = vunpack.c.l.b16 %v137
    %v430 = vunpack.c.l.b16 %v138
    %v431 = vunpack.c.l.b16 %v139
    %v432 = vunpack.c.l.b16 %v140
    %v433 = vunpack.c.l.b16 %v141
    %v434 = vunpack.c.l.b16 %v142
    %v435 = vunpack.c.l.b16 %v143
    %v436 = vunpack.c.l.b16 %v144
    %v437 = vunpack.c.l.b16 %v145
    %v438 = vunpack.c.l.b16 %v146
    %v439 = vunpack.c.l.b16 %v147
    %v440 = vunpack.c.l.b16 %v148
    %v441 = vunpack.c.l.b16 %v149
    %v442 = vunpack.c.l.b16 %v150
    %v443 = vunpack.c.l.b16 %v151
    %v444 = vunpack.c.l.b16 %v152
    %v445 = vunpack.c.l.b16 %v153
    %v446 = vunpack.c.l.b16 %v154
    %v447 = vunpack.c.l.b16 %v155
    %v448 = vunpack.c.l.b16 %v156
    %v449 = vunpack.c.l.b16 %v157
    %v450 = vunpack.c.l.b16 %v158
    %v451 = vunpack.c.l.b16 %v159
    %v452 = vunpack.c.l.b16 %v160
    %v453 = vunpack.c.l.b16 %v161
    %v454 = vunpack.c.l.b16 %v162
    %v455 = vunpack.c.l.b16 %v163
    %v456 = vunpack.c.l.b16 %v164
    %v457 = vunpack.c.l.b16 %v165
    %v458 = vunpack.c.l.b16 %v166
    %v459 = vunpack.c.l.b16 %v167
    %v460 = vunpack.c.l.b16 %v168
    %v461 = vunpack.c.l.b16 %v169
    %v462 = vunpack.c.l.b16 %v170
    %v463 = vunpack.c.l.b16 %v171
    %v464 = vunpack.c.l.b16 %v172
    %v465 = vunpack.c.l.b16 %v173
    %v466 = vunpack.c.l.b16 %v174
    %v467 = vunpack.c.l.b16 %v175
    %v468 = vunpack.c.l.b16 %v176
    %v469 = vunpack.c.l.b16 %v177
    %v470 = vpack.c.b16 %v327, %v326
    %v471 = vpack.c.b16 %v329, %v328
    %v472 = vpack.c.b16 %v331, %v330
    %v473 = vpack.c.b16 %v333, %v332
    %v474 = vpack.c.b16 %v335, %v334
    %v475 = vpack.c.b16 %v337, %v336
    %v476 = vpack.c.b16 %v339, %v338
    %v477 = vpack.c.b16 %v341, %v340
    %v478 = vpack.c.b16 %v343, %v342
    %v479 = vpack.c.b16 %v345, %v344
    %v480 = vpack.c.b16 %v347, %v346
    %v481 = vpack.c.b16 %v349, %v348
    %v482 = vpack.c.b16 %v351, %v350
    %v483 = vpack.c.b16 %v353, %v352
    %v484 = vpack.c.b16 %v355, %v354
    %v485 = vpack.c.b16 %v357, %v356
    %v486 = vpack.c.b16 %v359, %v358
    %v487 = vpack.c.b16 %v361, %v360
    %v488 = vpack.c.b16 %v363, %v362
    %v489 = vpack.c.b16 %v365, %v364
    %v490 = vpack.c.b16 %v367, %v366
    %v491 = vpack.c.b16 %v369, %v368
    %v492 = vpack.c.b16 %v371, %v370
    %v493 = vpack.c.b16 %v373, %v372
    %v494 = vpack.c.b16 %v375, %v374
    %v495 = vpack.c.b16 %v377, %v376
    %v496 = vpack.c.b16 %v379, %v378
    %v497 = vpack.c.b16 %v381, %v380
    %v498 = vpack.c.b16 %v383, %v382
    %v499 = vpack.c.b16 %v385, %v384
    %v500 = vpack.c.b16 %v387, %v386
    %v501 = vpack.c.b16 %v389, %v388
    %v502 = vpack.c.b16 %v391, %v390
    %v503 = vpack.c.b16 %v393, %v392
    %v504 = vpack.c.b16 %v395, %v394
    %v505 = vpack.c.b16 %v397, %v396
    %v506 = vpack.c.b16 %v399, %v398
    %v507 = vpack.c.b16 %v401, %v400
    %v508 = vpack.c.b16 %v403, %v402
    %v509 = vpack.c.b16 %v405, %v404
    %v510 = vpack.c.b16 %v407, %v406
    %v511 = vpack.c.b16 %v409, %v408
    %v512 = vpack.c.b16 %v411, %v410
    %v513 = vpack.c.b16 %v413, %v412
    %v514 = vpack.c.b16 %v415, %v414
    %v515 = vpack.c.b16 %v417, %v416
    %v516 = vpack.c.b16 %v419, %v418
    %v517 = vpack.c.b16 %v421, %v420
    %v518 = vpack.c.b16 %v423, %v422
    %v519 = vpack.c.b16 %v425, %v424
    %v520 = vpack.c.b16 %v427, %v426
    %v521 = vpack.c.b16 %v429, %v428
    %v522 = vpack.c.b16 %v431, %v430
    %v523 = vpack.c.b16 %v433, %v432
    %v524 = vpack.c.b16 %v435, %v434
    %v525 = vpack.c.b16 %v437, %v436
    %v526 = vpack.c.b16 %v439, %v438
    %v527 = vpack.c.b16 %v441, %v440
    %v528 = vpack.c.b16 %v443, %v442
    %v529 = vpack.c.b16 %v445, %v444
    %v530 = vpack.c.b16 %v447, %v446
    %v531 = vpack.c.b16 %v449, %v448
    %v532 = vpack.c.b16 %v451, %v450
    %v533 = vpack.c.b16 %v453, %v452
    %v534 = vpack.c.b16 %v455, %v454
    %v535 = vpack.c.b16 %v457, %v456
    %v536 = vpack.c.b16 %v459, %v458
    %v537 = vpack.c.b16 %v461, %v460
    %v538 = vpack.c.b16 %v463, %v462
    %v539 = vpack.c.b16 %v465, %v464
    %v540 = vpack.c.b16 %v467, %v466
    %v541 = vpack.c.b16 %v469, %v468
    %v546 = vunpack.c.l.b16 %v178
    %v547 = vunpack.c.l.b16 %v179
    %v548 = vunpack.c.l.b16 %v180
    %v549 = vunpack.c.l.b16 %v181
    %v550 = vpack.c.b16 %v547, %v546
    %v551 = vpack.c.b16 %v549, %v548
    %vm554 = vcmask 261120
    %v556 = vsel %vm554, %v470, 0
    %v559 = vsel %vm554, %v471, 0
    %v562 = vsel %vm554, %v472, 0
    %v565 = vsel %vm554, %v473, 0
    %v568 = vsel %vm554, %v474, 0
    %v571 = vsel %vm554, %v475, 0
    %v574 = vsel %vm554, %v476, 0
    %v577 = vsel %vm554, %v477, 0
    %v580 = vsel %vm554, %v478, 0
    %v583 = vsel %vm554, %v479, 0
    %v586 = vsel %vm554, %v480, 0
    %v589 = vsel %vm554, %v481, 0
    %v592 = vsel %vm554, %v482, 0
    %v595 = vsel %vm554, %v483, 0
    %v598 = vsel %vm554, %v484, 0
    %v601 = vsel %vm554, %v485, 0
    %v604 = vsel %vm554, %v486, 0
    %v607 = vsel %vm554, %v487, 0
    %v610 = vsel %vm554, %v488, 0
    %v613 = vsel %vm554, %v489, 0
    %v616 = vsel %vm554, %v490, 0
    %v619 = vsel %vm554, %v491, 0
    %v622 = vsel %vm554, %v492, 0
    %v625 = vsel %vm554, %v493, 0
    %v628 = vsel %vm554, %v494, 0
    %v631 = vsel %vm554, %v495, 0
    %v634 = vsel %vm554, %v496, 0
    %v637 = vsel %vm554, %v497, 0
    %v640 = vsel %vm554, %v498, 0
    %v643 = vsel %vm554, %v499, 0
    %v646 = vsel %vm554, %v500, 0
    %v649 = vsel %vm554, %v501, 0
    %v652 = vsel %vm554, %v502, 0
    %v655 = vsel %vm554, %v503, 0
    %v658 = vsel %vm554, %v504, 0
    %v661 = vsel %vm554, %v505, 0
    %v664 = vsel %vm554, %v506, 0
    %v667 = vsel %vm554, %v507, 0
    %v670 = vsel %vm554, %v508, 0
    %v673 = vsel %vm554, %v509, 0
    %v676 = vsel %vm554, %v510, 0
    %v679 = vsel %vm554, %v511, 0
    %v682 = vsel %vm554, %v512, 0
    %v685 = vsel %vm554, %v513, 0
    %v688 = vsel %vm554, %v514, 0
    %v691 = vsel %vm554, %v515, 0
    %v694 = vsel %vm554, %v516, 0
    %v697 = vsel %vm554, %v517, 0
    %v700 = vsel %vm554, %v518, 0
    %v703 = vsel %vm554, %v519, 0
    %v706 = vsel %vm554, %v520, 0
    %v709 = vsel %vm554, %v521, 0
    %v712 = vsel %vm554, %v522, 0
    %v715 = vsel %vm554, %v523, 0
    %v718 = vsel %vm554, %v524, 0
    %v721 = vsel %vm554, %v525, 0
    %v724 = vsel %vm554, %v526, 0
    %v727 = vsel %vm554, %v527, 0
    %v730 = vsel %vm554, %v528, 0
    %v733 = vsel %vm554, %v529, 0
    %v736 = vsel %vm554, %v530, 0
    %v739 = vsel %vm554, %v531, 0
    %v742 = vsel %vm554, %v532, 0
    %v745 = vsel %vm554, %v533, 0
    %v748 = vsel %vm554, %v534, 0
    %v751 = vsel %vm554, %v535, 0
    %v754 = vsel %vm554, %v536, 0
    %v757 = vsel %vm554, %v537, 0
    %v760 = vsel %vm554, %v538, 0
    %v763 = vsel %vm554, %v539, 0
    %v766 = vsel %vm554, %v540, 0
    %v769 = vsel %vm554, %v541, 0
    %771 = vmatprep.subr.bf16.mxu0 0
    %772 = vmatpush1.bf16.msra.mxu0 0
    %773 = vmatprep.subr.bf16.mxu0 0
    %774 = vmatpush1.bf16.msra.mxu0 0
    %775 = vmatprep.subr.bf16.mxu0 0
    %776 = vmatpush1.bf16.msra.mxu0 0
    %777 = vmatprep.subr.bf16.mxu0 0
    %778 = vmatpush1.bf16.msra.mxu0 0
    %779 = vmatprep.subr.bf16.mxu0 0
    %780 = vmatpush1.bf16.msra.mxu0 0
    %781 = vmatprep.subr.bf16.mxu0 0
    %782 = vmatpush1.bf16.msra.mxu0 0
    %783 = vmatprep.subr.bf16.mxu0 0
    %784 = vmatpush1.bf16.msra.mxu0 %v551
    %785 = vmatprep.subr.bf16.mxu0 0
    %786 = vmatpush1.bf16.msra.mxu0 %v550
    %787 = vmatprep.subr.bf16.mxu0 0
    %788 = vmatpush2.bf16.msra.mxu0 0
    %789 = vmatprep.subr.bf16.mxu0 0
    %790 = vmatpush2.bf16.msra.mxu0 0
    %791 = vmatprep.subr.bf16.mxu0 0
    %792 = vmatpush2.bf16.msra.mxu0 0
    %793 = vmatprep.subr.bf16.mxu0 0
    %794 = vmatpush2.bf16.msra.mxu0 0
    %795 = vmatprep.subr.bf16.mxu0 0
    %796 = vmatpush2.bf16.msra.mxu0 0
    %797 = vmatprep.subr.bf16.mxu0 0
    %798 = vmatpush2.bf16.msra.mxu0 0
    %799 = vmatprep.subr.bf16.mxu0 0
    %800 = vmatpush2.bf16.msra.mxu0 0
    %801 = vmatprep.subr.bf16.mxu0 0
    %802 = vmatpush2.bf16.msra.mxu0 0
    %803 = vmatprep.mubr.bf16.mxu0 0
    %804 = vmatmul.mubr.bf16.gmra.mxu0 %v556
    %v805 = vpop.f32.mrf.mxu0
    %v806 = vadd.f32 0.0, %v805
    %v807 = vpop.f32.mrf.mxu0
    %v808 = vpop.f32.mrf.mxu0
    %v809 = vadd.f32 0.0, %v808
    %v810 = vpop.f32.mrf.mxu0
    %811 = vmatprep.mubr.bf16.mxu0 0
    %812 = vmatmul.mubr.bf16.gmra.mxu0 %v559
    %v813 = vpop.f32.mrf.mxu0
    %v814 = vadd.f32 0.0, %v813
    %v815 = vpop.f32.mrf.mxu0
    %v816 = vpop.f32.mrf.mxu0
    %v817 = vadd.f32 0.0, %v816
    %v818 = vpop.f32.mrf.mxu0
    %819 = vmatprep.mubr.bf16.mxu0 0
    %820 = vmatmul.mubr.bf16.gmra.mxu0 %v562
    %v821 = vpop.f32.mrf.mxu0
    %v822 = vadd.f32 0.0, %v821
    %v823 = vpop.f32.mrf.mxu0
    %v824 = vpop.f32.mrf.mxu0
    %v825 = vadd.f32 0.0, %v824
    %v826 = vpop.f32.mrf.mxu0
    %827 = vmatprep.mubr.bf16.mxu0 0
    %828 = vmatmul.mubr.bf16.gmra.mxu0 %v565
    %v829 = vpop.f32.mrf.mxu0
    %v830 = vadd.f32 0.0, %v829
    %v831 = vpop.f32.mrf.mxu0
    %v832 = vpop.f32.mrf.mxu0
    %v833 = vadd.f32 0.0, %v832
    %v834 = vpop.f32.mrf.mxu0
    %835 = vmatprep.mubr.bf16.mxu0 0
    %836 = vmatmul.mubr.bf16.gmra.mxu0 %v568
    %v837 = vpop.f32.mrf.mxu0
    %v838 = vadd.f32 0.0, %v837
    %v839 = vpop.f32.mrf.mxu0
    %v840 = vpop.f32.mrf.mxu0
    %v841 = vadd.f32 0.0, %v840
    %v842 = vpop.f32.mrf.mxu0
    %843 = vmatprep.mubr.bf16.mxu0 0
    %844 = vmatmul.mubr.bf16.gmra.mxu0 %v571
    %v845 = vpop.f32.mrf.mxu0
    %v846 = vadd.f32 0.0, %v845
    %v847 = vpop.f32.mrf.mxu0
    %v848 = vpop.f32.mrf.mxu0
    %v849 = vadd.f32 0.0, %v848
    %v850 = vpop.f32.mrf.mxu0
    %851 = vmatprep.mubr.bf16.mxu0 0
    %852 = vmatmul.mubr.bf16.gmra.mxu0 %v574
    %v853 = vpop.f32.mrf.mxu0
    %v854 = vadd.f32 0.0, %v853
    %v855 = vpop.f32.mrf.mxu0
    %v856 = vpop.f32.mrf.mxu0
    %v857 = vadd.f32 0.0, %v856
    %v858 = vpop.f32.mrf.mxu0
    %859 = vmatprep.mubr.bf16.mxu0 0
    %860 = vmatmul.mubr.bf16.gmra.mxu0 %v577
    %v861 = vpop.f32.mrf.mxu0
    %v862 = vadd.f32 0.0, %v861
    %v863 = vpop.f32.mrf.mxu0
    %v864 = vpop.f32.mrf.mxu0
    %v865 = vadd.f32 0.0, %v864
    %v866 = vpop.f32.mrf.mxu0
    %867 = vmatprep.mubr.bf16.mxu0 0
    %868 = vmatmul.mubr.bf16.gmra.mxu0 %v580
    %v869 = vpop.f32.mrf.mxu0
    %v870 = vadd.f32 0.0, %v869
    %v871 = vpop.f32.mrf.mxu0
    %v872 = vpop.f32.mrf.mxu0
    %v873 = vadd.f32 0.0, %v872
    %v874 = vpop.f32.mrf.mxu0
    %875 = vmatprep.mubr.bf16.mxu0 0
    %876 = vmatmul.mubr.bf16.gmra.mxu0 %v583
    %v877 = vpop.f32.mrf.mxu0
    %v878 = vadd.f32 0.0, %v877
    %v879 = vpop.f32.mrf.mxu0
    %v880 = vpop.f32.mrf.mxu0
    %v881 = vadd.f32 0.0, %v880
    %v882 = vpop.f32.mrf.mxu0
    %883 = vmatprep.mubr.bf16.mxu0 0
    %884 = vmatmul.mubr.bf16.gmra.mxu0 %v586
    %v885 = vpop.f32.mrf.mxu0
    %v886 = vadd.f32 0.0, %v885
    %v887 = vpop.f32.mrf.mxu0
    %v888 = vpop.f32.mrf.mxu0
    %v889 = vadd.f32 0.0, %v888
    %v890 = vpop.f32.mrf.mxu0
    %891 = vmatprep.mubr.bf16.mxu0 0
    %892 = vmatmul.mubr.bf16.gmra.mxu0 %v589
    %v893 = vpop.f32.mrf.mxu0
    %v894 = vadd.f32 0.0, %v893
    %v895 = vpop.f32.mrf.mxu0
    %v896 = vpop.f32.mrf.mxu0
    %v897 = vadd.f32 0.0, %v896
    %v898 = vpop.f32.mrf.mxu0
    %899 = vmatprep.mubr.bf16.mxu0 0
    %900 = vmatmul.mubr.bf16.gmra.mxu0 %v592
    %v901 = vpop.f32.mrf.mxu0
    %v902 = vadd.f32 0.0, %v901
    %v903 = vpop.f32.mrf.mxu0
    %v904 = vpop.f32.mrf.mxu0
    %v905 = vadd.f32 0.0, %v904
    %v906 = vpop.f32.mrf.mxu0
    %907 = vmatprep.mubr.bf16.mxu0 0
    %908 = vmatmul.mubr.bf16.gmra.mxu0 %v595
    %v909 = vpop.f32.mrf.mxu0
    %v910 = vadd.f32 0.0, %v909
    %v911 = vpop.f32.mrf.mxu0
    %v912 = vpop.f32.mrf.mxu0
    %v913 = vadd.f32 0.0, %v912
    %v914 = vpop.f32.mrf.mxu0
    %915 = vmatprep.mubr.bf16.mxu0 0
    %916 = vmatmul.mubr.bf16.gmra.mxu0 %v598
    %v917 = vpop.f32.mrf.mxu0
    %v918 = vadd.f32 0.0, %v917
    %v919 = vpop.f32.mrf.mxu0
    %v920 = vpop.f32.mrf.mxu0
    %v921 = vadd.f32 0.0, %v920
    %v922 = vpop.f32.mrf.mxu0
    %923 = vmatprep.mubr.bf16.mxu0 0
    %924 = vmatmul.mubr.bf16.gmra.mxu0 %v601
    %v925 = vpop.f32.mrf.mxu0
    %v926 = vadd.f32 0.0, %v925
    %v927 = vpop.f32.mrf.mxu0
    %v928 = vpop.f32.mrf.mxu0
    %v929 = vadd.f32 0.0, %v928
    %v930 = vpop.f32.mrf.mxu0
    %931 = vmatprep.mubr.bf16.mxu0 0
    %932 = vmatmul.mubr.bf16.gmra.mxu0 %v604
    %v933 = vpop.f32.mrf.mxu0
    %v934 = vadd.f32 0.0, %v933
    %v935 = vpop.f32.mrf.mxu0
    %v936 = vpop.f32.mrf.mxu0
    %v937 = vadd.f32 0.0, %v936
    %v938 = vpop.f32.mrf.mxu0
    %939 = vmatprep.mubr.bf16.mxu0 0
    %940 = vmatmul.mubr.bf16.gmra.mxu0 %v607
    %v941 = vpop.f32.mrf.mxu0
    %v942 = vadd.f32 0.0, %v941
    %v943 = vpop.f32.mrf.mxu0
    %v944 = vpop.f32.mrf.mxu0
    %v945 = vadd.f32 0.0, %v944
    %v946 = vpop.f32.mrf.mxu0
    %947 = vmatprep.mubr.bf16.mxu0 0
    %948 = vmatmul.mubr.bf16.gmra.mxu0 %v610
    %v949 = vpop.f32.mrf.mxu0
    %v950 = vadd.f32 0.0, %v949
    %v951 = vpop.f32.mrf.mxu0
    %v952 = vpop.f32.mrf.mxu0
    %v953 = vadd.f32 0.0, %v952
    %v954 = vpop.f32.mrf.mxu0
    %955 = vmatprep.mubr.bf16.mxu0 0
    %956 = vmatmul.mubr.bf16.gmra.mxu0 %v613
    %v957 = vpop.f32.mrf.mxu0
    %v958 = vadd.f32 0.0, %v957
    %v959 = vpop.f32.mrf.mxu0
    %v960 = vpop.f32.mrf.mxu0
    %v961 = vadd.f32 0.0, %v960
    %v962 = vpop.f32.mrf.mxu0
    %963 = vmatprep.mubr.bf16.mxu0 0
    %964 = vmatmul.mubr.bf16.gmra.mxu0 %v616
    %v965 = vpop.f32.mrf.mxu0
    %v966 = vadd.f32 0.0, %v965
    %v967 = vpop.f32.mrf.mxu0
    %v968 = vpop.f32.mrf.mxu0
    %v969 = vadd.f32 0.0, %v968
    %v970 = vpop.f32.mrf.mxu0
    %971 = vmatprep.mubr.bf16.mxu0 0
    %972 = vmatmul.mubr.bf16.gmra.mxu0 %v619
    %v973 = vpop.f32.mrf.mxu0
    %v974 = vadd.f32 0.0, %v973
    %v975 = vpop.f32.mrf.mxu0
    %v976 = vpop.f32.mrf.mxu0
    %v977 = vadd.f32 0.0, %v976
    %v978 = vpop.f32.mrf.mxu0
    %979 = vmatprep.mubr.bf16.mxu0 0
    %980 = vmatmul.mubr.bf16.gmra.mxu0 %v622
    %v981 = vpop.f32.mrf.mxu0
    %v982 = vadd.f32 0.0, %v981
    %v983 = vpop.f32.mrf.mxu0
    %v984 = vpop.f32.mrf.mxu0
    %v985 = vadd.f32 0.0, %v984
    %v986 = vpop.f32.mrf.mxu0
    %987 = vmatprep.mubr.bf16.mxu0 0
    %988 = vmatmul.mubr.bf16.gmra.mxu0 %v625
    %v989 = vpop.f32.mrf.mxu0
    %v990 = vadd.f32 0.0, %v989
    %v991 = vpop.f32.mrf.mxu0
    %v992 = vpop.f32.mrf.mxu0
    %v993 = vadd.f32 0.0, %v992
    %v994 = vpop.f32.mrf.mxu0
    %995 = vmatprep.mubr.bf16.mxu0 0
    %996 = vmatmul.mubr.bf16.gmra.mxu0 %v628
    %v997 = vpop.f32.mrf.mxu0
    %v998 = vadd.f32 0.0, %v997
    %v999 = vpop.f32.mrf.mxu0
    %v1000 = vpop.f32.mrf.mxu0
    %v1001 = vadd.f32 0.0, %v1000
    %v1002 = vpop.f32.mrf.mxu0
    %1003 = vmatprep.mubr.bf16.mxu0 0
    %1004 = vmatmul.mubr.bf16.gmra.mxu0 %v631
    %v1005 = vpop.f32.mrf.mxu0
    %v1006 = vadd.f32 0.0, %v1005
    %v1007 = vpop.f32.mrf.mxu0
    %v1008 = vpop.f32.mrf.mxu0
    %v1009 = vadd.f32 0.0, %v1008
    %v1010 = vpop.f32.mrf.mxu0
    %1011 = vmatprep.mubr.bf16.mxu0 0
    %1012 = vmatmul.mubr.bf16.gmra.mxu0 %v634
    %v1013 = vpop.f32.mrf.mxu0
    %v1014 = vadd.f32 0.0, %v1013
    %v1015 = vpop.f32.mrf.mxu0
    %v1016 = vpop.f32.mrf.mxu0
    %v1017 = vadd.f32 0.0, %v1016
    %v1018 = vpop.f32.mrf.mxu0
    %1019 = vmatprep.mubr.bf16.mxu0 0
    %1020 = vmatmul.mubr.bf16.gmra.mxu0 %v637
    %v1021 = vpop.f32.mrf.mxu0
    %v1022 = vadd.f32 0.0, %v1021
    %v1023 = vpop.f32.mrf.mxu0
    %v1024 = vpop.f32.mrf.mxu0
    %v1025 = vadd.f32 0.0, %v1024
    %v1026 = vpop.f32.mrf.mxu0
    %1027 = vmatprep.mubr.bf16.mxu0 0
    %1028 = vmatmul.mubr.bf16.gmra.mxu0 %v640
    %v1029 = vpop.f32.mrf.mxu0
    %v1030 = vadd.f32 0.0, %v1029
    %v1031 = vpop.f32.mrf.mxu0
    %v1032 = vpop.f32.mrf.mxu0
    %v1033 = vadd.f32 0.0, %v1032
    %v1034 = vpop.f32.mrf.mxu0
    %1035 = vmatprep.mubr.bf16.mxu0 0
    %1036 = vmatmul.mubr.bf16.gmra.mxu0 %v643
    %v1037 = vpop.f32.mrf.mxu0
    %v1038 = vadd.f32 0.0, %v1037
    %v1039 = vpop.f32.mrf.mxu0
    %v1040 = vpop.f32.mrf.mxu0
    %v1041 = vadd.f32 0.0, %v1040
    %v1042 = vpop.f32.mrf.mxu0
    %1043 = vmatprep.mubr.bf16.mxu0 0
    %1044 = vmatmul.mubr.bf16.gmra.mxu0 %v646
    %v1045 = vpop.f32.mrf.mxu0
    %v1046 = vadd.f32 0.0, %v1045
    %v1047 = vpop.f32.mrf.mxu0
    %v1048 = vpop.f32.mrf.mxu0
    %v1049 = vadd.f32 0.0, %v1048
    %v1050 = vpop.f32.mrf.mxu0
    %1051 = vmatprep.mubr.bf16.mxu0 0
    %1052 = vmatmul.mubr.bf16.gmra.mxu0 %v649
    %v1053 = vpop.f32.mrf.mxu0
    %v1054 = vadd.f32 0.0, %v1053
    %v1055 = vpop.f32.mrf.mxu0
    %v1056 = vpop.f32.mrf.mxu0
    %v1057 = vadd.f32 0.0, %v1056
    %v1058 = vpop.f32.mrf.mxu0
    %1059 = vmatprep.mubr.bf16.mxu0 0
    %1060 = vmatmul.mubr.bf16.gmra.mxu0 %v652
    %v1061 = vpop.f32.mrf.mxu0
    %v1062 = vadd.f32 0.0, %v1061
    %v1063 = vpop.f32.mrf.mxu0
    %v1064 = vpop.f32.mrf.mxu0
    %v1065 = vadd.f32 0.0, %v1064
    %v1066 = vpop.f32.mrf.mxu0
    %1067 = vmatprep.mubr.bf16.mxu0 0
    %1068 = vmatmul.mubr.bf16.gmra.mxu0 %v655
    %v1069 = vpop.f32.mrf.mxu0
    %v1070 = vadd.f32 0.0, %v1069
    %v1071 = vpop.f32.mrf.mxu0
    %v1072 = vpop.f32.mrf.mxu0
    %v1073 = vadd.f32 0.0, %v1072
    %v1074 = vpop.f32.mrf.mxu0
    %1075 = vmatprep.mubr.bf16.mxu0 0
    %1076 = vmatmul.mubr.bf16.gmra.mxu0 %v658
    %v1077 = vpop.f32.mrf.mxu0
    %v1078 = vadd.f32 0.0, %v1077
    %v1079 = vpop.f32.mrf.mxu0
    %v1080 = vpop.f32.mrf.mxu0
    %v1081 = vadd.f32 0.0, %v1080
    %v1082 = vpop.f32.mrf.mxu0
    %1083 = vmatprep.mubr.bf16.mxu0 0
    %1084 = vmatmul.mubr.bf16.gmra.mxu0 %v661
    %v1085 = vpop.f32.mrf.mxu0
    %v1086 = vadd.f32 0.0, %v1085
    %v1087 = vpop.f32.mrf.mxu0
    %v1088 = vpop.f32.mrf.mxu0
    %v1089 = vadd.f32 0.0, %v1088
    %v1090 = vpop.f32.mrf.mxu0
    %1091 = vmatprep.mubr.bf16.mxu0 0
    %1092 = vmatmul.mubr.bf16.gmra.mxu0 %v664
    %v1093 = vpop.f32.mrf.mxu0
    %v1094 = vadd.f32 0.0, %v1093
    %v1095 = vpop.f32.mrf.mxu0
    %v1096 = vpop.f32.mrf.mxu0
    %v1097 = vadd.f32 0.0, %v1096
    %v1098 = vpop.f32.mrf.mxu0
    %1099 = vmatprep.mubr.bf16.mxu0 0
    %1100 = vmatmul.mubr.bf16.gmra.mxu0 %v667
    %v1101 = vpop.f32.mrf.mxu0
    %v1102 = vadd.f32 0.0, %v1101
    %v1103 = vpop.f32.mrf.mxu0
    %v1104 = vpop.f32.mrf.mxu0
    %v1105 = vadd.f32 0.0, %v1104
    %v1106 = vpop.f32.mrf.mxu0
    %1107 = vmatprep.mubr.bf16.mxu0 0
    %1108 = vmatmul.mubr.bf16.gmra.mxu0 %v670
    %v1109 = vpop.f32.mrf.mxu0
    %v1110 = vadd.f32 0.0, %v1109
    %v1111 = vpop.f32.mrf.mxu0
    %v1112 = vpop.f32.mrf.mxu0
    %v1113 = vadd.f32 0.0, %v1112
    %v1114 = vpop.f32.mrf.mxu0
    %1115 = vmatprep.mubr.bf16.mxu0 0
    %1116 = vmatmul.mubr.bf16.gmra.mxu0 %v673
    %v1117 = vpop.f32.mrf.mxu0
    %v1118 = vadd.f32 0.0, %v1117
    %v1119 = vpop.f32.mrf.mxu0
    %v1120 = vpop.f32.mrf.mxu0
    %v1121 = vadd.f32 0.0, %v1120
    %v1122 = vpop.f32.mrf.mxu0
    %1123 = vmatprep.mubr.bf16.mxu0 0
    %1124 = vmatmul.mubr.bf16.gmra.mxu0 %v676
    %v1125 = vpop.f32.mrf.mxu0
    %v1126 = vadd.f32 0.0, %v1125
    %v1127 = vpop.f32.mrf.mxu0
    %v1128 = vpop.f32.mrf.mxu0
    %v1129 = vadd.f32 0.0, %v1128
    %v1130 = vpop.f32.mrf.mxu0
    %1131 = vmatprep.mubr.bf16.mxu0 0
    %1132 = vmatmul.mubr.bf16.gmra.mxu0 %v679
    %v1133 = vpop.f32.mrf.mxu0
    %v1134 = vadd.f32 0.0, %v1133
    %v1135 = vpop.f32.mrf.mxu0
    %v1136 = vpop.f32.mrf.mxu0
    %v1137 = vadd.f32 0.0, %v1136
    %v1138 = vpop.f32.mrf.mxu0
    %1139 = vmatprep.mubr.bf16.mxu0 0
    %1140 = vmatmul.mubr.bf16.gmra.mxu0 %v682
    %v1141 = vpop.f32.mrf.mxu0
    %v1142 = vadd.f32 0.0, %v1141
    %v1143 = vpop.f32.mrf.mxu0
    %v1144 = vpop.f32.mrf.mxu0
    %v1145 = vadd.f32 0.0, %v1144
    %v1146 = vpop.f32.mrf.mxu0
    %1147 = vmatprep.mubr.bf16.mxu0 0
    %1148 = vmatmul.mubr.bf16.gmra.mxu0 %v685
    %v1149 = vpop.f32.mrf.mxu0
    %v1150 = vadd.f32 0.0, %v1149
    %v1151 = vpop.f32.mrf.mxu0
    %v1152 = vpop.f32.mrf.mxu0
    %v1153 = vadd.f32 0.0, %v1152
    %v1154 = vpop.f32.mrf.mxu0
    %1155 = vmatprep.mubr.bf16.mxu0 0
    %1156 = vmatmul.mubr.bf16.gmra.mxu0 %v688
    %v1157 = vpop.f32.mrf.mxu0
    %v1158 = vadd.f32 0.0, %v1157
    %v1159 = vpop.f32.mrf.mxu0
    %v1160 = vpop.f32.mrf.mxu0
    %v1161 = vadd.f32 0.0, %v1160
    %v1162 = vpop.f32.mrf.mxu0
    %1163 = vmatprep.mubr.bf16.mxu0 0
    %1164 = vmatmul.mubr.bf16.gmra.mxu0 %v691
    %v1165 = vpop.f32.mrf.mxu0
    %v1166 = vadd.f32 0.0, %v1165
    %v1167 = vpop.f32.mrf.mxu0
    %v1168 = vpop.f32.mrf.mxu0
    %v1169 = vadd.f32 0.0, %v1168
    %v1170 = vpop.f32.mrf.mxu0
    %1171 = vmatprep.mubr.bf16.mxu0 0
    %1172 = vmatmul.mubr.bf16.gmra.mxu0 %v694
    %v1173 = vpop.f32.mrf.mxu0
    %v1174 = vadd.f32 0.0, %v1173
    %v1175 = vpop.f32.mrf.mxu0
    %v1176 = vpop.f32.mrf.mxu0
    %v1177 = vadd.f32 0.0, %v1176
    %v1178 = vpop.f32.mrf.mxu0
    %1179 = vmatprep.mubr.bf16.mxu0 0
    %1180 = vmatmul.mubr.bf16.gmra.mxu0 %v697
    %v1181 = vpop.f32.mrf.mxu0
    %v1182 = vadd.f32 0.0, %v1181
    %v1183 = vpop.f32.mrf.mxu0
    %v1184 = vpop.f32.mrf.mxu0
    %v1185 = vadd.f32 0.0, %v1184
    %v1186 = vpop.f32.mrf.mxu0
    %1187 = vmatprep.mubr.bf16.mxu0 0
    %1188 = vmatmul.mubr.bf16.gmra.mxu0 %v700
    %v1189 = vpop.f32.mrf.mxu0
    %v1190 = vadd.f32 0.0, %v1189
    %v1191 = vpop.f32.mrf.mxu0
    %v1192 = vpop.f32.mrf.mxu0
    %v1193 = vadd.f32 0.0, %v1192
    %v1194 = vpop.f32.mrf.mxu0
    %1195 = vmatprep.mubr.bf16.mxu0 0
    %1196 = vmatmul.mubr.bf16.gmra.mxu0 %v703
    %v1197 = vpop.f32.mrf.mxu0
    %v1198 = vadd.f32 0.0, %v1197
    %v1199 = vpop.f32.mrf.mxu0
    %v1200 = vpop.f32.mrf.mxu0
    %v1201 = vadd.f32 0.0, %v1200
    %v1202 = vpop.f32.mrf.mxu0
    %1203 = vmatprep.mubr.bf16.mxu0 0
    %1204 = vmatmul.mubr.bf16.gmra.mxu0 %v706
    %v1205 = vpop.f32.mrf.mxu0
    %v1206 = vadd.f32 0.0, %v1205
    %v1207 = vpop.f32.mrf.mxu0
    %v1208 = vpop.f32.mrf.mxu0
    %v1209 = vadd.f32 0.0, %v1208
    %v1210 = vpop.f32.mrf.mxu0
    %1211 = vmatprep.mubr.bf16.mxu0 0
    %1212 = vmatmul.mubr.bf16.gmra.mxu0 %v709
    %v1213 = vpop.f32.mrf.mxu0
    %v1214 = vadd.f32 0.0, %v1213
    %v1215 = vpop.f32.mrf.mxu0
    %v1216 = vpop.f32.mrf.mxu0
    %v1217 = vadd.f32 0.0, %v1216
    %v1218 = vpop.f32.mrf.mxu0
    %1219 = vmatprep.mubr.bf16.mxu0 0
    %1220 = vmatmul.mubr.bf16.gmra.mxu0 %v712
    %v1221 = vpop.f32.mrf.mxu0
    %v1222 = vadd.f32 0.0, %v1221
    %v1223 = vpop.f32.mrf.mxu0
    %v1224 = vpop.f32.mrf.mxu0
    %v1225 = vadd.f32 0.0, %v1224
    %v1226 = vpop.f32.mrf.mxu0
    %1227 = vmatprep.mubr.bf16.mxu0 0
    %1228 = vmatmul.mubr.bf16.gmra.mxu0 %v715
    %v1229 = vpop.f32.mrf.mxu0
    %v1230 = vadd.f32 0.0, %v1229
    %v1231 = vpop.f32.mrf.mxu0
    %v1232 = vpop.f32.mrf.mxu0
    %v1233 = vadd.f32 0.0, %v1232
    %v1234 = vpop.f32.mrf.mxu0
    %1235 = vmatprep.mubr.bf16.mxu0 0
    %1236 = vmatmul.mubr.bf16.gmra.mxu0 %v718
    %v1237 = vpop.f32.mrf.mxu0
    %v1238 = vadd.f32 0.0, %v1237
    %v1239 = vpop.f32.mrf.mxu0
    %v1240 = vpop.f32.mrf.mxu0
    %v1241 = vadd.f32 0.0, %v1240
    %v1242 = vpop.f32.mrf.mxu0
    %1243 = vmatprep.mubr.bf16.mxu0 0
    %1244 = vmatmul.mubr.bf16.gmra.mxu0 %v721
    %v1245 = vpop.f32.mrf.mxu0
    %v1246 = vadd.f32 0.0, %v1245
    %v1247 = vpop.f32.mrf.mxu0
    %v1248 = vpop.f32.mrf.mxu0
    %v1249 = vadd.f32 0.0, %v1248
    %v1250 = vpop.f32.mrf.mxu0
    %1251 = vmatprep.mubr.bf16.mxu0 0
    %1252 = vmatmul.mubr.bf16.gmra.mxu0 %v724
    %v1253 = vpop.f32.mrf.mxu0
    %v1254 = vadd.f32 0.0, %v1253
    %v1255 = vpop.f32.mrf.mxu0
    %v1256 = vpop.f32.mrf.mxu0
    %v1257 = vadd.f32 0.0, %v1256
    %v1258 = vpop.f32.mrf.mxu0
    %1259 = vmatprep.mubr.bf16.mxu0 0
    %1260 = vmatmul.mubr.bf16.gmra.mxu0 %v727
    %v1261 = vpop.f32.mrf.mxu0
    %v1262 = vadd.f32 0.0, %v1261
    %v1263 = vpop.f32.mrf.mxu0
    %v1264 = vpop.f32.mrf.mxu0
    %v1265 = vadd.f32 0.0, %v1264
    %v1266 = vpop.f32.mrf.mxu0
    %1267 = vmatprep.mubr.bf16.mxu0 0
    %1268 = vmatmul.mubr.bf16.gmra.mxu0 %v730
    %v1269 = vpop.f32.mrf.mxu0
    %v1270 = vadd.f32 0.0, %v1269
    %v1271 = vpop.f32.mrf.mxu0
    %v1272 = vpop.f32.mrf.mxu0
    %v1273 = vadd.f32 0.0, %v1272
    %v1274 = vpop.f32.mrf.mxu0
    %1275 = vmatprep.mubr.bf16.mxu0 0
    %1276 = vmatmul.mubr.bf16.gmra.mxu0 %v733
    %v1277 = vpop.f32.mrf.mxu0
    %v1278 = vadd.f32 0.0, %v1277
    %v1279 = vpop.f32.mrf.mxu0
    %v1280 = vpop.f32.mrf.mxu0
    %v1281 = vadd.f32 0.0, %v1280
    %v1282 = vpop.f32.mrf.mxu0
    %1283 = vmatprep.mubr.bf16.mxu0 0
    %1284 = vmatmul.mubr.bf16.gmra.mxu0 %v736
    %v1285 = vpop.f32.mrf.mxu0
    %v1286 = vadd.f32 0.0, %v1285
    %v1287 = vpop.f32.mrf.mxu0
    %v1288 = vpop.f32.mrf.mxu0
    %v1289 = vadd.f32 0.0, %v1288
    %v1290 = vpop.f32.mrf.mxu0
    %1291 = vmatprep.mubr.bf16.mxu0 0
    %1292 = vmatmul.mubr.bf16.gmra.mxu0 %v739
    %v1293 = vpop.f32.mrf.mxu0
    %v1294 = vadd.f32 0.0, %v1293
    %v1295 = vpop.f32.mrf.mxu0
    %v1296 = vpop.f32.mrf.mxu0
    %v1297 = vadd.f32 0.0, %v1296
    %v1298 = vpop.f32.mrf.mxu0
    %1299 = vmatprep.mubr.bf16.mxu0 0
    %1300 = vmatmul.mubr.bf16.gmra.mxu0 %v742
    %v1301 = vpop.f32.mrf.mxu0
    %v1302 = vadd.f32 0.0, %v1301
    %v1303 = vpop.f32.mrf.mxu0
    %v1304 = vpop.f32.mrf.mxu0
    %v1305 = vadd.f32 0.0, %v1304
    %v1306 = vpop.f32.mrf.mxu0
    %1307 = vmatprep.mubr.bf16.mxu0 0
    %1308 = vmatmul.mubr.bf16.gmra.mxu0 %v745
    %v1309 = vpop.f32.mrf.mxu0
    %v1310 = vadd.f32 0.0, %v1309
    %v1311 = vpop.f32.mrf.mxu0
    %v1312 = vpop.f32.mrf.mxu0
    %v1313 = vadd.f32 0.0, %v1312
    %v1314 = vpop.f32.mrf.mxu0
    %1315 = vmatprep.mubr.bf16.mxu0 0
    %1316 = vmatmul.mubr.bf16.gmra.mxu0 %v748
    %v1317 = vpop.f32.mrf.mxu0
    %v1318 = vadd.f32 0.0, %v1317
    %v1319 = vpop.f32.mrf.mxu0
    %v1320 = vpop.f32.mrf.mxu0
    %v1321 = vadd.f32 0.0, %v1320
    %v1322 = vpop.f32.mrf.mxu0
    %1323 = vmatprep.mubr.bf16.mxu0 0
    %1324 = vmatmul.mubr.bf16.gmra.mxu0 %v751
    %v1325 = vpop.f32.mrf.mxu0
    %v1326 = vadd.f32 0.0, %v1325
    %v1327 = vpop.f32.mrf.mxu0
    %v1328 = vpop.f32.mrf.mxu0
    %v1329 = vadd.f32 0.0, %v1328
    %v1330 = vpop.f32.mrf.mxu0
    %1331 = vmatprep.mubr.bf16.mxu0 0
    %1332 = vmatmul.mubr.bf16.gmra.mxu0 %v754
    %v1333 = vpop.f32.mrf.mxu0
    %v1334 = vadd.f32 0.0, %v1333
    %v1335 = vpop.f32.mrf.mxu0
    %v1336 = vpop.f32.mrf.mxu0
    %v1337 = vadd.f32 0.0, %v1336
    %v1338 = vpop.f32.mrf.mxu0
    %1339 = vmatprep.mubr.bf16.mxu0 0
    %1340 = vmatmul.mubr.bf16.gmra.mxu0 %v757
    %v1341 = vpop.f32.mrf.mxu0
    %v1342 = vadd.f32 0.0, %v1341
    %v1343 = vpop.f32.mrf.mxu0
    %v1344 = vpop.f32.mrf.mxu0
    %v1345 = vadd.f32 0.0, %v1344
    %v1346 = vpop.f32.mrf.mxu0
    %1347 = vmatprep.mubr.bf16.mxu0 0
    %1348 = vmatmul.mubr.bf16.gmra.mxu0 %v760
    %v1349 = vpop.f32.mrf.mxu0
    %v1350 = vadd.f32 0.0, %v1349
    %v1351 = vpop.f32.mrf.mxu0
    %v1352 = vpop.f32.mrf.mxu0
    %v1353 = vadd.f32 0.0, %v1352
    %v1354 = vpop.f32.mrf.mxu0
    %1355 = vmatprep.mubr.bf16.mxu0 0
    %1356 = vmatmul.mubr.bf16.gmra.mxu0 %v763
    %v1357 = vpop.f32.mrf.mxu0
    %v1358 = vadd.f32 0.0, %v1357
    %v1359 = vpop.f32.mrf.mxu0
    %v1360 = vpop.f32.mrf.mxu0
    %v1361 = vadd.f32 0.0, %v1360
    %v1362 = vpop.f32.mrf.mxu0
    %1363 = vmatprep.mubr.bf16.mxu0 0
    %1364 = vmatmul.mubr.bf16.gmra.mxu0 %v766
    %v1365 = vpop.f32.mrf.mxu0
    %v1366 = vadd.f32 0.0, %v1365
    %v1367 = vpop.f32.mrf.mxu0
    %v1368 = vpop.f32.mrf.mxu0
    %v1369 = vadd.f32 0.0, %v1368
    %v1370 = vpop.f32.mrf.mxu0
    %1371 = vmatprep.mubr.bf16.mxu0 0
    %1372 = vmatmul.mubr.bf16.gmra.mxu0 %v769
    %v1373 = vpop.f32.mrf.mxu0
    %v1374 = vadd.f32 0.0, %v1373
    %v1375 = vpop.f32.mrf.mxu0
    %v1376 = vpop.f32.mrf.mxu0
    %v1377 = vadd.f32 0.0, %v1376
    %v1378 = vpop.f32.mrf.mxu0
    %1379 = vdwg.mxu0
    %v1380 = vmax.f32 %v806, %v878
    %v1381 = vmax.f32 %v809, %v881
    %v1382 = vmax.f32 %v814, %v886
    %v1383 = vmax.f32 %v817, %v889
    %v1384 = vmax.f32 %v822, %v894
    %v1385 = vmax.f32 %v825, %v897
    %v1386 = vmax.f32 %v830, %v902
    %v1387 = vmax.f32 %v833, %v905
    %v1388 = vmax.f32 %v838, %v910
    %v1389 = vmax.f32 %v841, %v913
    %v1390 = vmax.f32 %v846, %v918
    %v1391 = vmax.f32 %v849, %v921
    %v1392 = vmax.f32 %v854, %v926
    %v1393 = vmax.f32 %v857, %v929
    %v1394 = vmax.f32 %v862, %v934
    %v1395 = vmax.f32 %v865, %v937
    %v1396 = vmax.f32 %v870, %v942
    %v1397 = vmax.f32 %v873, %v945
    %v1398 = vmax.f32 %v1094, %v1166
    %v1399 = vmax.f32 %v1097, %v1169
    %v1400 = vmax.f32 %v1102, %v1174
    %v1401 = vmax.f32 %v1105, %v1177
    %v1402 = vmax.f32 %v1110, %v1182
    %v1403 = vmax.f32 %v1113, %v1185
    %v1404 = vmax.f32 %v1118, %v1190
    %v1405 = vmax.f32 %v1121, %v1193
    %v1406 = vmax.f32 %v1126, %v1198
    %v1407 = vmax.f32 %v1129, %v1201
    %v1408 = vmax.f32 %v1134, %v1206
    %v1409 = vmax.f32 %v1137, %v1209
    %v1410 = vmax.f32 %v1142, %v1214
    %v1411 = vmax.f32 %v1145, %v1217
    %v1412 = vmax.f32 %v1150, %v1222
    %v1413 = vmax.f32 %v1153, %v1225
    %v1414 = vmax.f32 %v1158, %v1230
    %v1415 = vmax.f32 %v1161, %v1233
    %v1416 = vmax.f32 %v950, %v1022
    %v1417 = vmax.f32 %v953, %v1025
    %v1418 = vmax.f32 %v958, %v1030
    %v1419 = vmax.f32 %v961, %v1033
    %v1420 = vmax.f32 %v966, %v1038
    %v1421 = vmax.f32 %v969, %v1041
    %v1422 = vmax.f32 %v974, %v1046
    %v1423 = vmax.f32 %v977, %v1049
    %v1424 = vmax.f32 %v982, %v1054
    %v1425 = vmax.f32 %v985, %v1057
    %v1426 = vmax.f32 %v990, %v1062
    %v1427 = vmax.f32 %v993, %v1065
    %v1428 = vmax.f32 %v998, %v1070
    %v1429 = vmax.f32 %v1001, %v1073
    %v1430 = vmax.f32 %v1006, %v1078
    %v1431 = vmax.f32 %v1009, %v1081
    %v1432 = vmax.f32 %v1014, %v1086
    %v1433 = vmax.f32 %v1017, %v1089
    %v1434 = vmax.f32 %v1238, %v1310
    %v1435 = vmax.f32 %v1241, %v1313
    %v1436 = vmax.f32 %v1246, %v1318
    %v1437 = vmax.f32 %v1249, %v1321
    %v1438 = vmax.f32 %v1254, %v1326
    %v1439 = vmax.f32 %v1257, %v1329
    %v1440 = vmax.f32 %v1262, %v1334
    %v1441 = vmax.f32 %v1265, %v1337
    %v1442 = vmax.f32 %v1270, %v1342
    %v1443 = vmax.f32 %v1273, %v1345
    %v1444 = vmax.f32 %v1278, %v1350
    %v1445 = vmax.f32 %v1281, %v1353
    %v1446 = vmax.f32 %v1286, %v1358
    %v1447 = vmax.f32 %v1289, %v1361
    %v1448 = vmax.f32 %v1294, %v1366
    %v1449 = vmax.f32 %v1297, %v1369
    %v1450 = vmax.f32 %v1302, %v1374
    %v1451 = vmax.f32 %v1305, %v1377
    %v1452 = vmax.f32 %v1380, %v1416
    %v1453 = vmax.f32 %v1381, %v1417
    %v1454 = vmax.f32 %v1382, %v1418
    %v1455 = vmax.f32 %v1383, %v1419
    %v1456 = vmax.f32 %v1384, %v1420
    %v1457 = vmax.f32 %v1385, %v1421
    %v1458 = vmax.f32 %v1386, %v1422
    %v1459 = vmax.f32 %v1387, %v1423
    %v1460 = vmax.f32 %v1388, %v1424
    %v1461 = vmax.f32 %v1389, %v1425
    %v1462 = vmax.f32 %v1390, %v1426
    %v1463 = vmax.f32 %v1391, %v1427
    %v1464 = vmax.f32 %v1392, %v1428
    %v1465 = vmax.f32 %v1393, %v1429
    %v1466 = vmax.f32 %v1394, %v1430
    %v1467 = vmax.f32 %v1395, %v1431
    %v1468 = vmax.f32 %v1396, %v1432
    %v1469 = vmax.f32 %v1397, %v1433
    %v1470 = vmax.f32 %v1398, %v1434
    %v1471 = vmax.f32 %v1399, %v1435
    %v1472 = vmax.f32 %v1400, %v1436
    %v1473 = vmax.f32 %v1401, %v1437
    %v1474 = vmax.f32 %v1402, %v1438
    %v1475 = vmax.f32 %v1403, %v1439
    %v1476 = vmax.f32 %v1404, %v1440
    %v1477 = vmax.f32 %v1405, %v1441
    %v1478 = vmax.f32 %v1406, %v1442
    %v1479 = vmax.f32 %v1407, %v1443
    %v1480 = vmax.f32 %v1408, %v1444
    %v1481 = vmax.f32 %v1409, %v1445
    %v1482 = vmax.f32 %v1410, %v1446
    %v1483 = vmax.f32 %v1411, %v1447
    %v1484 = vmax.f32 %v1412, %v1448
    %v1485 = vmax.f32 %v1413, %v1449
    %v1486 = vmax.f32 %v1414, %v1450
    %v1487 = vmax.f32 %v1415, %v1451
    %v1488 = vld [vmem:[%s2] sm:$0x1]
    %v1490 = vlaneseq
    %v1491 = vshrl.u32 %v1490, 7
    %v1492 = vsub.s32 0, %v1491
    %v1493 = vrot.slane %v1488, %v1492
    %v1495 = vadd.f32 %v1452, %v1493
    %v1496 = vadd.f32 %v1453, %v1493
    %v1497 = vadd.f32 %v1454, %v1493
    %v1498 = vadd.f32 %v1455, %v1493
    %v1499 = vadd.f32 %v1456, %v1493
    %v1500 = vadd.f32 %v1457, %v1493
    %v1501 = vadd.f32 %v1458, %v1493
    %v1502 = vadd.f32 %v1459, %v1493
    %v1503 = vadd.f32 %v1460, %v1493
    %v1504 = vadd.f32 %v1461, %v1493
    %v1505 = vadd.f32 %v1462, %v1493
    %v1506 = vadd.f32 %v1463, %v1493
    %v1507 = vadd.f32 %v1464, %v1493
    %v1508 = vadd.f32 %v1465, %v1493
    %v1509 = vadd.f32 %v1466, %v1493
    %v1510 = vadd.f32 %v1467, %v1493
    %v1511 = vadd.f32 %v1468, %v1493
    %v1512 = vadd.f32 %v1469, %v1493
    %v1513 = vadd.f32 %v1470, %v1493
    %v1514 = vadd.f32 %v1471, %v1493
    %v1515 = vadd.f32 %v1472, %v1493
    %v1516 = vadd.f32 %v1473, %v1493
    %v1517 = vadd.f32 %v1474, %v1493
    %v1518 = vadd.f32 %v1475, %v1493
    %v1519 = vadd.f32 %v1476, %v1493
    %v1520 = vadd.f32 %v1477, %v1493
    %v1521 = vadd.f32 %v1478, %v1493
    %v1522 = vadd.f32 %v1479, %v1493
    %v1523 = vadd.f32 %v1480, %v1493
    %v1524 = vadd.f32 %v1481, %v1493
    %v1525 = vadd.f32 %v1482, %v1493
    %v1526 = vadd.f32 %v1483, %v1493
    %v1527 = vadd.f32 %v1484, %v1493
    %v1528 = vadd.f32 %v1485, %v1493
    %v1529 = vadd.f32 %v1486, %v1493
    %v1530 = vadd.f32 %v1487, %v1493
    %v1531 = vmax.f32 %v1495, 0.0
    %v1532 = vmax.f32 %v1496, 0.0
    %v1533 = vmax.f32 %v1497, 0.0
    %v1534 = vmax.f32 %v1498, 0.0
    %v1535 = vmax.f32 %v1499, 0.0
    %v1536 = vmax.f32 %v1500, 0.0
    %v1537 = vmax.f32 %v1501, 0.0
    %v1538 = vmax.f32 %v1502, 0.0
    %v1539 = vmax.f32 %v1503, 0.0
    %v1540 = vmax.f32 %v1504, 0.0
    %v1541 = vmax.f32 %v1505, 0.0
    %v1542 = vmax.f32 %v1506, 0.0
    %v1543 = vmax.f32 %v1507, 0.0
    %v1544 = vmax.f32 %v1508, 0.0
    %v1545 = vmax.f32 %v1509, 0.0
    %v1546 = vmax.f32 %v1510, 0.0
    %v1547 = vmax.f32 %v1511, 0.0
    %v1548 = vmax.f32 %v1512, 0.0
    %v1549 = vmax.f32 %v1513, 0.0
    %v1550 = vmax.f32 %v1514, 0.0
    %v1551 = vmax.f32 %v1515, 0.0
    %v1552 = vmax.f32 %v1516, 0.0
    %v1553 = vmax.f32 %v1517, 0.0
    %v1554 = vmax.f32 %v1518, 0.0
    %v1555 = vmax.f32 %v1519, 0.0
    %v1556 = vmax.f32 %v1520, 0.0
    %v1557 = vmax.f32 %v1521, 0.0
    %v1558 = vmax.f32 %v1522, 0.0
    %v1559 = vmax.f32 %v1523, 0.0
    %v1560 = vmax.f32 %v1524, 0.0
    %v1561 = vmax.f32 %v1525, 0.0
    %v1562 = vmax.f32 %v1526, 0.0
    %v1563 = vmax.f32 %v1527, 0.0
    %v1564 = vmax.f32 %v1528, 0.0
    %v1565 = vmax.f32 %v1529, 0.0
    %v1566 = vmax.f32 %v1530, 0.0
    %v1567 = vpack.c.bf16 %v1532, %v1531
    %v1568 = vpack.c.bf16 %v1534, %v1533
    %v1569 = vpack.c.bf16 %v1536, %v1535
    %v1570 = vpack.c.bf16 %v1538, %v1537
    %v1571 = vpack.c.bf16 %v1540, %v1539
    %v1572 = vpack.c.bf16 %v1542, %v1541
    %v1573 = vpack.c.bf16 %v1544, %v1543
    %v1574 = vpack.c.bf16 %v1546, %v1545
    %v1575 = vpack.c.bf16 %v1548, %v1547
    %v1576 = vpack.c.bf16 %v1550, %v1549
    %v1577 = vpack.c.bf16 %v1552, %v1551
    %v1578 = vpack.c.bf16 %v1554, %v1553
    %v1579 = vpack.c.bf16 %v1556, %v1555
    %v1580 = vpack.c.bf16 %v1558, %v1557
    %v1581 = vpack.c.bf16 %v1560, %v1559
    %v1582 = vpack.c.bf16 %v1562, %v1561
    %v1583 = vpack.c.bf16 %v1564, %v1563
    %v1584 = vpack.c.bf16 %v1566, %v1565
    %v1603 = vunpack.c.l.b16 %v1567
    %v1604 = vunpack.c.h.b16 %v1567
    %v1605 = vunpack.c.l.b16 %v1568
    %v1606 = vunpack.c.h.b16 %v1568
    %v1607 = vunpack.c.l.b16 %v1569
    %v1608 = vunpack.c.h.b16 %v1569
    %v1609 = vunpack.c.l.b16 %v1570
    %v1610 = vunpack.c.h.b16 %v1570
    %v1611 = vunpack.c.l.b16 %v1571
    %v1612 = vunpack.c.h.b16 %v1571
    %v1613 = vunpack.c.l.b16 %v1572
    %v1614 = vunpack.c.h.b16 %v1572
    %v1615 = vunpack.c.l.b16 %v1573
    %v1616 = vunpack.c.h.b16 %v1573
    %v1617 = vunpack.c.l.b16 %v1574
    %v1618 = vunpack.c.h.b16 %v1574
    %v1619 = vunpack.c.l.b16 %v1575
    %v1620 = vunpack.c.h.b16 %v1575
    %v1621 = vunpack.c.l.b16 %v1576
    %v1622 = vunpack.c.h.b16 %v1576
    %v1623 = vunpack.c.l.b16 %v1577
    %v1624 = vunpack.c.h.b16 %v1577
    %v1625 = vunpack.c.l.b16 %v1578
    %v1626 = vunpack.c.h.b16 %v1578
    %v1627 = vunpack.c.l.b16 %v1579
    %v1628 = vunpack.c.h.b16 %v1579
    %v1629 = vunpack.c.l.b16 %v1580
    %v1630 = vunpack.c.h.b16 %v1580
    %v1631 = vunpack.c.l.b16 %v1581
    %v1632 = vunpack.c.h.b16 %v1581
    %v1633 = vunpack.c.l.b16 %v1582
    %v1634 = vunpack.c.h.b16 %v1582
    %v1635 = vunpack.c.l.b16 %v1583
    %v1636 = vunpack.c.h.b16 %v1583
    %v1637 = vunpack.c.l.b16 %v1584
    %v1638 = vunpack.c.h.b16 %v1584
    %v1639 = vpack.c.b16 %v1603, %v1603
    %v1640 = vpack.c.b16 %v1604, %v1604
    %v1641 = vpack.c.b16 %v1605, %v1605
    %v1642 = vpack.c.b16 %v1606, %v1606
    %v1643 = vpack.c.b16 %v1607, %v1607
    %v1644 = vpack.c.b16 %v1608, %v1608
    %v1645 = vpack.c.b16 %v1609, %v1609
    %v1646 = vpack.c.b16 %v1610, %v1610
    %v1647 = vpack.c.b16 %v1611, %v1611
    %v1648 = vpack.c.b16 %v1612, %v1612
    %v1649 = vpack.c.b16 %v1613, %v1613
    %v1650 = vpack.c.b16 %v1614, %v1614
    %v1651 = vpack.c.b16 %v1615, %v1615
    %v1652 = vpack.c.b16 %v1616, %v1616
    %v1653 = vpack.c.b16 %v1617, %v1617
    %v1654 = vpack.c.b16 %v1618, %v1618
    %v1655 = vpack.c.b16 %v1619, %v1619
    %v1656 = vpack.c.b16 %v1620, %v1620
    %v1657 = vpack.c.b16 %v1621, %v1621
    %v1658 = vpack.c.b16 %v1622, %v1622
    %v1659 = vpack.c.b16 %v1623, %v1623
    %v1660 = vpack.c.b16 %v1624, %v1624
    %v1661 = vpack.c.b16 %v1625, %v1625
    %v1662 = vpack.c.b16 %v1626, %v1626
    %v1663 = vpack.c.b16 %v1627, %v1627
    %v1664 = vpack.c.b16 %v1628, %v1628
    %v1665 = vpack.c.b16 %v1629, %v1629
    %v1666 = vpack.c.b16 %v1630, %v1630
    %v1667 = vpack.c.b16 %v1631, %v1631
    %v1668 = vpack.c.b16 %v1632, %v1632
    %v1669 = vpack.c.b16 %v1633, %v1633
    %v1670 = vpack.c.b16 %v1634, %v1634
    %v1671 = vpack.c.b16 %v1635, %v1635
    %v1672 = vpack.c.b16 %v1636, %v1636
    %v1673 = vpack.c.b16 %v1637, %v1637
    %v1674 = vpack.c.b16 %v1638, %v1638
    %vm1711 = vcmask 158720
    %1712 = vst.msk [vmem:[#allocation2] sm:$0xf] %vm1711, %v1639
    %1713 = vst.msk [vmem:[#allocation2 + $0x4] sm:$0xf] %vm1711, %v1640
    %1714 = vst.msk [vmem:[#allocation2 + $0x8] sm:$0xf] %vm1711, %v1641
    %1715 = vst.msk [vmem:[#allocation2 + $0xc] sm:$0xf] %vm1711, %v1642
    %1716 = vst.msk [vmem:[#allocation2 + $0x10] sm:$0xf] %vm1711, %v1643
    %1717 = vst.msk [vmem:[#allocation2 + $0x14] sm:$0xf] %vm1711, %v1644
    %1718 = vst.msk [vmem:[#allocation2 + $0x18] sm:$0xf] %vm1711, %v1645
    %1719 = vst.msk [vmem:[#allocation2 + $0x1c] sm:$0xf] %vm1711, %v1646
    %1720 = vst.msk [vmem:[#allocation2 + $0x20] sm:$0xf] %vm1711, %v1647
    %1721 = vst.msk [vmem:[#allocation2 + $0x24] sm:$0xf] %vm1711, %v1648
    %1722 = vst.msk [vmem:[#allocation2 + $0x28] sm:$0xf] %vm1711, %v1649
    %1723 = vst.msk [vmem:[#allocation2 + $0x2c] sm:$0xf] %vm1711, %v1650
    %1724 = vst.msk [vmem:[#allocation2 + $0x30] sm:$0xf] %vm1711, %v1651
    %1725 = vst.msk [vmem:[#allocation2 + $0x34] sm:$0xf] %vm1711, %v1652
    %1726 = vst.msk [vmem:[#allocation2 + $0x38] sm:$0xf] %vm1711, %v1653
    %1727 = vst.msk [vmem:[#allocation2 + $0x3c] sm:$0xf] %vm1711, %v1654
    %1728 = vst.msk [vmem:[#allocation2 + $0x40] sm:$0xf] %vm1711, %v1655
    %1729 = vst.msk [vmem:[#allocation2 + $0x44] sm:$0xf] %vm1711, %v1656
    %1730 = vst.msk [vmem:[#allocation2 + $0x4c] sm:$0xf] %vm1711, %v1657
    %1731 = vst.msk [vmem:[#allocation2 + $0x50] sm:$0xf] %vm1711, %v1658
    %1732 = vst.msk [vmem:[#allocation2 + $0x54] sm:$0xf] %vm1711, %v1659
    %1733 = vst.msk [vmem:[#allocation2 + $0x58] sm:$0xf] %vm1711, %v1660
    %1734 = vst.msk [vmem:[#allocation2 + $0x5c] sm:$0xf] %vm1711, %v1661
    %1735 = vst.msk [vmem:[#allocation2 + $0x60] sm:$0xf] %vm1711, %v1662
    %1736 = vst.msk [vmem:[#allocation2 + $0x64] sm:$0xf] %vm1711, %v1663
    %1737 = vst.msk [vmem:[#allocation2 + $0x68] sm:$0xf] %vm1711, %v1664
    %1738 = vst.msk [vmem:[#allocation2 + $0x6c] sm:$0xf] %vm1711, %v1665
    %1739 = vst.msk [vmem:[#allocation2 + $0x70] sm:$0xf] %vm1711, %v1666
    %1740 = vst.msk [vmem:[#allocation2 + $0x74] sm:$0xf] %vm1711, %v1667
    %1741 = vst.msk [vmem:[#allocation2 + $0x78] sm:$0xf] %vm1711, %v1668
    %1742 = vst.msk [vmem:[#allocation2 + $0x7c] sm:$0xf] %vm1711, %v1669
    %1743 = vst.msk [vmem:[#allocation2 + $0x80] sm:$0xf] %vm1711, %v1670
    %1744 = vst.msk [vmem:[#allocation2 + $0x84] sm:$0xf] %vm1711, %v1671
    %1745 = vst.msk [vmem:[#allocation2 + $0x88] sm:$0xf] %vm1711, %v1672
    %1746 = vst.msk [vmem:[#allocation2 + $0x8c] sm:$0xf] %vm1711, %v1673
    %1747 = vst.msk [vmem:[#allocation2 + $0x90] sm:$0xf] %vm1711, %v1674
    %1748 = vst.msk [vmem:[#allocation2 + $0x48] sm:$0xf] %vm1711, 0
    %1749 = vst.msk [vmem:[#allocation2 + $0x94] sm:$0xf] %vm1711, 0
    %v1750 = vld [vmem:[#allocation2] sm:$0xf]
    %v1751 = vld [vmem:[#allocation2 + $0x4] sm:$0xf]
    %v1752 = vld [vmem:[#allocation2 + $0x8] sm:$0xf]
    %v1753 = vld [vmem:[#allocation2 + $0xc] sm:$0xf]
    %v1754 = vld [vmem:[#allocation2 + $0x10] sm:$0xf]
    %v1755 = vld [vmem:[#allocation2 + $0x14] sm:$0xf]
    %v1756 = vld [vmem:[#allocation2 + $0x18] sm:$0xf]
    %v1757 = vld [vmem:[#allocation2 + $0x1c] sm:$0xf]
    %v1758 = vld [vmem:[#allocation2 + $0x20] sm:$0xf]
    %v1759 = vld [vmem:[#allocation2 + $0x24] sm:$0xf]
    %v1760 = vld [vmem:[#allocation2 + $0x28] sm:$0xf]
    %v1761 = vld [vmem:[#allocation2 + $0x2c] sm:$0xf]
    %v1762 = vld [vmem:[#allocation2 + $0x4c] sm:$0xf]
    %v1763 = vld [vmem:[#allocation2 + $0x50] sm:$0xf]
    %v1764 = vld [vmem:[#allocation2 + $0x54] sm:$0xf]
    %v1765 = vld [vmem:[#allocation2 + $0x58] sm:$0xf]
    %v1766 = vld [vmem:[#allocation2 + $0x5c] sm:$0xf]
    %v1767 = vld [vmem:[#allocation2 + $0x60] sm:$0xf]
    %v1768 = vld [vmem:[#allocation2 + $0x64] sm:$0xf]
    %v1769 = vld [vmem:[#allocation2 + $0x68] sm:$0xf]
    %v1770 = vld [vmem:[#allocation2 + $0x6c] sm:$0xf]
    %v1771 = vld [vmem:[#allocation2 + $0x70] sm:$0xf]
    %v1772 = vld [vmem:[#allocation2 + $0x74] sm:$0xf]
    %v1773 = vld [vmem:[#allocation2 + $0x78] sm:$0xf]
    %1774 = vst.msk [vmem:[#allocation3] sm:$0xf] %vm1711, %v1750
    %1775 = vst.msk [vmem:[#allocation3 + $0x10] sm:$0xf] %vm1711, %v1751
    %1776 = vst.msk [vmem:[#allocation3 + $0x20] sm:$0xf] %vm1711, %v1752
    %1777 = vst.msk [vmem:[#allocation3 + $0x30] sm:$0xf] %vm1711, %v1753
    %1778 = vst.msk [vmem:[#allocation3 + $0x40] sm:$0xf] %vm1711, %v1754
    %1779 = vst.msk [vmem:[#allocation3 + $0x50] sm:$0xf] %vm1711, %v1755
    %1780 = vst.msk [vmem:[#allocation3 + $0x60] sm:$0xf] %vm1711, %v1756
    %1781 = vst.msk [vmem:[#allocation3 + $0x70] sm:$0xf] %vm1711, %v1757
    %1782 = vst.msk [vmem:[#allocation3 + $0x80] sm:$0xf] %vm1711, %v1758
    %1783 = vst.msk [vmem:[#allocation3 + $0x90] sm:$0xf] %vm1711, %v1759
    %1784 = vst.msk [vmem:[#allocation3 + $0xa0] sm:$0xf] %vm1711, %v1760
    %1785 = vst.msk [vmem:[#allocation3 + $0xb0] sm:$0xf] %vm1711, %v1761
    %1786 = vst.msk [vmem:[#allocation3 + $0xc0] sm:$0xf] %vm1711, %v1762
    %1787 = vst.msk [vmem:[#allocation3 + $0xd0] sm:$0xf] %vm1711, %v1763
    %1788 = vst.msk [vmem:[#allocation3 + $0xe0] sm:$0xf] %vm1711, %v1764
    %1789 = vst.msk [vmem:[#allocation3 + $0xf0] sm:$0xf] %vm1711, %v1765
    %1790 = vst.msk [vmem:[#allocation3 + $0x100] sm:$0xf] %vm1711, %v1766
    %1791 = vst.msk [vmem:[#allocation3 + $0x110] sm:$0xf] %vm1711, %v1767
    %1792 = vst.msk [vmem:[#allocation3 + $0x120] sm:$0xf] %vm1711, %v1768
    %1793 = vst.msk [vmem:[#allocation3 + $0x130] sm:$0xf] %vm1711, %v1769
    %1794 = vst.msk [vmem:[#allocation3 + $0x140] sm:$0xf] %vm1711, %v1770
    %1795 = vst.msk [vmem:[#allocation3 + $0x150] sm:$0xf] %vm1711, %v1771
    %1796 = vst.msk [vmem:[#allocation3 + $0x160] sm:$0xf] %vm1711, %v1772
    %1797 = vst.msk [vmem:[#allocation3 + $0x170] sm:$0xf] %vm1711, %v1773
    %v1798 = vld [vmem:[#allocation2] sm:$0xf]
    %v1799 = vld [vmem:[#allocation2 + $0x4] sm:$0xf]
    %v1800 = vld [vmem:[#allocation2 + $0x8] sm:$0xf]
    %v1801 = vld [vmem:[#allocation2 + $0xc] sm:$0xf]
    %v1802 = vld [vmem:[#allocation2 + $0x10] sm:$0xf]
    %v1803 = vld [vmem:[#allocation2 + $0x14] sm:$0xf]
    %v1804 = vld [vmem:[#allocation2 + $0x18] sm:$0xf]
    %v1805 = vld [vmem:[#allocation2 + $0x1c] sm:$0xf]
    %v1806 = vld [vmem:[#allocation2 + $0x20] sm:$0xf]
    %v1807 = vld [vmem:[#allocation2 + $0x24] sm:$0xf]
    %v1808 = vld [vmem:[#allocation2 + $0x28] sm:$0xf]
    %v1809 = vld [vmem:[#allocation2 + $0x2c] sm:$0xf]
    %v1810 = vld [vmem:[#allocation2 + $0x30] sm:$0x1]
    %v1811 = vld [vmem:[#allocation2 + $0x4c] sm:$0xf]
    %v1812 = vld [vmem:[#allocation2 + $0x50] sm:$0xf]
    %v1813 = vld [vmem:[#allocation2 + $0x54] sm:$0xf]
    %v1814 = vld [vmem:[#allocation2 + $0x58] sm:$0xf]
    %v1815 = vld [vmem:[#allocation2 + $0x5c] sm:$0xf]
    %v1816 = vld [vmem:[#allocation2 + $0x60] sm:$0xf]
    %v1817 = vld [vmem:[#allocation2 + $0x64] sm:$0xf]
    %v1818 = vld [vmem:[#allocation2 + $0x68] sm:$0xf]
    %v1819 = vld [vmem:[#allocation2 + $0x6c] sm:$0xf]
    %v1820 = vld [vmem:[#allocation2 + $0x70] sm:$0xf]
    %v1821 = vld [vmem:[#allocation2 + $0x74] sm:$0xf]
    %v1822 = vld [vmem:[#allocation2 + $0x78] sm:$0xf]
    %v1823 = vld [vmem:[#allocation2 + $0x7c] sm:$0x1]
    %vm1824 = vsmask.f32 3328
    %vm1825 = vsmask.f32 7440
    %vm1826 = vmor %vm1824, %vm1825
    %v1828 = vshrl.u32 %v1798, 16
    %v1830 = vrot.slane %v1828, 4
    %v1831 = vshll.u32 %v1798, 16
    %v1833 = vrot.slane %v1831, 5
    %v1834 = vor.u32 %v1830, %v1833
    %v1835 = vrot.slane %v1834, 4
    %v1837 = vshll.u32 %v1799, 16
    %v1839 = vrot.slane %v1837, 5
    %v1840 = vsel %vm1826, %v1835, %v1839
    %v1841 = vshrl.u32 %v1799, 16
    %v1843 = vrot.slane %v1841, 4
    %v1844 = vor.u32 %v1843, %v1839
    %v1845 = vrot.slane %v1844, 4
    %v1847 = vshll.u32 %v1800, 16
    %v1849 = vrot.slane %v1847, 5
    %v1850 = vsel %vm1826, %v1845, %v1849
    %v1851 = vshrl.u32 %v1800, 16
    %v1853 = vrot.slane %v1851, 4
    %v1854 = vor.u32 %v1853, %v1849
    %v1855 = vrot.slane %v1854, 4
    %v1857 = vshll.u32 %v1801, 16
    %v1859 = vrot.slane %v1857, 5
    %v1860 = vsel %vm1826, %v1855, %v1859
    %v1861 = vshrl.u32 %v1801, 16
    %v1863 = vrot.slane %v1861, 4
    %v1864 = vor.u32 %v1863, %v1859
    %v1865 = vrot.slane %v1864, 4
    %v1867 = vshll.u32 %v1802, 16
    %v1869 = vrot.slane %v1867, 5
    %v1870 = vsel %vm1826, %v1865, %v1869
    %v1871 = vshrl.u32 %v1802, 16
    %v1873 = vrot.slane %v1871, 4
    %v1874 = vor.u32 %v1873, %v1869
    %v1875 = vrot.slane %v1874, 4
    %v1877 = vshll.u32 %v1803, 16
    %v1879 = vrot.slane %v1877, 5
    %v1880 = vsel %vm1826, %v1875, %v1879
    %v1881 = vshrl.u32 %v1803, 16
    %v1883 = vrot.slane %v1881, 4
    %v1884 = vor.u32 %v1883, %v1879
    %v1885 = vrot.slane %v1884, 4
    %v1887 = vshll.u32 %v1804, 16
    %v1889 = vrot.slane %v1887, 5
    %v1890 = vsel %vm1826, %v1885, %v1889
    %v1891 = vshrl.u32 %v1804, 16
    %v1893 = vrot.slane %v1891, 4
    %v1894 = vor.u32 %v1893, %v1889
    %v1895 = vrot.slane %v1894, 4
    %v1897 = vshll.u32 %v1805, 16
    %v1899 = vrot.slane %v1897, 5
    %v1900 = vsel %vm1826, %v1895, %v1899
    %v1901 = vshrl.u32 %v1805, 16
    %v1903 = vrot.slane %v1901, 4
    %v1904 = vor.u32 %v1903, %v1899
    %v1905 = vrot.slane %v1904, 4
    %v1907 = vshll.u32 %v1806, 16
    %v1909 = vrot.slane %v1907, 5
    %v1910 = vsel %vm1826, %v1905, %v1909
    %v1911 = vshrl.u32 %v1806, 16
    %v1913 = vrot.slane %v1911, 4
    %v1914 = vor.u32 %v1913, %v1909
    %v1915 = vrot.slane %v1914, 4
    %v1917 = vshll.u32 %v1807, 16
    %v1919 = vrot.slane %v1917, 5
    %v1920 = vsel %vm1826, %v1915, %v1919
    %v1921 = vshrl.u32 %v1807, 16
    %v1923 = vrot.slane %v1921, 4
    %v1924 = vor.u32 %v1923, %v1919
    %v1925 = vrot.slane %v1924, 4
    %v1927 = vshll.u32 %v1808, 16
    %v1929 = vrot.slane %v1927, 5
    %v1930 = vsel %vm1826, %v1925, %v1929
    %v1931 = vshrl.u32 %v1808, 16
    %v1933 = vrot.slane %v1931, 4
    %v1934 = vor.u32 %v1933, %v1929
    %v1935 = vrot.slane %v1934, 4
    %v1937 = vshll.u32 %v1809, 16
    %v1939 = vrot.slane %v1937, 5
    %v1940 = vsel %vm1826, %v1935, %v1939
    %v1941 = vshrl.u32 %v1809, 16
    %v1943 = vrot.slane %v1941, 4
    %v1944 = vor.u32 %v1943, %v1939
    %v1945 = vrot.slane %v1944, 4
    %v1947 = vshll.u32 %v1810, 16
    %v1949 = vrot.slane %v1947, 5
    %v1950 = vsel %vm1826, %v1945, %v1949
    %v1952 = vshrl.u32 %v1811, 16
    %v1954 = vrot.slane %v1952, 4
    %v1955 = vshll.u32 %v1811, 16
    %v1957 = vrot.slane %v1955, 5
    %v1958 = vor.u32 %v1954, %v1957
    %v1959 = vrot.slane %v1958, 4
    %v1961 = vshll.u32 %v1812, 16
    %v1963 = vrot.slane %v1961, 5
    %v1964 = vsel %vm1826, %v1959, %v1963
    %v1965 = vshrl.u32 %v1812, 16
    %v1967 = vrot.slane %v1965, 4
    %v1968 = vor.u32 %v1967, %v1963
    %v1969 = vrot.slane %v1968, 4
    %v1971 = vshll.u32 %v1813, 16
    %v1973 = vrot.slane %v1971, 5
    %v1974 = vsel %vm1826, %v1969, %v1973
    %v1975 = vshrl.u32 %v1813, 16
    %v1977 = vrot.slane %v1975, 4
    %v1978 = vor.u32 %v1977, %v1973
    %v1979 = vrot.slane %v1978, 4
    %v1981 = vshll.u32 %v1814, 16
    %v1983 = vrot.slane %v1981, 5
    %v1984 = vsel %vm1826, %v1979, %v1983
    %v1985 = vshrl.u32 %v1814, 16
    %v1987 = vrot.slane %v1985, 4
    %v1988 = vor.u32 %v1987, %v1983
    %v1989 = vrot.slane %v1988, 4
    %v1991 = vshll.u32 %v1815, 16
    %v1993 = vrot.slane %v1991, 5
    %v1994 = vsel %vm1826, %v1989, %v1993
    %v1995 = vshrl.u32 %v1815, 16
    %v1997 = vrot.slane %v1995, 4
    %v1998 = vor.u32 %v1997, %v1993
    %v1999 = vrot.slane %v1998, 4
    %v2001 = vshll.u32 %v1816, 16
    %v2003 = vrot.slane %v2001, 5
    %v2004 = vsel %vm1826, %v1999, %v2003
    %v2005 = vshrl.u32 %v1816, 16
    %v2007 = vrot.slane %v2005, 4
    %v2008 = vor.u32 %v2007, %v2003
    %v2009 = vrot.slane %v2008, 4
    %v2011 = vshll.u32 %v1817, 16
    %v2013 = vrot.slane %v2011, 5
    %v2014 = vsel %vm1826, %v2009, %v2013
    %v2015 = vshrl.u32 %v1817, 16
    %v2017 = vrot.slane %v2015, 4
    %v2018 = vor.u32 %v2017, %v2013
    %v2019 = vrot.slane %v2018, 4
    %v2021 = vshll.u32 %v1818, 16
    %v2023 = vrot.slane %v2021, 5
    %v2024 = vsel %vm1826, %v2019, %v2023
    %v2025 = vshrl.u32 %v1818, 16
    %v2027 = vrot.slane %v2025, 4
    %v2028 = vor.u32 %v2027, %v2023
    %v2029 = vrot.slane %v2028, 4
    %v2031 = vshll.u32 %v1819, 16
    %v2033 = vrot.slane %v2031, 5
    %v2034 = vsel %vm1826, %v2029, %v2033
    %v2035 = vshrl.u32 %v1819, 16
    %v2037 = vrot.slane %v2035, 4
    %v2038 = vor.u32 %v2037, %v2033
    %v2039 = vrot.slane %v2038, 4
    %v2041 = vshll.u32 %v1820, 16
    %v2043 = vrot.slane %v2041, 5
    %v2044 = vsel %vm1826, %v2039, %v2043
    %v2045 = vshrl.u32 %v1820, 16
    %v2047 = vrot.slane %v2045, 4
    %v2048 = vor.u32 %v2047, %v2043
    %v2049 = vrot.slane %v2048, 4
    %v2051 = vshll.u32 %v1821, 16
    %v2053 = vrot.slane %v2051, 5
    %v2054 = vsel %vm1826, %v2049, %v2053
    %v2055 = vshrl.u32 %v1821, 16
    %v2057 = vrot.slane %v2055, 4
    %v2058 = vor.u32 %v2057, %v2053
    %v2059 = vrot.slane %v2058, 4
    %v2061 = vshll.u32 %v1822, 16
    %v2063 = vrot.slane %v2061, 5
    %v2064 = vsel %vm1826, %v2059, %v2063
    %v2065 = vshrl.u32 %v1822, 16
    %v2067 = vrot.slane %v2065, 4
    %v2068 = vor.u32 %v2067, %v2063
    %v2069 = vrot.slane %v2068, 4
    %v2071 = vshll.u32 %v1823, 16
    %v2073 = vrot.slane %v2071, 5
    %v2074 = vsel %vm1826, %v2069, %v2073
    %2075 = vrot.lane.b32.xlu0 %v1840, 20
    %v2076 = vpop.permute.xlu0 %2075
    %2077 = vrot.lane.b32.xlu0 %v1850, 20
    %v2078 = vpop.permute.xlu0 %2077
    %2079 = vrot.lane.b32.xlu0 %v1860, 20
    %v2080 = vpop.permute.xlu0 %2079
    %2081 = vrot.lane.b32.xlu0 %v1870, 20
    %v2082 = vpop.permute.xlu0 %2081
    %2083 = vrot.lane.b32.xlu0 %v1880, 20
    %v2084 = vpop.permute.xlu0 %2083
    %2085 = vrot.lane.b32.xlu0 %v1890, 20
    %v2086 = vpop.permute.xlu0 %2085
    %2087 = vrot.lane.b32.xlu0 %v1900, 20
    %v2088 = vpop.permute.xlu0 %2087
    %2089 = vrot.lane.b32.xlu0 %v1910, 20
    %v2090 = vpop.permute.xlu0 %2089
    %2091 = vrot.lane.b32.xlu0 %v1920, 20
    %v2092 = vpop.permute.xlu0 %2091
    %2093 = vrot.lane.b32.xlu0 %v1930, 20
    %v2094 = vpop.permute.xlu0 %2093
    %2095 = vrot.lane.b32.xlu0 %v1940, 20
    %v2096 = vpop.permute.xlu0 %2095
    %2097 = vrot.lane.b32.xlu0 %v1950, 20
    %v2098 = vpop.permute.xlu0 %2097
    %2099 = vrot.lane.b32.xlu0 %v1964, 20
    %v2100 = vpop.permute.xlu0 %2099
    %2101 = vrot.lane.b32.xlu0 %v1974, 20
    %v2102 = vpop.permute.xlu0 %2101
    %2103 = vrot.lane.b32.xlu0 %v1984, 20
    %v2104 = vpop.permute.xlu0 %2103
    %2105 = vrot.lane.b32.xlu0 %v1994, 20
    %v2106 = vpop.permute.xlu0 %2105
    %2107 = vrot.lane.b32.xlu0 %v2004, 20
    %v2108 = vpop.permute.xlu0 %2107
    %2109 = vrot.lane.b32.xlu0 %v2014, 20
    %v2110 = vpop.permute.xlu0 %2109
    %2111 = vrot.lane.b32.xlu0 %v2024, 20
    %v2112 = vpop.permute.xlu0 %2111
    %2113 = vrot.lane.b32.xlu0 %v2034, 20
    %v2114 = vpop.permute.xlu0 %2113
    %2115 = vrot.lane.b32.xlu0 %v2044, 20
    %v2116 = vpop.permute.xlu0 %2115
    %2117 = vrot.lane.b32.xlu0 %v2054, 20
    %v2118 = vpop.permute.xlu0 %2117
    %2119 = vrot.lane.b32.xlu0 %v2064, 20
    %v2120 = vpop.permute.xlu0 %2119
    %2121 = vrot.lane.b32.xlu0 %v2074, 20
    %v2122 = vpop.permute.xlu0 %2121
    %vm2147 = vcmask 322720
    %2148 = vst.msk [vmem:[#allocation3] sm:$0xf] %vm2147, %v2076
    %2149 = vst.msk [vmem:[#allocation3 + $0x10] sm:$0xf] %vm2147, %v2078
    %2150 = vst.msk [vmem:[#allocation3 + $0x20] sm:$0xf] %vm2147, %v2080
    %2151 = vst.msk [vmem:[#allocation3 + $0x30] sm:$0xf] %vm2147, %v2082
    %2152 = vst.msk [vmem:[#allocation3 + $0x40] sm:$0xf] %vm2147, %v2084
    %2153 = vst.msk [vmem:[#allocation3 + $0x50] sm:$0xf] %vm2147, %v2086
    %2154 = vst.msk [vmem:[#allocation3 + $0x60] sm:$0xf] %vm2147, %v2088
    %2155 = vst.msk [vmem:[#allocation3 + $0x70] sm:$0xf] %vm2147, %v2090
    %2156 = vst.msk [vmem:[#allocation3 + $0x80] sm:$0xf] %vm2147, %v2092
    %2157 = vst.msk [vmem:[#allocation3 + $0x90] sm:$0xf] %vm2147, %v2094
    %2158 = vst.msk [vmem:[#allocation3 + $0xa0] sm:$0xf] %vm2147, %v2096
    %2159 = vst.msk [vmem:[#allocation3 + $0xb0] sm:$0xf] %vm2147, %v2098
    %2160 = vst.msk [vmem:[#allocation3 + $0xc0] sm:$0xf] %vm2147, %v2100
    %2161 = vst.msk [vmem:[#allocation3 + $0xd0] sm:$0xf] %vm2147, %v2102
    %2162 = vst.msk [vmem:[#allocation3 + $0xe0] sm:$0xf] %vm2147, %v2104
    %2163 = vst.msk [vmem:[#allocation3 + $0xf0] sm:$0xf] %vm2147, %v2106
    %2164 = vst.msk [vmem:[#allocation3 + $0x100] sm:$0xf] %vm2147, %v2108
    %2165 = vst.msk [vmem:[#allocation3 + $0x110] sm:$0xf] %vm2147, %v2110
    %2166 = vst.msk [vmem:[#allocation3 + $0x120] sm:$0xf] %vm2147, %v2112
    %2167 = vst.msk [vmem:[#allocation3 + $0x130] sm:$0xf] %vm2147, %v2114
    %2168 = vst.msk [vmem:[#allocation3 + $0x140] sm:$0xf] %vm2147, %v2116
    %2169 = vst.msk [vmem:[#allocation3 + $0x150] sm:$0xf] %vm2147, %v2118
    %2170 = vst.msk [vmem:[#allocation3 + $0x160] sm:$0xf] %vm2147, %v2120
    %2171 = vst.msk [vmem:[#allocation3 + $0x170] sm:$0xf] %vm2147, %v2122
    %v2172 = vld [vmem:[#allocation2] sm:$0xe]
    %v2173 = vld [vmem:[#allocation2 + $0x4] sm:$0xf]
    %v2174 = vld [vmem:[#allocation2 + $0x8] sm:$0xf]
    %v2175 = vld [vmem:[#allocation2 + $0xc] sm:$0xf]
    %v2176 = vld [vmem:[#allocation2 + $0x10] sm:$0xf]
    %v2177 = vld [vmem:[#allocation2 + $0x14] sm:$0xf]
    %v2178 = vld [vmem:[#allocation2 + $0x18] sm:$0xf]
    %v2179 = vld [vmem:[#allocation2 + $0x1c] sm:$0xf]
    %v2180 = vld [vmem:[#allocation2 + $0x20] sm:$0xf]
    %v2181 = vld [vmem:[#allocation2 + $0x24] sm:$0xf]
    %v2182 = vld [vmem:[#allocation2 + $0x28] sm:$0xf]
    %v2183 = vld [vmem:[#allocation2 + $0x2c] sm:$0xf]
    %v2184 = vld [vmem:[#allocation2 + $0x30] sm:$0x1]
    %v2185 = vld [vmem:[#allocation2 + $0x4c] sm:$0xe]
    %v2186 = vld [vmem:[#allocation2 + $0x50] sm:$0xf]
    %v2187 = vld [vmem:[#allocation2 + $0x54] sm:$0xf]
    %v2188 = vld [vmem:[#allocation2 + $0x58] sm:$0xf]
    %v2189 = vld [vmem:[#allocation2 + $0x5c] sm:$0xf]
    %v2190 = vld [vmem:[#allocation2 + $0x60] sm:$0xf]
    %v2191 = vld [vmem:[#allocation2 + $0x64] sm:$0xf]
    %v2192 = vld [vmem:[#allocation2 + $0x68] sm:$0xf]
    %v2193 = vld [vmem:[#allocation2 + $0x6c] sm:$0xf]
    %v2194 = vld [vmem:[#allocation2 + $0x70] sm:$0xf]
    %v2195 = vld [vmem:[#allocation2 + $0x74] sm:$0xf]
    %v2196 = vld [vmem:[#allocation2 + $0x78] sm:$0xf]
    %v2197 = vld [vmem:[#allocation2 + $0x7c] sm:$0x1]
    %vm2224 = vcmask 1042432
    %vm2225 = vcmask 1046532
    %vm2226 = vmor %vm2224, %vm2225
    %v2227 = vrot.slane %v2172, 5
    %v2228 = vrot.slane %v2227, 4
    %v2229 = vrot.slane %v2173, 5
    %v2230 = vsel %vm2226, %v2228, %v2229
    %v2231 = vrot.slane %v2229, 4
    %v2232 = vrot.slane %v2174, 5
    %v2233 = vsel %vm2226, %v2231, %v2232
    %v2234 = vrot.slane %v2232, 4
    %v2235 = vrot.slane %v2175, 5
    %v2236 = vsel %vm2226, %v2234, %v2235
    %v2237 = vrot.slane %v2235, 4
    %v2238 = vrot.slane %v2176, 5
    %v2239 = vsel %vm2226, %v2237, %v2238
    %v2240 = vrot.slane %v2238, 4
    %v2241 = vrot.slane %v2177, 5
    %v2242 = vsel %vm2226, %v2240, %v2241
    %v2243 = vrot.slane %v2241, 4
    %v2244 = vrot.slane %v2178, 5
    %v2245 = vsel %vm2226, %v2243, %v2244
    %v2246 = vrot.slane %v2244, 4
    %v2247 = vrot.slane %v2179, 5
    %v2248 = vsel %vm2226, %v2246, %v2247
    %v2249 = vrot.slane %v2247, 4
    %v2250 = vrot.slane %v2180, 5
    %v2251 = vsel %vm2226, %v2249, %v2250
    %v2252 = vrot.slane %v2250, 4
    %v2253 = vrot.slane %v2181, 5
    %v2254 = vsel %vm2226, %v2252, %v2253
    %v2255 = vrot.slane %v2253, 4
    %v2256 = vrot.slane %v2182, 5
    %v2257 = vsel %vm2226, %v2255, %v2256
    %v2258 = vrot.slane %v2256, 4
    %v2259 = vrot.slane %v2183, 5
    %v2260 = vsel %vm2226, %v2258, %v2259
    %v2261 = vrot.slane %v2259, 4
    %v2262 = vrot.slane %v2184, 5
    %v2263 = vsel %vm2226, %v2261, %v2262
    %v2264 = vrot.slane %v2185, 5
    %v2265 = vrot.slane %v2264, 4
    %v2266 = vrot.slane %v2186, 5
    %v2267 = vsel %vm2226, %v2265, %v2266
    %v2268 = vrot.slane %v2266, 4
    %v2269 = vrot.slane %v2187, 5
    %v2270 = vsel %vm2226, %v2268, %v2269
    %v2271 = vrot.slane %v2269, 4
    %v2272 = vrot.slane %v2188, 5
    %v2273 = vsel %vm2226, %v2271, %v2272
    %v2274 = vrot.slane %v2272, 4
    %v2275 = vrot.slane %v2189, 5
    %v2276 = vsel %vm2226, %v2274, %v2275
    %v2277 = vrot.slane %v2275, 4
    %v2278 = vrot.slane %v2190, 5
    %v2279 = vsel %vm2226, %v2277, %v2278
    %v2280 = vrot.slane %v2278, 4
    %v2281 = vrot.slane %v2191, 5
    %v2282 = vsel %vm2226, %v2280, %v2281
    %v2283 = vrot.slane %v2281, 4
    %v2284 = vrot.slane %v2192, 5
    %v2285 = vsel %vm2226, %v2283, %v2284
    %v2286 = vrot.slane %v2284, 4
    %v2287 = vrot.slane %v2193, 5
    %v2288 = vsel %vm2226, %v2286, %v2287
    %v2289 = vrot.slane %v2287, 4
    %v2290 = vrot.slane %v2194, 5
    %v2291 = vsel %vm2226, %v2289, %v2290
    %v2292 = vrot.slane %v2290, 4
    %v2293 = vrot.slane %v2195, 5
    %v2294 = vsel %vm2226, %v2292, %v2293
    %v2295 = vrot.slane %v2293, 4
    %v2296 = vrot.slane %v2196, 5
    %v2297 = vsel %vm2226, %v2295, %v2296
    %v2298 = vrot.slane %v2296, 4
    %v2299 = vrot.slane %v2197, 5
    %v2300 = vsel %vm2226, %v2298, %v2299
    %2301 = vrot.lane.b32.xlu0 %v2230, 40
    %v2302 = vpop.permute.xlu0 %2301
    %2303 = vrot.lane.b32.xlu0 %v2233, 40
    %v2304 = vpop.permute.xlu0 %2303
    %2305 = vrot.lane.b32.xlu0 %v2236, 40
    %v2306 = vpop.permute.xlu0 %2305
    %2307 = vrot.lane.b32.xlu0 %v2239, 40
    %v2308 = vpop.permute.xlu0 %2307
    %2309 = vrot.lane.b32.xlu0 %v2242, 40
    %v2310 = vpop.permute.xlu0 %2309
    %2311 = vrot.lane.b32.xlu0 %v2245, 40
    %v2312 = vpop.permute.xlu0 %2311
    %2313 = vrot.lane.b32.xlu0 %v2248, 40
    %v2314 = vpop.permute.xlu0 %2313
    %2315 = vrot.lane.b32.xlu0 %v2251, 40
    %v2316 = vpop.permute.xlu0 %2315
    %2317 = vrot.lane.b32.xlu0 %v2254, 40
    %v2318 = vpop.permute.xlu0 %2317
    %2319 = vrot.lane.b32.xlu0 %v2257, 40
    %v2320 = vpop.permute.xlu0 %2319
    %2321 = vrot.lane.b32.xlu0 %v2260, 40
    %v2322 = vpop.permute.xlu0 %2321
    %2323 = vrot.lane.b32.xlu0 %v2263, 40
    %v2324 = vpop.permute.xlu0 %2323
    %2325 = vrot.lane.b32.xlu0 %v2267, 40
    %v2326 = vpop.permute.xlu0 %2325
    %2327 = vrot.lane.b32.xlu0 %v2270, 40
    %v2328 = vpop.permute.xlu0 %2327
    %2329 = vrot.lane.b32.xlu0 %v2273, 40
    %v2330 = vpop.permute.xlu0 %2329
    %2331 = vrot.lane.b32.xlu0 %v2276, 40
    %v2332 = vpop.permute.xlu0 %2331
    %2333 = vrot.lane.b32.xlu0 %v2279, 40
    %v2334 = vpop.permute.xlu0 %2333
    %2335 = vrot.lane.b32.xlu0 %v2282, 40
    %v2336 = vpop.permute.xlu0 %2335
    %2337 = vrot.lane.b32.xlu0 %v2285, 40
    %v2338 = vpop.permute.xlu0 %2337
    %2339 = vrot.lane.b32.xlu0 %v2288, 40
    %v2340 = vpop.permute.xlu0 %2339
    %2341 = vrot.lane.b32.xlu0 %v2291, 40
    %v2342 = vpop.permute.xlu0 %2341
    %2343 = vrot.lane.b32.xlu0 %v2294, 40
    %v2344 = vpop.permute.xlu0 %2343
    %2345 = vrot.lane.b32.xlu0 %v2297, 40
    %v2346 = vpop.permute.xlu0 %2345
    %2347 = vrot.lane.b32.xlu0 %v2300, 40
    %v2348 = vpop.permute.xlu0 %2347
    %vm2373 = vcmask 486720
    %2374 = vst.msk [vmem:[#allocation3] sm:$0xf] %vm2373, %v2302
    %2375 = vst.msk [vmem:[#allocation3 + $0x10] sm:$0xf] %vm2373, %v2304
    %2376 = vst.msk [vmem:[#allocation3 + $0x20] sm:$0xf] %vm2373, %v2306
    %2377 = vst.msk [vmem:[#allocation3 + $0x30] sm:$0xf] %vm2373, %v2308
    %2378 = vst.msk [vmem:[#allocation3 + $0x40] sm:$0xf] %vm2373, %v2310
    %2379 = vst.msk [vmem:[#allocation3 + $0x50] sm:$0xf] %vm2373, %v2312
    %2380 = vst.msk [vmem:[#allocation3 + $0x60] sm:$0xf] %vm2373, %v2314
    %2381 = vst.msk [vmem:[#allocation3 + $0x70] sm:$0xf] %vm2373, %v2316
    %2382 = vst.msk [vmem:[#allocation3 + $0x80] sm:$0xf] %vm2373, %v2318
    %2383 = vst.msk [vmem:[#allocation3 + $0x90] sm:$0xf] %vm2373, %v2320
    %2384 = vst.msk [vmem:[#allocation3 + $0xa0] sm:$0xf] %vm2373, %v2322
    %2385 = vst.msk [vmem:[#allocation3 + $0xb0] sm:$0xf] %vm2373, %v2324
    %2386 = vst.msk [vmem:[#allocation3 + $0xc0] sm:$0xf] %vm2373, %v2326
    %2387 = vst.msk [vmem:[#allocation3 + $0xd0] sm:$0xf] %vm2373, %v2328
    %2388 = vst.msk [vmem:[#allocation3 + $0xe0] sm:$0xf] %vm2373, %v2330
    %2389 = vst.msk [vmem:[#allocation3 + $0xf0] sm:$0xf] %vm2373, %v2332
    %2390 = vst.msk [vmem:[#allocation3 + $0x100] sm:$0xf] %vm2373, %v2334
    %2391 = vst.msk [vmem:[#allocation3 + $0x110] sm:$0xf] %vm2373, %v2336
    %2392 = vst.msk [vmem:[#allocation3 + $0x120] sm:$0xf] %vm2373, %v2338
    %2393 = vst.msk [vmem:[#allocation3 + $0x130] sm:$0xf] %vm2373, %v2340
    %2394 = vst.msk [vmem:[#allocation3 + $0x140] sm:$0xf] %vm2373, %v2342
    %2395 = vst.msk [vmem:[#allocation3 + $0x150] sm:$0xf] %vm2373, %v2344
    %2396 = vst.msk [vmem:[#allocation3 + $0x160] sm:$0xf] %vm2373, %v2346
    %2397 = vst.msk [vmem:[#allocation3 + $0x170] sm:$0xf] %vm2373, %v2348
    %v2398 = vld [vmem:[#allocation2] sm:$0xe]
    %v2399 = vld [vmem:[#allocation2 + $0x4] sm:$0xf]
    %v2400 = vld [vmem:[#allocation2 + $0x8] sm:$0xf]
    %v2401 = vld [vmem:[#allocation2 + $0xc] sm:$0xf]
    %v2402 = vld [vmem:[#allocation2 + $0x10] sm:$0xf]
    %v2403 = vld [vmem:[#allocation2 + $0x14] sm:$0xf]
    %v2404 = vld [vmem:[#allocation2 + $0x18] sm:$0xf]
    %v2405 = vld [vmem:[#allocation2 + $0x1c] sm:$0xf]
    %v2406 = vld [vmem:[#allocation2 + $0x20] sm:$0xf]
    %v2407 = vld [vmem:[#allocation2 + $0x24] sm:$0xf]
    %v2408 = vld [vmem:[#allocation2 + $0x28] sm:$0xf]
    %v2409 = vld [vmem:[#allocation2 + $0x2c] sm:$0xf]
    %v2410 = vld [vmem:[#allocation2 + $0x30] sm:$0x3]
    %v2411 = vld [vmem:[#allocation2 + $0x4c] sm:$0xe]
    %v2412 = vld [vmem:[#allocation2 + $0x50] sm:$0xf]
    %v2413 = vld [vmem:[#allocation2 + $0x54] sm:$0xf]
    %v2414 = vld [vmem:[#allocation2 + $0x58] sm:$0xf]
    %v2415 = vld [vmem:[#allocation2 + $0x5c] sm:$0xf]
    %v2416 = vld [vmem:[#allocation2 + $0x60] sm:$0xf]
    %v2417 = vld [vmem:[#allocation2 + $0x64] sm:$0xf]
    %v2418 = vld [vmem:[#allocation2 + $0x68] sm:$0xf]
    %v2419 = vld [vmem:[#allocation2 + $0x6c] sm:$0xf]
    %v2420 = vld [vmem:[#allocation2 + $0x70] sm:$0xf]
    %v2421 = vld [vmem:[#allocation2 + $0x74] sm:$0xf]
    %v2422 = vld [vmem:[#allocation2 + $0x78] sm:$0xf]
    %v2423 = vld [vmem:[#allocation2 + $0x7c] sm:$0x3]
    %vm2424 = vsmask.f32 2304
    %vm2425 = vsmask.f32 6416
    %vm2426 = vmor %vm2424, %vm2425
    %v2428 = vshrl.u32 %v2398, 16
    %v2430 = vrot.slane %v2428, 5
    %v2431 = vshll.u32 %v2398, 16
    %v2433 = vrot.slane %v2431, 6
    %v2434 = vor.u32 %v2430, %v2433
    %v2435 = vrot.slane %v2434, 4
    %v2437 = vshrl.u32 %v2399, 16
    %v2439 = vrot.slane %v2437, 5
    %v2440 = vshll.u32 %v2399, 16
    %v2442 = vrot.slane %v2440, 6
    %v2443 = vor.u32 %v2439, %v2442
    %v2444 = vsel %vm2426, %v2435, %v2443
    %v2445 = vrot.slane %v2443, 4
    %v2447 = vshrl.u32 %v2400, 16
    %v2449 = vrot.slane %v2447, 5
    %v2450 = vshll.u32 %v2400, 16
    %v2452 = vrot.slane %v2450, 6
    %v2453 = vor.u32 %v2449, %v2452
    %v2454 = vsel %vm2426, %v2445, %v2453
    %v2455 = vrot.slane %v2453, 4
    %v2457 = vshrl.u32 %v2401, 16
    %v2459 = vrot.slane %v2457, 5
    %v2460 = vshll.u32 %v2401, 16
    %v2462 = vrot.slane %v2460, 6
    %v2463 = vor.u32 %v2459, %v2462
    %v2464 = vsel %vm2426, %v2455, %v2463
    %v2465 = vrot.slane %v2463, 4
    %v2467 = vshrl.u32 %v2402, 16
    %v2469 = vrot.slane %v2467, 5
    %v2470 = vshll.u32 %v2402, 16
    %v2472 = vrot.slane %v2470, 6
    %v2473 = vor.u32 %v2469, %v2472
    %v2474 = vsel %vm2426, %v2465, %v2473
    %v2475 = vrot.slane %v2473, 4
    %v2477 = vshrl.u32 %v2403, 16
    %v2479 = vrot.slane %v2477, 5
    %v2480 = vshll.u32 %v2403, 16
    %v2482 = vrot.slane %v2480, 6
    %v2483 = vor.u32 %v2479, %v2482
    %v2484 = vsel %vm2426, %v2475, %v2483
    %v2485 = vrot.slane %v2483, 4
    %v2487 = vshrl.u32 %v2404, 16
    %v2489 = vrot.slane %v2487, 5
    %v2490 = vshll.u32 %v2404, 16
    %v2492 = vrot.slane %v2490, 6
    %v2493 = vor.u32 %v2489, %v2492
    %v2494 = vsel %vm2426, %v2485, %v2493
    %v2495 = vrot.slane %v2493, 4
    %v2497 = vshrl.u32 %v2405, 16
    %v2499 = vrot.slane %v2497, 5
    %v2500 = vshll.u32 %v2405, 16
    %v2502 = vrot.slane %v2500, 6
    %v2503 = vor.u32 %v2499, %v2502
    %v2504 = vsel %vm2426, %v2495, %v2503
    %v2505 = vrot.slane %v2503, 4
    %v2507 = vshrl.u32 %v2406, 16
    %v2509 = vrot.slane %v2507, 5
    %v2510 = vshll.u32 %v2406, 16
    %v2512 = vrot.slane %v2510, 6
    %v2513 = vor.u32 %v2509, %v2512
    %v2514 = vsel %vm2426, %v2505, %v2513
    %v2515 = vrot.slane %v2513, 4
    %v2517 = vshrl.u32 %v2407, 16
    %v2519 = vrot.slane %v2517, 5
    %v2520 = vshll.u32 %v2407, 16
    %v2522 = vrot.slane %v2520, 6
    %v2523 = vor.u32 %v2519, %v2522
    %v2524 = vsel %vm2426, %v2515, %v2523
    %v2525 = vrot.slane %v2523, 4
    %v2527 = vshrl.u32 %v2408, 16
    %v2529 = vrot.slane %v2527, 5
    %v2530 = vshll.u32 %v2408, 16
    %v2532 = vrot.slane %v2530, 6
    %v2533 = vor.u32 %v2529, %v2532
    %v2534 = vsel %vm2426, %v2525, %v2533
    %v2535 = vrot.slane %v2533, 4
    %v2537 = vshrl.u32 %v2409, 16
    %v2539 = vrot.slane %v2537, 5
    %v2540 = vshll.u32 %v2409, 16
    %v2542 = vrot.slane %v2540, 6
    %v2543 = vor.u32 %v2539, %v2542
    %v2544 = vsel %vm2426, %v2535, %v2543
    %v2545 = vrot.slane %v2543, 4
    %v2547 = vshrl.u32 %v2410, 16
    %v2549 = vrot.slane %v2547, 5
    %v2550 = vshll.u32 %v2410, 16
    %v2552 = vrot.slane %v2550, 6
    %v2553 = vor.u32 %v2549, %v2552
    %v2554 = vsel %vm2426, %v2545, %v2553
    %v2556 = vshrl.u32 %v2411, 16
    %v2558 = vrot.slane %v2556, 5
    %v2559 = vshll.u32 %v2411, 16
    %v2561 = vrot.slane %v2559, 6
    %v2562 = vor.u32 %v2558, %v2561
    %v2563 = vrot.slane %v2562, 4
    %v2565 = vshrl.u32 %v2412, 16
    %v2567 = vrot.slane %v2565, 5
    %v2568 = vshll.u32 %v2412, 16
    %v2570 = vrot.slane %v2568, 6
    %v2571 = vor.u32 %v2567, %v2570
    %v2572 = vsel %vm2426, %v2563, %v2571
    %v2573 = vrot.slane %v2571, 4
    %v2575 = vshrl.u32 %v2413, 16
    %v2577 = vrot.slane %v2575, 5
    %v2578 = vshll.u32 %v2413, 16
    %v2580 = vrot.slane %v2578, 6
    %v2581 = vor.u32 %v2577, %v2580
    %v2582 = vsel %vm2426, %v2573, %v2581
    %v2583 = vrot.slane %v2581, 4
    %v2585 = vshrl.u32 %v2414, 16
    %v2587 = vrot.slane %v2585, 5
    %v2588 = vshll.u32 %v2414, 16
    %v2590 = vrot.slane %v2588, 6
    %v2591 = vor.u32 %v2587, %v2590
    %v2592 = vsel %vm2426, %v2583, %v2591
    %v2593 = vrot.slane %v2591, 4
    %v2595 = vshrl.u32 %v2415, 16
    %v2597 = vrot.slane %v2595, 5
    %v2598 = vshll.u32 %v2415, 16
    %v2600 = vrot.slane %v2598, 6
    %v2601 = vor.u32 %v2597, %v2600
    %v2602 = vsel %vm2426, %v2593, %v2601
    %v2603 = vrot.slane %v2601, 4
    %v2605 = vshrl.u32 %v2416, 16
    %v2607 = vrot.slane %v2605, 5
    %v2608 = vshll.u32 %v2416, 16
    %v2610 = vrot.slane %v2608, 6
    %v2611 = vor.u32 %v2607, %v2610
    %v2612 = vsel %vm2426, %v2603, %v2611
    %v2613 = vrot.slane %v2611, 4
    %v2615 = vshrl.u32 %v2417, 16
    %v2617 = vrot.slane %v2615, 5
    %v2618 = vshll.u32 %v2417, 16
    %v2620 = vrot.slane %v2618, 6
    %v2621 = vor.u32 %v2617, %v2620
    %v2622 = vsel %vm2426, %v2613, %v2621
    %v2623 = vrot.slane %v2621, 4
    %v2625 = vshrl.u32 %v2418, 16
    %v2627 = vrot.slane %v2625, 5
    %v2628 = vshll.u32 %v2418, 16
    %v2630 = vrot.slane %v2628, 6
    %v2631 = vor.u32 %v2627, %v2630
    %v2632 = vsel %vm2426, %v2623, %v2631
    %v2633 = vrot.slane %v2631, 4
    %v2635 = vshrl.u32 %v2419, 16
    %v2637 = vrot.slane %v2635, 5
    %v2638 = vshll.u32 %v2419, 16
    %v2640 = vrot.slane %v2638, 6
    %v2641 = vor.u32 %v2637, %v2640
    %v2642 = vsel %vm2426, %v2633, %v2641
    %v2643 = vrot.slane %v2641, 4
    %v2645 = vshrl.u32 %v2420, 16
    %v2647 = vrot.slane %v2645, 5
    %v2648 = vshll.u32 %v2420, 16
    %v2650 = vrot.slane %v2648, 6
    %v2651 = vor.u32 %v2647, %v2650
    %v2652 = vsel %vm2426, %v2643, %v2651
    %v2653 = vrot.slane %v2651, 4
    %v2655 = vshrl.u32 %v2421, 16
    %v2657 = vrot.slane %v2655, 5
    %v2658 = vshll.u32 %v2421, 16
    %v2660 = vrot.slane %v2658, 6
    %v2661 = vor.u32 %v2657, %v2660
    %v2662 = vsel %vm2426, %v2653, %v2661
    %v2663 = vrot.slane %v2661, 4
    %v2665 = vshrl.u32 %v2422, 16
    %v2667 = vrot.slane %v2665, 5
    %v2668 = vshll.u32 %v2422, 16
    %v2670 = vrot.slane %v2668, 6
    %v2671 = vor.u32 %v2667, %v2670
    %v2672 = vsel %vm2426, %v2663, %v2671
    %v2673 = vrot.slane %v2671, 4
    %v2675 = vshrl.u32 %v2423, 16
    %v2677 = vrot.slane %v2675, 5
    %v2678 = vshll.u32 %v2423, 16
    %v2680 = vrot.slane %v2678, 6
    %v2681 = vor.u32 %v2677, %v2680
    %v2682 = vsel %vm2426, %v2673, %v2681
    %2683 = vrot.lane.b32.xlu0 %v2444, 60
    %v2684 = vpop.permute.xlu0 %2683
    %2685 = vrot.lane.b32.xlu0 %v2454, 60
    %v2686 = vpop.permute.xlu0 %2685
    %2687 = vrot.lane.b32.xlu0 %v2464, 60
    %v2688 = vpop.permute.xlu0 %2687
    %2689 = vrot.lane.b32.xlu0 %v2474, 60
    %v2690 = vpop.permute.xlu0 %2689
    %2691 = vrot.lane.b32.xlu0 %v2484, 60
    %v2692 = vpop.permute.xlu0 %2691
    %2693 = vrot.lane.b32.xlu0 %v2494, 60
    %v2694 = vpop.permute.xlu0 %2693
    %2695 = vrot.lane.b32.xlu0 %v2504, 60
    %v2696 = vpop.permute.xlu0 %2695
    %2697 = vrot.lane.b32.xlu0 %v2514, 60
    %v2698 = vpop.permute.xlu0 %2697
    %2699 = vrot.lane.b32.xlu0 %v2524, 60
    %v2700 = vpop.permute.xlu0 %2699
    %2701 = vrot.lane.b32.xlu0 %v2534, 60
    %v2702 = vpop.permute.xlu0 %2701
    %2703 = vrot.lane.b32.xlu0 %v2544, 60
    %v2704 = vpop.permute.xlu0 %2703
    %2705 = vrot.lane.b32.xlu0 %v2554, 60
    %v2706 = vpop.permute.xlu0 %2705
    %2707 = vrot.lane.b32.xlu0 %v2572, 60
    %v2708 = vpop.permute.xlu0 %2707
    %2709 = vrot.lane.b32.xlu0 %v2582, 60
    %v2710 = vpop.permute.xlu0 %2709
    %2711 = vrot.lane.b32.xlu0 %v2592, 60
    %v2712 = vpop.permute.xlu0 %2711
    %2713 = vrot.lane.b32.xlu0 %v2602, 60
    %v2714 = vpop.permute.xlu0 %2713
    %2715 = vrot.lane.b32.xlu0 %v2612, 60
    %v2716 = vpop.permute.xlu0 %2715
    %2717 = vrot.lane.b32.xlu0 %v2622, 60
    %v2718 = vpop.permute.xlu0 %2717
    %2719 = vrot.lane.b32.xlu0 %v2632, 60
    %v2720 = vpop.permute.xlu0 %2719
    %2721 = vrot.lane.b32.xlu0 %v2642, 60
    %v2722 = vpop.permute.xlu0 %2721
    %2723 = vrot.lane.b32.xlu0 %v2652, 60
    %v2724 = vpop.permute.xlu0 %2723
    %2725 = vrot.lane.b32.xlu0 %v2662, 60
    %v2726 = vpop.permute.xlu0 %2725
    %2727 = vrot.lane.b32.xlu0 %v2672, 60
    %v2728 = vpop.permute.xlu0 %2727
    %2729 = vrot.lane.b32.xlu0 %v2682, 60
    %v2730 = vpop.permute.xlu0 %2729
    %vm2755 = vcmask 650720
    %2756 = vst.msk [vmem:[#allocation3] sm:$0xf] %vm2755, %v2684
    %2757 = vst.msk [vmem:[#allocation3 + $0x10] sm:$0xf] %vm2755, %v2686
    %2758 = vst.msk [vmem:[#allocation3 + $0x20] sm:$0xf] %vm2755, %v2688
    %2759 = vst.msk [vmem:[#allocation3 + $0x30] sm:$0xf] %vm2755, %v2690
    %2760 = vst.msk [vmem:[#allocation3 + $0x40] sm:$0xf] %vm2755, %v2692
    %2761 = vst.msk [vmem:[#allocation3 + $0x50] sm:$0xf] %vm2755, %v2694
    %2762 = vst.msk [vmem:[#allocation3 + $0x60] sm:$0xf] %vm2755, %v2696
    %2763 = vst.msk [vmem:[#allocation3 + $0x70] sm:$0xf] %vm2755, %v2698
    %2764 = vst.msk [vmem:[#allocation3 + $0x80] sm:$0xf] %vm2755, %v2700
    %2765 = vst.msk [vmem:[#allocation3 + $0x90] sm:$0xf] %vm2755, %v2702
    %2766 = vst.msk [vmem:[#allocation3 + $0xa0] sm:$0xf] %vm2755, %v2704
    %2767 = vst.msk [vmem:[#allocation3 + $0xb0] sm:$0xf] %vm2755, %v2706
    %2768 = vst.msk [vmem:[#allocation3 + $0xc0] sm:$0xf] %vm2755, %v2708
    %2769 = vst.msk [vmem:[#allocation3 + $0xd0] sm:$0xf] %vm2755, %v2710
    %2770 = vst.msk [vmem:[#allocation3 + $0xe0] sm:$0xf] %vm2755, %v2712
    %2771 = vst.msk [vmem:[#allocation3 + $0xf0] sm:$0xf] %vm2755, %v2714
    %2772 = vst.msk [vmem:[#allocation3 + $0x100] sm:$0xf] %vm2755, %v2716
    %2773 = vst.msk [vmem:[#allocation3 + $0x110] sm:$0xf] %vm2755, %v2718
    %2774 = vst.msk [vmem:[#allocation3 + $0x120] sm:$0xf] %vm2755, %v2720
    %2775 = vst.msk [vmem:[#allocation3 + $0x130] sm:$0xf] %vm2755, %v2722
    %2776 = vst.msk [vmem:[#allocation3 + $0x140] sm:$0xf] %vm2755, %v2724
    %2777 = vst.msk [vmem:[#allocation3 + $0x150] sm:$0xf] %vm2755, %v2726
    %2778 = vst.msk [vmem:[#allocation3 + $0x160] sm:$0xf] %vm2755, %v2728
    %2779 = vst.msk [vmem:[#allocation3 + $0x170] sm:$0xf] %vm2755, %v2730
    %v2780 = vld [vmem:[#allocation2] sm:$0xc]
    %v2781 = vld [vmem:[#allocation2 + $0x4] sm:$0xf]
    %v2782 = vld [vmem:[#allocation2 + $0x8] sm:$0xf]
    %v2783 = vld [vmem:[#allocation2 + $0xc] sm:$0xf]
    %v2784 = vld [vmem:[#allocation2 + $0x10] sm:$0xf]
    %v2785 = vld [vmem:[#allocation2 + $0x14] sm:$0xf]
    %v2786 = vld [vmem:[#allocation2 + $0x18] sm:$0xf]
    %v2787 = vld [vmem:[#allocation2 + $0x1c] sm:$0xf]
    %v2788 = vld [vmem:[#allocation2 + $0x20] sm:$0xf]
    %v2789 = vld [vmem:[#allocation2 + $0x24] sm:$0xf]
    %v2790 = vld [vmem:[#allocation2 + $0x28] sm:$0xf]
    %v2791 = vld [vmem:[#allocation2 + $0x2c] sm:$0xf]
    %v2792 = vld [vmem:[#allocation2 + $0x30] sm:$0x3]
    %v2793 = vld [vmem:[#allocation2 + $0x4c] sm:$0xc]
    %v2794 = vld [vmem:[#allocation2 + $0x50] sm:$0xf]
    %v2795 = vld [vmem:[#allocation2 + $0x54] sm:$0xf]
    %v2796 = vld [vmem:[#allocation2 + $0x58] sm:$0xf]
    %v2797 = vld [vmem:[#allocation2 + $0x5c] sm:$0xf]
    %v2798 = vld [vmem:[#allocation2 + $0x60] sm:$0xf]
    %v2799 = vld [vmem:[#allocation2 + $0x64] sm:$0xf]
    %v2800 = vld [vmem:[#allocation2 + $0x68] sm:$0xf]
    %v2801 = vld [vmem:[#allocation2 + $0x6c] sm:$0xf]
    %v2802 = vld [vmem:[#allocation2 + $0x70] sm:$0xf]
    %v2803 = vld [vmem:[#allocation2 + $0x74] sm:$0xf]
    %v2804 = vld [vmem:[#allocation2 + $0x78] sm:$0xf]
    %v2805 = vld [vmem:[#allocation2 + $0x7c] sm:$0x3]
    %vm2832 = vcmask 1041408
    %vm2833 = vcmask 1045508
    %vm2834 = vmor %vm2832, %vm2833
    %v2835 = vrot.slane %v2780, 6
    %v2836 = vrot.slane %v2835, 4
    %v2837 = vrot.slane %v2781, 6
    %v2838 = vsel %vm2834, %v2836, %v2837
    %v2839 = vrot.slane %v2837, 4
    %v2840 = vrot.slane %v2782, 6
    %v2841 = vsel %vm2834, %v2839, %v2840
    %v2842 = vrot.slane %v2840, 4
    %v2843 = vrot.slane %v2783, 6
    %v2844 = vsel %vm2834, %v2842, %v2843
    %v2845 = vrot.slane %v2843, 4
    %v2846 = vrot.slane %v2784, 6
    %v2847 = vsel %vm2834, %v2845, %v2846
    %v2848 = vrot.slane %v2846, 4
    %v2849 = vrot.slane %v2785, 6
    %v2850 = vsel %vm2834, %v2848, %v2849
    %v2851 = vrot.slane %v2849, 4
    %v2852 = vrot.slane %v2786, 6
    %v2853 = vsel %vm2834, %v2851, %v2852
    %v2854 = vrot.slane %v2852, 4
    %v2855 = vrot.slane %v2787, 6
    %v2856 = vsel %vm2834, %v2854, %v2855
    %v2857 = vrot.slane %v2855, 4
    %v2858 = vrot.slane %v2788, 6
    %v2859 = vsel %vm2834, %v2857, %v2858
    %v2860 = vrot.slane %v2858, 4
    %v2861 = vrot.slane %v2789, 6
    %v2862 = vsel %vm2834, %v2860, %v2861
    %v2863 = vrot.slane %v2861, 4
    %v2864 = vrot.slane %v2790, 6
    %v2865 = vsel %vm2834, %v2863, %v2864
    %v2866 = vrot.slane %v2864, 4
    %v2867 = vrot.slane %v2791, 6
    %v2868 = vsel %vm2834, %v2866, %v2867
    %v2869 = vrot.slane %v2867, 4
    %v2870 = vrot.slane %v2792, 6
    %v2871 = vsel %vm2834, %v2869, %v2870
    %v2872 = vrot.slane %v2793, 6
    %v2873 = vrot.slane %v2872, 4
    %v2874 = vrot.slane %v2794, 6
    %v2875 = vsel %vm2834, %v2873, %v2874
    %v2876 = vrot.slane %v2874, 4
    %v2877 = vrot.slane %v2795, 6
    %v2878 = vsel %vm2834, %v2876, %v2877
    %v2879 = vrot.slane %v2877, 4
    %v2880 = vrot.slane %v2796, 6
    %v2881 = vsel %vm2834, %v2879, %v2880
    %v2882 = vrot.slane %v2880, 4
    %v2883 = vrot.slane %v2797, 6
    %v2884 = vsel %vm2834, %v2882, %v2883
    %v2885 = vrot.slane %v2883, 4
    %v2886 = vrot.slane %v2798, 6
    %v2887 = vsel %vm2834, %v2885, %v2886
    %v2888 = vrot.slane %v2886, 4
    %v2889 = vrot.slane %v2799, 6
    %v2890 = vsel %vm2834, %v2888, %v2889
    %v2891 = vrot.slane %v2889, 4
    %v2892 = vrot.slane %v2800, 6
    %v2893 = vsel %vm2834, %v2891, %v2892
    %v2894 = vrot.slane %v2892, 4
    %v2895 = vrot.slane %v2801, 6
    %v2896 = vsel %vm2834, %v2894, %v2895
    %v2897 = vrot.slane %v2895, 4
    %v2898 = vrot.slane %v2802, 6
    %v2899 = vsel %vm2834, %v2897, %v2898
    %v2900 = vrot.slane %v2898, 4
    %v2901 = vrot.slane %v2803, 6
    %v2902 = vsel %vm2834, %v2900, %v2901
    %v2903 = vrot.slane %v2901, 4
    %v2904 = vrot.slane %v2804, 6
    %v2905 = vsel %vm2834, %v2903, %v2904
    %v2906 = vrot.slane %v2904, 4
    %v2907 = vrot.slane %v2805, 6
    %v2908 = vsel %vm2834, %v2906, %v2907
    %2909 = vrot.lane.b32.xlu0 %v2838, 80
    %v2910 = vpop.permute.xlu0 %2909
    %2911 = vrot.lane.b32.xlu0 %v2841, 80
    %v2912 = vpop.permute.xlu0 %2911
    %2913 = vrot.lane.b32.xlu0 %v2844, 80
    %v2914 = vpop.permute.xlu0 %2913
    %2915 = vrot.lane.b32.xlu0 %v2847, 80
    %v2916 = vpop.permute.xlu0 %2915
    %2917 = vrot.lane.b32.xlu0 %v2850, 80
    %v2918 = vpop.permute.xlu0 %2917
    %2919 = vrot.lane.b32.xlu0 %v2853, 80
    %v2920 = vpop.permute.xlu0 %2919
    %2921 = vrot.lane.b32.xlu0 %v2856, 80
    %v2922 = vpop.permute.xlu0 %2921
    %2923 = vrot.lane.b32.xlu0 %v2859, 80
    %v2924 = vpop.permute.xlu0 %2923
    %2925 = vrot.lane.b32.xlu0 %v2862, 80
    %v2926 = vpop.permute.xlu0 %2925
    %2927 = vrot.lane.b32.xlu0 %v2865, 80
    %v2928 = vpop.permute.xlu0 %2927
    %2929 = vrot.lane.b32.xlu0 %v2868, 80
    %v2930 = vpop.permute.xlu0 %2929
    %2931 = vrot.lane.b32.xlu0 %v2871, 80
    %v2932 = vpop.permute.xlu0 %2931
    %2933 = vrot.lane.b32.xlu0 %v2875, 80
    %v2934 = vpop.permute.xlu0 %2933
    %2935 = vrot.lane.b32.xlu0 %v2878, 80
    %v2936 = vpop.permute.xlu0 %2935
    %2937 = vrot.lane.b32.xlu0 %v2881, 80
    %v2938 = vpop.permute.xlu0 %2937
    %2939 = vrot.lane.b32.xlu0 %v2884, 80
    %v2940 = vpop.permute.xlu0 %2939
    %2941 = vrot.lane.b32.xlu0 %v2887, 80
    %v2942 = vpop.permute.xlu0 %2941
    %2943 = vrot.lane.b32.xlu0 %v2890, 80
    %v2944 = vpop.permute.xlu0 %2943
    %2945 = vrot.lane.b32.xlu0 %v2893, 80
    %v2946 = vpop.permute.xlu0 %2945
    %2947 = vrot.lane.b32.xlu0 %v2896, 80
    %v2948 = vpop.permute.xlu0 %2947
    %2949 = vrot.lane.b32.xlu0 %v2899, 80
    %v2950 = vpop.permute.xlu0 %2949
    %2951 = vrot.lane.b32.xlu0 %v2902, 80
    %v2952 = vpop.permute.xlu0 %2951
    %2953 = vrot.lane.b32.xlu0 %v2905, 80
    %v2954 = vpop.permute.xlu0 %2953
    %2955 = vrot.lane.b32.xlu0 %v2908, 80
    %v2956 = vpop.permute.xlu0 %2955
    %vm2981 = vcmask 814720
    %2982 = vst.msk [vmem:[#allocation3] sm:$0xf] %vm2981, %v2910
    %2983 = vst.msk [vmem:[#allocation3 + $0x10] sm:$0xf] %vm2981, %v2912
    %2984 = vst.msk [vmem:[#allocation3 + $0x20] sm:$0xf] %vm2981, %v2914
    %2985 = vst.msk [vmem:[#allocation3 + $0x30] sm:$0xf] %vm2981, %v2916
    %2986 = vst.msk [vmem:[#allocation3 + $0x40] sm:$0xf] %vm2981, %v2918
    %2987 = vst.msk [vmem:[#allocation3 + $0x50] sm:$0xf] %vm2981, %v2920
    %2988 = vst.msk [vmem:[#allocation3 + $0x60] sm:$0xf] %vm2981, %v2922
    %2989 = vst.msk [vmem:[#allocation3 + $0x70] sm:$0xf] %vm2981, %v2924
    %2990 = vst.msk [vmem:[#allocation3 + $0x80] sm:$0xf] %vm2981, %v2926
    %2991 = vst.msk [vmem:[#allocation3 + $0x90] sm:$0xf] %vm2981, %v2928
    %2992 = vst.msk [vmem:[#allocation3 + $0xa0] sm:$0xf] %vm2981, %v2930
    %2993 = vst.msk [vmem:[#allocation3 + $0xb0] sm:$0xf] %vm2981, %v2932
    %2994 = vst.msk [vmem:[#allocation3 + $0xc0] sm:$0xf] %vm2981, %v2934
    %2995 = vst.msk [vmem:[#allocation3 + $0xd0] sm:$0xf] %vm2981, %v2936
    %2996 = vst.msk [vmem:[#allocation3 + $0xe0] sm:$0xf] %vm2981, %v2938
    %2997 = vst.msk [vmem:[#allocation3 + $0xf0] sm:$0xf] %vm2981, %v2940
    %2998 = vst.msk [vmem:[#allocation3 + $0x100] sm:$0xf] %vm2981, %v2942
    %2999 = vst.msk [vmem:[#allocation3 + $0x110] sm:$0xf] %vm2981, %v2944
    %3000 = vst.msk [vmem:[#allocation3 + $0x120] sm:$0xf] %vm2981, %v2946
    %3001 = vst.msk [vmem:[#allocation3 + $0x130] sm:$0xf] %vm2981, %v2948
    %3002 = vst.msk [vmem:[#allocation3 + $0x140] sm:$0xf] %vm2981, %v2950
    %3003 = vst.msk [vmem:[#allocation3 + $0x150] sm:$0xf] %vm2981, %v2952
    %3004 = vst.msk [vmem:[#allocation3 + $0x160] sm:$0xf] %vm2981, %v2954
    %3005 = vst.msk [vmem:[#allocation3 + $0x170] sm:$0xf] %vm2981, %v2956
    %v3006 = vld [vmem:[#allocation2 + $0x4] sm:$0xc]
    %v3007 = vld [vmem:[#allocation2 + $0x8] sm:$0xf]
    %v3008 = vld [vmem:[#allocation2 + $0xc] sm:$0xf]
    %v3009 = vld [vmem:[#allocation2 + $0x10] sm:$0xf]
    %v3010 = vld [vmem:[#allocation2 + $0x14] sm:$0xf]
    %v3011 = vld [vmem:[#allocation2 + $0x18] sm:$0xf]
    %v3012 = vld [vmem:[#allocation2 + $0x1c] sm:$0xf]
    %v3013 = vld [vmem:[#allocation2 + $0x20] sm:$0xf]
    %v3014 = vld [vmem:[#allocation2 + $0x24] sm:$0xf]
    %v3015 = vld [vmem:[#allocation2 + $0x28] sm:$0xf]
    %v3016 = vld [vmem:[#allocation2 + $0x2c] sm:$0xf]
    %v3017 = vld [vmem:[#allocation2 + $0x30] sm:$0xf]
    %v3018 = vld [vmem:[#allocation2 + $0x34] sm:$0x3]
    %v3019 = vld [vmem:[#allocation2 + $0x50] sm:$0xc]
    %v3020 = vld [vmem:[#allocation2 + $0x54] sm:$0xf]
    %v3021 = vld [vmem:[#allocation2 + $0x58] sm:$0xf]
    %v3022 = vld [vmem:[#allocation2 + $0x5c] sm:$0xf]
    %v3023 = vld [vmem:[#allocation2 + $0x60] sm:$0xf]
    %v3024 = vld [vmem:[#allocation2 + $0x64] sm:$0xf]
    %v3025 = vld [vmem:[#allocation2 + $0x68] sm:$0xf]
    %v3026 = vld [vmem:[#allocation2 + $0x6c] sm:$0xf]
    %v3027 = vld [vmem:[#allocation2 + $0x70] sm:$0xf]
    %v3028 = vld [vmem:[#allocation2 + $0x74] sm:$0xf]
    %v3029 = vld [vmem:[#allocation2 + $0x78] sm:$0xf]
    %v3030 = vld [vmem:[#allocation2 + $0x7c] sm:$0xf]
    %v3031 = vld [vmem:[#allocation2 + $0x80] sm:$0x3]
    %v3058 = vrot.slane %v3006, 6
    %v3059 = vrot.slane %v3058, 4
    %v3060 = vrot.slane %v3007, 6
    %v3061 = vsel %vm2834, %v3059, %v3060
    %v3062 = vrot.slane %v3060, 4
    %v3063 = vrot.slane %v3008, 6
    %v3064 = vsel %vm2834, %v3062, %v3063
    %v3065 = vrot.slane %v3063, 4
    %v3066 = vrot.slane %v3009, 6
    %v3067 = vsel %vm2834, %v3065, %v3066
    %v3068 = vrot.slane %v3066, 4
    %v3069 = vrot.slane %v3010, 6
    %v3070 = vsel %vm2834, %v3068, %v3069
    %v3071 = vrot.slane %v3069, 4
    %v3072 = vrot.slane %v3011, 6
    %v3073 = vsel %vm2834, %v3071, %v3072
    %v3074 = vrot.slane %v3072, 4
    %v3075 = vrot.slane %v3012, 6
    %v3076 = vsel %vm2834, %v3074, %v3075
    %v3077 = vrot.slane %v3075, 4
    %v3078 = vrot.slane %v3013, 6
    %v3079 = vsel %vm2834, %v3077, %v3078
    %v3080 = vrot.slane %v3078, 4
    %v3081 = vrot.slane %v3014, 6
    %v3082 = vsel %vm2834, %v3080, %v3081
    %v3083 = vrot.slane %v3081, 4
    %v3084 = vrot.slane %v3015, 6
    %v3085 = vsel %vm2834, %v3083, %v3084
    %v3086 = vrot.slane %v3084, 4
    %v3087 = vrot.slane %v3016, 6
    %v3088 = vsel %vm2834, %v3086, %v3087
    %v3089 = vrot.slane %v3087, 4
    %v3090 = vrot.slane %v3017, 6
    %v3091 = vsel %vm2834, %v3089, %v3090
    %v3092 = vrot.slane %v3090, 4
    %v3093 = vrot.slane %v3018, 6
    %v3094 = vsel %vm2834, %v3092, %v3093
    %v3095 = vrot.slane %v3019, 6
    %v3096 = vrot.slane %v3095, 4
    %v3097 = vrot.slane %v3020, 6
    %v3098 = vsel %vm2834, %v3096, %v3097
    %v3099 = vrot.slane %v3097, 4
    %v3100 = vrot.slane %v3021, 6
    %v3101 = vsel %vm2834, %v3099, %v3100
    %v3102 = vrot.slane %v3100, 4
    %v3103 = vrot.slane %v3022, 6
    %v3104 = vsel %vm2834, %v3102, %v3103
    %v3105 = vrot.slane %v3103, 4
    %v3106 = vrot.slane %v3023, 6
    %v3107 = vsel %vm2834, %v3105, %v3106
    %v3108 = vrot.slane %v3106, 4
    %v3109 = vrot.slane %v3024, 6
    %v3110 = vsel %vm2834, %v3108, %v3109
    %v3111 = vrot.slane %v3109, 4
    %v3112 = vrot.slane %v3025, 6
    %v3113 = vsel %vm2834, %v3111, %v3112
    %v3114 = vrot.slane %v3112, 4
    %v3115 = vrot.slane %v3026, 6
    %v3116 = vsel %vm2834, %v3114, %v3115
    %v3117 = vrot.slane %v3115, 4
    %v3118 = vrot.slane %v3027, 6
    %v3119 = vsel %vm2834, %v3117, %v3118
    %v3120 = vrot.slane %v3118, 4
    %v3121 = vrot.slane %v3028, 6
    %v3122 = vsel %vm2834, %v3120, %v3121
    %v3123 = vrot.slane %v3121, 4
    %v3124 = vrot.slane %v3029, 6
    %v3125 = vsel %vm2834, %v3123, %v3124
    %v3126 = vrot.slane %v3124, 4
    %v3127 = vrot.slane %v3030, 6
    %v3128 = vsel %vm2834, %v3126, %v3127
    %v3129 = vrot.slane %v3127, 4
    %v3130 = vrot.slane %v3031, 6
    %v3131 = vsel %vm2834, %v3129, %v3130
    %3132 = vrot.lane.b32.xlu0 %v3061, 100
    %v3133 = vpop.permute.xlu0 %3132
    %3134 = vrot.lane.b32.xlu0 %v3064, 100
    %v3135 = vpop.permute.xlu0 %3134
    %3136 = vrot.lane.b32.xlu0 %v3067, 100
    %v3137 = vpop.permute.xlu0 %3136
    %3138 = vrot.lane.b32.xlu0 %v3070, 100
    %v3139 = vpop.permute.xlu0 %3138
    %3140 = vrot.lane.b32.xlu0 %v3073, 100
    %v3141 = vpop.permute.xlu0 %3140
    %3142 = vrot.lane.b32.xlu0 %v3076, 100
    %v3143 = vpop.permute.xlu0 %3142
    %3144 = vrot.lane.b32.xlu0 %v3079, 100
    %v3145 = vpop.permute.xlu0 %3144
    %3146 = vrot.lane.b32.xlu0 %v3082, 100
    %v3147 = vpop.permute.xlu0 %3146
    %3148 = vrot.lane.b32.xlu0 %v3085, 100
    %v3149 = vpop.permute.xlu0 %3148
    %3150 = vrot.lane.b32.xlu0 %v3088, 100
    %v3151 = vpop.permute.xlu0 %3150
    %3152 = vrot.lane.b32.xlu0 %v3091, 100
    %v3153 = vpop.permute.xlu0 %3152
    %3154 = vrot.lane.b32.xlu0 %v3094, 100
    %v3155 = vpop.permute.xlu0 %3154
    %3156 = vrot.lane.b32.xlu0 %v3098, 100
    %v3157 = vpop.permute.xlu0 %3156
    %3158 = vrot.lane.b32.xlu0 %v3101, 100
    %v3159 = vpop.permute.xlu0 %3158
    %3160 = vrot.lane.b32.xlu0 %v3104, 100
    %v3161 = vpop.permute.xlu0 %3160
    %3162 = vrot.lane.b32.xlu0 %v3107, 100
    %v3163 = vpop.permute.xlu0 %3162
    %3164 = vrot.lane.b32.xlu0 %v3110, 100
    %v3165 = vpop.permute.xlu0 %3164
    %3166 = vrot.lane.b32.xlu0 %v3113, 100
    %v3167 = vpop.permute.xlu0 %3166
    %3168 = vrot.lane.b32.xlu0 %v3116, 100
    %v3169 = vpop.permute.xlu0 %3168
    %3170 = vrot.lane.b32.xlu0 %v3119, 100
    %v3171 = vpop.permute.xlu0 %3170
    %3172 = vrot.lane.b32.xlu0 %v3122, 100
    %v3173 = vpop.permute.xlu0 %3172
    %3174 = vrot.lane.b32.xlu0 %v3125, 100
    %v3175 = vpop.permute.xlu0 %3174
    %3176 = vrot.lane.b32.xlu0 %v3128, 100
    %v3177 = vpop.permute.xlu0 %3176
    %3178 = vrot.lane.b32.xlu0 %v3131, 100
    %v3179 = vpop.permute.xlu0 %3178
    %vm3204 = vcmask 978720
    %3205 = vst.msk [vmem:[#allocation3] sm:$0xf] %vm3204, %v3133
    %3206 = vst.msk [vmem:[#allocation3 + $0x10] sm:$0xf] %vm3204, %v3135
    %3207 = vst.msk [vmem:[#allocation3 + $0x20] sm:$0xf] %vm3204, %v3137
    %3208 = vst.msk [vmem:[#allocation3 + $0x30] sm:$0xf] %vm3204, %v3139
    %3209 = vst.msk [vmem:[#allocation3 + $0x40] sm:$0xf] %vm3204, %v3141
    %3210 = vst.msk [vmem:[#allocation3 + $0x50] sm:$0xf] %vm3204, %v3143
    %3211 = vst.msk [vmem:[#allocation3 + $0x60] sm:$0xf] %vm3204, %v3145
    %3212 = vst.msk [vmem:[#allocation3 + $0x70] sm:$0xf] %vm3204, %v3147
    %3213 = vst.msk [vmem:[#allocation3 + $0x80] sm:$0xf] %vm3204, %v3149
    %3214 = vst.msk [vmem:[#allocation3 + $0x90] sm:$0xf] %vm3204, %v3151
    %3215 = vst.msk [vmem:[#allocation3 + $0xa0] sm:$0xf] %vm3204, %v3153
    %3216 = vst.msk [vmem:[#allocation3 + $0xb0] sm:$0xf] %vm3204, %v3155
    %3217 = vst.msk [vmem:[#allocation3 + $0xc0] sm:$0xf] %vm3204, %v3157
    %3218 = vst.msk [vmem:[#allocation3 + $0xd0] sm:$0xf] %vm3204, %v3159
    %3219 = vst.msk [vmem:[#allocation3 + $0xe0] sm:$0xf] %vm3204, %v3161
    %3220 = vst.msk [vmem:[#allocation3 + $0xf0] sm:$0xf] %vm3204, %v3163
    %3221 = vst.msk [vmem:[#allocation3 + $0x100] sm:$0xf] %vm3204, %v3165
    %3222 = vst.msk [vmem:[#allocation3 + $0x110] sm:$0xf] %vm3204, %v3167
    %3223 = vst.msk [vmem:[#allocation3 + $0x120] sm:$0xf] %vm3204, %v3169
    %3224 = vst.msk [vmem:[#allocation3 + $0x130] sm:$0xf] %vm3204, %v3171
    %3225 = vst.msk [vmem:[#allocation3 + $0x140] sm:$0xf] %vm3204, %v3173
    %3226 = vst.msk [vmem:[#allocation3 + $0x150] sm:$0xf] %vm3204, %v3175
    %3227 = vst.msk [vmem:[#allocation3 + $0x160] sm:$0xf] %vm3204, %v3177
    %3228 = vst.msk [vmem:[#allocation3 + $0x170] sm:$0xf] %vm3204, %v3179
    %v3229 = vld [vmem:[#allocation2 + $0x4] sm:$0xc]
    %v3230 = vld [vmem:[#allocation2 + $0x8] sm:$0xf]
    %v3231 = vld [vmem:[#allocation2 + $0xc] sm:$0xf]
    %v3232 = vld [vmem:[#allocation2 + $0x10] sm:$0xf]
    %v3233 = vld [vmem:[#allocation2 + $0x14] sm:$0xf]
    %v3234 = vld [vmem:[#allocation2 + $0x18] sm:$0xf]
    %v3235 = vld [vmem:[#allocation2 + $0x1c] sm:$0xf]
    %v3236 = vld [vmem:[#allocation2 + $0x20] sm:$0xf]
    %v3237 = vld [vmem:[#allocation2 + $0x24] sm:$0xf]
    %v3238 = vld [vmem:[#allocation2 + $0x28] sm:$0xf]
    %v3239 = vld [vmem:[#allocation2 + $0x2c] sm:$0xf]
    %v3240 = vld [vmem:[#allocation2 + $0x30] sm:$0xf]
    %v3241 = vld [vmem:[#allocation2 + $0x34] sm:$0x7]
    %v3242 = vld [vmem:[#allocation2 + $0x50] sm:$0xc]
    %v3243 = vld [vmem:[#allocation2 + $0x54] sm:$0xf]
    %v3244 = vld [vmem:[#allocation2 + $0x58] sm:$0xf]
    %v3245 = vld [vmem:[#allocation2 + $0x5c] sm:$0xf]
    %v3246 = vld [vmem:[#allocation2 + $0x60] sm:$0xf]
    %v3247 = vld [vmem:[#allocation2 + $0x64] sm:$0xf]
    %v3248 = vld [vmem:[#allocation2 + $0x68] sm:$0xf]
    %v3249 = vld [vmem:[#allocation2 + $0x6c] sm:$0xf]
    %v3250 = vld [vmem:[#allocation2 + $0x70] sm:$0xf]
    %v3251 = vld [vmem:[#allocation2 + $0x74] sm:$0xf]
    %v3252 = vld [vmem:[#allocation2 + $0x78] sm:$0xf]
    %v3253 = vld [vmem:[#allocation2 + $0x7c] sm:$0xf]
    %v3254 = vld [vmem:[#allocation2 + $0x80] sm:$0x7]
    %vm3255 = vsmask.f32 1280
    %vm3256 = vsmask.f32 5392
    %vm3257 = vmor %vm3255, %vm3256
    %v3259 = vshrl.u32 %v3229, 16
    %v3261 = vrot.slane %v3259, 6
    %v3262 = vshll.u32 %v3229, 16
    %v3264 = vrot.slane %v3262, 7
    %v3265 = vor.u32 %v3261, %v3264
    %v3266 = vrot.slane %v3265, 4
    %v3268 = vshrl.u32 %v3230, 16
    %v3270 = vrot.slane %v3268, 6
    %v3271 = vshll.u32 %v3230, 16
    %v3273 = vrot.slane %v3271, 7
    %v3274 = vor.u32 %v3270, %v3273
    %v3275 = vsel %vm3257, %v3266, %v3274
    %v3276 = vrot.slane %v3274, 4
    %v3278 = vshrl.u32 %v3231, 16
    %v3280 = vrot.slane %v3278, 6
    %v3281 = vshll.u32 %v3231, 16
    %v3283 = vrot.slane %v3281, 7
    %v3284 = vor.u32 %v3280, %v3283
    %v3285 = vsel %vm3257, %v3276, %v3284
    %v3286 = vrot.slane %v3284, 4
    %v3288 = vshrl.u32 %v3232, 16
    %v3290 = vrot.slane %v3288, 6
    %v3291 = vshll.u32 %v3232, 16
    %v3293 = vrot.slane %v3291, 7
    %v3294 = vor.u32 %v3290, %v3293
    %v3295 = vsel %vm3257, %v3286, %v3294
    %v3296 = vrot.slane %v3294, 4
    %v3298 = vshrl.u32 %v3233, 16
    %v3300 = vrot.slane %v3298, 6
    %v3301 = vshll.u32 %v3233, 16
    %v3303 = vrot.slane %v3301, 7
    %v3304 = vor.u32 %v3300, %v3303
    %v3305 = vsel %vm3257, %v3296, %v3304
    %v3306 = vrot.slane %v3304, 4
    %v3308 = vshrl.u32 %v3234, 16
    %v3310 = vrot.slane %v3308, 6
    %v3311 = vshll.u32 %v3234, 16
    %v3313 = vrot.slane %v3311, 7
    %v3314 = vor.u32 %v3310, %v3313
    %v3315 = vsel %vm3257, %v3306, %v3314
    %v3316 = vrot.slane %v3314, 4
    %v3318 = vshrl.u32 %v3235, 16
    %v3320 = vrot.slane %v3318, 6
    %v3321 = vshll.u32 %v3235, 16
    %v3323 = vrot.slane %v3321, 7
    %v3324 = vor.u32 %v3320, %v3323
    %v3325 = vsel %vm3257, %v3316, %v3324
    %v3326 = vrot.slane %v3324, 4
    %v3328 = vshrl.u32 %v3236, 16
    %v3330 = vrot.slane %v3328, 6
    %v3331 = vshll.u32 %v3236, 16
    %v3333 = vrot.slane %v3331, 7
    %v3334 = vor.u32 %v3330, %v3333
    %v3335 = vsel %vm3257, %v3326, %v3334
    %v3336 = vrot.slane %v3334, 4
    %v3338 = vshrl.u32 %v3237, 16
    %v3340 = vrot.slane %v3338, 6
    %v3341 = vshll.u32 %v3237, 16
    %v3343 = vrot.slane %v3341, 7
    %v3344 = vor.u32 %v3340, %v3343
    %v3345 = vsel %vm3257, %v3336, %v3344
    %v3346 = vrot.slane %v3344, 4
    %v3348 = vshrl.u32 %v3238, 16
    %v3350 = vrot.slane %v3348, 6
    %v3351 = vshll.u32 %v3238, 16
    %v3353 = vrot.slane %v3351, 7
    %v3354 = vor.u32 %v3350, %v3353
    %v3355 = vsel %vm3257, %v3346, %v3354
    %v3356 = vrot.slane %v3354, 4
    %v3358 = vshrl.u32 %v3239, 16
    %v3360 = vrot.slane %v3358, 6
    %v3361 = vshll.u32 %v3239, 16
    %v3363 = vrot.slane %v3361, 7
    %v3364 = vor.u32 %v3360, %v3363
    %v3365 = vsel %vm3257, %v3356, %v3364
    %v3366 = vrot.slane %v3364, 4
    %v3368 = vshrl.u32 %v3240, 16
    %v3370 = vrot.slane %v3368, 6
    %v3371 = vshll.u32 %v3240, 16
    %v3373 = vrot.slane %v3371, 7
    %v3374 = vor.u32 %v3370, %v3373
    %v3375 = vsel %vm3257, %v3366, %v3374
    %v3376 = vrot.slane %v3374, 4
    %v3378 = vshrl.u32 %v3241, 16
    %v3380 = vrot.slane %v3378, 6
    %v3381 = vshll.u32 %v3241, 16
    %v3383 = vrot.slane %v3381, 7
    %v3384 = vor.u32 %v3380, %v3383
    %v3385 = vsel %vm3257, %v3376, %v3384
    %v3387 = vshrl.u32 %v3242, 16
    %v3389 = vrot.slane %v3387, 6
    %v3390 = vshll.u32 %v3242, 16
    %v3392 = vrot.slane %v3390, 7
    %v3393 = vor.u32 %v3389, %v3392
    %v3394 = vrot.slane %v3393, 4
    %v3396 = vshrl.u32 %v3243, 16
    %v3398 = vrot.slane %v3396, 6
    %v3399 = vshll.u32 %v3243, 16
    %v3401 = vrot.slane %v3399, 7
    %v3402 = vor.u32 %v3398, %v3401
    %v3403 = vsel %vm3257, %v3394, %v3402
    %v3404 = vrot.slane %v3402, 4
    %v3406 = vshrl.u32 %v3244, 16
    %v3408 = vrot.slane %v3406, 6
    %v3409 = vshll.u32 %v3244, 16
    %v3411 = vrot.slane %v3409, 7
    %v3412 = vor.u32 %v3408, %v3411
    %v3413 = vsel %vm3257, %v3404, %v3412
    %v3414 = vrot.slane %v3412, 4
    %v3416 = vshrl.u32 %v3245, 16
    %v3418 = vrot.slane %v3416, 6
    %v3419 = vshll.u32 %v3245, 16
    %v3421 = vrot.slane %v3419, 7
    %v3422 = vor.u32 %v3418, %v3421
    %v3423 = vsel %vm3257, %v3414, %v3422
    %v3424 = vrot.slane %v3422, 4
    %v3426 = vshrl.u32 %v3246, 16
    %v3428 = vrot.slane %v3426, 6
    %v3429 = vshll.u32 %v3246, 16
    %v3431 = vrot.slane %v3429, 7
    %v3432 = vor.u32 %v3428, %v3431
    %v3433 = vsel %vm3257, %v3424, %v3432
    %v3434 = vrot.slane %v3432, 4
    %v3436 = vshrl.u32 %v3247, 16
    %v3438 = vrot.slane %v3436, 6
    %v3439 = vshll.u32 %v3247, 16
    %v3441 = vrot.slane %v3439, 7
    %v3442 = vor.u32 %v3438, %v3441
    %v3443 = vsel %vm3257, %v3434, %v3442
    %v3444 = vrot.slane %v3442, 4
    %v3446 = vshrl.u32 %v3248, 16
    %v3448 = vrot.slane %v3446, 6
    %v3449 = vshll.u32 %v3248, 16
    %v3451 = vrot.slane %v3449, 7
    %v3452 = vor.u32 %v3448, %v3451
    %v3453 = vsel %vm3257, %v3444, %v3452
    %v3454 = vrot.slane %v3452, 4
    %v3456 = vshrl.u32 %v3249, 16
    %v3458 = vrot.slane %v3456, 6
    %v3459 = vshll.u32 %v3249, 16
    %v3461 = vrot.slane %v3459, 7
    %v3462 = vor.u32 %v3458, %v3461
    %v3463 = vsel %vm3257, %v3454, %v3462
    %v3464 = vrot.slane %v3462, 4
    %v3466 = vshrl.u32 %v3250, 16
    %v3468 = vrot.slane %v3466, 6
    %v3469 = vshll.u32 %v3250, 16
    %v3471 = vrot.slane %v3469, 7
    %v3472 = vor.u32 %v3468, %v3471
    %v3473 = vsel %vm3257, %v3464, %v3472
    %v3474 = vrot.slane %v3472, 4
    %v3476 = vshrl.u32 %v3251, 16
    %v3478 = vrot.slane %v3476, 6
    %v3479 = vshll.u32 %v3251, 16
    %v3481 = vrot.slane %v3479, 7
    %v3482 = vor.u32 %v3478, %v3481
    %v3483 = vsel %vm3257, %v3474, %v3482
    %v3484 = vrot.slane %v3482, 4
    %v3486 = vshrl.u32 %v3252, 16
    %v3488 = vrot.slane %v3486, 6
    %v3489 = vshll.u32 %v3252, 16
    %v3491 = vrot.slane %v3489, 7
    %v3492 = vor.u32 %v3488, %v3491
    %v3493 = vsel %vm3257, %v3484, %v3492
    %v3494 = vrot.slane %v3492, 4
    %v3496 = vshrl.u32 %v3253, 16
    %v3498 = vrot.slane %v3496, 6
    %v3499 = vshll.u32 %v3253, 16
    %v3501 = vrot.slane %v3499, 7
    %v3502 = vor.u32 %v3498, %v3501
    %v3503 = vsel %vm3257, %v3494, %v3502
    %v3504 = vrot.slane %v3502, 4
    %v3506 = vshrl.u32 %v3254, 16
    %v3508 = vrot.slane %v3506, 6
    %v3509 = vshll.u32 %v3254, 16
    %v3511 = vrot.slane %v3509, 7
    %v3512 = vor.u32 %v3508, %v3511
    %v3513 = vsel %vm3257, %v3504, %v3512
    %3514 = vrot.lane.b32.xlu0 %v3275, 120
    %v3515 = vpop.permute.xlu0 %3514
    %3516 = vrot.lane.b32.xlu0 %v3285, 120
    %v3517 = vpop.permute.xlu0 %3516
    %3518 = vrot.lane.b32.xlu0 %v3295, 120
    %v3519 = vpop.permute.xlu0 %3518
    %3520 = vrot.lane.b32.xlu0 %v3305, 120
    %v3521 = vpop.permute.xlu0 %3520
    %3522 = vrot.lane.b32.xlu0 %v3315, 120
    %v3523 = vpop.permute.xlu0 %3522
    %3524 = vrot.lane.b32.xlu0 %v3325, 120
    %v3525 = vpop.permute.xlu0 %3524
    %3526 = vrot.lane.b32.xlu0 %v3335, 120
    %v3527 = vpop.permute.xlu0 %3526
    %3528 = vrot.lane.b32.xlu0 %v3345, 120
    %v3529 = vpop.permute.xlu0 %3528
    %3530 = vrot.lane.b32.xlu0 %v3355, 120
    %v3531 = vpop.permute.xlu0 %3530
    %3532 = vrot.lane.b32.xlu0 %v3365, 120
    %v3533 = vpop.permute.xlu0 %3532
    %3534 = vrot.lane.b32.xlu0 %v3375, 120
    %v3535 = vpop.permute.xlu0 %3534
    %3536 = vrot.lane.b32.xlu0 %v3385, 120
    %v3537 = vpop.permute.xlu0 %3536
    %3538 = vrot.lane.b32.xlu0 %v3403, 120
    %v3539 = vpop.permute.xlu0 %3538
    %3540 = vrot.lane.b32.xlu0 %v3413, 120
    %v3541 = vpop.permute.xlu0 %3540
    %3542 = vrot.lane.b32.xlu0 %v3423, 120
    %v3543 = vpop.permute.xlu0 %3542
    %3544 = vrot.lane.b32.xlu0 %v3433, 120
    %v3545 = vpop.permute.xlu0 %3544
    %3546 = vrot.lane.b32.xlu0 %v3443, 120
    %v3547 = vpop.permute.xlu0 %3546
    %3548 = vrot.lane.b32.xlu0 %v3453, 120
    %v3549 = vpop.permute.xlu0 %3548
    %3550 = vrot.lane.b32.xlu0 %v3463, 120
    %v3551 = vpop.permute.xlu0 %3550
    %3552 = vrot.lane.b32.xlu0 %v3473, 120
    %v3553 = vpop.permute.xlu0 %3552
    %3554 = vrot.lane.b32.xlu0 %v3483, 120
    %v3555 = vpop.permute.xlu0 %3554
    %3556 = vrot.lane.b32.xlu0 %v3493, 120
    %v3557 = vpop.permute.xlu0 %3556
    %3558 = vrot.lane.b32.xlu0 %v3503, 120
    %v3559 = vpop.permute.xlu0 %3558
    %3560 = vrot.lane.b32.xlu0 %v3513, 120
    %v3561 = vpop.permute.xlu0 %3560
    %v3562 = vrot.slane %v3515, 4
    %v3563 = vrot.slane %v3517, 4
    %v3564 = vrot.slane %v3519, 4
    %v3565 = vrot.slane %v3521, 4
    %v3566 = vrot.slane %v3523, 4
    %v3567 = vrot.slane %v3525, 4
    %v3568 = vrot.slane %v3527, 4
    %v3569 = vrot.slane %v3529, 4
    %v3570 = vrot.slane %v3531, 4
    %v3571 = vrot.slane %v3533, 4
    %v3572 = vrot.slane %v3535, 4
    %v3573 = vrot.slane %v3537, 4
    %v3574 = vrot.slane %v3539, 4
    %v3575 = vrot.slane %v3541, 4
    %v3576 = vrot.slane %v3543, 4
    %v3577 = vrot.slane %v3545, 4
    %v3578 = vrot.slane %v3547, 4
    %v3579 = vrot.slane %v3549, 4
    %v3580 = vrot.slane %v3551, 4
    %v3581 = vrot.slane %v3553, 4
    %v3582 = vrot.slane %v3555, 4
    %v3583 = vrot.slane %v3557, 4
    %v3584 = vrot.slane %v3559, 4
    %v3585 = vrot.slane %v3561, 4
    %vm3586 = vcmask 982016
    %v3587 = vsel %vm3586, %v3562, %v3515
    %v3588 = vsel %vm3586, %v3563, %v3517
    %v3589 = vsel %vm3586, %v3564, %v3519
    %v3590 = vsel %vm3586, %v3565, %v3521
    %v3591 = vsel %vm3586, %v3566, %v3523
    %v3592 = vsel %vm3586, %v3567, %v3525
    %v3593 = vsel %vm3586, %v3568, %v3527
    %v3594 = vsel %vm3586, %v3569, %v3529
    %v3595 = vsel %vm3586, %v3570, %v3531
    %v3596 = vsel %vm3586, %v3571, %v3533
    %v3597 = vsel %vm3586, %v3572, %v3535
    %v3598 = vsel %vm3586, %v3573, %v3537
    %v3599 = vsel %vm3586, %v3574, %v3539
    %v3600 = vsel %vm3586, %v3575, %v3541
    %v3601 = vsel %vm3586, %v3576, %v3543
    %v3602 = vsel %vm3586, %v3577, %v3545
    %v3603 = vsel %vm3586, %v3578, %v3547
    %v3604 = vsel %vm3586, %v3579, %v3549
    %v3605 = vsel %vm3586, %v3580, %v3551
    %v3606 = vsel %vm3586, %v3581, %v3553
    %v3607 = vsel %vm3586, %v3582, %v3555
    %v3608 = vsel %vm3586, %v3583, %v3557
    %v3609 = vsel %vm3586, %v3584, %v3559
    %v3610 = vsel %vm3586, %v3585, %v3561
    %vm3635 = vcmask 1044416
    %vm3636 = vcmask 97284
    %vm3637 = vmor %vm3636, %vm3635
    %3638 = vst.msk [vmem:[#allocation3] sm:$0xff] %vm3637, %v3587
    %3639 = vst.msk [vmem:[#allocation3 + $0x10] sm:$0xff] %vm3637, %v3588
    %3640 = vst.msk [vmem:[#allocation3 + $0x20] sm:$0xff] %vm3637, %v3589
    %3641 = vst.msk [vmem:[#allocation3 + $0x30] sm:$0xff] %vm3637, %v3590
    %3642 = vst.msk [vmem:[#allocation3 + $0x40] sm:$0xff] %vm3637, %v3591
    %3643 = vst.msk [vmem:[#allocation3 + $0x50] sm:$0xff] %vm3637, %v3592
    %3644 = vst.msk [vmem:[#allocation3 + $0x60] sm:$0xff] %vm3637, %v3593
    %3645 = vst.msk [vmem:[#allocation3 + $0x70] sm:$0xff] %vm3637, %v3594
    %3646 = vst.msk [vmem:[#allocation3 + $0x80] sm:$0xff] %vm3637, %v3595
    %3647 = vst.msk [vmem:[#allocation3 + $0x90] sm:$0xff] %vm3637, %v3596
    %3648 = vst.msk [vmem:[#allocation3 + $0xa0] sm:$0xff] %vm3637, %v3597
    %3649 = vst.msk [vmem:[#allocation3 + $0xb0] sm:$0xff] %vm3637, %v3598
    %3650 = vst.msk [vmem:[#allocation3 + $0xc0] sm:$0xff] %vm3637, %v3599
    %3651 = vst.msk [vmem:[#allocation3 + $0xd0] sm:$0xff] %vm3637, %v3600
    %3652 = vst.msk [vmem:[#allocation3 + $0xe0] sm:$0xff] %vm3637, %v3601
    %3653 = vst.msk [vmem:[#allocation3 + $0xf0] sm:$0xff] %vm3637, %v3602
    %3654 = vst.msk [vmem:[#allocation3 + $0x100] sm:$0xff] %vm3637, %v3603
    %3655 = vst.msk [vmem:[#allocation3 + $0x110] sm:$0xff] %vm3637, %v3604
    %3656 = vst.msk [vmem:[#allocation3 + $0x120] sm:$0xff] %vm3637, %v3605
    %3657 = vst.msk [vmem:[#allocation3 + $0x130] sm:$0xff] %vm3637, %v3606
    %3658 = vst.msk [vmem:[#allocation3 + $0x140] sm:$0xff] %vm3637, %v3607
    %3659 = vst.msk [vmem:[#allocation3 + $0x150] sm:$0xff] %vm3637, %v3608
    %3660 = vst.msk [vmem:[#allocation3 + $0x160] sm:$0xff] %vm3637, %v3609
    %3661 = vst.msk [vmem:[#allocation3 + $0x170] sm:$0xff] %vm3637, %v3610
    %v3662 = vld [vmem:[#allocation2 + $0x4] sm:$0x8]
    %v3663 = vld [vmem:[#allocation2 + $0x8] sm:$0xf]
    %v3664 = vld [vmem:[#allocation2 + $0xc] sm:$0xf]
    %v3665 = vld [vmem:[#allocation2 + $0x10] sm:$0xf]
    %v3666 = vld [vmem:[#allocation2 + $0x14] sm:$0xf]
    %v3667 = vld [vmem:[#allocation2 + $0x18] sm:$0xf]
    %v3668 = vld [vmem:[#allocation2 + $0x1c] sm:$0xf]
    %v3669 = vld [vmem:[#allocation2 + $0x20] sm:$0xf]
    %v3670 = vld [vmem:[#allocation2 + $0x24] sm:$0xf]
    %v3671 = vld [vmem:[#allocation2 + $0x28] sm:$0xf]
    %v3672 = vld [vmem:[#allocation2 + $0x2c] sm:$0xf]
    %v3673 = vld [vmem:[#allocation2 + $0x30] sm:$0xf]
    %v3674 = vld [vmem:[#allocation2 + $0x34] sm:$0x7]
    %v3675 = vld [vmem:[#allocation2 + $0x50] sm:$0x8]
    %v3676 = vld [vmem:[#allocation2 + $0x54] sm:$0xf]
    %v3677 = vld [vmem:[#allocation2 + $0x58] sm:$0xf]
    %v3678 = vld [vmem:[#allocation2 + $0x5c] sm:$0xf]
    %v3679 = vld [vmem:[#allocation2 + $0x60] sm:$0xf]
    %v3680 = vld [vmem:[#allocation2 + $0x64] sm:$0xf]
    %v3681 = vld [vmem:[#allocation2 + $0x68] sm:$0xf]
    %v3682 = vld [vmem:[#allocation2 + $0x6c] sm:$0xf]
    %v3683 = vld [vmem:[#allocation2 + $0x70] sm:$0xf]
    %v3684 = vld [vmem:[#allocation2 + $0x74] sm:$0xf]
    %v3685 = vld [vmem:[#allocation2 + $0x78] sm:$0xf]
    %v3686 = vld [vmem:[#allocation2 + $0x7c] sm:$0xf]
    %v3687 = vld [vmem:[#allocation2 + $0x80] sm:$0x7]
    %vm3714 = vcmask 1040384
    %vm3715 = vcmask 1044484
    %vm3716 = vmor %vm3714, %vm3715
    %v3717 = vrot.slane %v3662, 7
    %v3718 = vrot.slane %v3717, 4
    %v3719 = vrot.slane %v3663, 7
    %v3720 = vsel %vm3716, %v3718, %v3719
    %v3721 = vrot.slane %v3719, 4
    %v3722 = vrot.slane %v3664, 7
    %v3723 = vsel %vm3716, %v3721, %v3722
    %v3724 = vrot.slane %v3722, 4
    %v3725 = vrot.slane %v3665, 7
    %v3726 = vsel %vm3716, %v3724, %v3725
    %v3727 = vrot.slane %v3725, 4
    %v3728 = vrot.slane %v3666, 7
    %v3729 = vsel %vm3716, %v3727, %v3728
    %v3730 = vrot.slane %v3728, 4
    %v3731 = vrot.slane %v3667, 7
    %v3732 = vsel %vm3716, %v3730, %v3731
    %v3733 = vrot.slane %v3731, 4
    %v3734 = vrot.slane %v3668, 7
    %v3735 = vsel %vm3716, %v3733, %v3734
    %v3736 = vrot.slane %v3734, 4
    %v3737 = vrot.slane %v3669, 7
    %v3738 = vsel %vm3716, %v3736, %v3737
    %v3739 = vrot.slane %v3737, 4
    %v3740 = vrot.slane %v3670, 7
    %v3741 = vsel %vm3716, %v3739, %v3740
    %v3742 = vrot.slane %v3740, 4
    %v3743 = vrot.slane %v3671, 7
    %v3744 = vsel %vm3716, %v3742, %v3743
    %v3745 = vrot.slane %v3743, 4
    %v3746 = vrot.slane %v3672, 7
    %v3747 = vsel %vm3716, %v3745, %v3746
    %v3748 = vrot.slane %v3746, 4
    %v3749 = vrot.slane %v3673, 7
    %v3750 = vsel %vm3716, %v3748, %v3749
    %v3751 = vrot.slane %v3749, 4
    %v3752 = vrot.slane %v3674, 7
    %v3753 = vsel %vm3716, %v3751, %v3752
    %v3754 = vrot.slane %v3675, 7
    %v3755 = vrot.slane %v3754, 4
    %v3756 = vrot.slane %v3676, 7
    %v3757 = vsel %vm3716, %v3755, %v3756
    %v3758 = vrot.slane %v3756, 4
    %v3759 = vrot.slane %v3677, 7
    %v3760 = vsel %vm3716, %v3758, %v3759
    %v3761 = vrot.slane %v3759, 4
    %v3762 = vrot.slane %v3678, 7
    %v3763 = vsel %vm3716, %v3761, %v3762
    %v3764 = vrot.slane %v3762, 4
    %v3765 = vrot.slane %v3679, 7
    %v3766 = vsel %vm3716, %v3764, %v3765
    %v3767 = vrot.slane %v3765, 4
    %v3768 = vrot.slane %v3680, 7
    %v3769 = vsel %vm3716, %v3767, %v3768
    %v3770 = vrot.slane %v3768, 4
    %v3771 = vrot.slane %v3681, 7
    %v3772 = vsel %vm3716, %v3770, %v3771
    %v3773 = vrot.slane %v3771, 4
    %v3774 = vrot.slane %v3682, 7
    %v3775 = vsel %vm3716, %v3773, %v3774
    %v3776 = vrot.slane %v3774, 4
    %v3777 = vrot.slane %v3683, 7
    %v3778 = vsel %vm3716, %v3776, %v3777
    %v3779 = vrot.slane %v3777, 4
    %v3780 = vrot.slane %v3684, 7
    %v3781 = vsel %vm3716, %v3779, %v3780
    %v3782 = vrot.slane %v3780, 4
    %v3783 = vrot.slane %v3685, 7
    %v3784 = vsel %vm3716, %v3782, %v3783
    %v3785 = vrot.slane %v3783, 4
    %v3786 = vrot.slane %v3686, 7
    %v3787 = vsel %vm3716, %v3785, %v3786
    %v3788 = vrot.slane %v3786, 4
    %v3789 = vrot.slane %v3687, 7
    %v3790 = vsel %vm3716, %v3788, %v3789
    %3791 = vrot.lane.b32.xlu0 %v3720, 12
    %v3792 = vpop.permute.xlu0 %3791
    %3793 = vrot.lane.b32.xlu0 %v3723, 12
    %v3794 = vpop.permute.xlu0 %3793
    %3795 = vrot.lane.b32.xlu0 %v3726, 12
    %v3796 = vpop.permute.xlu0 %3795
    %3797 = vrot.lane.b32.xlu0 %v3729, 12
    %v3798 = vpop.permute.xlu0 %3797
    %3799 = vrot.lane.b32.xlu0 %v3732, 12
    %v3800 = vpop.permute.xlu0 %3799
    %3801 = vrot.lane.b32.xlu0 %v3735, 12
    %v3802 = vpop.permute.xlu0 %3801
    %3803 = vrot.lane.b32.xlu0 %v3738, 12
    %v3804 = vpop.permute.xlu0 %3803
    %3805 = vrot.lane.b32.xlu0 %v3741, 12
    %v3806 = vpop.permute.xlu0 %3805
    %3807 = vrot.lane.b32.xlu0 %v3744, 12
    %v3808 = vpop.permute.xlu0 %3807
    %3809 = vrot.lane.b32.xlu0 %v3747, 12
    %v3810 = vpop.permute.xlu0 %3809
    %3811 = vrot.lane.b32.xlu0 %v3750, 12
    %v3812 = vpop.permute.xlu0 %3811
    %3813 = vrot.lane.b32.xlu0 %v3753, 12
    %v3814 = vpop.permute.xlu0 %3813
    %3815 = vrot.lane.b32.xlu0 %v3757, 12
    %v3816 = vpop.permute.xlu0 %3815
    %3817 = vrot.lane.b32.xlu0 %v3760, 12
    %v3818 = vpop.permute.xlu0 %3817
    %3819 = vrot.lane.b32.xlu0 %v3763, 12
    %v3820 = vpop.permute.xlu0 %3819
    %3821 = vrot.lane.b32.xlu0 %v3766, 12
    %v3822 = vpop.permute.xlu0 %3821
    %3823 = vrot.lane.b32.xlu0 %v3769, 12
    %v3824 = vpop.permute.xlu0 %3823
    %3825 = vrot.lane.b32.xlu0 %v3772, 12
    %v3826 = vpop.permute.xlu0 %3825
    %3827 = vrot.lane.b32.xlu0 %v3775, 12
    %v3828 = vpop.permute.xlu0 %3827
    %3829 = vrot.lane.b32.xlu0 %v3778, 12
    %v3830 = vpop.permute.xlu0 %3829
    %3831 = vrot.lane.b32.xlu0 %v3781, 12
    %v3832 = vpop.permute.xlu0 %3831
    %3833 = vrot.lane.b32.xlu0 %v3784, 12
    %v3834 = vpop.permute.xlu0 %3833
    %3835 = vrot.lane.b32.xlu0 %v3787, 12
    %v3836 = vpop.permute.xlu0 %3835
    %3837 = vrot.lane.b32.xlu0 %v3790, 12
    %v3838 = vpop.permute.xlu0 %3837
    %vm3863 = vcmask 257120
    %3864 = vst.msk [vmem:[#allocation3 + $0x4] sm:$0xf] %vm3863, %v3792
    %3865 = vst.msk [vmem:[#allocation3 + $0x14] sm:$0xf] %vm3863, %v3794
    %3866 = vst.msk [vmem:[#allocation3 + $0x24] sm:$0xf] %vm3863, %v3796
    %3867 = vst.msk [vmem:[#allocation3 + $0x34] sm:$0xf] %vm3863, %v3798
    %3868 = vst.msk [vmem:[#allocation3 + $0x44] sm:$0xf] %vm3863, %v3800
    %3869 = vst.msk [vmem:[#allocation3 + $0x54] sm:$0xf] %vm3863, %v3802
    %3870 = vst.msk [vmem:[#allocation3 + $0x64] sm:$0xf] %vm3863, %v3804
    %3871 = vst.msk [vmem:[#allocation3 + $0x74] sm:$0xf] %vm3863, %v3806
    %3872 = vst.msk [vmem:[#allocation3 + $0x84] sm:$0xf] %vm3863, %v3808
    %3873 = vst.msk [vmem:[#allocation3 + $0x94] sm:$0xf] %vm3863, %v3810
    %3874 = vst.msk [vmem:[#allocation3 + $0xa4] sm:$0xf] %vm3863, %v3812
    %3875 = vst.msk [vmem:[#allocation3 + $0xb4] sm:$0xf] %vm3863, %v3814
    %3876 = vst.msk [vmem:[#allocation3 + $0xc4] sm:$0xf] %vm3863, %v3816
    %3877 = vst.msk [vmem:[#allocation3 + $0xd4] sm:$0xf] %vm3863, %v3818
    %3878 = vst.msk [vmem:[#allocation3 + $0xe4] sm:$0xf] %vm3863, %v3820
    %3879 = vst.msk [vmem:[#allocation3 + $0xf4] sm:$0xf] %vm3863, %v3822
    %3880 = vst.msk [vmem:[#allocation3 + $0x104] sm:$0xf] %vm3863, %v3824
    %3881 = vst.msk [vmem:[#allocation3 + $0x114] sm:$0xf] %vm3863, %v3826
    %3882 = vst.msk [vmem:[#allocation3 + $0x124] sm:$0xf] %vm3863, %v3828
    %3883 = vst.msk [vmem:[#allocation3 + $0x134] sm:$0xf] %vm3863, %v3830
    %3884 = vst.msk [vmem:[#allocation3 + $0x144] sm:$0xf] %vm3863, %v3832
    %3885 = vst.msk [vmem:[#allocation3 + $0x154] sm:$0xf] %vm3863, %v3834
    %3886 = vst.msk [vmem:[#allocation3 + $0x164] sm:$0xf] %vm3863, %v3836
    %3887 = vst.msk [vmem:[#allocation3 + $0x174] sm:$0xf] %vm3863, %v3838
    %v3888 = vld [vmem:[#allocation2 + $0x4] sm:$0x8]
    %v3889 = vld [vmem:[#allocation2 + $0x8] sm:$0xf]
    %v3890 = vld [vmem:[#allocation2 + $0xc] sm:$0xf]
    %v3891 = vld [vmem:[#allocation2 + $0x10] sm:$0xf]
    %v3892 = vld [vmem:[#allocation2 + $0x14] sm:$0xf]
    %v3893 = vld [vmem:[#allocation2 + $0x18] sm:$0xf]
    %v3894 = vld [vmem:[#allocation2 + $0x1c] sm:$0xf]
    %v3895 = vld [vmem:[#allocation2 + $0x20] sm:$0xf]
    %v3896 = vld [vmem:[#allocation2 + $0x24] sm:$0xf]
    %v3897 = vld [vmem:[#allocation2 + $0x28] sm:$0xf]
    %v3898 = vld [vmem:[#allocation2 + $0x2c] sm:$0xf]
    %v3899 = vld [vmem:[#allocation2 + $0x30] sm:$0xf]
    %v3900 = vld [vmem:[#allocation2 + $0x34] sm:$0xf]
    %v3901 = vld [vmem:[#allocation2 + $0x50] sm:$0x8]
    %v3902 = vld [vmem:[#allocation2 + $0x54] sm:$0xf]
    %v3903 = vld [vmem:[#allocation2 + $0x58] sm:$0xf]
    %v3904 = vld [vmem:[#allocation2 + $0x5c] sm:$0xf]
    %v3905 = vld [vmem:[#allocation2 + $0x60] sm:$0xf]
    %v3906 = vld [vmem:[#allocation2 + $0x64] sm:$0xf]
    %v3907 = vld [vmem:[#allocation2 + $0x68] sm:$0xf]
    %v3908 = vld [vmem:[#allocation2 + $0x6c] sm:$0xf]
    %v3909 = vld [vmem:[#allocation2 + $0x70] sm:$0xf]
    %v3910 = vld [vmem:[#allocation2 + $0x74] sm:$0xf]
    %v3911 = vld [vmem:[#allocation2 + $0x78] sm:$0xf]
    %v3912 = vld [vmem:[#allocation2 + $0x7c] sm:$0xf]
    %v3913 = vld [vmem:[#allocation2 + $0x80] sm:$0xf]
    %vm3914 = vsmask.f32 256
    %vm3915 = vsmask.f32 4368
    %vm3916 = vmor %vm3914, %vm3915
    %v3918 = vshrl.u32 %v3888, 16
    %v3920 = vrot.slane %v3918, 7
    %v3921 = vrot.slane %v3920, 4
    %v3923 = vshrl.u32 %v3889, 16
    %v3925 = vrot.slane %v3923, 7
    %v3926 = vshll.u32 %v3889, 16
    %v3928 = vor.u32 %v3925, %v3926
    %v3929 = vsel %vm3916, %v3921, %v3928
    %v3930 = vrot.slane %v3925, 4
    %v3932 = vshrl.u32 %v3890, 16
    %v3934 = vrot.slane %v3932, 7
    %v3935 = vshll.u32 %v3890, 16
    %v3937 = vor.u32 %v3934, %v3935
    %v3938 = vsel %vm3916, %v3930, %v3937
    %v3939 = vrot.slane %v3934, 4
    %v3941 = vshrl.u32 %v3891, 16
    %v3943 = vrot.slane %v3941, 7
    %v3944 = vshll.u32 %v3891, 16
    %v3946 = vor.u32 %v3943, %v3944
    %v3947 = vsel %vm3916, %v3939, %v3946
    %v3948 = vrot.slane %v3943, 4
    %v3950 = vshrl.u32 %v3892, 16
    %v3952 = vrot.slane %v3950, 7
    %v3953 = vshll.u32 %v3892, 16
    %v3955 = vor.u32 %v3952, %v3953
    %v3956 = vsel %vm3916, %v3948, %v3955
    %v3957 = vrot.slane %v3952, 4
    %v3959 = vshrl.u32 %v3893, 16
    %v3961 = vrot.slane %v3959, 7
    %v3962 = vshll.u32 %v3893, 16
    %v3964 = vor.u32 %v3961, %v3962
    %v3965 = vsel %vm3916, %v3957, %v3964
    %v3966 = vrot.slane %v3961, 4
    %v3968 = vshrl.u32 %v3894, 16
    %v3970 = vrot.slane %v3968, 7
    %v3971 = vshll.u32 %v3894, 16
    %v3973 = vor.u32 %v3970, %v3971
    %v3974 = vsel %vm3916, %v3966, %v3973
    %v3975 = vrot.slane %v3970, 4
    %v3977 = vshrl.u32 %v3895, 16
    %v3979 = vrot.slane %v3977, 7
    %v3980 = vshll.u32 %v3895, 16
    %v3982 = vor.u32 %v3979, %v3980
    %v3983 = vsel %vm3916, %v3975, %v3982
    %v3984 = vrot.slane %v3979, 4
    %v3986 = vshrl.u32 %v3896, 16
    %v3988 = vrot.slane %v3986, 7
    %v3989 = vshll.u32 %v3896, 16
    %v3991 = vor.u32 %v3988, %v3989
    %v3992 = vsel %vm3916, %v3984, %v3991
    %v3993 = vrot.slane %v3988, 4
    %v3995 = vshrl.u32 %v3897, 16
    %v3997 = vrot.slane %v3995, 7
    %v3998 = vshll.u32 %v3897, 16
    %v4000 = vor.u32 %v3997, %v3998
    %v4001 = vsel %vm3916, %v3993, %v4000
    %v4002 = vrot.slane %v3997, 4
    %v4004 = vshrl.u32 %v3898, 16
    %v4006 = vrot.slane %v4004, 7
    %v4007 = vshll.u32 %v3898, 16
    %v4009 = vor.u32 %v4006, %v4007
    %v4010 = vsel %vm3916, %v4002, %v4009
    %v4011 = vrot.slane %v4006, 4
    %v4013 = vshrl.u32 %v3899, 16
    %v4015 = vrot.slane %v4013, 7
    %v4016 = vshll.u32 %v3899, 16
    %v4018 = vor.u32 %v4015, %v4016
    %v4019 = vsel %vm3916, %v4011, %v4018
    %v4020 = vrot.slane %v4015, 4
    %v4022 = vshrl.u32 %v3900, 16
    %v4024 = vrot.slane %v4022, 7
    %v4025 = vshll.u32 %v3900, 16
    %v4027 = vor.u32 %v4024, %v4025
    %v4028 = vsel %vm3916, %v4020, %v4027
    %v4030 = vshrl.u32 %v3901, 16
    %v4032 = vrot.slane %v4030, 7
    %v4033 = vrot.slane %v4032, 4
    %v4035 = vshrl.u32 %v3902, 16
    %v4037 = vrot.slane %v4035, 7
    %v4038 = vshll.u32 %v3902, 16
    %v4040 = vor.u32 %v4037, %v4038
    %v4041 = vsel %vm3916, %v4033, %v4040
    %v4042 = vrot.slane %v4037, 4
    %v4044 = vshrl.u32 %v3903, 16
    %v4046 = vrot.slane %v4044, 7
    %v4047 = vshll.u32 %v3903, 16
    %v4049 = vor.u32 %v4046, %v4047
    %v4050 = vsel %vm3916, %v4042, %v4049
    %v4051 = vrot.slane %v4046, 4
    %v4053 = vshrl.u32 %v3904, 16
    %v4055 = vrot.slane %v4053, 7
    %v4056 = vshll.u32 %v3904, 16
    %v4058 = vor.u32 %v4055, %v4056
    %v4059 = vsel %vm3916, %v4051, %v4058
    %v4060 = vrot.slane %v4055, 4
    %v4062 = vshrl.u32 %v3905, 16
    %v4064 = vrot.slane %v4062, 7
    %v4065 = vshll.u32 %v3905, 16
    %v4067 = vor.u32 %v4064, %v4065
    %v4068 = vsel %vm3916, %v4060, %v4067
    %v4069 = vrot.slane %v4064, 4
    %v4071 = vshrl.u32 %v3906, 16
    %v4073 = vrot.slane %v4071, 7
    %v4074 = vshll.u32 %v3906, 16
    %v4076 = vor.u32 %v4073, %v4074
    %v4077 = vsel %vm3916, %v4069, %v4076
    %v4078 = vrot.slane %v4073, 4
    %v4080 = vshrl.u32 %v3907, 16
    %v4082 = vrot.slane %v4080, 7
    %v4083 = vshll.u32 %v3907, 16
    %v4085 = vor.u32 %v4082, %v4083
    %v4086 = vsel %vm3916, %v4078, %v4085
    %v4087 = vrot.slane %v4082, 4
    %v4089 = vshrl.u32 %v3908, 16
    %v4091 = vrot.slane %v4089, 7
    %v4092 = vshll.u32 %v3908, 16
    %v4094 = vor.u32 %v4091, %v4092
    %v4095 = vsel %vm3916, %v4087, %v4094
    %v4096 = vrot.slane %v4091, 4
    %v4098 = vshrl.u32 %v3909, 16
    %v4100 = vrot.slane %v4098, 7
    %v4101 = vshll.u32 %v3909, 16
    %v4103 = vor.u32 %v4100, %v4101
    %v4104 = vsel %vm3916, %v4096, %v4103
    %v4105 = vrot.slane %v4100, 4
    %v4107 = vshrl.u32 %v3910, 16
    %v4109 = vrot.slane %v4107, 7
    %v4110 = vshll.u32 %v3910, 16
    %v4112 = vor.u32 %v4109, %v4110
    %v4113 = vsel %vm3916, %v4105, %v4112
    %v4114 = vrot.slane %v4109, 4
    %v4116 = vshrl.u32 %v3911, 16
    %v4118 = vrot.slane %v4116, 7
    %v4119 = vshll.u32 %v3911, 16
    %v4121 = vor.u32 %v4118, %v4119
    %v4122 = vsel %vm3916, %v4114, %v4121
    %v4123 = vrot.slane %v4118, 4
    %v4125 = vshrl.u32 %v3912, 16
    %v4127 = vrot.slane %v4125, 7
    %v4128 = vshll.u32 %v3912, 16
    %v4130 = vor.u32 %v4127, %v4128
    %v4131 = vsel %vm3916, %v4123, %v4130
    %v4132 = vrot.slane %v4127, 4
    %v4134 = vshrl.u32 %v3913, 16
    %v4136 = vrot.slane %v4134, 7
    %v4137 = vshll.u32 %v3913, 16
    %v4139 = vor.u32 %v4136, %v4137
    %v4140 = vsel %vm3916, %v4132, %v4139
    %4141 = vrot.lane.b32.xlu0 %v3929, 32
    %v4142 = vpop.permute.xlu0 %4141
    %4143 = vrot.lane.b32.xlu0 %v3938, 32
    %v4144 = vpop.permute.xlu0 %4143
    %4145 = vrot.lane.b32.xlu0 %v3947, 32
    %v4146 = vpop.permute.xlu0 %4145
    %4147 = vrot.lane.b32.xlu0 %v3956, 32
    %v4148 = vpop.permute.xlu0 %4147
    %4149 = vrot.lane.b32.xlu0 %v3965, 32
    %v4150 = vpop.permute.xlu0 %4149
    %4151 = vrot.lane.b32.xlu0 %v3974, 32
    %v4152 = vpop.permute.xlu0 %4151
    %4153 = vrot.lane.b32.xlu0 %v3983, 32
    %v4154 = vpop.permute.xlu0 %4153
    %4155 = vrot.lane.b32.xlu0 %v3992, 32
    %v4156 = vpop.permute.xlu0 %4155
    %4157 = vrot.lane.b32.xlu0 %v4001, 32
    %v4158 = vpop.permute.xlu0 %4157
    %4159 = vrot.lane.b32.xlu0 %v4010, 32
    %v4160 = vpop.permute.xlu0 %4159
    %4161 = vrot.lane.b32.xlu0 %v4019, 32
    %v4162 = vpop.permute.xlu0 %4161
    %4163 = vrot.lane.b32.xlu0 %v4028, 32
    %v4164 = vpop.permute.xlu0 %4163
    %4165 = vrot.lane.b32.xlu0 %v4041, 32
    %v4166 = vpop.permute.xlu0 %4165
    %4167 = vrot.lane.b32.xlu0 %v4050, 32
    %v4168 = vpop.permute.xlu0 %4167
    %4169 = vrot.lane.b32.xlu0 %v4059, 32
    %v4170 = vpop.permute.xlu0 %4169
    %4171 = vrot.lane.b32.xlu0 %v4068, 32
    %v4172 = vpop.permute.xlu0 %4171
    %4173 = vrot.lane.b32.xlu0 %v4077, 32
    %v4174 = vpop.permute.xlu0 %4173
    %4175 = vrot.lane.b32.xlu0 %v4086, 32
    %v4176 = vpop.permute.xlu0 %4175
    %4177 = vrot.lane.b32.xlu0 %v4095, 32
    %v4178 = vpop.permute.xlu0 %4177
    %4179 = vrot.lane.b32.xlu0 %v4104, 32
    %v4180 = vpop.permute.xlu0 %4179
    %4181 = vrot.lane.b32.xlu0 %v4113, 32
    %v4182 = vpop.permute.xlu0 %4181
    %4183 = vrot.lane.b32.xlu0 %v4122, 32
    %v4184 = vpop.permute.xlu0 %4183
    %4185 = vrot.lane.b32.xlu0 %v4131, 32
    %v4186 = vpop.permute.xlu0 %4185
    %4187 = vrot.lane.b32.xlu0 %v4140, 32
    %v4188 = vpop.permute.xlu0 %4187
    %vm4213 = vcmask 421120
    %4214 = vst.msk [vmem:[#allocation3 + $0x4] sm:$0xf] %vm4213, %v4142
    %4215 = vst.msk [vmem:[#allocation3 + $0x14] sm:$0xf] %vm4213, %v4144
    %4216 = vst.msk [vmem:[#allocation3 + $0x24] sm:$0xf] %vm4213, %v4146
    %4217 = vst.msk [vmem:[#allocation3 + $0x34] sm:$0xf] %vm4213, %v4148
    %4218 = vst.msk [vmem:[#allocation3 + $0x44] sm:$0xf] %vm4213, %v4150
    %4219 = vst.msk [vmem:[#allocation3 + $0x54] sm:$0xf] %vm4213, %v4152
    %4220 = vst.msk [vmem:[#allocation3 + $0x64] sm:$0xf] %vm4213, %v4154
    %4221 = vst.msk [vmem:[#allocation3 + $0x74] sm:$0xf] %vm4213, %v4156
    %4222 = vst.msk [vmem:[#allocation3 + $0x84] sm:$0xf] %vm4213, %v4158
    %4223 = vst.msk [vmem:[#allocation3 + $0x94] sm:$0xf] %vm4213, %v4160
    %4224 = vst.msk [vmem:[#allocation3 + $0xa4] sm:$0xf] %vm4213, %v4162
    %4225 = vst.msk [vmem:[#allocation3 + $0xb4] sm:$0xf] %vm4213, %v4164
    %4226 = vst.msk [vmem:[#allocation3 + $0xc4] sm:$0xf] %vm4213, %v4166
    %4227 = vst.msk [vmem:[#allocation3 + $0xd4] sm:$0xf] %vm4213, %v4168
    %4228 = vst.msk [vmem:[#allocation3 + $0xe4] sm:$0xf] %vm4213, %v4170
    %4229 = vst.msk [vmem:[#allocation3 + $0xf4] sm:$0xf] %vm4213, %v4172
    %4230 = vst.msk [vmem:[#allocation3 + $0x104] sm:$0xf] %vm4213, %v4174
    %4231 = vst.msk [vmem:[#allocation3 + $0x114] sm:$0xf] %vm4213, %v4176
    %4232 = vst.msk [vmem:[#allocation3 + $0x124] sm:$0xf] %vm4213, %v4178
    %4233 = vst.msk [vmem:[#allocation3 + $0x134] sm:$0xf] %vm4213, %v4180
    %4234 = vst.msk [vmem:[#allocation3 + $0x144] sm:$0xf] %vm4213, %v4182
    %4235 = vst.msk [vmem:[#allocation3 + $0x154] sm:$0xf] %vm4213, %v4184
    %4236 = vst.msk [vmem:[#allocation3 + $0x164] sm:$0xf] %vm4213, %v4186
    %4237 = vst.msk [vmem:[#allocation3 + $0x174] sm:$0xf] %vm4213, %v4188
    %v4238 = vld [vmem:[#allocation2 + $0x8] sm:$0xf]
    %v4239 = vld [vmem:[#allocation2 + $0xc] sm:$0xf]
    %v4240 = vld [vmem:[#allocation2 + $0x10] sm:$0xf]
    %v4241 = vld [vmem:[#allocation2 + $0x14] sm:$0xf]
    %v4242 = vld [vmem:[#allocation2 + $0x18] sm:$0xf]
    %v4243 = vld [vmem:[#allocation2 + $0x1c] sm:$0xf]
    %v4244 = vld [vmem:[#allocation2 + $0x20] sm:$0xf]
    %v4245 = vld [vmem:[#allocation2 + $0x24] sm:$0xf]
    %v4246 = vld [vmem:[#allocation2 + $0x28] sm:$0xf]
    %v4247 = vld [vmem:[#allocation2 + $0x2c] sm:$0xf]
    %v4248 = vld [vmem:[#allocation2 + $0x30] sm:$0xf]
    %v4249 = vld [vmem:[#allocation2 + $0x34] sm:$0xf]
    %v4250 = vld [vmem:[#allocation2 + $0x54] sm:$0xf]
    %v4251 = vld [vmem:[#allocation2 + $0x58] sm:$0xf]
    %v4252 = vld [vmem:[#allocation2 + $0x5c] sm:$0xf]
    %v4253 = vld [vmem:[#allocation2 + $0x60] sm:$0xf]
    %v4254 = vld [vmem:[#allocation2 + $0x64] sm:$0xf]
    %v4255 = vld [vmem:[#allocation2 + $0x68] sm:$0xf]
    %v4256 = vld [vmem:[#allocation2 + $0x6c] sm:$0xf]
    %v4257 = vld [vmem:[#allocation2 + $0x70] sm:$0xf]
    %v4258 = vld [vmem:[#allocation2 + $0x74] sm:$0xf]
    %v4259 = vld [vmem:[#allocation2 + $0x78] sm:$0xf]
    %v4260 = vld [vmem:[#allocation2 + $0x7c] sm:$0xf]
    %v4261 = vld [vmem:[#allocation2 + $0x80] sm:$0xf]
    %4286 = vrot.lane.b32.xlu0 %v4238, 52
    %v4287 = vpop.permute.xlu0 %4286
    %4288 = vrot.lane.b32.xlu0 %v4239, 52
    %v4289 = vpop.permute.xlu0 %4288
    %4290 = vrot.lane.b32.xlu0 %v4240, 52
    %v4291 = vpop.permute.xlu0 %4290
    %4292 = vrot.lane.b32.xlu0 %v4241, 52
    %v4293 = vpop.permute.xlu0 %4292
    %4294 = vrot.lane.b32.xlu0 %v4242, 52
    %v4295 = vpop.permute.xlu0 %4294
    %4296 = vrot.lane.b32.xlu0 %v4243, 52
    %v4297 = vpop.permute.xlu0 %4296
    %4298 = vrot.lane.b32.xlu0 %v4244, 52
    %v4299 = vpop.permute.xlu0 %4298
    %4300 = vrot.lane.b32.xlu0 %v4245, 52
    %v4301 = vpop.permute.xlu0 %4300
    %4302 = vrot.lane.b32.xlu0 %v4246, 52
    %v4303 = vpop.permute.xlu0 %4302
    %4304 = vrot.lane.b32.xlu0 %v4247, 52
    %v4305 = vpop.permute.xlu0 %4304
    %4306 = vrot.lane.b32.xlu0 %v4248, 52
    %v4307 = vpop.permute.xlu0 %4306
    %4308 = vrot.lane.b32.xlu0 %v4249, 52
    %v4309 = vpop.permute.xlu0 %4308
    %4310 = vrot.lane.b32.xlu0 %v4250, 52
    %v4311 = vpop.permute.xlu0 %4310
    %4312 = vrot.lane.b32.xlu0 %v4251, 52
    %v4313 = vpop.permute.xlu0 %4312
    %4314 = vrot.lane.b32.xlu0 %v4252, 52
    %v4315 = vpop.permute.xlu0 %4314
    %4316 = vrot.lane.b32.xlu0 %v4253, 52
    %v4317 = vpop.permute.xlu0 %4316
    %4318 = vrot.lane.b32.xlu0 %v4254, 52
    %v4319 = vpop.permute.xlu0 %4318
    %4320 = vrot.lane.b32.xlu0 %v4255, 52
    %v4321 = vpop.permute.xlu0 %4320
    %4322 = vrot.lane.b32.xlu0 %v4256, 52
    %v4323 = vpop.permute.xlu0 %4322
    %4324 = vrot.lane.b32.xlu0 %v4257, 52
    %v4325 = vpop.permute.xlu0 %4324
    %4326 = vrot.lane.b32.xlu0 %v4258, 52
    %v4327 = vpop.permute.xlu0 %4326
    %4328 = vrot.lane.b32.xlu0 %v4259, 52
    %v4329 = vpop.permute.xlu0 %4328
    %4330 = vrot.lane.b32.xlu0 %v4260, 52
    %v4331 = vpop.permute.xlu0 %4330
    %4332 = vrot.lane.b32.xlu0 %v4261, 52
    %v4333 = vpop.permute.xlu0 %4332
    %vm4358 = vcmask 585120
    %4359 = vst.msk [vmem:[#allocation3 + $0x4] sm:$0xf] %vm4358, %v4287
    %4360 = vst.msk [vmem:[#allocation3 + $0x14] sm:$0xf] %vm4358, %v4289
    %4361 = vst.msk [vmem:[#allocation3 + $0x24] sm:$0xf] %vm4358, %v4291
    %4362 = vst.msk [vmem:[#allocation3 + $0x34] sm:$0xf] %vm4358, %v4293
    %4363 = vst.msk [vmem:[#allocation3 + $0x44] sm:$0xf] %vm4358, %v4295
    %4364 = vst.msk [vmem:[#allocation3 + $0x54] sm:$0xf] %vm4358, %v4297
    %4365 = vst.msk [vmem:[#allocation3 + $0x64] sm:$0xf] %vm4358, %v4299
    %4366 = vst.msk [vmem:[#allocation3 + $0x74] sm:$0xf] %vm4358, %v4301
    %4367 = vst.msk [vmem:[#allocation3 + $0x84] sm:$0xf] %vm4358, %v4303
    %4368 = vst.msk [vmem:[#allocation3 + $0x94] sm:$0xf] %vm4358, %v4305
    %4369 = vst.msk [vmem:[#allocation3 + $0xa4] sm:$0xf] %vm4358, %v4307
    %4370 = vst.msk [vmem:[#allocation3 + $0xb4] sm:$0xf] %vm4358, %v4309
    %4371 = vst.msk [vmem:[#allocation3 + $0xc4] sm:$0xf] %vm4358, %v4311
    %4372 = vst.msk [vmem:[#allocation3 + $0xd4] sm:$0xf] %vm4358, %v4313
    %4373 = vst.msk [vmem:[#allocation3 + $0xe4] sm:$0xf] %vm4358, %v4315
    %4374 = vst.msk [vmem:[#allocation3 + $0xf4] sm:$0xf] %vm4358, %v4317
    %4375 = vst.msk [vmem:[#allocation3 + $0x104] sm:$0xf] %vm4358, %v4319
    %4376 = vst.msk [vmem:[#allocation3 + $0x114] sm:$0xf] %vm4358, %v4321
    %4377 = vst.msk [vmem:[#allocation3 + $0x124] sm:$0xf] %vm4358, %v4323
    %4378 = vst.msk [vmem:[#allocation3 + $0x134] sm:$0xf] %vm4358, %v4325
    %4379 = vst.msk [vmem:[#allocation3 + $0x144] sm:$0xf] %vm4358, %v4327
    %4380 = vst.msk [vmem:[#allocation3 + $0x154] sm:$0xf] %vm4358, %v4329
    %4381 = vst.msk [vmem:[#allocation3 + $0x164] sm:$0xf] %vm4358, %v4331
    %4382 = vst.msk [vmem:[#allocation3 + $0x174] sm:$0xf] %vm4358, %v4333
    %v4383 = vld [vmem:[#allocation2 + $0xc] sm:$0xf]
    %v4384 = vld [vmem:[#allocation2 + $0x10] sm:$0xf]
    %v4385 = vld [vmem:[#allocation2 + $0x14] sm:$0xf]
    %v4386 = vld [vmem:[#allocation2 + $0x18] sm:$0xf]
    %v4387 = vld [vmem:[#allocation2 + $0x1c] sm:$0xf]
    %v4388 = vld [vmem:[#allocation2 + $0x20] sm:$0xf]
    %v4389 = vld [vmem:[#allocation2 + $0x24] sm:$0xf]
    %v4390 = vld [vmem:[#allocation2 + $0x28] sm:$0xf]
    %v4391 = vld [vmem:[#allocation2 + $0x2c] sm:$0xf]
    %v4392 = vld [vmem:[#allocation2 + $0x30] sm:$0xf]
    %v4393 = vld [vmem:[#allocation2 + $0x34] sm:$0xf]
    %v4394 = vld [vmem:[#allocation2 + $0x38] sm:$0xf]
    %v4395 = vld [vmem:[#allocation2 + $0x58] sm:$0xf]
    %v4396 = vld [vmem:[#allocation2 + $0x5c] sm:$0xf]
    %v4397 = vld [vmem:[#allocation2 + $0x60] sm:$0xf]
    %v4398 = vld [vmem:[#allocation2 + $0x64] sm:$0xf]
    %v4399 = vld [vmem:[#allocation2 + $0x68] sm:$0xf]
    %v4400 = vld [vmem:[#allocation2 + $0x6c] sm:$0xf]
    %v4401 = vld [vmem:[#allocation2 + $0x70] sm:$0xf]
    %v4402 = vld [vmem:[#allocation2 + $0x74] sm:$0xf]
    %v4403 = vld [vmem:[#allocation2 + $0x78] sm:$0xf]
    %v4404 = vld [vmem:[#allocation2 + $0x7c] sm:$0xf]
    %v4405 = vld [vmem:[#allocation2 + $0x80] sm:$0xf]
    %v4406 = vld [vmem:[#allocation2 + $0x84] sm:$0xf]
    %4431 = vrot.lane.b32.xlu0 %v4383, 72
    %v4432 = vpop.permute.xlu0 %4431
    %4433 = vrot.lane.b32.xlu0 %v4384, 72
    %v4434 = vpop.permute.xlu0 %4433
    %4435 = vrot.lane.b32.xlu0 %v4385, 72
    %v4436 = vpop.permute.xlu0 %4435
    %4437 = vrot.lane.b32.xlu0 %v4386, 72
    %v4438 = vpop.permute.xlu0 %4437
    %4439 = vrot.lane.b32.xlu0 %v4387, 72
    %v4440 = vpop.permute.xlu0 %4439
    %4441 = vrot.lane.b32.xlu0 %v4388, 72
    %v4442 = vpop.permute.xlu0 %4441
    %4443 = vrot.lane.b32.xlu0 %v4389, 72
    %v4444 = vpop.permute.xlu0 %4443
    %4445 = vrot.lane.b32.xlu0 %v4390, 72
    %v4446 = vpop.permute.xlu0 %4445
    %4447 = vrot.lane.b32.xlu0 %v4391, 72
    %v4448 = vpop.permute.xlu0 %4447
    %4449 = vrot.lane.b32.xlu0 %v4392, 72
    %v4450 = vpop.permute.xlu0 %4449
    %4451 = vrot.lane.b32.xlu0 %v4393, 72
    %v4452 = vpop.permute.xlu0 %4451
    %4453 = vrot.lane.b32.xlu0 %v4394, 72
    %v4454 = vpop.permute.xlu0 %4453
    %4455 = vrot.lane.b32.xlu0 %v4395, 72
    %v4456 = vpop.permute.xlu0 %4455
    %4457 = vrot.lane.b32.xlu0 %v4396, 72
    %v4458 = vpop.permute.xlu0 %4457
    %4459 = vrot.lane.b32.xlu0 %v4397, 72
    %v4460 = vpop.permute.xlu0 %4459
    %4461 = vrot.lane.b32.xlu0 %v4398, 72
    %v4462 = vpop.permute.xlu0 %4461
    %4463 = vrot.lane.b32.xlu0 %v4399, 72
    %v4464 = vpop.permute.xlu0 %4463
    %4465 = vrot.lane.b32.xlu0 %v4400, 72
    %v4466 = vpop.permute.xlu0 %4465
    %4467 = vrot.lane.b32.xlu0 %v4401, 72
    %v4468 = vpop.permute.xlu0 %4467
    %4469 = vrot.lane.b32.xlu0 %v4402, 72
    %v4470 = vpop.permute.xlu0 %4469
    %4471 = vrot.lane.b32.xlu0 %v4403, 72
    %v4472 = vpop.permute.xlu0 %4471
    %4473 = vrot.lane.b32.xlu0 %v4404, 72
    %v4474 = vpop.permute.xlu0 %4473
    %4475 = vrot.lane.b32.xlu0 %v4405, 72
    %v4476 = vpop.permute.xlu0 %4475
    %4477 = vrot.lane.b32.xlu0 %v4406, 72
    %v4478 = vpop.permute.xlu0 %4477
    %vm4503 = vcmask 749120
    %4504 = vst.msk [vmem:[#allocation3 + $0x4] sm:$0xf] %vm4503, %v4432
    %4505 = vst.msk [vmem:[#allocation3 + $0x14] sm:$0xf] %vm4503, %v4434
    %4506 = vst.msk [vmem:[#allocation3 + $0x24] sm:$0xf] %vm4503, %v4436
    %4507 = vst.msk [vmem:[#allocation3 + $0x34] sm:$0xf] %vm4503, %v4438
    %4508 = vst.msk [vmem:[#allocation3 + $0x44] sm:$0xf] %vm4503, %v4440
    %4509 = vst.msk [vmem:[#allocation3 + $0x54] sm:$0xf] %vm4503, %v4442
    %4510 = vst.msk [vmem:[#allocation3 + $0x64] sm:$0xf] %vm4503, %v4444
    %4511 = vst.msk [vmem:[#allocation3 + $0x74] sm:$0xf] %vm4503, %v4446
    %4512 = vst.msk [vmem:[#allocation3 + $0x84] sm:$0xf] %vm4503, %v4448
    %4513 = vst.msk [vmem:[#allocation3 + $0x94] sm:$0xf] %vm4503, %v4450
    %4514 = vst.msk [vmem:[#allocation3 + $0xa4] sm:$0xf] %vm4503, %v4452
    %4515 = vst.msk [vmem:[#allocation3 + $0xb4] sm:$0xf] %vm4503, %v4454
    %4516 = vst.msk [vmem:[#allocation3 + $0xc4] sm:$0xf] %vm4503, %v4456
    %4517 = vst.msk [vmem:[#allocation3 + $0xd4] sm:$0xf] %vm4503, %v4458
    %4518 = vst.msk [vmem:[#allocation3 + $0xe4] sm:$0xf] %vm4503, %v4460
    %4519 = vst.msk [vmem:[#allocation3 + $0xf4] sm:$0xf] %vm4503, %v4462
    %4520 = vst.msk [vmem:[#allocation3 + $0x104] sm:$0xf] %vm4503, %v4464
    %4521 = vst.msk [vmem:[#allocation3 + $0x114] sm:$0xf] %vm4503, %v4466
    %4522 = vst.msk [vmem:[#allocation3 + $0x124] sm:$0xf] %vm4503, %v4468
    %4523 = vst.msk [vmem:[#allocation3 + $0x134] sm:$0xf] %vm4503, %v4470
    %4524 = vst.msk [vmem:[#allocation3 + $0x144] sm:$0xf] %vm4503, %v4472
    %4525 = vst.msk [vmem:[#allocation3 + $0x154] sm:$0xf] %vm4503, %v4474
    %4526 = vst.msk [vmem:[#allocation3 + $0x164] sm:$0xf] %vm4503, %v4476
    %4527 = vst.msk [vmem:[#allocation3 + $0x174] sm:$0xf] %vm4503, %v4478
    %v4528 = vld [vmem:[#allocation2 + $0xc] sm:$0xf]
    %v4529 = vld [vmem:[#allocation2 + $0x10] sm:$0xf]
    %v4530 = vld [vmem:[#allocation2 + $0x14] sm:$0xf]
    %v4531 = vld [vmem:[#allocation2 + $0x18] sm:$0xf]
    %v4532 = vld [vmem:[#allocation2 + $0x1c] sm:$0xf]
    %v4533 = vld [vmem:[#allocation2 + $0x20] sm:$0xf]
    %v4534 = vld [vmem:[#allocation2 + $0x24] sm:$0xf]
    %v4535 = vld [vmem:[#allocation2 + $0x28] sm:$0xf]
    %v4536 = vld [vmem:[#allocation2 + $0x2c] sm:$0xf]
    %v4537 = vld [vmem:[#allocation2 + $0x30] sm:$0xf]
    %v4538 = vld [vmem:[#allocation2 + $0x34] sm:$0xf]
    %v4539 = vld [vmem:[#allocation2 + $0x38] sm:$0xf]
    %v4540 = vld [vmem:[#allocation2 + $0x3c] sm:$0x1]
    %v4541 = vld [vmem:[#allocation2 + $0x58] sm:$0xf]
    %v4542 = vld [vmem:[#allocation2 + $0x5c] sm:$0xf]
    %v4543 = vld [vmem:[#allocation2 + $0x60] sm:$0xf]
    %v4544 = vld [vmem:[#allocation2 + $0x64] sm:$0xf]
    %v4545 = vld [vmem:[#allocation2 + $0x68] sm:$0xf]
    %v4546 = vld [vmem:[#allocation2 + $0x6c] sm:$0xf]
    %v4547 = vld [vmem:[#allocation2 + $0x70] sm:$0xf]
    %v4548 = vld [vmem:[#allocation2 + $0x74] sm:$0xf]
    %v4549 = vld [vmem:[#allocation2 + $0x78] sm:$0xf]
    %v4550 = vld [vmem:[#allocation2 + $0x7c] sm:$0xf]
    %v4551 = vld [vmem:[#allocation2 + $0x80] sm:$0xf]
    %v4552 = vld [vmem:[#allocation2 + $0x84] sm:$0xf]
    %v4553 = vld [vmem:[#allocation2 + $0x88] sm:$0x1]
    %v4555 = vshrl.u32 %v4528, 16
    %v4557 = vrot.slane %v4555, 4
    %v4558 = vshll.u32 %v4528, 16
    %v4560 = vrot.slane %v4558, 5
    %v4561 = vor.u32 %v4557, %v4560
    %v4562 = vrot.slane %v4561, 4
    %v4564 = vshll.u32 %v4529, 16
    %v4566 = vrot.slane %v4564, 5
    %v4567 = vsel %vm1826, %v4562, %v4566
    %v4568 = vshrl.u32 %v4529, 16
    %v4570 = vrot.slane %v4568, 4
    %v4571 = vor.u32 %v4570, %v4566
    %v4572 = vrot.slane %v4571, 4
    %v4574 = vshll.u32 %v4530, 16
    %v4576 = vrot.slane %v4574, 5
    %v4577 = vsel %vm1826, %v4572, %v4576
    %v4578 = vshrl.u32 %v4530, 16
    %v4580 = vrot.slane %v4578, 4
    %v4581 = vor.u32 %v4580, %v4576
    %v4582 = vrot.slane %v4581, 4
    %v4584 = vshll.u32 %v4531, 16
    %v4586 = vrot.slane %v4584, 5
    %v4587 = vsel %vm1826, %v4582, %v4586
    %v4588 = vshrl.u32 %v4531, 16
    %v4590 = vrot.slane %v4588, 4
    %v4591 = vor.u32 %v4590, %v4586
    %v4592 = vrot.slane %v4591, 4
    %v4594 = vshll.u32 %v4532, 16
    %v4596 = vrot.slane %v4594, 5
    %v4597 = vsel %vm1826, %v4592, %v4596
    %v4598 = vshrl.u32 %v4532, 16
    %v4600 = vrot.slane %v4598, 4
    %v4601 = vor.u32 %v4600, %v4596
    %v4602 = vrot.slane %v4601, 4
    %v4604 = vshll.u32 %v4533, 16
    %v4606 = vrot.slane %v4604, 5
    %v4607 = vsel %vm1826, %v4602, %v4606
    %v4608 = vshrl.u32 %v4533, 16
    %v4610 = vrot.slane %v4608, 4
    %v4611 = vor.u32 %v4610, %v4606
    %v4612 = vrot.slane %v4611, 4
    %v4614 = vshll.u32 %v4534, 16
    %v4616 = vrot.slane %v4614, 5
    %v4617 = vsel %vm1826, %v4612, %v4616
    %v4618 = vshrl.u32 %v4534, 16
    %v4620 = vrot.slane %v4618, 4
    %v4621 = vor.u32 %v4620, %v4616
    %v4622 = vrot.slane %v4621, 4
    %v4624 = vshll.u32 %v4535, 16
    %v4626 = vrot.slane %v4624, 5
    %v4627 = vsel %vm1826, %v4622, %v4626
    %v4628 = vshrl.u32 %v4535, 16
    %v4630 = vrot.slane %v4628, 4
    %v4631 = vor.u32 %v4630, %v4626
    %v4632 = vrot.slane %v4631, 4
    %v4634 = vshll.u32 %v4536, 16
    %v4636 = vrot.slane %v4634, 5
    %v4637 = vsel %vm1826, %v4632, %v4636
    %v4638 = vshrl.u32 %v4536, 16
    %v4640 = vrot.slane %v4638, 4
    %v4641 = vor.u32 %v4640, %v4636
    %v4642 = vrot.slane %v4641, 4
    %v4644 = vshll.u32 %v4537, 16
    %v4646 = vrot.slane %v4644, 5
    %v4647 = vsel %vm1826, %v4642, %v4646
    %v4648 = vshrl.u32 %v4537, 16
    %v4650 = vrot.slane %v4648, 4
    %v4651 = vor.u32 %v4650, %v4646
    %v4652 = vrot.slane %v4651, 4
    %v4654 = vshll.u32 %v4538, 16
    %v4656 = vrot.slane %v4654, 5
    %v4657 = vsel %vm1826, %v4652, %v4656
    %v4658 = vshrl.u32 %v4538, 16
    %v4660 = vrot.slane %v4658, 4
    %v4661 = vor.u32 %v4660, %v4656
    %v4662 = vrot.slane %v4661, 4
    %v4664 = vshll.u32 %v4539, 16
    %v4666 = vrot.slane %v4664, 5
    %v4667 = vsel %vm1826, %v4662, %v4666
    %v4668 = vshrl.u32 %v4539, 16
    %v4670 = vrot.slane %v4668, 4
    %v4671 = vor.u32 %v4670, %v4666
    %v4672 = vrot.slane %v4671, 4
    %v4674 = vshll.u32 %v4540, 16
    %v4676 = vrot.slane %v4674, 5
    %v4677 = vsel %vm1826, %v4672, %v4676
    %v4679 = vshrl.u32 %v4541, 16
    %v4681 = vrot.slane %v4679, 4
    %v4682 = vshll.u32 %v4541, 16
    %v4684 = vrot.slane %v4682, 5
    %v4685 = vor.u32 %v4681, %v4684
    %v4686 = vrot.slane %v4685, 4
    %v4688 = vshll.u32 %v4542, 16
    %v4690 = vrot.slane %v4688, 5
    %v4691 = vsel %vm1826, %v4686, %v4690
    %v4692 = vshrl.u32 %v4542, 16
    %v4694 = vrot.slane %v4692, 4
    %v4695 = vor.u32 %v4694, %v4690
    %v4696 = vrot.slane %v4695, 4
    %v4698 = vshll.u32 %v4543, 16
    %v4700 = vrot.slane %v4698, 5
    %v4701 = vsel %vm1826, %v4696, %v4700
    %v4702 = vshrl.u32 %v4543, 16
    %v4704 = vrot.slane %v4702, 4
    %v4705 = vor.u32 %v4704, %v4700
    %v4706 = vrot.slane %v4705, 4
    %v4708 = vshll.u32 %v4544, 16
    %v4710 = vrot.slane %v4708, 5
    %v4711 = vsel %vm1826, %v4706, %v4710
    %v4712 = vshrl.u32 %v4544, 16
    %v4714 = vrot.slane %v4712, 4
    %v4715 = vor.u32 %v4714, %v4710
    %v4716 = vrot.slane %v4715, 4
    %v4718 = vshll.u32 %v4545, 16
    %v4720 = vrot.slane %v4718, 5
    %v4721 = vsel %vm1826, %v4716, %v4720
    %v4722 = vshrl.u32 %v4545, 16
    %v4724 = vrot.slane %v4722, 4
    %v4725 = vor.u32 %v4724, %v4720
    %v4726 = vrot.slane %v4725, 4
    %v4728 = vshll.u32 %v4546, 16
    %v4730 = vrot.slane %v4728, 5
    %v4731 = vsel %vm1826, %v4726, %v4730
    %v4732 = vshrl.u32 %v4546, 16
    %v4734 = vrot.slane %v4732, 4
    %v4735 = vor.u32 %v4734, %v4730
    %v4736 = vrot.slane %v4735, 4
    %v4738 = vshll.u32 %v4547, 16
    %v4740 = vrot.slane %v4738, 5
    %v4741 = vsel %vm1826, %v4736, %v4740
    %v4742 = vshrl.u32 %v4547, 16
    %v4744 = vrot.slane %v4742, 4
    %v4745 = vor.u32 %v4744, %v4740
    %v4746 = vrot.slane %v4745, 4
    %v4748 = vshll.u32 %v4548, 16
    %v4750 = vrot.slane %v4748, 5
    %v4751 = vsel %vm1826, %v4746, %v4750
    %v4752 = vshrl.u32 %v4548, 16
    %v4754 = vrot.slane %v4752, 4
    %v4755 = vor.u32 %v4754, %v4750
    %v4756 = vrot.slane %v4755, 4
    %v4758 = vshll.u32 %v4549, 16
    %v4760 = vrot.slane %v4758, 5
    %v4761 = vsel %vm1826, %v4756, %v4760
    %v4762 = vshrl.u32 %v4549, 16
    %v4764 = vrot.slane %v4762, 4
    %v4765 = vor.u32 %v4764, %v4760
    %v4766 = vrot.slane %v4765, 4
    %v4768 = vshll.u32 %v4550, 16
    %v4770 = vrot.slane %v4768, 5
    %v4771 = vsel %vm1826, %v4766, %v4770
    %v4772 = vshrl.u32 %v4550, 16
    %v4774 = vrot.slane %v4772, 4
    %v4775 = vor.u32 %v4774, %v4770
    %v4776 = vrot.slane %v4775, 4
    %v4778 = vshll.u32 %v4551, 16
    %v4780 = vrot.slane %v4778, 5
    %v4781 = vsel %vm1826, %v4776, %v4780
    %v4782 = vshrl.u32 %v4551, 16
    %v4784 = vrot.slane %v4782, 4
    %v4785 = vor.u32 %v4784, %v4780
    %v4786 = vrot.slane %v4785, 4
    %v4788 = vshll.u32 %v4552, 16
    %v4790 = vrot.slane %v4788, 5
    %v4791 = vsel %vm1826, %v4786, %v4790
    %v4792 = vshrl.u32 %v4552, 16
    %v4794 = vrot.slane %v4792, 4
    %v4795 = vor.u32 %v4794, %v4790
    %v4796 = vrot.slane %v4795, 4
    %v4798 = vshll.u32 %v4553, 16
    %v4800 = vrot.slane %v4798, 5
    %v4801 = vsel %vm1826, %v4796, %v4800
    %4802 = vrot.lane.b32.xlu0 %v4567, 92
    %v4803 = vpop.permute.xlu0 %4802
    %4804 = vrot.lane.b32.xlu0 %v4577, 92
    %v4805 = vpop.permute.xlu0 %4804
    %4806 = vrot.lane.b32.xlu0 %v4587, 92
    %v4807 = vpop.permute.xlu0 %4806
    %4808 = vrot.lane.b32.xlu0 %v4597, 92
    %v4809 = vpop.permute.xlu0 %4808
    %4810 = vrot.lane.b32.xlu0 %v4607, 92
    %v4811 = vpop.permute.xlu0 %4810
    %4812 = vrot.lane.b32.xlu0 %v4617, 92
    %v4813 = vpop.permute.xlu0 %4812
    %4814 = vrot.lane.b32.xlu0 %v4627, 92
    %v4815 = vpop.permute.xlu0 %4814
    %4816 = vrot.lane.b32.xlu0 %v4637, 92
    %v4817 = vpop.permute.xlu0 %4816
    %4818 = vrot.lane.b32.xlu0 %v4647, 92
    %v4819 = vpop.permute.xlu0 %4818
    %4820 = vrot.lane.b32.xlu0 %v4657, 92
    %v4821 = vpop.permute.xlu0 %4820
    %4822 = vrot.lane.b32.xlu0 %v4667, 92
    %v4823 = vpop.permute.xlu0 %4822
    %4824 = vrot.lane.b32.xlu0 %v4677, 92
    %v4825 = vpop.permute.xlu0 %4824
    %4826 = vrot.lane.b32.xlu0 %v4691, 92
    %v4827 = vpop.permute.xlu0 %4826
    %4828 = vrot.lane.b32.xlu0 %v4701, 92
    %v4829 = vpop.permute.xlu0 %4828
    %4830 = vrot.lane.b32.xlu0 %v4711, 92
    %v4831 = vpop.permute.xlu0 %4830
    %4832 = vrot.lane.b32.xlu0 %v4721, 92
    %v4833 = vpop.permute.xlu0 %4832
    %4834 = vrot.lane.b32.xlu0 %v4731, 92
    %v4835 = vpop.permute.xlu0 %4834
    %4836 = vrot.lane.b32.xlu0 %v4741, 92
    %v4837 = vpop.permute.xlu0 %4836
    %4838 = vrot.lane.b32.xlu0 %v4751, 92
    %v4839 = vpop.permute.xlu0 %4838
    %4840 = vrot.lane.b32.xlu0 %v4761, 92
    %v4841 = vpop.permute.xlu0 %4840
    %4842 = vrot.lane.b32.xlu0 %v4771, 92
    %v4843 = vpop.permute.xlu0 %4842
    %4844 = vrot.lane.b32.xlu0 %v4781, 92
    %v4845 = vpop.permute.xlu0 %4844
    %4846 = vrot.lane.b32.xlu0 %v4791, 92
    %v4847 = vpop.permute.xlu0 %4846
    %4848 = vrot.lane.b32.xlu0 %v4801, 92
    %v4849 = vpop.permute.xlu0 %4848
    %vm4874 = vcmask 913120
    %4875 = vst.msk [vmem:[#allocation3 + $0x4] sm:$0xf] %vm4874, %v4803
    %4876 = vst.msk [vmem:[#allocation3 + $0x14] sm:$0xf] %vm4874, %v4805
    %4877 = vst.msk [vmem:[#allocation3 + $0x24] sm:$0xf] %vm4874, %v4807
    %4878 = vst.msk [vmem:[#allocation3 + $0x34] sm:$0xf] %vm4874, %v4809
    %4879 = vst.msk [vmem:[#allocation3 + $0x44] sm:$0xf] %vm4874, %v4811
    %4880 = vst.msk [vmem:[#allocation3 + $0x54] sm:$0xf] %vm4874, %v4813
    %4881 = vst.msk [vmem:[#allocation3 + $0x64] sm:$0xf] %vm4874, %v4815
    %4882 = vst.msk [vmem:[#allocation3 + $0x74] sm:$0xf] %vm4874, %v4817
    %4883 = vst.msk [vmem:[#allocation3 + $0x84] sm:$0xf] %vm4874, %v4819
    %4884 = vst.msk [vmem:[#allocation3 + $0x94] sm:$0xf] %vm4874, %v4821
    %4885 = vst.msk [vmem:[#allocation3 + $0xa4] sm:$0xf] %vm4874, %v4823
    %4886 = vst.msk [vmem:[#allocation3 + $0xb4] sm:$0xf] %vm4874, %v4825
    %4887 = vst.msk [vmem:[#allocation3 + $0xc4] sm:$0xf] %vm4874, %v4827
    %4888 = vst.msk [vmem:[#allocation3 + $0xd4] sm:$0xf] %vm4874, %v4829
    %4889 = vst.msk [vmem:[#allocation3 + $0xe4] sm:$0xf] %vm4874, %v4831
    %4890 = vst.msk [vmem:[#allocation3 + $0xf4] sm:$0xf] %vm4874, %v4833
    %4891 = vst.msk [vmem:[#allocation3 + $0x104] sm:$0xf] %vm4874, %v4835
    %4892 = vst.msk [vmem:[#allocation3 + $0x114] sm:$0xf] %vm4874, %v4837
    %4893 = vst.msk [vmem:[#allocation3 + $0x124] sm:$0xf] %vm4874, %v4839
    %4894 = vst.msk [vmem:[#allocation3 + $0x134] sm:$0xf] %vm4874, %v4841
    %4895 = vst.msk [vmem:[#allocation3 + $0x144] sm:$0xf] %vm4874, %v4843
    %4896 = vst.msk [vmem:[#allocation3 + $0x154] sm:$0xf] %vm4874, %v4845
    %4897 = vst.msk [vmem:[#allocation3 + $0x164] sm:$0xf] %vm4874, %v4847
    %4898 = vst.msk [vmem:[#allocation3 + $0x174] sm:$0xf] %vm4874, %v4849
    %v4899 = vld [vmem:[#allocation2 + $0xc] sm:$0xe]
    %v4900 = vld [vmem:[#allocation2 + $0x10] sm:$0xf]
    %v4901 = vld [vmem:[#allocation2 + $0x14] sm:$0xf]
    %v4902 = vld [vmem:[#allocation2 + $0x18] sm:$0xf]
    %v4903 = vld [vmem:[#allocation2 + $0x1c] sm:$0xf]
    %v4904 = vld [vmem:[#allocation2 + $0x20] sm:$0xf]
    %v4905 = vld [vmem:[#allocation2 + $0x24] sm:$0xf]
    %v4906 = vld [vmem:[#allocation2 + $0x28] sm:$0xf]
    %v4907 = vld [vmem:[#allocation2 + $0x2c] sm:$0xf]
    %v4908 = vld [vmem:[#allocation2 + $0x30] sm:$0xf]
    %v4909 = vld [vmem:[#allocation2 + $0x34] sm:$0xf]
    %v4910 = vld [vmem:[#allocation2 + $0x38] sm:$0xf]
    %v4911 = vld [vmem:[#allocation2 + $0x3c] sm:$0x1]
    %v4912 = vld [vmem:[#allocation2 + $0x58] sm:$0xe]
    %v4913 = vld [vmem:[#allocation2 + $0x5c] sm:$0xf]
    %v4914 = vld [vmem:[#allocation2 + $0x60] sm:$0xf]
    %v4915 = vld [vmem:[#allocation2 + $0x64] sm:$0xf]
    %v4916 = vld [vmem:[#allocation2 + $0x68] sm:$0xf]
    %v4917 = vld [vmem:[#allocation2 + $0x6c] sm:$0xf]
    %v4918 = vld [vmem:[#allocation2 + $0x70] sm:$0xf]
    %v4919 = vld [vmem:[#allocation2 + $0x74] sm:$0xf]
    %v4920 = vld [vmem:[#allocation2 + $0x78] sm:$0xf]
    %v4921 = vld [vmem:[#allocation2 + $0x7c] sm:$0xf]
    %v4922 = vld [vmem:[#allocation2 + $0x80] sm:$0xf]
    %v4923 = vld [vmem:[#allocation2 + $0x84] sm:$0xf]
    %v4924 = vld [vmem:[#allocation2 + $0x88] sm:$0x1]
    %v4951 = vrot.slane %v4899, 5
    %v4952 = vrot.slane %v4951, 4
    %v4953 = vrot.slane %v4900, 5
    %v4954 = vsel %vm2226, %v4952, %v4953
    %v4955 = vrot.slane %v4953, 4
    %v4956 = vrot.slane %v4901, 5
    %v4957 = vsel %vm2226, %v4955, %v4956
    %v4958 = vrot.slane %v4956, 4
    %v4959 = vrot.slane %v4902, 5
    %v4960 = vsel %vm2226, %v4958, %v4959
    %v4961 = vrot.slane %v4959, 4
    %v4962 = vrot.slane %v4903, 5
    %v4963 = vsel %vm2226, %v4961, %v4962
    %v4964 = vrot.slane %v4962, 4
    %v4965 = vrot.slane %v4904, 5
    %v4966 = vsel %vm2226, %v4964, %v4965
    %v4967 = vrot.slane %v4965, 4
    %v4968 = vrot.slane %v4905, 5
    %v4969 = vsel %vm2226, %v4967, %v4968
    %v4970 = vrot.slane %v4968, 4
    %v4971 = vrot.slane %v4906, 5
    %v4972 = vsel %vm2226, %v4970, %v4971
    %v4973 = vrot.slane %v4971, 4
    %v4974 = vrot.slane %v4907, 5
    %v4975 = vsel %vm2226, %v4973, %v4974
    %v4976 = vrot.slane %v4974, 4
    %v4977 = vrot.slane %v4908, 5
    %v4978 = vsel %vm2226, %v4976, %v4977
    %v4979 = vrot.slane %v4977, 4
    %v4980 = vrot.slane %v4909, 5
    %v4981 = vsel %vm2226, %v4979, %v4980
    %v4982 = vrot.slane %v4980, 4
    %v4983 = vrot.slane %v4910, 5
    %v4984 = vsel %vm2226, %v4982, %v4983
    %v4985 = vrot.slane %v4983, 4
    %v4986 = vrot.slane %v4911, 5
    %v4987 = vsel %vm2226, %v4985, %v4986
    %v4988 = vrot.slane %v4912, 5
    %v4989 = vrot.slane %v4988, 4
    %v4990 = vrot.slane %v4913, 5
    %v4991 = vsel %vm2226, %v4989, %v4990
    %v4992 = vrot.slane %v4990, 4
    %v4993 = vrot.slane %v4914, 5
    %v4994 = vsel %vm2226, %v4992, %v4993
    %v4995 = vrot.slane %v4993, 4
    %v4996 = vrot.slane %v4915, 5
    %v4997 = vsel %vm2226, %v4995, %v4996
    %v4998 = vrot.slane %v4996, 4
    %v4999 = vrot.slane %v4916, 5
    %v5000 = vsel %vm2226, %v4998, %v4999
    %v5001 = vrot.slane %v4999, 4
    %v5002 = vrot.slane %v4917, 5
    %v5003 = vsel %vm2226, %v5001, %v5002
    %v5004 = vrot.slane %v5002, 4
    %v5005 = vrot.slane %v4918, 5
    %v5006 = vsel %vm2226, %v5004, %v5005
    %v5007 = vrot.slane %v5005, 4
    %v5008 = vrot.slane %v4919, 5
    %v5009 = vsel %vm2226, %v5007, %v5008
    %v5010 = vrot.slane %v5008, 4
    %v5011 = vrot.slane %v4920, 5
    %v5012 = vsel %vm2226, %v5010, %v5011
    %v5013 = vrot.slane %v5011, 4
    %v5014 = vrot.slane %v4921, 5
    %v5015 = vsel %vm2226, %v5013, %v5014
    %v5016 = vrot.slane %v5014, 4
    %v5017 = vrot.slane %v4922, 5
    %v5018 = vsel %vm2226, %v5016, %v5017
    %v5019 = vrot.slane %v5017, 4
    %v5020 = vrot.slane %v4923, 5
    %v5021 = vsel %vm2226, %v5019, %v5020
    %v5022 = vrot.slane %v5020, 4
    %v5023 = vrot.slane %v4924, 5
    %v5024 = vsel %vm2226, %v5022, %v5023
    %5025 = vrot.lane.b32.xlu0 %v4954, 112
    %v5026 = vpop.permute.xlu0 %5025
    %5027 = vrot.lane.b32.xlu0 %v4957, 112
    %v5028 = vpop.permute.xlu0 %5027
    %5029 = vrot.lane.b32.xlu0 %v4960, 112
    %v5030 = vpop.permute.xlu0 %5029
    %5031 = vrot.lane.b32.xlu0 %v4963, 112
    %v5032 = vpop.permute.xlu0 %5031
    %5033 = vrot.lane.b32.xlu0 %v4966, 112
    %v5034 = vpop.permute.xlu0 %5033
    %5035 = vrot.lane.b32.xlu0 %v4969, 112
    %v5036 = vpop.permute.xlu0 %5035
    %5037 = vrot.lane.b32.xlu0 %v4972, 112
    %v5038 = vpop.permute.xlu0 %5037
    %5039 = vrot.lane.b32.xlu0 %v4975, 112
    %v5040 = vpop.permute.xlu0 %5039
    %5041 = vrot.lane.b32.xlu0 %v4978, 112
    %v5042 = vpop.permute.xlu0 %5041
    %5043 = vrot.lane.b32.xlu0 %v4981, 112
    %v5044 = vpop.permute.xlu0 %5043
    %5045 = vrot.lane.b32.xlu0 %v4984, 112
    %v5046 = vpop.permute.xlu0 %5045
    %5047 = vrot.lane.b32.xlu0 %v4987, 112
    %v5048 = vpop.permute.xlu0 %5047
    %5049 = vrot.lane.b32.xlu0 %v4991, 112
    %v5050 = vpop.permute.xlu0 %5049
    %5051 = vrot.lane.b32.xlu0 %v4994, 112
    %v5052 = vpop.permute.xlu0 %5051
    %5053 = vrot.lane.b32.xlu0 %v4997, 112
    %v5054 = vpop.permute.xlu0 %5053
    %5055 = vrot.lane.b32.xlu0 %v5000, 112
    %v5056 = vpop.permute.xlu0 %5055
    %5057 = vrot.lane.b32.xlu0 %v5003, 112
    %v5058 = vpop.permute.xlu0 %5057
    %5059 = vrot.lane.b32.xlu0 %v5006, 112
    %v5060 = vpop.permute.xlu0 %5059
    %5061 = vrot.lane.b32.xlu0 %v5009, 112
    %v5062 = vpop.permute.xlu0 %5061
    %5063 = vrot.lane.b32.xlu0 %v5012, 112
    %v5064 = vpop.permute.xlu0 %5063
    %5065 = vrot.lane.b32.xlu0 %v5015, 112
    %v5066 = vpop.permute.xlu0 %5065
    %5067 = vrot.lane.b32.xlu0 %v5018, 112
    %v5068 = vpop.permute.xlu0 %5067
    %5069 = vrot.lane.b32.xlu0 %v5021, 112
    %v5070 = vpop.permute.xlu0 %5069
    %5071 = vrot.lane.b32.xlu0 %v5024, 112
    %v5072 = vpop.permute.xlu0 %5071
    %v5073 = vrot.slane %v5026, 4
    %v5074 = vrot.slane %v5028, 4
    %v5075 = vrot.slane %v5030, 4
    %v5076 = vrot.slane %v5032, 4
    %v5077 = vrot.slane %v5034, 4
    %v5078 = vrot.slane %v5036, 4
    %v5079 = vrot.slane %v5038, 4
    %v5080 = vrot.slane %v5040, 4
    %v5081 = vrot.slane %v5042, 4
    %v5082 = vrot.slane %v5044, 4
    %v5083 = vrot.slane %v5046, 4
    %v5084 = vrot.slane %v5048, 4
    %v5085 = vrot.slane %v5050, 4
    %v5086 = vrot.slane %v5052, 4
    %v5087 = vrot.slane %v5054, 4
    %v5088 = vrot.slane %v5056, 4
    %v5089 = vrot.slane %v5058, 4
    %v5090 = vrot.slane %v5060, 4
    %v5091 = vrot.slane %v5062, 4
    %v5092 = vrot.slane %v5064, 4
    %v5093 = vrot.slane %v5066, 4
    %v5094 = vrot.slane %v5068, 4
    %v5095 = vrot.slane %v5070, 4
    %v5096 = vrot.slane %v5072, 4
    %vm5097 = vcmask 916480
    %v5098 = vsel %vm5097, %v5073, %v5026
    %v5099 = vsel %vm5097, %v5074, %v5028
    %v5100 = vsel %vm5097, %v5075, %v5030
    %v5101 = vsel %vm5097, %v5076, %v5032
    %v5102 = vsel %vm5097, %v5077, %v5034
    %v5103 = vsel %vm5097, %v5078, %v5036
    %v5104 = vsel %vm5097, %v5079, %v5038
    %v5105 = vsel %vm5097, %v5080, %v5040
    %v5106 = vsel %vm5097, %v5081, %v5042
    %v5107 = vsel %vm5097, %v5082, %v5044
    %v5108 = vsel %vm5097, %v5083, %v5046
    %v5109 = vsel %vm5097, %v5084, %v5048
    %v5110 = vsel %vm5097, %v5085, %v5050
    %v5111 = vsel %vm5097, %v5086, %v5052
    %v5112 = vsel %vm5097, %v5087, %v5054
    %v5113 = vsel %vm5097, %v5088, %v5056
    %v5114 = vsel %vm5097, %v5089, %v5058
    %v5115 = vsel %vm5097, %v5090, %v5060
    %v5116 = vsel %vm5097, %v5091, %v5062
    %v5117 = vsel %vm5097, %v5092, %v5064
    %v5118 = vsel %vm5097, %v5093, %v5066
    %v5119 = vsel %vm5097, %v5094, %v5068
    %v5120 = vsel %vm5097, %v5095, %v5070
    %v5121 = vsel %vm5097, %v5096, %v5072
    %vm5146 = vcmask 1044352
    %vm5147 = vcmask 31748
    %vm5148 = vmor %vm5147, %vm5146
    %5149 = vst.msk [vmem:[#allocation3 + $0x4] sm:$0xff] %vm5148, %v5098
    %5150 = vst.msk [vmem:[#allocation3 + $0x14] sm:$0xff] %vm5148, %v5099
    %5151 = vst.msk [vmem:[#allocation3 + $0x24] sm:$0xff] %vm5148, %v5100
    %5152 = vst.msk [vmem:[#allocation3 + $0x34] sm:$0xff] %vm5148, %v5101
    %5153 = vst.msk [vmem:[#allocation3 + $0x44] sm:$0xff] %vm5148, %v5102
    %5154 = vst.msk [vmem:[#allocation3 + $0x54] sm:$0xff] %vm5148, %v5103
    %5155 = vst.msk [vmem:[#allocation3 + $0x64] sm:$0xff] %vm5148, %v5104
    %5156 = vst.msk [vmem:[#allocation3 + $0x74] sm:$0xff] %vm5148, %v5105
    %5157 = vst.msk [vmem:[#allocation3 + $0x84] sm:$0xff] %vm5148, %v5106
    %5158 = vst.msk [vmem:[#allocation3 + $0x94] sm:$0xff] %vm5148, %v5107
    %5159 = vst.msk [vmem:[#allocation3 + $0xa4] sm:$0xff] %vm5148, %v5108
    %5160 = vst.msk [vmem:[#allocation3 + $0xb4] sm:$0xff] %vm5148, %v5109
    %5161 = vst.msk [vmem:[#allocation3 + $0xc4] sm:$0xff] %vm5148, %v5110
    %5162 = vst.msk [vmem:[#allocation3 + $0xd4] sm:$0xff] %vm5148, %v5111
    %5163 = vst.msk [vmem:[#allocation3 + $0xe4] sm:$0xff] %vm5148, %v5112
    %5164 = vst.msk [vmem:[#allocation3 + $0xf4] sm:$0xff] %vm5148, %v5113
    %5165 = vst.msk [vmem:[#allocation3 + $0x104] sm:$0xff] %vm5148, %v5114
    %5166 = vst.msk [vmem:[#allocation3 + $0x114] sm:$0xff] %vm5148, %v5115
    %5167 = vst.msk [vmem:[#allocation3 + $0x124] sm:$0xff] %vm5148, %v5116
    %5168 = vst.msk [vmem:[#allocation3 + $0x134] sm:$0xff] %vm5148, %v5117
    %5169 = vst.msk [vmem:[#allocation3 + $0x144] sm:$0xff] %vm5148, %v5118
    %5170 = vst.msk [vmem:[#allocation3 + $0x154] sm:$0xff] %vm5148, %v5119
    %5171 = vst.msk [vmem:[#allocation3 + $0x164] sm:$0xff] %vm5148, %v5120
    %5172 = vst.msk [vmem:[#allocation3 + $0x174] sm:$0xff] %vm5148, %v5121
    %v5173 = vld [vmem:[#allocation2 + $0xc] sm:$0xe]
    %v5174 = vld [vmem:[#allocation2 + $0x10] sm:$0xf]
    %v5175 = vld [vmem:[#allocation2 + $0x14] sm:$0xf]
    %v5176 = vld [vmem:[#allocation2 + $0x18] sm:$0xf]
    %v5177 = vld [vmem:[#allocation2 + $0x1c] sm:$0xf]
    %v5178 = vld [vmem:[#allocation2 + $0x20] sm:$0xf]
    %v5179 = vld [vmem:[#allocation2 + $0x24] sm:$0xf]
    %v5180 = vld [vmem:[#allocation2 + $0x28] sm:$0xf]
    %v5181 = vld [vmem:[#allocation2 + $0x2c] sm:$0xf]
    %v5182 = vld [vmem:[#allocation2 + $0x30] sm:$0xf]
    %v5183 = vld [vmem:[#allocation2 + $0x34] sm:$0xf]
    %v5184 = vld [vmem:[#allocation2 + $0x38] sm:$0xf]
    %v5185 = vld [vmem:[#allocation2 + $0x3c] sm:$0x3]
    %v5186 = vld [vmem:[#allocation2 + $0x58] sm:$0xe]
    %v5187 = vld [vmem:[#allocation2 + $0x5c] sm:$0xf]
    %v5188 = vld [vmem:[#allocation2 + $0x60] sm:$0xf]
    %v5189 = vld [vmem:[#allocation2 + $0x64] sm:$0xf]
    %v5190 = vld [vmem:[#allocation2 + $0x68] sm:$0xf]
    %v5191 = vld [vmem:[#allocation2 + $0x6c] sm:$0xf]
    %v5192 = vld [vmem:[#allocation2 + $0x70] sm:$0xf]
    %v5193 = vld [vmem:[#allocation2 + $0x74] sm:$0xf]
    %v5194 = vld [vmem:[#allocation2 + $0x78] sm:$0xf]
    %v5195 = vld [vmem:[#allocation2 + $0x7c] sm:$0xf]
    %v5196 = vld [vmem:[#allocation2 + $0x80] sm:$0xf]
    %v5197 = vld [vmem:[#allocation2 + $0x84] sm:$0xf]
    %v5198 = vld [vmem:[#allocation2 + $0x88] sm:$0x3]
    %v5200 = vshrl.u32 %v5173, 16
    %v5202 = vrot.slane %v5200, 5
    %v5203 = vshll.u32 %v5173, 16
    %v5205 = vrot.slane %v5203, 6
    %v5206 = vor.u32 %v5202, %v5205
    %v5207 = vrot.slane %v5206, 4
    %v5209 = vshrl.u32 %v5174, 16
    %v5211 = vrot.slane %v5209, 5
    %v5212 = vshll.u32 %v5174, 16
    %v5214 = vrot.slane %v5212, 6
    %v5215 = vor.u32 %v5211, %v5214
    %v5216 = vsel %vm2426, %v5207, %v5215
    %v5217 = vrot.slane %v5215, 4
    %v5219 = vshrl.u32 %v5175, 16
    %v5221 = vrot.slane %v5219, 5
    %v5222 = vshll.u32 %v5175, 16
    %v5224 = vrot.slane %v5222, 6
    %v5225 = vor.u32 %v5221, %v5224
    %v5226 = vsel %vm2426, %v5217, %v5225
    %v5227 = vrot.slane %v5225, 4
    %v5229 = vshrl.u32 %v5176, 16
    %v5231 = vrot.slane %v5229, 5
    %v5232 = vshll.u32 %v5176, 16
    %v5234 = vrot.slane %v5232, 6
    %v5235 = vor.u32 %v5231, %v5234
    %v5236 = vsel %vm2426, %v5227, %v5235
    %v5237 = vrot.slane %v5235, 4
    %v5239 = vshrl.u32 %v5177, 16
    %v5241 = vrot.slane %v5239, 5
    %v5242 = vshll.u32 %v5177, 16
    %v5244 = vrot.slane %v5242, 6
    %v5245 = vor.u32 %v5241, %v5244
    %v5246 = vsel %vm2426, %v5237, %v5245
    %v5247 = vrot.slane %v5245, 4
    %v5249 = vshrl.u32 %v5178, 16
    %v5251 = vrot.slane %v5249, 5
    %v5252 = vshll.u32 %v5178, 16
    %v5254 = vrot.slane %v5252, 6
    %v5255 = vor.u32 %v5251, %v5254
    %v5256 = vsel %vm2426, %v5247, %v5255
    %v5257 = vrot.slane %v5255, 4
    %v5259 = vshrl.u32 %v5179, 16
    %v5261 = vrot.slane %v5259, 5
    %v5262 = vshll.u32 %v5179, 16
    %v5264 = vrot.slane %v5262, 6
    %v5265 = vor.u32 %v5261, %v5264
    %v5266 = vsel %vm2426, %v5257, %v5265
    %v5267 = vrot.slane %v5265, 4
    %v5269 = vshrl.u32 %v5180, 16
    %v5271 = vrot.slane %v5269, 5
    %v5272 = vshll.u32 %v5180, 16
    %v5274 = vrot.slane %v5272, 6
    %v5275 = vor.u32 %v5271, %v5274
    %v5276 = vsel %vm2426, %v5267, %v5275
    %v5277 = vrot.slane %v5275, 4
    %v5279 = vshrl.u32 %v5181, 16
    %v5281 = vrot.slane %v5279, 5
    %v5282 = vshll.u32 %v5181, 16
    %v5284 = vrot.slane %v5282, 6
    %v5285 = vor.u32 %v5281, %v5284
    %v5286 = vsel %vm2426, %v5277, %v5285
    %v5287 = vrot.slane %v5285, 4
    %v5289 = vshrl.u32 %v5182, 16
    %v5291 = vrot.slane %v5289, 5
    %v5292 = vshll.u32 %v5182, 16
    %v5294 = vrot.slane %v5292, 6
    %v5295 = vor.u32 %v5291, %v5294
    %v5296 = vsel %vm2426, %v5287, %v5295
    %v5297 = vrot.slane %v5295, 4
    %v5299 = vshrl.u32 %v5183, 16
    %v5301 = vrot.slane %v5299, 5
    %v5302 = vshll.u32 %v5183, 16
    %v5304 = vrot.slane %v5302, 6
    %v5305 = vor.u32 %v5301, %v5304
    %v5306 = vsel %vm2426, %v5297, %v5305
    %v5307 = vrot.slane %v5305, 4
    %v5309 = vshrl.u32 %v5184, 16
    %v5311 = vrot.slane %v5309, 5
    %v5312 = vshll.u32 %v5184, 16
    %v5314 = vrot.slane %v5312, 6
    %v5315 = vor.u32 %v5311, %v5314
    %v5316 = vsel %vm2426, %v5307, %v5315
    %v5317 = vrot.slane %v5315, 4
    %v5319 = vshrl.u32 %v5185, 16
    %v5321 = vrot.slane %v5319, 5
    %v5322 = vshll.u32 %v5185, 16
    %v5324 = vrot.slane %v5322, 6
    %v5325 = vor.u32 %v5321, %v5324
    %v5326 = vsel %vm2426, %v5317, %v5325
    %v5328 = vshrl.u32 %v5186, 16
    %v5330 = vrot.slane %v5328, 5
    %v5331 = vshll.u32 %v5186, 16
    %v5333 = vrot.slane %v5331, 6
    %v5334 = vor.u32 %v5330, %v5333
    %v5335 = vrot.slane %v5334, 4
    %v5337 = vshrl.u32 %v5187, 16
    %v5339 = vrot.slane %v5337, 5
    %v5340 = vshll.u32 %v5187, 16
    %v5342 = vrot.slane %v5340, 6
    %v5343 = vor.u32 %v5339, %v5342
    %v5344 = vsel %vm2426, %v5335, %v5343
    %v5345 = vrot.slane %v5343, 4
    %v5347 = vshrl.u32 %v5188, 16
    %v5349 = vrot.slane %v5347, 5
    %v5350 = vshll.u32 %v5188, 16
    %v5352 = vrot.slane %v5350, 6
    %v5353 = vor.u32 %v5349, %v5352
    %v5354 = vsel %vm2426, %v5345, %v5353
    %v5355 = vrot.slane %v5353, 4
    %v5357 = vshrl.u32 %v5189, 16
    %v5359 = vrot.slane %v5357, 5
    %v5360 = vshll.u32 %v5189, 16
    %v5362 = vrot.slane %v5360, 6
    %v5363 = vor.u32 %v5359, %v5362
    %v5364 = vsel %vm2426, %v5355, %v5363
    %v5365 = vrot.slane %v5363, 4
    %v5367 = vshrl.u32 %v5190, 16
    %v5369 = vrot.slane %v5367, 5
    %v5370 = vshll.u32 %v5190, 16
    %v5372 = vrot.slane %v5370, 6
    %v5373 = vor.u32 %v5369, %v5372
    %v5374 = vsel %vm2426, %v5365, %v5373
    %v5375 = vrot.slane %v5373, 4
    %v5377 = vshrl.u32 %v5191, 16
    %v5379 = vrot.slane %v5377, 5
    %v5380 = vshll.u32 %v5191, 16
    %v5382 = vrot.slane %v5380, 6
    %v5383 = vor.u32 %v5379, %v5382
    %v5384 = vsel %vm2426, %v5375, %v5383
    %v5385 = vrot.slane %v5383, 4
    %v5387 = vshrl.u32 %v5192, 16
    %v5389 = vrot.slane %v5387, 5
    %v5390 = vshll.u32 %v5192, 16
    %v5392 = vrot.slane %v5390, 6
    %v5393 = vor.u32 %v5389, %v5392
    %v5394 = vsel %vm2426, %v5385, %v5393
    %v5395 = vrot.slane %v5393, 4
    %v5397 = vshrl.u32 %v5193, 16
    %v5399 = vrot.slane %v5397, 5
    %v5400 = vshll.u32 %v5193, 16
    %v5402 = vrot.slane %v5400, 6
    %v5403 = vor.u32 %v5399, %v5402
    %v5404 = vsel %vm2426, %v5395, %v5403
    %v5405 = vrot.slane %v5403, 4
    %v5407 = vshrl.u32 %v5194, 16
    %v5409 = vrot.slane %v5407, 5
    %v5410 = vshll.u32 %v5194, 16
    %v5412 = vrot.slane %v5410, 6
    %v5413 = vor.u32 %v5409, %v5412
    %v5414 = vsel %vm2426, %v5405, %v5413
    %v5415 = vrot.slane %v5413, 4
    %v5417 = vshrl.u32 %v5195, 16
    %v5419 = vrot.slane %v5417, 5
    %v5420 = vshll.u32 %v5195, 16
    %v5422 = vrot.slane %v5420, 6
    %v5423 = vor.u32 %v5419, %v5422
    %v5424 = vsel %vm2426, %v5415, %v5423
    %v5425 = vrot.slane %v5423, 4
    %v5427 = vshrl.u32 %v5196, 16
    %v5429 = vrot.slane %v5427, 5
    %v5430 = vshll.u32 %v5196, 16
    %v5432 = vrot.slane %v5430, 6
    %v5433 = vor.u32 %v5429, %v5432
    %v5434 = vsel %vm2426, %v5425, %v5433
    %v5435 = vrot.slane %v5433, 4
    %v5437 = vshrl.u32 %v5197, 16
    %v5439 = vrot.slane %v5437, 5
    %v5440 = vshll.u32 %v5197, 16
    %v5442 = vrot.slane %v5440, 6
    %v5443 = vor.u32 %v5439, %v5442
    %v5444 = vsel %vm2426, %v5435, %v5443
    %v5445 = vrot.slane %v5443, 4
    %v5447 = vshrl.u32 %v5198, 16
    %v5449 = vrot.slane %v5447, 5
    %v5450 = vshll.u32 %v5198, 16
    %v5452 = vrot.slane %v5450, 6
    %v5453 = vor.u32 %v5449, %v5452
    %v5454 = vsel %vm2426, %v5445, %v5453
    %5455 = vrot.lane.b32.xlu0 %v5216, 4
    %v5456 = vpop.permute.xlu0 %5455
    %5457 = vrot.lane.b32.xlu0 %v5226, 4
    %v5458 = vpop.permute.xlu0 %5457
    %5459 = vrot.lane.b32.xlu0 %v5236, 4
    %v5460 = vpop.permute.xlu0 %5459
    %5461 = vrot.lane.b32.xlu0 %v5246, 4
    %v5462 = vpop.permute.xlu0 %5461
    %5463 = vrot.lane.b32.xlu0 %v5256, 4
    %v5464 = vpop.permute.xlu0 %5463
    %5465 = vrot.lane.b32.xlu0 %v5266, 4
    %v5466 = vpop.permute.xlu0 %5465
    %5467 = vrot.lane.b32.xlu0 %v5276, 4
    %v5468 = vpop.permute.xlu0 %5467
    %5469 = vrot.lane.b32.xlu0 %v5286, 4
    %v5470 = vpop.permute.xlu0 %5469
    %5471 = vrot.lane.b32.xlu0 %v5296, 4
    %v5472 = vpop.permute.xlu0 %5471
    %5473 = vrot.lane.b32.xlu0 %v5306, 4
    %v5474 = vpop.permute.xlu0 %5473
    %5475 = vrot.lane.b32.xlu0 %v5316, 4
    %v5476 = vpop.permute.xlu0 %5475
    %5477 = vrot.lane.b32.xlu0 %v5326, 4
    %v5478 = vpop.permute.xlu0 %5477
    %5479 = vrot.lane.b32.xlu0 %v5344, 4
    %v5480 = vpop.permute.xlu0 %5479
    %5481 = vrot.lane.b32.xlu0 %v5354, 4
    %v5482 = vpop.permute.xlu0 %5481
    %5483 = vrot.lane.b32.xlu0 %v5364, 4
    %v5484 = vpop.permute.xlu0 %5483
    %5485 = vrot.lane.b32.xlu0 %v5374, 4
    %v5486 = vpop.permute.xlu0 %5485
    %5487 = vrot.lane.b32.xlu0 %v5384, 4
    %v5488 = vpop.permute.xlu0 %5487
    %5489 = vrot.lane.b32.xlu0 %v5394, 4
    %v5490 = vpop.permute.xlu0 %5489
    %5491 = vrot.lane.b32.xlu0 %v5404, 4
    %v5492 = vpop.permute.xlu0 %5491
    %5493 = vrot.lane.b32.xlu0 %v5414, 4
    %v5494 = vpop.permute.xlu0 %5493
    %5495 = vrot.lane.b32.xlu0 %v5424, 4
    %v5496 = vpop.permute.xlu0 %5495
    %5497 = vrot.lane.b32.xlu0 %v5434, 4
    %v5498 = vpop.permute.xlu0 %5497
    %5499 = vrot.lane.b32.xlu0 %v5444, 4
    %v5500 = vpop.permute.xlu0 %5499
    %5501 = vrot.lane.b32.xlu0 %v5454, 4
    %v5502 = vpop.permute.xlu0 %5501
    %vm5527 = vcmask 191520
    %5528 = vst.msk [vmem:[#allocation3 + $0x8] sm:$0xf] %vm5527, %v5456
    %5529 = vst.msk [vmem:[#allocation3 + $0x18] sm:$0xf] %vm5527, %v5458
    %5530 = vst.msk [vmem:[#allocation3 + $0x28] sm:$0xf] %vm5527, %v5460
    %5531 = vst.msk [vmem:[#allocation3 + $0x38] sm:$0xf] %vm5527, %v5462
    %5532 = vst.msk [vmem:[#allocation3 + $0x48] sm:$0xf] %vm5527, %v5464
    %5533 = vst.msk [vmem:[#allocation3 + $0x58] sm:$0xf] %vm5527, %v5466
    %5534 = vst.msk [vmem:[#allocation3 + $0x68] sm:$0xf] %vm5527, %v5468
    %5535 = vst.msk [vmem:[#allocation3 + $0x78] sm:$0xf] %vm5527, %v5470
    %5536 = vst.msk [vmem:[#allocation3 + $0x88] sm:$0xf] %vm5527, %v5472
    %5537 = vst.msk [vmem:[#allocation3 + $0x98] sm:$0xf] %vm5527, %v5474
    %5538 = vst.msk [vmem:[#allocation3 + $0xa8] sm:$0xf] %vm5527, %v5476
    %5539 = vst.msk [vmem:[#allocation3 + $0xb8] sm:$0xf] %vm5527, %v5478
    %5540 = vst.msk [vmem:[#allocation3 + $0xc8] sm:$0xf] %vm5527, %v5480
    %5541 = vst.msk [vmem:[#allocation3 + $0xd8] sm:$0xf] %vm5527, %v5482
    %5542 = vst.msk [vmem:[#allocation3 + $0xe8] sm:$0xf] %vm5527, %v5484
    %5543 = vst.msk [vmem:[#allocation3 + $0xf8] sm:$0xf] %vm5527, %v5486
    %5544 = vst.msk [vmem:[#allocation3 + $0x108] sm:$0xf] %vm5527, %v5488
    %5545 = vst.msk [vmem:[#allocation3 + $0x118] sm:$0xf] %vm5527, %v5490
    %5546 = vst.msk [vmem:[#allocation3 + $0x128] sm:$0xf] %vm5527, %v5492
    %5547 = vst.msk [vmem:[#allocation3 + $0x138] sm:$0xf] %vm5527, %v5494
    %5548 = vst.msk [vmem:[#allocation3 + $0x148] sm:$0xf] %vm5527, %v5496
    %5549 = vst.msk [vmem:[#allocation3 + $0x158] sm:$0xf] %vm5527, %v5498
    %5550 = vst.msk [vmem:[#allocation3 + $0x168] sm:$0xf] %vm5527, %v5500
    %5551 = vst.msk [vmem:[#allocation3 + $0x178] sm:$0xf] %vm5527, %v5502
    %v5552 = vld [vmem:[#allocation2 + $0xc] sm:$0xc]
    %v5553 = vld [vmem:[#allocation2 + $0x10] sm:$0xf]
    %v5554 = vld [vmem:[#allocation2 + $0x14] sm:$0xf]
    %v5555 = vld [vmem:[#allocation2 + $0x18] sm:$0xf]
    %v5556 = vld [vmem:[#allocation2 + $0x1c] sm:$0xf]
    %v5557 = vld [vmem:[#allocation2 + $0x20] sm:$0xf]
    %v5558 = vld [vmem:[#allocation2 + $0x24] sm:$0xf]
    %v5559 = vld [vmem:[#allocation2 + $0x28] sm:$0xf]
    %v5560 = vld [vmem:[#allocation2 + $0x2c] sm:$0xf]
    %v5561 = vld [vmem:[#allocation2 + $0x30] sm:$0xf]
    %v5562 = vld [vmem:[#allocation2 + $0x34] sm:$0xf]
    %v5563 = vld [vmem:[#allocation2 + $0x38] sm:$0xf]
    %v5564 = vld [vmem:[#allocation2 + $0x3c] sm:$0x3]
    %v5565 = vld [vmem:[#allocation2 + $0x58] sm:$0xc]
    %v5566 = vld [vmem:[#allocation2 + $0x5c] sm:$0xf]
    %v5567 = vld [vmem:[#allocation2 + $0x60] sm:$0xf]
    %v5568 = vld [vmem:[#allocation2 + $0x64] sm:$0xf]
    %v5569 = vld [vmem:[#allocation2 + $0x68] sm:$0xf]
    %v5570 = vld [vmem:[#allocation2 + $0x6c] sm:$0xf]
    %v5571 = vld [vmem:[#allocation2 + $0x70] sm:$0xf]
    %v5572 = vld [vmem:[#allocation2 + $0x74] sm:$0xf]
    %v5573 = vld [vmem:[#allocation2 + $0x78] sm:$0xf]
    %v5574 = vld [vmem:[#allocation2 + $0x7c] sm:$0xf]
    %v5575 = vld [vmem:[#allocation2 + $0x80] sm:$0xf]
    %v5576 = vld [vmem:[#allocation2 + $0x84] sm:$0xf]
    %v5577 = vld [vmem:[#allocation2 + $0x88] sm:$0x3]
    %v5604 = vrot.slane %v5552, 6
    %v5605 = vrot.slane %v5604, 4
    %v5606 = vrot.slane %v5553, 6
    %v5607 = vsel %vm2834, %v5605, %v5606
    %v5608 = vrot.slane %v5606, 4
    %v5609 = vrot.slane %v5554, 6
    %v5610 = vsel %vm2834, %v5608, %v5609
    %v5611 = vrot.slane %v5609, 4
    %v5612 = vrot.slane %v5555, 6
    %v5613 = vsel %vm2834, %v5611, %v5612
    %v5614 = vrot.slane %v5612, 4
    %v5615 = vrot.slane %v5556, 6
    %v5616 = vsel %vm2834, %v5614, %v5615
    %v5617 = vrot.slane %v5615, 4
    %v5618 = vrot.slane %v5557, 6
    %v5619 = vsel %vm2834, %v5617, %v5618
    %v5620 = vrot.slane %v5618, 4
    %v5621 = vrot.slane %v5558, 6
    %v5622 = vsel %vm2834, %v5620, %v5621
    %v5623 = vrot.slane %v5621, 4
    %v5624 = vrot.slane %v5559, 6
    %v5625 = vsel %vm2834, %v5623, %v5624
    %v5626 = vrot.slane %v5624, 4
    %v5627 = vrot.slane %v5560, 6
    %v5628 = vsel %vm2834, %v5626, %v5627
    %v5629 = vrot.slane %v5627, 4
    %v5630 = vrot.slane %v5561, 6
    %v5631 = vsel %vm2834, %v5629, %v5630
    %v5632 = vrot.slane %v5630, 4
    %v5633 = vrot.slane %v5562, 6
    %v5634 = vsel %vm2834, %v5632, %v5633
    %v5635 = vrot.slane %v5633, 4
    %v5636 = vrot.slane %v5563, 6
    %v5637 = vsel %vm2834, %v5635, %v5636
    %v5638 = vrot.slane %v5636, 4
    %v5639 = vrot.slane %v5564, 6
    %v5640 = vsel %vm2834, %v5638, %v5639
    %v5641 = vrot.slane %v5565, 6
    %v5642 = vrot.slane %v5641, 4
    %v5643 = vrot.slane %v5566, 6
    %v5644 = vsel %vm2834, %v5642, %v5643
    %v5645 = vrot.slane %v5643, 4
    %v5646 = vrot.slane %v5567, 6
    %v5647 = vsel %vm2834, %v5645, %v5646
    %v5648 = vrot.slane %v5646, 4
    %v5649 = vrot.slane %v5568, 6
    %v5650 = vsel %vm2834, %v5648, %v5649
    %v5651 = vrot.slane %v5649, 4
    %v5652 = vrot.slane %v5569, 6
    %v5653 = vsel %vm2834, %v5651, %v5652
    %v5654 = vrot.slane %v5652, 4
    %v5655 = vrot.slane %v5570, 6
    %v5656 = vsel %vm2834, %v5654, %v5655
    %v5657 = vrot.slane %v5655, 4
    %v5658 = vrot.slane %v5571, 6
    %v5659 = vsel %vm2834, %v5657, %v5658
    %v5660 = vrot.slane %v5658, 4
    %v5661 = vrot.slane %v5572, 6
    %v5662 = vsel %vm2834, %v5660, %v5661
    %v5663 = vrot.slane %v5661, 4
    %v5664 = vrot.slane %v5573, 6
    %v5665 = vsel %vm2834, %v5663, %v5664
    %v5666 = vrot.slane %v5664, 4
    %v5667 = vrot.slane %v5574, 6
    %v5668 = vsel %vm2834, %v5666, %v5667
    %v5669 = vrot.slane %v5667, 4
    %v5670 = vrot.slane %v5575, 6
    %v5671 = vsel %vm2834, %v5669, %v5670
    %v5672 = vrot.slane %v5670, 4
    %v5673 = vrot.slane %v5576, 6
    %v5674 = vsel %vm2834, %v5672, %v5673
    %v5675 = vrot.slane %v5673, 4
    %v5676 = vrot.slane %v5577, 6
    %v5677 = vsel %vm2834, %v5675, %v5676
    %5678 = vrot.lane.b32.xlu0 %v5607, 24
    %v5679 = vpop.permute.xlu0 %5678
    %5680 = vrot.lane.b32.xlu0 %v5610, 24
    %v5681 = vpop.permute.xlu0 %5680
    %5682 = vrot.lane.b32.xlu0 %v5613, 24
    %v5683 = vpop.permute.xlu0 %5682
    %5684 = vrot.lane.b32.xlu0 %v5616, 24
    %v5685 = vpop.permute.xlu0 %5684
    %5686 = vrot.lane.b32.xlu0 %v5619, 24
    %v5687 = vpop.permute.xlu0 %5686
    %5688 = vrot.lane.b32.xlu0 %v5622, 24
    %v5689 = vpop.permute.xlu0 %5688
    %5690 = vrot.lane.b32.xlu0 %v5625, 24
    %v5691 = vpop.permute.xlu0 %5690
    %5692 = vrot.lane.b32.xlu0 %v5628, 24
    %v5693 = vpop.permute.xlu0 %5692
    %5694 = vrot.lane.b32.xlu0 %v5631, 24
    %v5695 = vpop.permute.xlu0 %5694
    %5696 = vrot.lane.b32.xlu0 %v5634, 24
    %v5697 = vpop.permute.xlu0 %5696
    %5698 = vrot.lane.b32.xlu0 %v5637, 24
    %v5699 = vpop.permute.xlu0 %5698
    %5700 = vrot.lane.b32.xlu0 %v5640, 24
    %v5701 = vpop.permute.xlu0 %5700
    %5702 = vrot.lane.b32.xlu0 %v5644, 24
    %v5703 = vpop.permute.xlu0 %5702
    %5704 = vrot.lane.b32.xlu0 %v5647, 24
    %v5705 = vpop.permute.xlu0 %5704
    %5706 = vrot.lane.b32.xlu0 %v5650, 24
    %v5707 = vpop.permute.xlu0 %5706
    %5708 = vrot.lane.b32.xlu0 %v5653, 24
    %v5709 = vpop.permute.xlu0 %5708
    %5710 = vrot.lane.b32.xlu0 %v5656, 24
    %v5711 = vpop.permute.xlu0 %5710
    %5712 = vrot.lane.b32.xlu0 %v5659, 24
    %v5713 = vpop.permute.xlu0 %5712
    %5714 = vrot.lane.b32.xlu0 %v5662, 24
    %v5715 = vpop.permute.xlu0 %5714
    %5716 = vrot.lane.b32.xlu0 %v5665, 24
    %v5717 = vpop.permute.xlu0 %5716
    %5718 = vrot.lane.b32.xlu0 %v5668, 24
    %v5719 = vpop.permute.xlu0 %5718
    %5720 = vrot.lane.b32.xlu0 %v5671, 24
    %v5721 = vpop.permute.xlu0 %5720
    %5722 = vrot.lane.b32.xlu0 %v5674, 24
    %v5723 = vpop.permute.xlu0 %5722
    %5724 = vrot.lane.b32.xlu0 %v5677, 24
    %v5725 = vpop.permute.xlu0 %5724
    %vm5750 = vcmask 355520
    %5751 = vst.msk [vmem:[#allocation3 + $0x8] sm:$0xf] %vm5750, %v5679
    %5752 = vst.msk [vmem:[#allocation3 + $0x18] sm:$0xf] %vm5750, %v5681
    %5753 = vst.msk [vmem:[#allocation3 + $0x28] sm:$0xf] %vm5750, %v5683
    %5754 = vst.msk [vmem:[#allocation3 + $0x38] sm:$0xf] %vm5750, %v5685
    %5755 = vst.msk [vmem:[#allocation3 + $0x48] sm:$0xf] %vm5750, %v5687
    %5756 = vst.msk [vmem:[#allocation3 + $0x58] sm:$0xf] %vm5750, %v5689
    %5757 = vst.msk [vmem:[#allocation3 + $0x68] sm:$0xf] %vm5750, %v5691
    %5758 = vst.msk [vmem:[#allocation3 + $0x78] sm:$0xf] %vm5750, %v5693
    %5759 = vst.msk [vmem:[#allocation3 + $0x88] sm:$0xf] %vm5750, %v5695
    %5760 = vst.msk [vmem:[#allocation3 + $0x98] sm:$0xf] %vm5750, %v5697
    %5761 = vst.msk [vmem:[#allocation3 + $0xa8] sm:$0xf] %vm5750, %v5699
    %5762 = vst.msk [vmem:[#allocation3 + $0xb8] sm:$0xf] %vm5750, %v5701
    %5763 = vst.msk [vmem:[#allocation3 + $0xc8] sm:$0xf] %vm5750, %v5703
    %5764 = vst.msk [vmem:[#allocation3 + $0xd8] sm:$0xf] %vm5750, %v5705
    %5765 = vst.msk [vmem:[#allocation3 + $0xe8] sm:$0xf] %vm5750, %v5707
    %5766 = vst.msk [vmem:[#allocation3 + $0xf8] sm:$0xf] %vm5750, %v5709
    %5767 = vst.msk [vmem:[#allocation3 + $0x108] sm:$0xf] %vm5750, %v5711
    %5768 = vst.msk [vmem:[#allocation3 + $0x118] sm:$0xf] %vm5750, %v5713
    %5769 = vst.msk [vmem:[#allocation3 + $0x128] sm:$0xf] %vm5750, %v5715
    %5770 = vst.msk [vmem:[#allocation3 + $0x138] sm:$0xf] %vm5750, %v5717
    %5771 = vst.msk [vmem:[#allocation3 + $0x148] sm:$0xf] %vm5750, %v5719
    %5772 = vst.msk [vmem:[#allocation3 + $0x158] sm:$0xf] %vm5750, %v5721
    %5773 = vst.msk [vmem:[#allocation3 + $0x168] sm:$0xf] %vm5750, %v5723
    %5774 = vst.msk [vmem:[#allocation3 + $0x178] sm:$0xf] %vm5750, %v5725
    %v5775 = vld [vmem:[#allocation2 + $0x10] sm:$0xc]
    %v5776 = vld [vmem:[#allocation2 + $0x14] sm:$0xf]
    %v5777 = vld [vmem:[#allocation2 + $0x18] sm:$0xf]
    %v5778 = vld [vmem:[#allocation2 + $0x1c] sm:$0xf]
    %v5779 = vld [vmem:[#allocation2 + $0x20] sm:$0xf]
    %v5780 = vld [vmem:[#allocation2 + $0x24] sm:$0xf]
    %v5781 = vld [vmem:[#allocation2 + $0x28] sm:$0xf]
    %v5782 = vld [vmem:[#allocation2 + $0x2c] sm:$0xf]
    %v5783 = vld [vmem:[#allocation2 + $0x30] sm:$0xf]
    %v5784 = vld [vmem:[#allocation2 + $0x34] sm:$0xf]
    %v5785 = vld [vmem:[#allocation2 + $0x38] sm:$0xf]
    %v5786 = vld [vmem:[#allocation2 + $0x3c] sm:$0xf]
    %v5787 = vld [vmem:[#allocation2 + $0x40] sm:$0x3]
    %v5788 = vld [vmem:[#allocation2 + $0x5c] sm:$0xc]
    %v5789 = vld [vmem:[#allocation2 + $0x60] sm:$0xf]
    %v5790 = vld [vmem:[#allocation2 + $0x64] sm:$0xf]
    %v5791 = vld [vmem:[#allocation2 + $0x68] sm:$0xf]
    %v5792 = vld [vmem:[#allocation2 + $0x6c] sm:$0xf]
    %v5793 = vld [vmem:[#allocation2 + $0x70] sm:$0xf]
    %v5794 = vld [vmem:[#allocation2 + $0x74] sm:$0xf]
    %v5795 = vld [vmem:[#allocation2 + $0x78] sm:$0xf]
    %v5796 = vld [vmem:[#allocation2 + $0x7c] sm:$0xf]
    %v5797 = vld [vmem:[#allocation2 + $0x80] sm:$0xf]
    %v5798 = vld [vmem:[#allocation2 + $0x84] sm:$0xf]
    %v5799 = vld [vmem:[#allocation2 + $0x88] sm:$0xf]
    %v5800 = vld [vmem:[#allocation2 + $0x8c] sm:$0x3]
    %v5827 = vrot.slane %v5775, 6
    %v5828 = vrot.slane %v5827, 4
    %v5829 = vrot.slane %v5776, 6
    %v5830 = vsel %vm2834, %v5828, %v5829
    %v5831 = vrot.slane %v5829, 4
    %v5832 = vrot.slane %v5777, 6
    %v5833 = vsel %vm2834, %v5831, %v5832
    %v5834 = vrot.slane %v5832, 4
    %v5835 = vrot.slane %v5778, 6
    %v5836 = vsel %vm2834, %v5834, %v5835
    %v5837 = vrot.slane %v5835, 4
    %v5838 = vrot.slane %v5779, 6
    %v5839 = vsel %vm2834, %v5837, %v5838
    %v5840 = vrot.slane %v5838, 4
    %v5841 = vrot.slane %v5780, 6
    %v5842 = vsel %vm2834, %v5840, %v5841
    %v5843 = vrot.slane %v5841, 4
    %v5844 = vrot.slane %v5781, 6
    %v5845 = vsel %vm2834, %v5843, %v5844
    %v5846 = vrot.slane %v5844, 4
    %v5847 = vrot.slane %v5782, 6
    %v5848 = vsel %vm2834, %v5846, %v5847
    %v5849 = vrot.slane %v5847, 4
    %v5850 = vrot.slane %v5783, 6
    %v5851 = vsel %vm2834, %v5849, %v5850
    %v5852 = vrot.slane %v5850, 4
    %v5853 = vrot.slane %v5784, 6
    %v5854 = vsel %vm2834, %v5852, %v5853
    %v5855 = vrot.slane %v5853, 4
    %v5856 = vrot.slane %v5785, 6
    %v5857 = vsel %vm2834, %v5855, %v5856
    %v5858 = vrot.slane %v5856, 4
    %v5859 = vrot.slane %v5786, 6
    %v5860 = vsel %vm2834, %v5858, %v5859
    %v5861 = vrot.slane %v5859, 4
    %v5862 = vrot.slane %v5787, 6
    %v5863 = vsel %vm2834, %v5861, %v5862
    %v5864 = vrot.slane %v5788, 6
    %v5865 = vrot.slane %v5864, 4
    %v5866 = vrot.slane %v5789, 6
    %v5867 = vsel %vm2834, %v5865, %v5866
    %v5868 = vrot.slane %v5866, 4
    %v5869 = vrot.slane %v5790, 6
    %v5870 = vsel %vm2834, %v5868, %v5869
    %v5871 = vrot.slane %v5869, 4
    %v5872 = vrot.slane %v5791, 6
    %v5873 = vsel %vm2834, %v5871, %v5872
    %v5874 = vrot.slane %v5872, 4
    %v5875 = vrot.slane %v5792, 6
    %v5876 = vsel %vm2834, %v5874, %v5875
    %v5877 = vrot.slane %v5875, 4
    %v5878 = vrot.slane %v5793, 6
    %v5879 = vsel %vm2834, %v5877, %v5878
    %v5880 = vrot.slane %v5878, 4
    %v5881 = vrot.slane %v5794, 6
    %v5882 = vsel %vm2834, %v5880, %v5881
    %v5883 = vrot.slane %v5881, 4
    %v5884 = vrot.slane %v5795, 6
    %v5885 = vsel %vm2834, %v5883, %v5884
    %v5886 = vrot.slane %v5884, 4
    %v5887 = vrot.slane %v5796, 6
    %v5888 = vsel %vm2834, %v5886, %v5887
    %v5889 = vrot.slane %v5887, 4
    %v5890 = vrot.slane %v5797, 6
    %v5891 = vsel %vm2834, %v5889, %v5890
    %v5892 = vrot.slane %v5890, 4
    %v5893 = vrot.slane %v5798, 6
    %v5894 = vsel %vm2834, %v5892, %v5893
    %v5895 = vrot.slane %v5893, 4
    %v5896 = vrot.slane %v5799, 6
    %v5897 = vsel %vm2834, %v5895, %v5896
    %v5898 = vrot.slane %v5896, 4
    %v5899 = vrot.slane %v5800, 6
    %v5900 = vsel %vm2834, %v5898, %v5899
    %5901 = vrot.lane.b32.xlu0 %v5830, 44
    %v5902 = vpop.permute.xlu0 %5901
    %5903 = vrot.lane.b32.xlu0 %v5833, 44
    %v5904 = vpop.permute.xlu0 %5903
    %5905 = vrot.lane.b32.xlu0 %v5836, 44
    %v5906 = vpop.permute.xlu0 %5905
    %5907 = vrot.lane.b32.xlu0 %v5839, 44
    %v5908 = vpop.permute.xlu0 %5907
    %5909 = vrot.lane.b32.xlu0 %v5842, 44
    %v5910 = vpop.permute.xlu0 %5909
    %5911 = vrot.lane.b32.xlu0 %v5845, 44
    %v5912 = vpop.permute.xlu0 %5911
    %5913 = vrot.lane.b32.xlu0 %v5848, 44
    %v5914 = vpop.permute.xlu0 %5913
    %5915 = vrot.lane.b32.xlu0 %v5851, 44
    %v5916 = vpop.permute.xlu0 %5915
    %5917 = vrot.lane.b32.xlu0 %v5854, 44
    %v5918 = vpop.permute.xlu0 %5917
    %5919 = vrot.lane.b32.xlu0 %v5857, 44
    %v5920 = vpop.permute.xlu0 %5919
    %5921 = vrot.lane.b32.xlu0 %v5860, 44
    %v5922 = vpop.permute.xlu0 %5921
    %5923 = vrot.lane.b32.xlu0 %v5863, 44
    %v5924 = vpop.permute.xlu0 %5923
    %5925 = vrot.lane.b32.xlu0 %v5867, 44
    %v5926 = vpop.permute.xlu0 %5925
    %5927 = vrot.lane.b32.xlu0 %v5870, 44
    %v5928 = vpop.permute.xlu0 %5927
    %5929 = vrot.lane.b32.xlu0 %v5873, 44
    %v5930 = vpop.permute.xlu0 %5929
    %5931 = vrot.lane.b32.xlu0 %v5876, 44
    %v5932 = vpop.permute.xlu0 %5931
    %5933 = vrot.lane.b32.xlu0 %v5879, 44
    %v5934 = vpop.permute.xlu0 %5933
    %5935 = vrot.lane.b32.xlu0 %v5882, 44
    %v5936 = vpop.permute.xlu0 %5935
    %5937 = vrot.lane.b32.xlu0 %v5885, 44
    %v5938 = vpop.permute.xlu0 %5937
    %5939 = vrot.lane.b32.xlu0 %v5888, 44
    %v5940 = vpop.permute.xlu0 %5939
    %5941 = vrot.lane.b32.xlu0 %v5891, 44
    %v5942 = vpop.permute.xlu0 %5941
    %5943 = vrot.lane.b32.xlu0 %v5894, 44
    %v5944 = vpop.permute.xlu0 %5943
    %5945 = vrot.lane.b32.xlu0 %v5897, 44
    %v5946 = vpop.permute.xlu0 %5945
    %5947 = vrot.lane.b32.xlu0 %v5900, 44
    %v5948 = vpop.permute.xlu0 %5947
    %vm5973 = vcmask 519520
    %5974 = vst.msk [vmem:[#allocation3 + $0x8] sm:$0xf] %vm5973, %v5902
    %5975 = vst.msk [vmem:[#allocation3 + $0x18] sm:$0xf] %vm5973, %v5904
    %5976 = vst.msk [vmem:[#allocation3 + $0x28] sm:$0xf] %vm5973, %v5906
    %5977 = vst.msk [vmem:[#allocation3 + $0x38] sm:$0xf] %vm5973, %v5908
    %5978 = vst.msk [vmem:[#allocation3 + $0x48] sm:$0xf] %vm5973, %v5910
    %5979 = vst.msk [vmem:[#allocation3 + $0x58] sm:$0xf] %vm5973, %v5912
    %5980 = vst.msk [vmem:[#allocation3 + $0x68] sm:$0xf] %vm5973, %v5914
    %5981 = vst.msk [vmem:[#allocation3 + $0x78] sm:$0xf] %vm5973, %v5916
    %5982 = vst.msk [vmem:[#allocation3 + $0x88] sm:$0xf] %vm5973, %v5918
    %5983 = vst.msk [vmem:[#allocation3 + $0x98] sm:$0xf] %vm5973, %v5920
    %5984 = vst.msk [vmem:[#allocation3 + $0xa8] sm:$0xf] %vm5973, %v5922
    %5985 = vst.msk [vmem:[#allocation3 + $0xb8] sm:$0xf] %vm5973, %v5924
    %5986 = vst.msk [vmem:[#allocation3 + $0xc8] sm:$0xf] %vm5973, %v5926
    %5987 = vst.msk [vmem:[#allocation3 + $0xd8] sm:$0xf] %vm5973, %v5928
    %5988 = vst.msk [vmem:[#allocation3 + $0xe8] sm:$0xf] %vm5973, %v5930
    %5989 = vst.msk [vmem:[#allocation3 + $0xf8] sm:$0xf] %vm5973, %v5932
    %5990 = vst.msk [vmem:[#allocation3 + $0x108] sm:$0xf] %vm5973, %v5934
    %5991 = vst.msk [vmem:[#allocation3 + $0x118] sm:$0xf] %vm5973, %v5936
    %5992 = vst.msk [vmem:[#allocation3 + $0x128] sm:$0xf] %vm5973, %v5938
    %5993 = vst.msk [vmem:[#allocation3 + $0x138] sm:$0xf] %vm5973, %v5940
    %5994 = vst.msk [vmem:[#allocation3 + $0x148] sm:$0xf] %vm5973, %v5942
    %5995 = vst.msk [vmem:[#allocation3 + $0x158] sm:$0xf] %vm5973, %v5944
    %5996 = vst.msk [vmem:[#allocation3 + $0x168] sm:$0xf] %vm5973, %v5946
    %5997 = vst.msk [vmem:[#allocation3 + $0x178] sm:$0xf] %vm5973, %v5948
    %v5998 = vld [vmem:[#allocation2 + $0x10] sm:$0xc]
    %v5999 = vld [vmem:[#allocation2 + $0x14] sm:$0xf]
    %v6000 = vld [vmem:[#allocation2 + $0x18] sm:$0xf]
    %v6001 = vld [vmem:[#allocation2 + $0x1c] sm:$0xf]
    %v6002 = vld [vmem:[#allocation2 + $0x20] sm:$0xf]
    %v6003 = vld [vmem:[#allocation2 + $0x24] sm:$0xf]
    %v6004 = vld [vmem:[#allocation2 + $0x28] sm:$0xf]
    %v6005 = vld [vmem:[#allocation2 + $0x2c] sm:$0xf]
    %v6006 = vld [vmem:[#allocation2 + $0x30] sm:$0xf]
    %v6007 = vld [vmem:[#allocation2 + $0x34] sm:$0xf]
    %v6008 = vld [vmem:[#allocation2 + $0x38] sm:$0xf]
    %v6009 = vld [vmem:[#allocation2 + $0x3c] sm:$0xf]
    %v6010 = vld [vmem:[#allocation2 + $0x40] sm:$0x7]
    %v6011 = vld [vmem:[#allocation2 + $0x5c] sm:$0xc]
    %v6012 = vld [vmem:[#allocation2 + $0x60] sm:$0xf]
    %v6013 = vld [vmem:[#allocation2 + $0x64] sm:$0xf]
    %v6014 = vld [vmem:[#allocation2 + $0x68] sm:$0xf]
    %v6015 = vld [vmem:[#allocation2 + $0x6c] sm:$0xf]
    %v6016 = vld [vmem:[#allocation2 + $0x70] sm:$0xf]
    %v6017 = vld [vmem:[#allocation2 + $0x74] sm:$0xf]
    %v6018 = vld [vmem:[#allocation2 + $0x78] sm:$0xf]
    %v6019 = vld [vmem:[#allocation2 + $0x7c] sm:$0xf]
    %v6020 = vld [vmem:[#allocation2 + $0x80] sm:$0xf]
    %v6021 = vld [vmem:[#allocation2 + $0x84] sm:$0xf]
    %v6022 = vld [vmem:[#allocation2 + $0x88] sm:$0xf]
    %v6023 = vld [vmem:[#allocation2 + $0x8c] sm:$0x7]
    %v6025 = vshrl.u32 %v5998, 16
    %v6027 = vrot.slane %v6025, 6
    %v6028 = vshll.u32 %v5998, 16
    %v6030 = vrot.slane %v6028, 7
    %v6031 = vor.u32 %v6027, %v6030
    %v6032 = vrot.slane %v6031, 4
    %v6034 = vshrl.u32 %v5999, 16
    %v6036 = vrot.slane %v6034, 6
    %v6037 = vshll.u32 %v5999, 16
    %v6039 = vrot.slane %v6037, 7
    %v6040 = vor.u32 %v6036, %v6039
    %v6041 = vsel %vm3257, %v6032, %v6040
    %v6042 = vrot.slane %v6040, 4
    %v6044 = vshrl.u32 %v6000, 16
    %v6046 = vrot.slane %v6044, 6
    %v6047 = vshll.u32 %v6000, 16
    %v6049 = vrot.slane %v6047, 7
    %v6050 = vor.u32 %v6046, %v6049
    %v6051 = vsel %vm3257, %v6042, %v6050
    %v6052 = vrot.slane %v6050, 4
    %v6054 = vshrl.u32 %v6001, 16
    %v6056 = vrot.slane %v6054, 6
    %v6057 = vshll.u32 %v6001, 16
    %v6059 = vrot.slane %v6057, 7
    %v6060 = vor.u32 %v6056, %v6059
    %v6061 = vsel %vm3257, %v6052, %v6060
    %v6062 = vrot.slane %v6060, 4
    %v6064 = vshrl.u32 %v6002, 16
    %v6066 = vrot.slane %v6064, 6
    %v6067 = vshll.u32 %v6002, 16
    %v6069 = vrot.slane %v6067, 7
    %v6070 = vor.u32 %v6066, %v6069
    %v6071 = vsel %vm3257, %v6062, %v6070
    %v6072 = vrot.slane %v6070, 4
    %v6074 = vshrl.u32 %v6003, 16
    %v6076 = vrot.slane %v6074, 6
    %v6077 = vshll.u32 %v6003, 16
    %v6079 = vrot.slane %v6077, 7
    %v6080 = vor.u32 %v6076, %v6079
    %v6081 = vsel %vm3257, %v6072, %v6080
    %v6082 = vrot.slane %v6080, 4
    %v6084 = vshrl.u32 %v6004, 16
    %v6086 = vrot.slane %v6084, 6
    %v6087 = vshll.u32 %v6004, 16
    %v6089 = vrot.slane %v6087, 7
    %v6090 = vor.u32 %v6086, %v6089
    %v6091 = vsel %vm3257, %v6082, %v6090
    %v6092 = vrot.slane %v6090, 4
    %v6094 = vshrl.u32 %v6005, 16
    %v6096 = vrot.slane %v6094, 6
    %v6097 = vshll.u32 %v6005, 16
    %v6099 = vrot.slane %v6097, 7
    %v6100 = vor.u32 %v6096, %v6099
    %v6101 = vsel %vm3257, %v6092, %v6100
    %v6102 = vrot.slane %v6100, 4
    %v6104 = vshrl.u32 %v6006, 16
    %v6106 = vrot.slane %v6104, 6
    %v6107 = vshll.u32 %v6006, 16
    %v6109 = vrot.slane %v6107, 7
    %v6110 = vor.u32 %v6106, %v6109
    %v6111 = vsel %vm3257, %v6102, %v6110
    %v6112 = vrot.slane %v6110, 4
    %v6114 = vshrl.u32 %v6007, 16
    %v6116 = vrot.slane %v6114, 6
    %v6117 = vshll.u32 %v6007, 16
    %v6119 = vrot.slane %v6117, 7
    %v6120 = vor.u32 %v6116, %v6119
    %v6121 = vsel %vm3257, %v6112, %v6120
    %v6122 = vrot.slane %v6120, 4
    %v6124 = vshrl.u32 %v6008, 16
    %v6126 = vrot.slane %v6124, 6
    %v6127 = vshll.u32 %v6008, 16
    %v6129 = vrot.slane %v6127, 7
    %v6130 = vor.u32 %v6126, %v6129
    %v6131 = vsel %vm3257, %v6122, %v6130
    %v6132 = vrot.slane %v6130, 4
    %v6134 = vshrl.u32 %v6009, 16
    %v6136 = vrot.slane %v6134, 6
    %v6137 = vshll.u32 %v6009, 16
    %v6139 = vrot.slane %v6137, 7
    %v6140 = vor.u32 %v6136, %v6139
    %v6141 = vsel %vm3257, %v6132, %v6140
    %v6142 = vrot.slane %v6140, 4
    %v6144 = vshrl.u32 %v6010, 16
    %v6146 = vrot.slane %v6144, 6
    %v6147 = vshll.u32 %v6010, 16
    %v6149 = vrot.slane %v6147, 7
    %v6150 = vor.u32 %v6146, %v6149
    %v6151 = vsel %vm3257, %v6142, %v6150
    %v6153 = vshrl.u32 %v6011, 16
    %v6155 = vrot.slane %v6153, 6
    %v6156 = vshll.u32 %v6011, 16
    %v6158 = vrot.slane %v6156, 7
    %v6159 = vor.u32 %v6155, %v6158
    %v6160 = vrot.slane %v6159, 4
    %v6162 = vshrl.u32 %v6012, 16
    %v6164 = vrot.slane %v6162, 6
    %v6165 = vshll.u32 %v6012, 16
    %v6167 = vrot.slane %v6165, 7
    %v6168 = vor.u32 %v6164, %v6167
    %v6169 = vsel %vm3257, %v6160, %v6168
    %v6170 = vrot.slane %v6168, 4
    %v6172 = vshrl.u32 %v6013, 16
    %v6174 = vrot.slane %v6172, 6
    %v6175 = vshll.u32 %v6013, 16
    %v6177 = vrot.slane %v6175, 7
    %v6178 = vor.u32 %v6174, %v6177
    %v6179 = vsel %vm3257, %v6170, %v6178
    %v6180 = vrot.slane %v6178, 4
    %v6182 = vshrl.u32 %v6014, 16
    %v6184 = vrot.slane %v6182, 6
    %v6185 = vshll.u32 %v6014, 16
    %v6187 = vrot.slane %v6185, 7
    %v6188 = vor.u32 %v6184, %v6187
    %v6189 = vsel %vm3257, %v6180, %v6188
    %v6190 = vrot.slane %v6188, 4
    %v6192 = vshrl.u32 %v6015, 16
    %v6194 = vrot.slane %v6192, 6
    %v6195 = vshll.u32 %v6015, 16
    %v6197 = vrot.slane %v6195, 7
    %v6198 = vor.u32 %v6194, %v6197
    %v6199 = vsel %vm3257, %v6190, %v6198
    %v6200 = vrot.slane %v6198, 4
    %v6202 = vshrl.u32 %v6016, 16
    %v6204 = vrot.slane %v6202, 6
    %v6205 = vshll.u32 %v6016, 16
    %v6207 = vrot.slane %v6205, 7
    %v6208 = vor.u32 %v6204, %v6207
    %v6209 = vsel %vm3257, %v6200, %v6208
    %v6210 = vrot.slane %v6208, 4
    %v6212 = vshrl.u32 %v6017, 16
    %v6214 = vrot.slane %v6212, 6
    %v6215 = vshll.u32 %v6017, 16
    %v6217 = vrot.slane %v6215, 7
    %v6218 = vor.u32 %v6214, %v6217
    %v6219 = vsel %vm3257, %v6210, %v6218
    %v6220 = vrot.slane %v6218, 4
    %v6222 = vshrl.u32 %v6018, 16
    %v6224 = vrot.slane %v6222, 6
    %v6225 = vshll.u32 %v6018, 16
    %v6227 = vrot.slane %v6225, 7
    %v6228 = vor.u32 %v6224, %v6227
    %v6229 = vsel %vm3257, %v6220, %v6228
    %v6230 = vrot.slane %v6228, 4
    %v6232 = vshrl.u32 %v6019, 16
    %v6234 = vrot.slane %v6232, 6
    %v6235 = vshll.u32 %v6019, 16
    %v6237 = vrot.slane %v6235, 7
    %v6238 = vor.u32 %v6234, %v6237
    %v6239 = vsel %vm3257, %v6230, %v6238
    %v6240 = vrot.slane %v6238, 4
    %v6242 = vshrl.u32 %v6020, 16
    %v6244 = vrot.slane %v6242, 6
    %v6245 = vshll.u32 %v6020, 16
    %v6247 = vrot.slane %v6245, 7
    %v6248 = vor.u32 %v6244, %v6247
    %v6249 = vsel %vm3257, %v6240, %v6248
    %v6250 = vrot.slane %v6248, 4
    %v6252 = vshrl.u32 %v6021, 16
    %v6254 = vrot.slane %v6252, 6
    %v6255 = vshll.u32 %v6021, 16
    %v6257 = vrot.slane %v6255, 7
    %v6258 = vor.u32 %v6254, %v6257
    %v6259 = vsel %vm3257, %v6250, %v6258
    %v6260 = vrot.slane %v6258, 4
    %v6262 = vshrl.u32 %v6022, 16
    %v6264 = vrot.slane %v6262, 6
    %v6265 = vshll.u32 %v6022, 16
    %v6267 = vrot.slane %v6265, 7
    %v6268 = vor.u32 %v6264, %v6267
    %v6269 = vsel %vm3257, %v6260, %v6268
    %v6270 = vrot.slane %v6268, 4
    %v6272 = vshrl.u32 %v6023, 16
    %v6274 = vrot.slane %v6272, 6
    %v6275 = vshll.u32 %v6023, 16
    %v6277 = vrot.slane %v6275, 7
    %v6278 = vor.u32 %v6274, %v6277
    %v6279 = vsel %vm3257, %v6270, %v6278
    %6280 = vrot.lane.b32.xlu0 %v6041, 64
    %v6281 = vpop.permute.xlu0 %6280
    %6282 = vrot.lane.b32.xlu0 %v6051, 64
    %v6283 = vpop.permute.xlu0 %6282
    %6284 = vrot.lane.b32.xlu0 %v6061, 64
    %v6285 = vpop.permute.xlu0 %6284
    %6286 = vrot.lane.b32.xlu0 %v6071, 64
    %v6287 = vpop.permute.xlu0 %6286
    %6288 = vrot.lane.b32.xlu0 %v6081, 64
    %v6289 = vpop.permute.xlu0 %6288
    %6290 = vrot.lane.b32.xlu0 %v6091, 64
    %v6291 = vpop.permute.xlu0 %6290
    %6292 = vrot.lane.b32.xlu0 %v6101, 64
    %v6293 = vpop.permute.xlu0 %6292
    %6294 = vrot.lane.b32.xlu0 %v6111, 64
    %v6295 = vpop.permute.xlu0 %6294
    %6296 = vrot.lane.b32.xlu0 %v6121, 64
    %v6297 = vpop.permute.xlu0 %6296
    %6298 = vrot.lane.b32.xlu0 %v6131, 64
    %v6299 = vpop.permute.xlu0 %6298
    %6300 = vrot.lane.b32.xlu0 %v6141, 64
    %v6301 = vpop.permute.xlu0 %6300
    %6302 = vrot.lane.b32.xlu0 %v6151, 64
    %v6303 = vpop.permute.xlu0 %6302
    %6304 = vrot.lane.b32.xlu0 %v6169, 64
    %v6305 = vpop.permute.xlu0 %6304
    %6306 = vrot.lane.b32.xlu0 %v6179, 64
    %v6307 = vpop.permute.xlu0 %6306
    %6308 = vrot.lane.b32.xlu0 %v6189, 64
    %v6309 = vpop.permute.xlu0 %6308
    %6310 = vrot.lane.b32.xlu0 %v6199, 64
    %v6311 = vpop.permute.xlu0 %6310
    %6312 = vrot.lane.b32.xlu0 %v6209, 64
    %v6313 = vpop.permute.xlu0 %6312
    %6314 = vrot.lane.b32.xlu0 %v6219, 64
    %v6315 = vpop.permute.xlu0 %6314
    %6316 = vrot.lane.b32.xlu0 %v6229, 64
    %v6317 = vpop.permute.xlu0 %6316
    %6318 = vrot.lane.b32.xlu0 %v6239, 64
    %v6319 = vpop.permute.xlu0 %6318
    %6320 = vrot.lane.b32.xlu0 %v6249, 64
    %v6321 = vpop.permute.xlu0 %6320
    %6322 = vrot.lane.b32.xlu0 %v6259, 64
    %v6323 = vpop.permute.xlu0 %6322
    %6324 = vrot.lane.b32.xlu0 %v6269, 64
    %v6325 = vpop.permute.xlu0 %6324
    %6326 = vrot.lane.b32.xlu0 %v6279, 64
    %v6327 = vpop.permute.xlu0 %6326
    %vm6352 = vcmask 683520
    %6353 = vst.msk [vmem:[#allocation3 + $0x8] sm:$0xf] %vm6352, %v6281
    %6354 = vst.msk [vmem:[#allocation3 + $0x18] sm:$0xf] %vm6352, %v6283
    %6355 = vst.msk [vmem:[#allocation3 + $0x28] sm:$0xf] %vm6352, %v6285
    %6356 = vst.msk [vmem:[#allocation3 + $0x38] sm:$0xf] %vm6352, %v6287
    %6357 = vst.msk [vmem:[#allocation3 + $0x48] sm:$0xf] %vm6352, %v6289
    %6358 = vst.msk [vmem:[#allocation3 + $0x58] sm:$0xf] %vm6352, %v6291
    %6359 = vst.msk [vmem:[#allocation3 + $0x68] sm:$0xf] %vm6352, %v6293
    %6360 = vst.msk [vmem:[#allocation3 + $0x78] sm:$0xf] %vm6352, %v6295
    %6361 = vst.msk [vmem:[#allocation3 + $0x88] sm:$0xf] %vm6352, %v6297
    %6362 = vst.msk [vmem:[#allocation3 + $0x98] sm:$0xf] %vm6352, %v6299
    %6363 = vst.msk [vmem:[#allocation3 + $0xa8] sm:$0xf] %vm6352, %v6301
    %6364 = vst.msk [vmem:[#allocation3 + $0xb8] sm:$0xf] %vm6352, %v6303
    %6365 = vst.msk [vmem:[#allocation3 + $0xc8] sm:$0xf] %vm6352, %v6305
    %6366 = vst.msk [vmem:[#allocation3 + $0xd8] sm:$0xf] %vm6352, %v6307
    %6367 = vst.msk [vmem:[#allocation3 + $0xe8] sm:$0xf] %vm6352, %v6309
    %6368 = vst.msk [vmem:[#allocation3 + $0xf8] sm:$0xf] %vm6352, %v6311
    %6369 = vst.msk [vmem:[#allocation3 + $0x108] sm:$0xf] %vm6352, %v6313
    %6370 = vst.msk [vmem:[#allocation3 + $0x118] sm:$0xf] %vm6352, %v6315
    %6371 = vst.msk [vmem:[#allocation3 + $0x128] sm:$0xf] %vm6352, %v6317
    %6372 = vst.msk [vmem:[#allocation3 + $0x138] sm:$0xf] %vm6352, %v6319
    %6373 = vst.msk [vmem:[#allocation3 + $0x148] sm:$0xf] %vm6352, %v6321
    %6374 = vst.msk [vmem:[#allocation3 + $0x158] sm:$0xf] %vm6352, %v6323
    %6375 = vst.msk [vmem:[#allocation3 + $0x168] sm:$0xf] %vm6352, %v6325
    %6376 = vst.msk [vmem:[#allocation3 + $0x178] sm:$0xf] %vm6352, %v6327
    %v6377 = vld [vmem:[#allocation2 + $0x10] sm:$0x8]
    %v6378 = vld [vmem:[#allocation2 + $0x14] sm:$0xf]
    %v6379 = vld [vmem:[#allocation2 + $0x18] sm:$0xf]
    %v6380 = vld [vmem:[#allocation2 + $0x1c] sm:$0xf]
    %v6381 = vld [vmem:[#allocation2 + $0x20] sm:$0xf]
    %v6382 = vld [vmem:[#allocation2 + $0x24] sm:$0xf]
    %v6383 = vld [vmem:[#allocation2 + $0x28] sm:$0xf]
    %v6384 = vld [vmem:[#allocation2 + $0x2c] sm:$0xf]
    %v6385 = vld [vmem:[#allocation2 + $0x30] sm:$0xf]
    %v6386 = vld [vmem:[#allocation2 + $0x34] sm:$0xf]
    %v6387 = vld [vmem:[#allocation2 + $0x38] sm:$0xf]
    %v6388 = vld [vmem:[#allocation2 + $0x3c] sm:$0xf]
    %v6389 = vld [vmem:[#allocation2 + $0x40] sm:$0x7]
    %v6390 = vld [vmem:[#allocation2 + $0x5c] sm:$0x8]
    %v6391 = vld [vmem:[#allocation2 + $0x60] sm:$0xf]
    %v6392 = vld [vmem:[#allocation2 + $0x64] sm:$0xf]
    %v6393 = vld [vmem:[#allocation2 + $0x68] sm:$0xf]
    %v6394 = vld [vmem:[#allocation2 + $0x6c] sm:$0xf]
    %v6395 = vld [vmem:[#allocation2 + $0x70] sm:$0xf]
    %v6396 = vld [vmem:[#allocation2 + $0x74] sm:$0xf]
    %v6397 = vld [vmem:[#allocation2 + $0x78] sm:$0xf]
    %v6398 = vld [vmem:[#allocation2 + $0x7c] sm:$0xf]
    %v6399 = vld [vmem:[#allocation2 + $0x80] sm:$0xf]
    %v6400 = vld [vmem:[#allocation2 + $0x84] sm:$0xf]
    %v6401 = vld [vmem:[#allocation2 + $0x88] sm:$0xf]
    %v6402 = vld [vmem:[#allocation2 + $0x8c] sm:$0x7]
    %v6429 = vrot.slane %v6377, 7
    %v6430 = vrot.slane %v6429, 4
    %v6431 = vrot.slane %v6378, 7
    %v6432 = vsel %vm3716, %v6430, %v6431
    %v6433 = vrot.slane %v6431, 4
    %v6434 = vrot.slane %v6379, 7
    %v6435 = vsel %vm3716, %v6433, %v6434
    %v6436 = vrot.slane %v6434, 4
    %v6437 = vrot.slane %v6380, 7
    %v6438 = vsel %vm3716, %v6436, %v6437
    %v6439 = vrot.slane %v6437, 4
    %v6440 = vrot.slane %v6381, 7
    %v6441 = vsel %vm3716, %v6439, %v6440
    %v6442 = vrot.slane %v6440, 4
    %v6443 = vrot.slane %v6382, 7
    %v6444 = vsel %vm3716, %v6442, %v6443
    %v6445 = vrot.slane %v6443, 4
    %v6446 = vrot.slane %v6383, 7
    %v6447 = vsel %vm3716, %v6445, %v6446
    %v6448 = vrot.slane %v6446, 4
    %v6449 = vrot.slane %v6384, 7
    %v6450 = vsel %vm3716, %v6448, %v6449
    %v6451 = vrot.slane %v6449, 4
    %v6452 = vrot.slane %v6385, 7
    %v6453 = vsel %vm3716, %v6451, %v6452
    %v6454 = vrot.slane %v6452, 4
    %v6455 = vrot.slane %v6386, 7
    %v6456 = vsel %vm3716, %v6454, %v6455
    %v6457 = vrot.slane %v6455, 4
    %v6458 = vrot.slane %v6387, 7
    %v6459 = vsel %vm3716, %v6457, %v6458
    %v6460 = vrot.slane %v6458, 4
    %v6461 = vrot.slane %v6388, 7
    %v6462 = vsel %vm3716, %v6460, %v6461
    %v6463 = vrot.slane %v6461, 4
    %v6464 = vrot.slane %v6389, 7
    %v6465 = vsel %vm3716, %v6463, %v6464
    %v6466 = vrot.slane %v6390, 7
    %v6467 = vrot.slane %v6466, 4
    %v6468 = vrot.slane %v6391, 7
    %v6469 = vsel %vm3716, %v6467, %v6468
    %v6470 = vrot.slane %v6468, 4
    %v6471 = vrot.slane %v6392, 7
    %v6472 = vsel %vm3716, %v6470, %v6471
    %v6473 = vrot.slane %v6471, 4
    %v6474 = vrot.slane %v6393, 7
    %v6475 = vsel %vm3716, %v6473, %v6474
    %v6476 = vrot.slane %v6474, 4
    %v6477 = vrot.slane %v6394, 7
    %v6478 = vsel %vm3716, %v6476, %v6477
    %v6479 = vrot.slane %v6477, 4
    %v6480 = vrot.slane %v6395, 7
    %v6481 = vsel %vm3716, %v6479, %v6480
    %v6482 = vrot.slane %v6480, 4
    %v6483 = vrot.slane %v6396, 7
    %v6484 = vsel %vm3716, %v6482, %v6483
    %v6485 = vrot.slane %v6483, 4
    %v6486 = vrot.slane %v6397, 7
    %v6487 = vsel %vm3716, %v6485, %v6486
    %v6488 = vrot.slane %v6486, 4
    %v6489 = vrot.slane %v6398, 7
    %v6490 = vsel %vm3716, %v6488, %v6489
    %v6491 = vrot.slane %v6489, 4
    %v6492 = vrot.slane %v6399, 7
    %v6493 = vsel %vm3716, %v6491, %v6492
    %v6494 = vrot.slane %v6492, 4
    %v6495 = vrot.slane %v6400, 7
    %v6496 = vsel %vm3716, %v6494, %v6495
    %v6497 = vrot.slane %v6495, 4
    %v6498 = vrot.slane %v6401, 7
    %v6499 = vsel %vm3716, %v6497, %v6498
    %v6500 = vrot.slane %v6498, 4
    %v6501 = vrot.slane %v6402, 7
    %v6502 = vsel %vm3716, %v6500, %v6501
    %6503 = vrot.lane.b32.xlu0 %v6432, 84
    %v6504 = vpop.permute.xlu0 %6503
    %6505 = vrot.lane.b32.xlu0 %v6435, 84
    %v6506 = vpop.permute.xlu0 %6505
    %6507 = vrot.lane.b32.xlu0 %v6438, 84
    %v6508 = vpop.permute.xlu0 %6507
    %6509 = vrot.lane.b32.xlu0 %v6441, 84
    %v6510 = vpop.permute.xlu0 %6509
    %6511 = vrot.lane.b32.xlu0 %v6444, 84
    %v6512 = vpop.permute.xlu0 %6511
    %6513 = vrot.lane.b32.xlu0 %v6447, 84
    %v6514 = vpop.permute.xlu0 %6513
    %6515 = vrot.lane.b32.xlu0 %v6450, 84
    %v6516 = vpop.permute.xlu0 %6515
    %6517 = vrot.lane.b32.xlu0 %v6453, 84
    %v6518 = vpop.permute.xlu0 %6517
    %6519 = vrot.lane.b32.xlu0 %v6456, 84
    %v6520 = vpop.permute.xlu0 %6519
    %6521 = vrot.lane.b32.xlu0 %v6459, 84
    %v6522 = vpop.permute.xlu0 %6521
    %6523 = vrot.lane.b32.xlu0 %v6462, 84
    %v6524 = vpop.permute.xlu0 %6523
    %6525 = vrot.lane.b32.xlu0 %v6465, 84
    %v6526 = vpop.permute.xlu0 %6525
    %6527 = vrot.lane.b32.xlu0 %v6469, 84
    %v6528 = vpop.permute.xlu0 %6527
    %6529 = vrot.lane.b32.xlu0 %v6472, 84
    %v6530 = vpop.permute.xlu0 %6529
    %6531 = vrot.lane.b32.xlu0 %v6475, 84
    %v6532 = vpop.permute.xlu0 %6531
    %6533 = vrot.lane.b32.xlu0 %v6478, 84
    %v6534 = vpop.permute.xlu0 %6533
    %6535 = vrot.lane.b32.xlu0 %v6481, 84
    %v6536 = vpop.permute.xlu0 %6535
    %6537 = vrot.lane.b32.xlu0 %v6484, 84
    %v6538 = vpop.permute.xlu0 %6537
    %6539 = vrot.lane.b32.xlu0 %v6487, 84
    %v6540 = vpop.permute.xlu0 %6539
    %6541 = vrot.lane.b32.xlu0 %v6490, 84
    %v6542 = vpop.permute.xlu0 %6541
    %6543 = vrot.lane.b32.xlu0 %v6493, 84
    %v6544 = vpop.permute.xlu0 %6543
    %6545 = vrot.lane.b32.xlu0 %v6496, 84
    %v6546 = vpop.permute.xlu0 %6545
    %6547 = vrot.lane.b32.xlu0 %v6499, 84
    %v6548 = vpop.permute.xlu0 %6547
    %6549 = vrot.lane.b32.xlu0 %v6502, 84
    %v6550 = vpop.permute.xlu0 %6549
    %vm6575 = vcmask 847520
    %6576 = vst.msk [vmem:[#allocation3 + $0x8] sm:$0xf] %vm6575, %v6504
    %6577 = vst.msk [vmem:[#allocation3 + $0x18] sm:$0xf] %vm6575, %v6506
    %6578 = vst.msk [vmem:[#allocation3 + $0x28] sm:$0xf] %vm6575, %v6508
    %6579 = vst.msk [vmem:[#allocation3 + $0x38] sm:$0xf] %vm6575, %v6510
    %6580 = vst.msk [vmem:[#allocation3 + $0x48] sm:$0xf] %vm6575, %v6512
    %6581 = vst.msk [vmem:[#allocation3 + $0x58] sm:$0xf] %vm6575, %v6514
    %6582 = vst.msk [vmem:[#allocation3 + $0x68] sm:$0xf] %vm6575, %v6516
    %6583 = vst.msk [vmem:[#allocation3 + $0x78] sm:$0xf] %vm6575, %v6518
    %6584 = vst.msk [vmem:[#allocation3 + $0x88] sm:$0xf] %vm6575, %v6520
    %6585 = vst.msk [vmem:[#allocation3 + $0x98] sm:$0xf] %vm6575, %v6522
    %6586 = vst.msk [vmem:[#allocation3 + $0xa8] sm:$0xf] %vm6575, %v6524
    %6587 = vst.msk [vmem:[#allocation3 + $0xb8] sm:$0xf] %vm6575, %v6526
    %6588 = vst.msk [vmem:[#allocation3 + $0xc8] sm:$0xf] %vm6575, %v6528
    %6589 = vst.msk [vmem:[#allocation3 + $0xd8] sm:$0xf] %vm6575, %v6530
    %6590 = vst.msk [vmem:[#allocation3 + $0xe8] sm:$0xf] %vm6575, %v6532
    %6591 = vst.msk [vmem:[#allocation3 + $0xf8] sm:$0xf] %vm6575, %v6534
    %6592 = vst.msk [vmem:[#allocation3 + $0x108] sm:$0xf] %vm6575, %v6536
    %6593 = vst.msk [vmem:[#allocation3 + $0x118] sm:$0xf] %vm6575, %v6538
    %6594 = vst.msk [vmem:[#allocation3 + $0x128] sm:$0xf] %vm6575, %v6540
    %6595 = vst.msk [vmem:[#allocation3 + $0x138] sm:$0xf] %vm6575, %v6542
    %6596 = vst.msk [vmem:[#allocation3 + $0x148] sm:$0xf] %vm6575, %v6544
    %6597 = vst.msk [vmem:[#allocation3 + $0x158] sm:$0xf] %vm6575, %v6546
    %6598 = vst.msk [vmem:[#allocation3 + $0x168] sm:$0xf] %vm6575, %v6548
    %6599 = vst.msk [vmem:[#allocation3 + $0x178] sm:$0xf] %vm6575, %v6550
    %v6600 = vld [vmem:[#allocation2 + $0x10] sm:$0x8]
    %v6601 = vld [vmem:[#allocation2 + $0x14] sm:$0xf]
    %v6602 = vld [vmem:[#allocation2 + $0x18] sm:$0xf]
    %v6603 = vld [vmem:[#allocation2 + $0x1c] sm:$0xf]
    %v6604 = vld [vmem:[#allocation2 + $0x20] sm:$0xf]
    %v6605 = vld [vmem:[#allocation2 + $0x24] sm:$0xf]
    %v6606 = vld [vmem:[#allocation2 + $0x28] sm:$0xf]
    %v6607 = vld [vmem:[#allocation2 + $0x2c] sm:$0xf]
    %v6608 = vld [vmem:[#allocation2 + $0x30] sm:$0xf]
    %v6609 = vld [vmem:[#allocation2 + $0x34] sm:$0xf]
    %v6610 = vld [vmem:[#allocation2 + $0x38] sm:$0xf]
    %v6611 = vld [vmem:[#allocation2 + $0x3c] sm:$0xf]
    %v6612 = vld [vmem:[#allocation2 + $0x40] sm:$0xf]
    %v6613 = vld [vmem:[#allocation2 + $0x5c] sm:$0x8]
    %v6614 = vld [vmem:[#allocation2 + $0x60] sm:$0xf]
    %v6615 = vld [vmem:[#allocation2 + $0x64] sm:$0xf]
    %v6616 = vld [vmem:[#allocation2 + $0x68] sm:$0xf]
    %v6617 = vld [vmem:[#allocation2 + $0x6c] sm:$0xf]
    %v6618 = vld [vmem:[#allocation2 + $0x70] sm:$0xf]
    %v6619 = vld [vmem:[#allocation2 + $0x74] sm:$0xf]
    %v6620 = vld [vmem:[#allocation2 + $0x78] sm:$0xf]
    %v6621 = vld [vmem:[#allocation2 + $0x7c] sm:$0xf]
    %v6622 = vld [vmem:[#allocation2 + $0x80] sm:$0xf]
    %v6623 = vld [vmem:[#allocation2 + $0x84] sm:$0xf]
    %v6624 = vld [vmem:[#allocation2 + $0x88] sm:$0xf]
    %v6625 = vld [vmem:[#allocation2 + $0x8c] sm:$0xf]
    %v6627 = vshrl.u32 %v6600, 16
    %v6629 = vrot.slane %v6627, 7
    %v6630 = vrot.slane %v6629, 4
    %v6632 = vshrl.u32 %v6601, 16
    %v6634 = vrot.slane %v6632, 7
    %v6635 = vshll.u32 %v6601, 16
    %v6637 = vor.u32 %v6634, %v6635
    %v6638 = vsel %vm3916, %v6630, %v6637
    %v6639 = vrot.slane %v6634, 4
    %v6641 = vshrl.u32 %v6602, 16
    %v6643 = vrot.slane %v6641, 7
    %v6644 = vshll.u32 %v6602, 16
    %v6646 = vor.u32 %v6643, %v6644
    %v6647 = vsel %vm3916, %v6639, %v6646
    %v6648 = vrot.slane %v6643, 4
    %v6650 = vshrl.u32 %v6603, 16
    %v6652 = vrot.slane %v6650, 7
    %v6653 = vshll.u32 %v6603, 16
    %v6655 = vor.u32 %v6652, %v6653
    %v6656 = vsel %vm3916, %v6648, %v6655
    %v6657 = vrot.slane %v6652, 4
    %v6659 = vshrl.u32 %v6604, 16
    %v6661 = vrot.slane %v6659, 7
    %v6662 = vshll.u32 %v6604, 16
    %v6664 = vor.u32 %v6661, %v6662
    %v6665 = vsel %vm3916, %v6657, %v6664
    %v6666 = vrot.slane %v6661, 4
    %v6668 = vshrl.u32 %v6605, 16
    %v6670 = vrot.slane %v6668, 7
    %v6671 = vshll.u32 %v6605, 16
    %v6673 = vor.u32 %v6670, %v6671
    %v6674 = vsel %vm3916, %v6666, %v6673
    %v6675 = vrot.slane %v6670, 4
    %v6677 = vshrl.u32 %v6606, 16
    %v6679 = vrot.slane %v6677, 7
    %v6680 = vshll.u32 %v6606, 16
    %v6682 = vor.u32 %v6679, %v6680
    %v6683 = vsel %vm3916, %v6675, %v6682
    %v6684 = vrot.slane %v6679, 4
    %v6686 = vshrl.u32 %v6607, 16
    %v6688 = vrot.slane %v6686, 7
    %v6689 = vshll.u32 %v6607, 16
    %v6691 = vor.u32 %v6688, %v6689
    %v6692 = vsel %vm3916, %v6684, %v6691
    %v6693 = vrot.slane %v6688, 4
    %v6695 = vshrl.u32 %v6608, 16
    %v6697 = vrot.slane %v6695, 7
    %v6698 = vshll.u32 %v6608, 16
    %v6700 = vor.u32 %v6697, %v6698
    %v6701 = vsel %vm3916, %v6693, %v6700
    %v6702 = vrot.slane %v6697, 4
    %v6704 = vshrl.u32 %v6609, 16
    %v6706 = vrot.slane %v6704, 7
    %v6707 = vshll.u32 %v6609, 16
    %v6709 = vor.u32 %v6706, %v6707
    %v6710 = vsel %vm3916, %v6702, %v6709
    %v6711 = vrot.slane %v6706, 4
    %v6713 = vshrl.u32 %v6610, 16
    %v6715 = vrot.slane %v6713, 7
    %v6716 = vshll.u32 %v6610, 16
    %v6718 = vor.u32 %v6715, %v6716
    %v6719 = vsel %vm3916, %v6711, %v6718
    %v6720 = vrot.slane %v6715, 4
    %v6722 = vshrl.u32 %v6611, 16
    %v6724 = vrot.slane %v6722, 7
    %v6725 = vshll.u32 %v6611, 16
    %v6727 = vor.u32 %v6724, %v6725
    %v6728 = vsel %vm3916, %v6720, %v6727
    %v6729 = vrot.slane %v6724, 4
    %v6731 = vshrl.u32 %v6612, 16
    %v6733 = vrot.slane %v6731, 7
    %v6734 = vshll.u32 %v6612, 16
    %v6736 = vor.u32 %v6733, %v6734
    %v6737 = vsel %vm3916, %v6729, %v6736
    %v6739 = vshrl.u32 %v6613, 16
    %v6741 = vrot.slane %v6739, 7
    %v6742 = vrot.slane %v6741, 4
    %v6744 = vshrl.u32 %v6614, 16
    %v6746 = vrot.slane %v6744, 7
    %v6747 = vshll.u32 %v6614, 16
    %v6749 = vor.u32 %v6746, %v6747
    %v6750 = vsel %vm3916, %v6742, %v6749
    %v6751 = vrot.slane %v6746, 4
    %v6753 = vshrl.u32 %v6615, 16
    %v6755 = vrot.slane %v6753, 7
    %v6756 = vshll.u32 %v6615, 16
    %v6758 = vor.u32 %v6755, %v6756
    %v6759 = vsel %vm3916, %v6751, %v6758
    %v6760 = vrot.slane %v6755, 4
    %v6762 = vshrl.u32 %v6616, 16
    %v6764 = vrot.slane %v6762, 7
    %v6765 = vshll.u32 %v6616, 16
    %v6767 = vor.u32 %v6764, %v6765
    %v6768 = vsel %vm3916, %v6760, %v6767
    %v6769 = vrot.slane %v6764, 4
    %v6771 = vshrl.u32 %v6617, 16
    %v6773 = vrot.slane %v6771, 7
    %v6774 = vshll.u32 %v6617, 16
    %v6776 = vor.u32 %v6773, %v6774
    %v6777 = vsel %vm3916, %v6769, %v6776
    %v6778 = vrot.slane %v6773, 4
    %v6780 = vshrl.u32 %v6618, 16
    %v6782 = vrot.slane %v6780, 7
    %v6783 = vshll.u32 %v6618, 16
    %v6785 = vor.u32 %v6782, %v6783
    %v6786 = vsel %vm3916, %v6778, %v6785
    %v6787 = vrot.slane %v6782, 4
    %v6789 = vshrl.u32 %v6619, 16
    %v6791 = vrot.slane %v6789, 7
    %v6792 = vshll.u32 %v6619, 16
    %v6794 = vor.u32 %v6791, %v6792
    %v6795 = vsel %vm3916, %v6787, %v6794
    %v6796 = vrot.slane %v6791, 4
    %v6798 = vshrl.u32 %v6620, 16
    %v6800 = vrot.slane %v6798, 7
    %v6801 = vshll.u32 %v6620, 16
    %v6803 = vor.u32 %v6800, %v6801
    %v6804 = vsel %vm3916, %v6796, %v6803
    %v6805 = vrot.slane %v6800, 4
    %v6807 = vshrl.u32 %v6621, 16
    %v6809 = vrot.slane %v6807, 7
    %v6810 = vshll.u32 %v6621, 16
    %v6812 = vor.u32 %v6809, %v6810
    %v6813 = vsel %vm3916, %v6805, %v6812
    %v6814 = vrot.slane %v6809, 4
    %v6816 = vshrl.u32 %v6622, 16
    %v6818 = vrot.slane %v6816, 7
    %v6819 = vshll.u32 %v6622, 16
    %v6821 = vor.u32 %v6818, %v6819
    %v6822 = vsel %vm3916, %v6814, %v6821
    %v6823 = vrot.slane %v6818, 4
    %v6825 = vshrl.u32 %v6623, 16
    %v6827 = vrot.slane %v6825, 7
    %v6828 = vshll.u32 %v6623, 16
    %v6830 = vor.u32 %v6827, %v6828
    %v6831 = vsel %vm3916, %v6823, %v6830
    %v6832 = vrot.slane %v6827, 4
    %v6834 = vshrl.u32 %v6624, 16
    %v6836 = vrot.slane %v6834, 7
    %v6837 = vshll.u32 %v6624, 16
    %v6839 = vor.u32 %v6836, %v6837
    %v6840 = vsel %vm3916, %v6832, %v6839
    %v6841 = vrot.slane %v6836, 4
    %v6843 = vshrl.u32 %v6625, 16
    %v6845 = vrot.slane %v6843, 7
    %v6846 = vshll.u32 %v6625, 16
    %v6848 = vor.u32 %v6845, %v6846
    %v6849 = vsel %vm3916, %v6841, %v6848
    %6850 = vrot.lane.b32.xlu0 %v6638, 104
    %v6851 = vpop.permute.xlu0 %6850
    %6852 = vrot.lane.b32.xlu0 %v6647, 104
    %v6853 = vpop.permute.xlu0 %6852
    %6854 = vrot.lane.b32.xlu0 %v6656, 104
    %v6855 = vpop.permute.xlu0 %6854
    %6856 = vrot.lane.b32.xlu0 %v6665, 104
    %v6857 = vpop.permute.xlu0 %6856
    %6858 = vrot.lane.b32.xlu0 %v6674, 104
    %v6859 = vpop.permute.xlu0 %6858
    %6860 = vrot.lane.b32.xlu0 %v6683, 104
    %v6861 = vpop.permute.xlu0 %6860
    %6862 = vrot.lane.b32.xlu0 %v6692, 104
    %v6863 = vpop.permute.xlu0 %6862
    %6864 = vrot.lane.b32.xlu0 %v6701, 104
    %v6865 = vpop.permute.xlu0 %6864
    %6866 = vrot.lane.b32.xlu0 %v6710, 104
    %v6867 = vpop.permute.xlu0 %6866
    %6868 = vrot.lane.b32.xlu0 %v6719, 104
    %v6869 = vpop.permute.xlu0 %6868
    %6870 = vrot.lane.b32.xlu0 %v6728, 104
    %v6871 = vpop.permute.xlu0 %6870
    %6872 = vrot.lane.b32.xlu0 %v6737, 104
    %v6873 = vpop.permute.xlu0 %6872
    %6874 = vrot.lane.b32.xlu0 %v6750, 104
    %v6875 = vpop.permute.xlu0 %6874
    %6876 = vrot.lane.b32.xlu0 %v6759, 104
    %v6877 = vpop.permute.xlu0 %6876
    %6878 = vrot.lane.b32.xlu0 %v6768, 104
    %v6879 = vpop.permute.xlu0 %6878
    %6880 = vrot.lane.b32.xlu0 %v6777, 104
    %v6881 = vpop.permute.xlu0 %6880
    %6882 = vrot.lane.b32.xlu0 %v6786, 104
    %v6883 = vpop.permute.xlu0 %6882
    %6884 = vrot.lane.b32.xlu0 %v6795, 104
    %v6885 = vpop.permute.xlu0 %6884
    %6886 = vrot.lane.b32.xlu0 %v6804, 104
    %v6887 = vpop.permute.xlu0 %6886
    %6888 = vrot.lane.b32.xlu0 %v6813, 104
    %v6889 = vpop.permute.xlu0 %6888
    %6890 = vrot.lane.b32.xlu0 %v6822, 104
    %v6891 = vpop.permute.xlu0 %6890
    %6892 = vrot.lane.b32.xlu0 %v6831, 104
    %v6893 = vpop.permute.xlu0 %6892
    %6894 = vrot.lane.b32.xlu0 %v6840, 104
    %v6895 = vpop.permute.xlu0 %6894
    %6896 = vrot.lane.b32.xlu0 %v6849, 104
    %v6897 = vpop.permute.xlu0 %6896
    %vm6922 = vcmask 1011520
    %6923 = vst.msk [vmem:[#allocation3 + $0x8] sm:$0xf] %vm6922, %v6851
    %6924 = vst.msk [vmem:[#allocation3 + $0x18] sm:$0xf] %vm6922, %v6853
    %6925 = vst.msk [vmem:[#allocation3 + $0x28] sm:$0xf] %vm6922, %v6855
    %6926 = vst.msk [vmem:[#allocation3 + $0x38] sm:$0xf] %vm6922, %v6857
    %6927 = vst.msk [vmem:[#allocation3 + $0x48] sm:$0xf] %vm6922, %v6859
    %6928 = vst.msk [vmem:[#allocation3 + $0x58] sm:$0xf] %vm6922, %v6861
    %6929 = vst.msk [vmem:[#allocation3 + $0x68] sm:$0xf] %vm6922, %v6863
    %6930 = vst.msk [vmem:[#allocation3 + $0x78] sm:$0xf] %vm6922, %v6865
    %6931 = vst.msk [vmem:[#allocation3 + $0x88] sm:$0xf] %vm6922, %v6867
    %6932 = vst.msk [vmem:[#allocation3 + $0x98] sm:$0xf] %vm6922, %v6869
    %6933 = vst.msk [vmem:[#allocation3 + $0xa8] sm:$0xf] %vm6922, %v6871
    %6934 = vst.msk [vmem:[#allocation3 + $0xb8] sm:$0xf] %vm6922, %v6873
    %6935 = vst.msk [vmem:[#allocation3 + $0xc8] sm:$0xf] %vm6922, %v6875
    %6936 = vst.msk [vmem:[#allocation3 + $0xd8] sm:$0xf] %vm6922, %v6877
    %6937 = vst.msk [vmem:[#allocation3 + $0xe8] sm:$0xf] %vm6922, %v6879
    %6938 = vst.msk [vmem:[#allocation3 + $0xf8] sm:$0xf] %vm6922, %v6881
    %6939 = vst.msk [vmem:[#allocation3 + $0x108] sm:$0xf] %vm6922, %v6883
    %6940 = vst.msk [vmem:[#allocation3 + $0x118] sm:$0xf] %vm6922, %v6885
    %6941 = vst.msk [vmem:[#allocation3 + $0x128] sm:$0xf] %vm6922, %v6887
    %6942 = vst.msk [vmem:[#allocation3 + $0x138] sm:$0xf] %vm6922, %v6889
    %6943 = vst.msk [vmem:[#allocation3 + $0x148] sm:$0xf] %vm6922, %v6891
    %6944 = vst.msk [vmem:[#allocation3 + $0x158] sm:$0xf] %vm6922, %v6893
    %6945 = vst.msk [vmem:[#allocation3 + $0x168] sm:$0xf] %vm6922, %v6895
    %6946 = vst.msk [vmem:[#allocation3 + $0x178] sm:$0xf] %vm6922, %v6897
    %v6947 = vld [vmem:[#allocation2 + $0x14] sm:$0xf]
    %v6948 = vld [vmem:[#allocation2 + $0x18] sm:$0xf]
    %v6949 = vld [vmem:[#allocation2 + $0x1c] sm:$0xf]
    %v6950 = vld [vmem:[#allocation2 + $0x20] sm:$0xf]
    %v6951 = vld [vmem:[#allocation2 + $0x24] sm:$0xf]
    %v6952 = vld [vmem:[#allocation2 + $0x28] sm:$0xf]
    %v6953 = vld [vmem:[#allocation2 + $0x2c] sm:$0xf]
    %v6954 = vld [vmem:[#allocation2 + $0x30] sm:$0xf]
    %v6955 = vld [vmem:[#allocation2 + $0x34] sm:$0xf]
    %v6956 = vld [vmem:[#allocation2 + $0x38] sm:$0xf]
    %v6957 = vld [vmem:[#allocation2 + $0x3c] sm:$0xf]
    %v6958 = vld [vmem:[#allocation2 + $0x40] sm:$0xf]
    %v6959 = vld [vmem:[#allocation2 + $0x60] sm:$0xf]
    %v6960 = vld [vmem:[#allocation2 + $0x64] sm:$0xf]
    %v6961 = vld [vmem:[#allocation2 + $0x68] sm:$0xf]
    %v6962 = vld [vmem:[#allocation2 + $0x6c] sm:$0xf]
    %v6963 = vld [vmem:[#allocation2 + $0x70] sm:$0xf]
    %v6964 = vld [vmem:[#allocation2 + $0x74] sm:$0xf]
    %v6965 = vld [vmem:[#allocation2 + $0x78] sm:$0xf]
    %v6966 = vld [vmem:[#allocation2 + $0x7c] sm:$0xf]
    %v6967 = vld [vmem:[#allocation2 + $0x80] sm:$0xf]
    %v6968 = vld [vmem:[#allocation2 + $0x84] sm:$0xf]
    %v6969 = vld [vmem:[#allocation2 + $0x88] sm:$0xf]
    %v6970 = vld [vmem:[#allocation2 + $0x8c] sm:$0xf]
    %6995 = vrot.lane.b32.xlu0 %v6947, 124
    %v6996 = vpop.permute.xlu0 %6995
    %6997 = vrot.lane.b32.xlu0 %v6948, 124
    %v6998 = vpop.permute.xlu0 %6997
    %6999 = vrot.lane.b32.xlu0 %v6949, 124
    %v7000 = vpop.permute.xlu0 %6999
    %7001 = vrot.lane.b32.xlu0 %v6950, 124
    %v7002 = vpop.permute.xlu0 %7001
    %7003 = vrot.lane.b32.xlu0 %v6951, 124
    %v7004 = vpop.permute.xlu0 %7003
    %7005 = vrot.lane.b32.xlu0 %v6952, 124
    %v7006 = vpop.permute.xlu0 %7005
    %7007 = vrot.lane.b32.xlu0 %v6953, 124
    %v7008 = vpop.permute.xlu0 %7007
    %7009 = vrot.lane.b32.xlu0 %v6954, 124
    %v7010 = vpop.permute.xlu0 %7009
    %7011 = vrot.lane.b32.xlu0 %v6955, 124
    %v7012 = vpop.permute.xlu0 %7011
    %7013 = vrot.lane.b32.xlu0 %v6956, 124
    %v7014 = vpop.permute.xlu0 %7013
    %7015 = vrot.lane.b32.xlu0 %v6957, 124
    %v7016 = vpop.permute.xlu0 %7015
    %7017 = vrot.lane.b32.xlu0 %v6958, 124
    %v7018 = vpop.permute.xlu0 %7017
    %7019 = vrot.lane.b32.xlu0 %v6959, 124
    %v7020 = vpop.permute.xlu0 %7019
    %7021 = vrot.lane.b32.xlu0 %v6960, 124
    %v7022 = vpop.permute.xlu0 %7021
    %7023 = vrot.lane.b32.xlu0 %v6961, 124
    %v7024 = vpop.permute.xlu0 %7023
    %7025 = vrot.lane.b32.xlu0 %v6962, 124
    %v7026 = vpop.permute.xlu0 %7025
    %7027 = vrot.lane.b32.xlu0 %v6963, 124
    %v7028 = vpop.permute.xlu0 %7027
    %7029 = vrot.lane.b32.xlu0 %v6964, 124
    %v7030 = vpop.permute.xlu0 %7029
    %7031 = vrot.lane.b32.xlu0 %v6965, 124
    %v7032 = vpop.permute.xlu0 %7031
    %7033 = vrot.lane.b32.xlu0 %v6966, 124
    %v7034 = vpop.permute.xlu0 %7033
    %7035 = vrot.lane.b32.xlu0 %v6967, 124
    %v7036 = vpop.permute.xlu0 %7035
    %7037 = vrot.lane.b32.xlu0 %v6968, 124
    %v7038 = vpop.permute.xlu0 %7037
    %7039 = vrot.lane.b32.xlu0 %v6969, 124
    %v7040 = vpop.permute.xlu0 %7039
    %7041 = vrot.lane.b32.xlu0 %v6970, 124
    %v7042 = vpop.permute.xlu0 %7041
    %v7043 = vrot.slane %v6996, 4
    %v7044 = vrot.slane %v6998, 4
    %v7045 = vrot.slane %v7000, 4
    %v7046 = vrot.slane %v7002, 4
    %v7047 = vrot.slane %v7004, 4
    %v7048 = vrot.slane %v7006, 4
    %v7049 = vrot.slane %v7008, 4
    %v7050 = vrot.slane %v7010, 4
    %v7051 = vrot.slane %v7012, 4
    %v7052 = vrot.slane %v7014, 4
    %v7053 = vrot.slane %v7016, 4
    %v7054 = vrot.slane %v7018, 4
    %v7055 = vrot.slane %v7020, 4
    %v7056 = vrot.slane %v7022, 4
    %v7057 = vrot.slane %v7024, 4
    %v7058 = vrot.slane %v7026, 4
    %v7059 = vrot.slane %v7028, 4
    %v7060 = vrot.slane %v7030, 4
    %v7061 = vrot.slane %v7032, 4
    %v7062 = vrot.slane %v7034, 4
    %v7063 = vrot.slane %v7036, 4
    %v7064 = vrot.slane %v7038, 4
    %v7065 = vrot.slane %v7040, 4
    %v7066 = vrot.slane %v7042, 4
    %vm7067 = vcmask 1014784
    %v7068 = vsel %vm7067, %v7043, %v6996
    %v7069 = vsel %vm7067, %v7044, %v6998
    %v7070 = vsel %vm7067, %v7045, %v7000
    %v7071 = vsel %vm7067, %v7046, %v7002
    %v7072 = vsel %vm7067, %v7047, %v7004
    %v7073 = vsel %vm7067, %v7048, %v7006
    %v7074 = vsel %vm7067, %v7049, %v7008
    %v7075 = vsel %vm7067, %v7050, %v7010
    %v7076 = vsel %vm7067, %v7051, %v7012
    %v7077 = vsel %vm7067, %v7052, %v7014
    %v7078 = vsel %vm7067, %v7053, %v7016
    %v7079 = vsel %vm7067, %v7054, %v7018
    %v7080 = vsel %vm7067, %v7055, %v7020
    %v7081 = vsel %vm7067, %v7056, %v7022
    %v7082 = vsel %vm7067, %v7057, %v7024
    %v7083 = vsel %vm7067, %v7058, %v7026
    %v7084 = vsel %vm7067, %v7059, %v7028
    %v7085 = vsel %vm7067, %v7060, %v7030
    %v7086 = vsel %vm7067, %v7061, %v7032
    %v7087 = vsel %vm7067, %v7062, %v7034
    %v7088 = vsel %vm7067, %v7063, %v7036
    %v7089 = vsel %vm7067, %v7064, %v7038
    %v7090 = vsel %vm7067, %v7065, %v7040
    %v7091 = vsel %vm7067, %v7066, %v7042
    %vm7116 = vcmask 1044448
    %vm7117 = vcmask 130052
    %vm7118 = vmor %vm7117, %vm7116
    %7119 = vst.msk [vmem:[#allocation3 + $0x8] sm:$0xff] %vm7118, %v7068
    %7120 = vst.msk [vmem:[#allocation3 + $0x18] sm:$0xff] %vm7118, %v7069
    %7121 = vst.msk [vmem:[#allocation3 + $0x28] sm:$0xff] %vm7118, %v7070
    %7122 = vst.msk [vmem:[#allocation3 + $0x38] sm:$0xff] %vm7118, %v7071
    %7123 = vst.msk [vmem:[#allocation3 + $0x48] sm:$0xff] %vm7118, %v7072
    %7124 = vst.msk [vmem:[#allocation3 + $0x58] sm:$0xff] %vm7118, %v7073
    %7125 = vst.msk [vmem:[#allocation3 + $0x68] sm:$0xff] %vm7118, %v7074
    %7126 = vst.msk [vmem:[#allocation3 + $0x78] sm:$0xff] %vm7118, %v7075
    %7127 = vst.msk [vmem:[#allocation3 + $0x88] sm:$0xff] %vm7118, %v7076
    %7128 = vst.msk [vmem:[#allocation3 + $0x98] sm:$0xff] %vm7118, %v7077
    %7129 = vst.msk [vmem:[#allocation3 + $0xa8] sm:$0xff] %vm7118, %v7078
    %7130 = vst.msk [vmem:[#allocation3 + $0xb8] sm:$0xff] %vm7118, %v7079
    %7131 = vst.msk [vmem:[#allocation3 + $0xc8] sm:$0xff] %vm7118, %v7080
    %7132 = vst.msk [vmem:[#allocation3 + $0xd8] sm:$0xff] %vm7118, %v7081
    %7133 = vst.msk [vmem:[#allocation3 + $0xe8] sm:$0xff] %vm7118, %v7082
    %7134 = vst.msk [vmem:[#allocation3 + $0xf8] sm:$0xff] %vm7118, %v7083
    %7135 = vst.msk [vmem:[#allocation3 + $0x108] sm:$0xff] %vm7118, %v7084
    %7136 = vst.msk [vmem:[#allocation3 + $0x118] sm:$0xff] %vm7118, %v7085
    %7137 = vst.msk [vmem:[#allocation3 + $0x128] sm:$0xff] %vm7118, %v7086
    %7138 = vst.msk [vmem:[#allocation3 + $0x138] sm:$0xff] %vm7118, %v7087
    %7139 = vst.msk [vmem:[#allocation3 + $0x148] sm:$0xff] %vm7118, %v7088
    %7140 = vst.msk [vmem:[#allocation3 + $0x158] sm:$0xff] %vm7118, %v7089
    %7141 = vst.msk [vmem:[#allocation3 + $0x168] sm:$0xff] %vm7118, %v7090
    %7142 = vst.msk [vmem:[#allocation3 + $0x178] sm:$0xff] %vm7118, %v7091
    %v7143 = vld [vmem:[#allocation2 + $0x18] sm:$0xf]
    %v7144 = vld [vmem:[#allocation2 + $0x1c] sm:$0xf]
    %v7145 = vld [vmem:[#allocation2 + $0x20] sm:$0xf]
    %v7146 = vld [vmem:[#allocation2 + $0x24] sm:$0xf]
    %v7147 = vld [vmem:[#allocation2 + $0x28] sm:$0xf]
    %v7148 = vld [vmem:[#allocation2 + $0x2c] sm:$0xf]
    %v7149 = vld [vmem:[#allocation2 + $0x30] sm:$0xf]
    %v7150 = vld [vmem:[#allocation2 + $0x34] sm:$0xf]
    %v7151 = vld [vmem:[#allocation2 + $0x38] sm:$0xf]
    %v7152 = vld [vmem:[#allocation2 + $0x3c] sm:$0xf]
    %v7153 = vld [vmem:[#allocation2 + $0x40] sm:$0xf]
    %v7154 = vld [vmem:[#allocation2 + $0x44] sm:$0xf]
    %v7155 = vld [vmem:[#allocation2 + $0x64] sm:$0xf]
    %v7156 = vld [vmem:[#allocation2 + $0x68] sm:$0xf]
    %v7157 = vld [vmem:[#allocation2 + $0x6c] sm:$0xf]
    %v7158 = vld [vmem:[#allocation2 + $0x70] sm:$0xf]
    %v7159 = vld [vmem:[#allocation2 + $0x74] sm:$0xf]
    %v7160 = vld [vmem:[#allocation2 + $0x78] sm:$0xf]
    %v7161 = vld [vmem:[#allocation2 + $0x7c] sm:$0xf]
    %v7162 = vld [vmem:[#allocation2 + $0x80] sm:$0xf]
    %v7163 = vld [vmem:[#allocation2 + $0x84] sm:$0xf]
    %v7164 = vld [vmem:[#allocation2 + $0x88] sm:$0xf]
    %v7165 = vld [vmem:[#allocation2 + $0x8c] sm:$0xf]
    %v7166 = vld [vmem:[#allocation2 + $0x90] sm:$0xf]
    %7191 = vrot.lane.b32.xlu0 %v7143, 16
    %v7192 = vpop.permute.xlu0 %7191
    %7193 = vrot.lane.b32.xlu0 %v7144, 16
    %v7194 = vpop.permute.xlu0 %7193
    %7195 = vrot.lane.b32.xlu0 %v7145, 16
    %v7196 = vpop.permute.xlu0 %7195
    %7197 = vrot.lane.b32.xlu0 %v7146, 16
    %v7198 = vpop.permute.xlu0 %7197
    %7199 = vrot.lane.b32.xlu0 %v7147, 16
    %v7200 = vpop.permute.xlu0 %7199
    %7201 = vrot.lane.b32.xlu0 %v7148, 16
    %v7202 = vpop.permute.xlu0 %7201
    %7203 = vrot.lane.b32.xlu0 %v7149, 16
    %v7204 = vpop.permute.xlu0 %7203
    %7205 = vrot.lane.b32.xlu0 %v7150, 16
    %v7206 = vpop.permute.xlu0 %7205
    %7207 = vrot.lane.b32.xlu0 %v7151, 16
    %v7208 = vpop.permute.xlu0 %7207
    %7209 = vrot.lane.b32.xlu0 %v7152, 16
    %v7210 = vpop.permute.xlu0 %7209
    %7211 = vrot.lane.b32.xlu0 %v7153, 16
    %v7212 = vpop.permute.xlu0 %7211
    %7213 = vrot.lane.b32.xlu0 %v7154, 16
    %v7214 = vpop.permute.xlu0 %7213
    %7215 = vrot.lane.b32.xlu0 %v7155, 16
    %v7216 = vpop.permute.xlu0 %7215
    %7217 = vrot.lane.b32.xlu0 %v7156, 16
    %v7218 = vpop.permute.xlu0 %7217
    %7219 = vrot.lane.b32.xlu0 %v7157, 16
    %v7220 = vpop.permute.xlu0 %7219
    %7221 = vrot.lane.b32.xlu0 %v7158, 16
    %v7222 = vpop.permute.xlu0 %7221
    %7223 = vrot.lane.b32.xlu0 %v7159, 16
    %v7224 = vpop.permute.xlu0 %7223
    %7225 = vrot.lane.b32.xlu0 %v7160, 16
    %v7226 = vpop.permute.xlu0 %7225
    %7227 = vrot.lane.b32.xlu0 %v7161, 16
    %v7228 = vpop.permute.xlu0 %7227
    %7229 = vrot.lane.b32.xlu0 %v7162, 16
    %v7230 = vpop.permute.xlu0 %7229
    %7231 = vrot.lane.b32.xlu0 %v7163, 16
    %v7232 = vpop.permute.xlu0 %7231
    %7233 = vrot.lane.b32.xlu0 %v7164, 16
    %v7234 = vpop.permute.xlu0 %7233
    %7235 = vrot.lane.b32.xlu0 %v7165, 16
    %v7236 = vpop.permute.xlu0 %7235
    %7237 = vrot.lane.b32.xlu0 %v7166, 16
    %v7238 = vpop.permute.xlu0 %7237
    %vm7263 = vcmask 289920
    %7264 = vst.msk [vmem:[#allocation3 + $0xc] sm:$0xf] %vm7263, %v7192
    %7265 = vst.msk [vmem:[#allocation3 + $0x1c] sm:$0xf] %vm7263, %v7194
    %7266 = vst.msk [vmem:[#allocation3 + $0x2c] sm:$0xf] %vm7263, %v7196
    %7267 = vst.msk [vmem:[#allocation3 + $0x3c] sm:$0xf] %vm7263, %v7198
    %7268 = vst.msk [vmem:[#allocation3 + $0x4c] sm:$0xf] %vm7263, %v7200
    %7269 = vst.msk [vmem:[#allocation3 + $0x5c] sm:$0xf] %vm7263, %v7202
    %7270 = vst.msk [vmem:[#allocation3 + $0x6c] sm:$0xf] %vm7263, %v7204
    %7271 = vst.msk [vmem:[#allocation3 + $0x7c] sm:$0xf] %vm7263, %v7206
    %7272 = vst.msk [vmem:[#allocation3 + $0x8c] sm:$0xf] %vm7263, %v7208
    %7273 = vst.msk [vmem:[#allocation3 + $0x9c] sm:$0xf] %vm7263, %v7210
    %7274 = vst.msk [vmem:[#allocation3 + $0xac] sm:$0xf] %vm7263, %v7212
    %7275 = vst.msk [vmem:[#allocation3 + $0xbc] sm:$0xf] %vm7263, %v7214
    %7276 = vst.msk [vmem:[#allocation3 + $0xcc] sm:$0xf] %vm7263, %v7216
    %7277 = vst.msk [vmem:[#allocation3 + $0xdc] sm:$0xf] %vm7263, %v7218
    %7278 = vst.msk [vmem:[#allocation3 + $0xec] sm:$0xf] %vm7263, %v7220
    %7279 = vst.msk [vmem:[#allocation3 + $0xfc] sm:$0xf] %vm7263, %v7222
    %7280 = vst.msk [vmem:[#allocation3 + $0x10c] sm:$0xf] %vm7263, %v7224
    %7281 = vst.msk [vmem:[#allocation3 + $0x11c] sm:$0xf] %vm7263, %v7226
    %7282 = vst.msk [vmem:[#allocation3 + $0x12c] sm:$0xf] %vm7263, %v7228
    %7283 = vst.msk [vmem:[#allocation3 + $0x13c] sm:$0xf] %vm7263, %v7230
    %7284 = vst.msk [vmem:[#allocation3 + $0x14c] sm:$0xf] %vm7263, %v7232
    %7285 = vst.msk [vmem:[#allocation3 + $0x15c] sm:$0xf] %vm7263, %v7234
    %7286 = vst.msk [vmem:[#allocation3 + $0x16c] sm:$0xf] %vm7263, %v7236
    %7287 = vst.msk [vmem:[#allocation3 + $0x17c] sm:$0xf] %vm7263, %v7238
    %v7288 = vld [vmem:[#allocation2 + $0x18] sm:$0xf]
    %v7289 = vld [vmem:[#allocation2 + $0x1c] sm:$0xf]
    %v7290 = vld [vmem:[#allocation2 + $0x20] sm:$0xf]
    %v7291 = vld [vmem:[#allocation2 + $0x24] sm:$0xf]
    %v7292 = vld [vmem:[#allocation2 + $0x28] sm:$0xf]
    %v7293 = vld [vmem:[#allocation2 + $0x2c] sm:$0xf]
    %v7294 = vld [vmem:[#allocation2 + $0x30] sm:$0xf]
    %v7295 = vld [vmem:[#allocation2 + $0x34] sm:$0xf]
    %v7296 = vld [vmem:[#allocation2 + $0x38] sm:$0xf]
    %v7297 = vld [vmem:[#allocation2 + $0x3c] sm:$0xf]
    %v7298 = vld [vmem:[#allocation2 + $0x40] sm:$0xf]
    %v7299 = vld [vmem:[#allocation2 + $0x44] sm:$0xf]
    %v7300 = vld [vmem:[#allocation2 + $0x48] sm:$0x1]
    %v7301 = vld [vmem:[#allocation2 + $0x64] sm:$0xf]
    %v7302 = vld [vmem:[#allocation2 + $0x68] sm:$0xf]
    %v7303 = vld [vmem:[#allocation2 + $0x6c] sm:$0xf]
    %v7304 = vld [vmem:[#allocation2 + $0x70] sm:$0xf]
    %v7305 = vld [vmem:[#allocation2 + $0x74] sm:$0xf]
    %v7306 = vld [vmem:[#allocation2 + $0x78] sm:$0xf]
    %v7307 = vld [vmem:[#allocation2 + $0x7c] sm:$0xf]
    %v7308 = vld [vmem:[#allocation2 + $0x80] sm:$0xf]
    %v7309 = vld [vmem:[#allocation2 + $0x84] sm:$0xf]
    %v7310 = vld [vmem:[#allocation2 + $0x88] sm:$0xf]
    %v7311 = vld [vmem:[#allocation2 + $0x8c] sm:$0xf]
    %v7312 = vld [vmem:[#allocation2 + $0x90] sm:$0xf]
    %v7313 = vld [vmem:[#allocation2 + $0x94] sm:$0x1]
    %v7315 = vshrl.u32 %v7288, 16
    %v7317 = vrot.slane %v7315, 4
    %v7318 = vshll.u32 %v7288, 16
    %v7320 = vrot.slane %v7318, 5
    %v7321 = vor.u32 %v7317, %v7320
    %v7322 = vrot.slane %v7321, 4
    %v7324 = vshll.u32 %v7289, 16
    %v7326 = vrot.slane %v7324, 5
    %v7327 = vsel %vm1826, %v7322, %v7326
    %v7328 = vshrl.u32 %v7289, 16
    %v7330 = vrot.slane %v7328, 4
    %v7331 = vor.u32 %v7330, %v7326
    %v7332 = vrot.slane %v7331, 4
    %v7334 = vshll.u32 %v7290, 16
    %v7336 = vrot.slane %v7334, 5
    %v7337 = vsel %vm1826, %v7332, %v7336
    %v7338 = vshrl.u32 %v7290, 16
    %v7340 = vrot.slane %v7338, 4
    %v7341 = vor.u32 %v7340, %v7336
    %v7342 = vrot.slane %v7341, 4
    %v7344 = vshll.u32 %v7291, 16
    %v7346 = vrot.slane %v7344, 5
    %v7347 = vsel %vm1826, %v7342, %v7346
    %v7348 = vshrl.u32 %v7291, 16
    %v7350 = vrot.slane %v7348, 4
    %v7351 = vor.u32 %v7350, %v7346
    %v7352 = vrot.slane %v7351, 4
    %v7354 = vshll.u32 %v7292, 16
    %v7356 = vrot.slane %v7354, 5
    %v7357 = vsel %vm1826, %v7352, %v7356
    %v7358 = vshrl.u32 %v7292, 16
    %v7360 = vrot.slane %v7358, 4
    %v7361 = vor.u32 %v7360, %v7356
    %v7362 = vrot.slane %v7361, 4
    %v7364 = vshll.u32 %v7293, 16
    %v7366 = vrot.slane %v7364, 5
    %v7367 = vsel %vm1826, %v7362, %v7366
    %v7368 = vshrl.u32 %v7293, 16
    %v7370 = vrot.slane %v7368, 4
    %v7371 = vor.u32 %v7370, %v7366
    %v7372 = vrot.slane %v7371, 4
    %v7374 = vshll.u32 %v7294, 16
    %v7376 = vrot.slane %v7374, 5
    %v7377 = vsel %vm1826, %v7372, %v7376
    %v7378 = vshrl.u32 %v7294, 16
    %v7380 = vrot.slane %v7378, 4
    %v7381 = vor.u32 %v7380, %v7376
    %v7382 = vrot.slane %v7381, 4
    %v7384 = vshll.u32 %v7295, 16
    %v7386 = vrot.slane %v7384, 5
    %v7387 = vsel %vm1826, %v7382, %v7386
    %v7388 = vshrl.u32 %v7295, 16
    %v7390 = vrot.slane %v7388, 4
    %v7391 = vor.u32 %v7390, %v7386
    %v7392 = vrot.slane %v7391, 4
    %v7394 = vshll.u32 %v7296, 16
    %v7396 = vrot.slane %v7394, 5
    %v7397 = vsel %vm1826, %v7392, %v7396
    %v7398 = vshrl.u32 %v7296, 16
    %v7400 = vrot.slane %v7398, 4
    %v7401 = vor.u32 %v7400, %v7396
    %v7402 = vrot.slane %v7401, 4
    %v7404 = vshll.u32 %v7297, 16
    %v7406 = vrot.slane %v7404, 5
    %v7407 = vsel %vm1826, %v7402, %v7406
    %v7408 = vshrl.u32 %v7297, 16
    %v7410 = vrot.slane %v7408, 4
    %v7411 = vor.u32 %v7410, %v7406
    %v7412 = vrot.slane %v7411, 4
    %v7414 = vshll.u32 %v7298, 16
    %v7416 = vrot.slane %v7414, 5
    %v7417 = vsel %vm1826, %v7412, %v7416
    %v7418 = vshrl.u32 %v7298, 16
    %v7420 = vrot.slane %v7418, 4
    %v7421 = vor.u32 %v7420, %v7416
    %v7422 = vrot.slane %v7421, 4
    %v7424 = vshll.u32 %v7299, 16
    %v7426 = vrot.slane %v7424, 5
    %v7427 = vsel %vm1826, %v7422, %v7426
    %v7428 = vshrl.u32 %v7299, 16
    %v7430 = vrot.slane %v7428, 4
    %v7431 = vor.u32 %v7430, %v7426
    %v7432 = vrot.slane %v7431, 4
    %v7434 = vshll.u32 %v7300, 16
    %v7436 = vrot.slane %v7434, 5
    %v7437 = vsel %vm1826, %v7432, %v7436
    %v7439 = vshrl.u32 %v7301, 16
    %v7441 = vrot.slane %v7439, 4
    %v7442 = vshll.u32 %v7301, 16
    %v7444 = vrot.slane %v7442, 5
    %v7445 = vor.u32 %v7441, %v7444
    %v7446 = vrot.slane %v7445, 4
    %v7448 = vshll.u32 %v7302, 16
    %v7450 = vrot.slane %v7448, 5
    %v7451 = vsel %vm1826, %v7446, %v7450
    %v7452 = vshrl.u32 %v7302, 16
    %v7454 = vrot.slane %v7452, 4
    %v7455 = vor.u32 %v7454, %v7450
    %v7456 = vrot.slane %v7455, 4
    %v7458 = vshll.u32 %v7303, 16
    %v7460 = vrot.slane %v7458, 5
    %v7461 = vsel %vm1826, %v7456, %v7460
    %v7462 = vshrl.u32 %v7303, 16
    %v7464 = vrot.slane %v7462, 4
    %v7465 = vor.u32 %v7464, %v7460
    %v7466 = vrot.slane %v7465, 4
    %v7468 = vshll.u32 %v7304, 16
    %v7470 = vrot.slane %v7468, 5
    %v7471 = vsel %vm1826, %v7466, %v7470
    %v7472 = vshrl.u32 %v7304, 16
    %v7474 = vrot.slane %v7472, 4
    %v7475 = vor.u32 %v7474, %v7470
    %v7476 = vrot.slane %v7475, 4
    %v7478 = vshll.u32 %v7305, 16
    %v7480 = vrot.slane %v7478, 5
    %v7481 = vsel %vm1826, %v7476, %v7480
    %v7482 = vshrl.u32 %v7305, 16
    %v7484 = vrot.slane %v7482, 4
    %v7485 = vor.u32 %v7484, %v7480
    %v7486 = vrot.slane %v7485, 4
    %v7488 = vshll.u32 %v7306, 16
    %v7490 = vrot.slane %v7488, 5
    %v7491 = vsel %vm1826, %v7486, %v7490
    %v7492 = vshrl.u32 %v7306, 16
    %v7494 = vrot.slane %v7492, 4
    %v7495 = vor.u32 %v7494, %v7490
    %v7496 = vrot.slane %v7495, 4
    %v7498 = vshll.u32 %v7307, 16
    %v7500 = vrot.slane %v7498, 5
    %v7501 = vsel %vm1826, %v7496, %v7500
    %v7502 = vshrl.u32 %v7307, 16
    %v7504 = vrot.slane %v7502, 4
    %v7505 = vor.u32 %v7504, %v7500
    %v7506 = vrot.slane %v7505, 4
    %v7508 = vshll.u32 %v7308, 16
    %v7510 = vrot.slane %v7508, 5
    %v7511 = vsel %vm1826, %v7506, %v7510
    %v7512 = vshrl.u32 %v7308, 16
    %v7514 = vrot.slane %v7512, 4
    %v7515 = vor.u32 %v7514, %v7510
    %v7516 = vrot.slane %v7515, 4
    %v7518 = vshll.u32 %v7309, 16
    %v7520 = vrot.slane %v7518, 5
    %v7521 = vsel %vm1826, %v7516, %v7520
    %v7522 = vshrl.u32 %v7309, 16
    %v7524 = vrot.slane %v7522, 4
    %v7525 = vor.u32 %v7524, %v7520
    %v7526 = vrot.slane %v7525, 4
    %v7528 = vshll.u32 %v7310, 16
    %v7530 = vrot.slane %v7528, 5
    %v7531 = vsel %vm1826, %v7526, %v7530
    %v7532 = vshrl.u32 %v7310, 16
    %v7534 = vrot.slane %v7532, 4
    %v7535 = vor.u32 %v7534, %v7530
    %v7536 = vrot.slane %v7535, 4
    %v7538 = vshll.u32 %v7311, 16
    %v7540 = vrot.slane %v7538, 5
    %v7541 = vsel %vm1826, %v7536, %v7540
    %v7542 = vshrl.u32 %v7311, 16
    %v7544 = vrot.slane %v7542, 4
    %v7545 = vor.u32 %v7544, %v7540
    %v7546 = vrot.slane %v7545, 4
    %v7548 = vshll.u32 %v7312, 16
    %v7550 = vrot.slane %v7548, 5
    %v7551 = vsel %vm1826, %v7546, %v7550
    %v7552 = vshrl.u32 %v7312, 16
    %v7554 = vrot.slane %v7552, 4
    %v7555 = vor.u32 %v7554, %v7550
    %v7556 = vrot.slane %v7555, 4
    %v7558 = vshll.u32 %v7313, 16
    %v7560 = vrot.slane %v7558, 5
    %v7561 = vsel %vm1826, %v7556, %v7560
    %7562 = vrot.lane.b32.xlu0 %v7327, 36
    %v7563 = vpop.permute.xlu0 %7562
    %7564 = vrot.lane.b32.xlu0 %v7337, 36
    %v7565 = vpop.permute.xlu0 %7564
    %7566 = vrot.lane.b32.xlu0 %v7347, 36
    %v7567 = vpop.permute.xlu0 %7566
    %7568 = vrot.lane.b32.xlu0 %v7357, 36
    %v7569 = vpop.permute.xlu0 %7568
    %7570 = vrot.lane.b32.xlu0 %v7367, 36
    %v7571 = vpop.permute.xlu0 %7570
    %7572 = vrot.lane.b32.xlu0 %v7377, 36
    %v7573 = vpop.permute.xlu0 %7572
    %7574 = vrot.lane.b32.xlu0 %v7387, 36
    %v7575 = vpop.permute.xlu0 %7574
    %7576 = vrot.lane.b32.xlu0 %v7397, 36
    %v7577 = vpop.permute.xlu0 %7576
    %7578 = vrot.lane.b32.xlu0 %v7407, 36
    %v7579 = vpop.permute.xlu0 %7578
    %7580 = vrot.lane.b32.xlu0 %v7417, 36
    %v7581 = vpop.permute.xlu0 %7580
    %7582 = vrot.lane.b32.xlu0 %v7427, 36
    %v7583 = vpop.permute.xlu0 %7582
    %7584 = vrot.lane.b32.xlu0 %v7437, 36
    %v7585 = vpop.permute.xlu0 %7584
    %7586 = vrot.lane.b32.xlu0 %v7451, 36
    %v7587 = vpop.permute.xlu0 %7586
    %7588 = vrot.lane.b32.xlu0 %v7461, 36
    %v7589 = vpop.permute.xlu0 %7588
    %7590 = vrot.lane.b32.xlu0 %v7471, 36
    %v7591 = vpop.permute.xlu0 %7590
    %7592 = vrot.lane.b32.xlu0 %v7481, 36
    %v7593 = vpop.permute.xlu0 %7592
    %7594 = vrot.lane.b32.xlu0 %v7491, 36
    %v7595 = vpop.permute.xlu0 %7594
    %7596 = vrot.lane.b32.xlu0 %v7501, 36
    %v7597 = vpop.permute.xlu0 %7596
    %7598 = vrot.lane.b32.xlu0 %v7511, 36
    %v7599 = vpop.permute.xlu0 %7598
    %7600 = vrot.lane.b32.xlu0 %v7521, 36
    %v7601 = vpop.permute.xlu0 %7600
    %7602 = vrot.lane.b32.xlu0 %v7531, 36
    %v7603 = vpop.permute.xlu0 %7602
    %7604 = vrot.lane.b32.xlu0 %v7541, 36
    %v7605 = vpop.permute.xlu0 %7604
    %7606 = vrot.lane.b32.xlu0 %v7551, 36
    %v7607 = vpop.permute.xlu0 %7606
    %7608 = vrot.lane.b32.xlu0 %v7561, 36
    %v7609 = vpop.permute.xlu0 %7608
    %vm7634 = vcmask 453920
    %7635 = vst.msk [vmem:[#allocation3 + $0xc] sm:$0xf] %vm7634, %v7563
    %7636 = vst.msk [vmem:[#allocation3 + $0x1c] sm:$0xf] %vm7634, %v7565
    %7637 = vst.msk [vmem:[#allocation3 + $0x2c] sm:$0xf] %vm7634, %v7567
    %7638 = vst.msk [vmem:[#allocation3 + $0x3c] sm:$0xf] %vm7634, %v7569
    %7639 = vst.msk [vmem:[#allocation3 + $0x4c] sm:$0xf] %vm7634, %v7571
    %7640 = vst.msk [vmem:[#allocation3 + $0x5c] sm:$0xf] %vm7634, %v7573
    %7641 = vst.msk [vmem:[#allocation3 + $0x6c] sm:$0xf] %vm7634, %v7575
    %7642 = vst.msk [vmem:[#allocation3 + $0x7c] sm:$0xf] %vm7634, %v7577
    %7643 = vst.msk [vmem:[#allocation3 + $0x8c] sm:$0xf] %vm7634, %v7579
    %7644 = vst.msk [vmem:[#allocation3 + $0x9c] sm:$0xf] %vm7634, %v7581
    %7645 = vst.msk [vmem:[#allocation3 + $0xac] sm:$0xf] %vm7634, %v7583
    %7646 = vst.msk [vmem:[#allocation3 + $0xbc] sm:$0xf] %vm7634, %v7585
    %7647 = vst.msk [vmem:[#allocation3 + $0xcc] sm:$0xf] %vm7634, %v7587
    %7648 = vst.msk [vmem:[#allocation3 + $0xdc] sm:$0xf] %vm7634, %v7589
    %7649 = vst.msk [vmem:[#allocation3 + $0xec] sm:$0xf] %vm7634, %v7591
    %7650 = vst.msk [vmem:[#allocation3 + $0xfc] sm:$0xf] %vm7634, %v7593
    %7651 = vst.msk [vmem:[#allocation3 + $0x10c] sm:$0xf] %vm7634, %v7595
    %7652 = vst.msk [vmem:[#allocation3 + $0x11c] sm:$0xf] %vm7634, %v7597
    %7653 = vst.msk [vmem:[#allocation3 + $0x12c] sm:$0xf] %vm7634, %v7599
    %7654 = vst.msk [vmem:[#allocation3 + $0x13c] sm:$0xf] %vm7634, %v7601
    %7655 = vst.msk [vmem:[#allocation3 + $0x14c] sm:$0xf] %vm7634, %v7603
    %7656 = vst.msk [vmem:[#allocation3 + $0x15c] sm:$0xf] %vm7634, %v7605
    %7657 = vst.msk [vmem:[#allocation3 + $0x16c] sm:$0xf] %vm7634, %v7607
    %7658 = vst.msk [vmem:[#allocation3 + $0x17c] sm:$0xf] %vm7634, %v7609
    %v7659 = vld [vmem:[#allocation2 + $0x18] sm:$0xe]
    %v7660 = vld [vmem:[#allocation2 + $0x1c] sm:$0xf]
    %v7661 = vld [vmem:[#allocation2 + $0x20] sm:$0xf]
    %v7662 = vld [vmem:[#allocation2 + $0x24] sm:$0xf]
    %v7663 = vld [vmem:[#allocation2 + $0x28] sm:$0xf]
    %v7664 = vld [vmem:[#allocation2 + $0x2c] sm:$0xf]
    %v7665 = vld [vmem:[#allocation2 + $0x30] sm:$0xf]
    %v7666 = vld [vmem:[#allocation2 + $0x34] sm:$0xf]
    %v7667 = vld [vmem:[#allocation2 + $0x38] sm:$0xf]
    %v7668 = vld [vmem:[#allocation2 + $0x3c] sm:$0xf]
    %v7669 = vld [vmem:[#allocation2 + $0x40] sm:$0xf]
    %v7670 = vld [vmem:[#allocation2 + $0x44] sm:$0xf]
    %v7671 = vld [vmem:[#allocation2 + $0x48] sm:$0x1]
    %v7672 = vld [vmem:[#allocation2 + $0x64] sm:$0xe]
    %v7673 = vld [vmem:[#allocation2 + $0x68] sm:$0xf]
    %v7674 = vld [vmem:[#allocation2 + $0x6c] sm:$0xf]
    %v7675 = vld [vmem:[#allocation2 + $0x70] sm:$0xf]
    %v7676 = vld [vmem:[#allocation2 + $0x74] sm:$0xf]
    %v7677 = vld [vmem:[#allocation2 + $0x78] sm:$0xf]
    %v7678 = vld [vmem:[#allocation2 + $0x7c] sm:$0xf]
    %v7679 = vld [vmem:[#allocation2 + $0x80] sm:$0xf]
    %v7680 = vld [vmem:[#allocation2 + $0x84] sm:$0xf]
    %v7681 = vld [vmem:[#allocation2 + $0x88] sm:$0xf]
    %v7682 = vld [vmem:[#allocation2 + $0x8c] sm:$0xf]
    %v7683 = vld [vmem:[#allocation2 + $0x90] sm:$0xf]
    %v7684 = vld [vmem:[#allocation2 + $0x94] sm:$0x1]
    %v7711 = vrot.slane %v7659, 5
    %v7712 = vrot.slane %v7711, 4
    %v7713 = vrot.slane %v7660, 5
    %v7714 = vsel %vm2226, %v7712, %v7713
    %v7715 = vrot.slane %v7713, 4
    %v7716 = vrot.slane %v7661, 5
    %v7717 = vsel %vm2226, %v7715, %v7716
    %v7718 = vrot.slane %v7716, 4
    %v7719 = vrot.slane %v7662, 5
    %v7720 = vsel %vm2226, %v7718, %v7719
    %v7721 = vrot.slane %v7719, 4
    %v7722 = vrot.slane %v7663, 5
    %v7723 = vsel %vm2226, %v7721, %v7722
    %v7724 = vrot.slane %v7722, 4
    %v7725 = vrot.slane %v7664, 5
    %v7726 = vsel %vm2226, %v7724, %v7725
    %v7727 = vrot.slane %v7725, 4
    %v7728 = vrot.slane %v7665, 5
    %v7729 = vsel %vm2226, %v7727, %v7728
    %v7730 = vrot.slane %v7728, 4
    %v7731 = vrot.slane %v7666, 5
    %v7732 = vsel %vm2226, %v7730, %v7731
    %v7733 = vrot.slane %v7731, 4
    %v7734 = vrot.slane %v7667, 5
    %v7735 = vsel %vm2226, %v7733, %v7734
    %v7736 = vrot.slane %v7734, 4
    %v7737 = vrot.slane %v7668, 5
    %v7738 = vsel %vm2226, %v7736, %v7737
    %v7739 = vrot.slane %v7737, 4
    %v7740 = vrot.slane %v7669, 5
    %v7741 = vsel %vm2226, %v7739, %v7740
    %v7742 = vrot.slane %v7740, 4
    %v7743 = vrot.slane %v7670, 5
    %v7744 = vsel %vm2226, %v7742, %v7743
    %v7745 = vrot.slane %v7743, 4
    %v7746 = vrot.slane %v7671, 5
    %v7747 = vsel %vm2226, %v7745, %v7746
    %v7748 = vrot.slane %v7672, 5
    %v7749 = vrot.slane %v7748, 4
    %v7750 = vrot.slane %v7673, 5
    %v7751 = vsel %vm2226, %v7749, %v7750
    %v7752 = vrot.slane %v7750, 4
    %v7753 = vrot.slane %v7674, 5
    %v7754 = vsel %vm2226, %v7752, %v7753
    %v7755 = vrot.slane %v7753, 4
    %v7756 = vrot.slane %v7675, 5
    %v7757 = vsel %vm2226, %v7755, %v7756
    %v7758 = vrot.slane %v7756, 4
    %v7759 = vrot.slane %v7676, 5
    %v7760 = vsel %vm2226, %v7758, %v7759
    %v7761 = vrot.slane %v7759, 4
    %v7762 = vrot.slane %v7677, 5
    %v7763 = vsel %vm2226, %v7761, %v7762
    %v7764 = vrot.slane %v7762, 4
    %v7765 = vrot.slane %v7678, 5
    %v7766 = vsel %vm2226, %v7764, %v7765
    %v7767 = vrot.slane %v7765, 4
    %v7768 = vrot.slane %v7679, 5
    %v7769 = vsel %vm2226, %v7767, %v7768
    %v7770 = vrot.slane %v7768, 4
    %v7771 = vrot.slane %v7680, 5
    %v7772 = vsel %vm2226, %v7770, %v7771
    %v7773 = vrot.slane %v7771, 4
    %v7774 = vrot.slane %v7681, 5
    %v7775 = vsel %vm2226, %v7773, %v7774
    %v7776 = vrot.slane %v7774, 4
    %v7777 = vrot.slane %v7682, 5
    %v7778 = vsel %vm2226, %v7776, %v7777
    %v7779 = vrot.slane %v7777, 4
    %v7780 = vrot.slane %v7683, 5
    %v7781 = vsel %vm2226, %v7779, %v7780
    %v7782 = vrot.slane %v7780, 4
    %v7783 = vrot.slane %v7684, 5
    %v7784 = vsel %vm2226, %v7782, %v7783
    %7785 = vrot.lane.b32.xlu0 %v7714, 56
    %v7786 = vpop.permute.xlu0 %7785
    %7787 = vrot.lane.b32.xlu0 %v7717, 56
    %v7788 = vpop.permute.xlu0 %7787
    %7789 = vrot.lane.b32.xlu0 %v7720, 56
    %v7790 = vpop.permute.xlu0 %7789
    %7791 = vrot.lane.b32.xlu0 %v7723, 56
    %v7792 = vpop.permute.xlu0 %7791
    %7793 = vrot.lane.b32.xlu0 %v7726, 56
    %v7794 = vpop.permute.xlu0 %7793
    %7795 = vrot.lane.b32.xlu0 %v7729, 56
    %v7796 = vpop.permute.xlu0 %7795
    %7797 = vrot.lane.b32.xlu0 %v7732, 56
    %v7798 = vpop.permute.xlu0 %7797
    %7799 = vrot.lane.b32.xlu0 %v7735, 56
    %v7800 = vpop.permute.xlu0 %7799
    %7801 = vrot.lane.b32.xlu0 %v7738, 56
    %v7802 = vpop.permute.xlu0 %7801
    %7803 = vrot.lane.b32.xlu0 %v7741, 56
    %v7804 = vpop.permute.xlu0 %7803
    %7805 = vrot.lane.b32.xlu0 %v7744, 56
    %v7806 = vpop.permute.xlu0 %7805
    %7807 = vrot.lane.b32.xlu0 %v7747, 56
    %v7808 = vpop.permute.xlu0 %7807
    %7809 = vrot.lane.b32.xlu0 %v7751, 56
    %v7810 = vpop.permute.xlu0 %7809
    %7811 = vrot.lane.b32.xlu0 %v7754, 56
    %v7812 = vpop.permute.xlu0 %7811
    %7813 = vrot.lane.b32.xlu0 %v7757, 56
    %v7814 = vpop.permute.xlu0 %7813
    %7815 = vrot.lane.b32.xlu0 %v7760, 56
    %v7816 = vpop.permute.xlu0 %7815
    %7817 = vrot.lane.b32.xlu0 %v7763, 56
    %v7818 = vpop.permute.xlu0 %7817
    %7819 = vrot.lane.b32.xlu0 %v7766, 56
    %v7820 = vpop.permute.xlu0 %7819
    %7821 = vrot.lane.b32.xlu0 %v7769, 56
    %v7822 = vpop.permute.xlu0 %7821
    %7823 = vrot.lane.b32.xlu0 %v7772, 56
    %v7824 = vpop.permute.xlu0 %7823
    %7825 = vrot.lane.b32.xlu0 %v7775, 56
    %v7826 = vpop.permute.xlu0 %7825
    %7827 = vrot.lane.b32.xlu0 %v7778, 56
    %v7828 = vpop.permute.xlu0 %7827
    %7829 = vrot.lane.b32.xlu0 %v7781, 56
    %v7830 = vpop.permute.xlu0 %7829
    %7831 = vrot.lane.b32.xlu0 %v7784, 56
    %v7832 = vpop.permute.xlu0 %7831
    %vm7857 = vcmask 617920
    %7858 = vst.msk [vmem:[#allocation3 + $0xc] sm:$0xf] %vm7857, %v7786
    %7859 = vst.msk [vmem:[#allocation3 + $0x1c] sm:$0xf] %vm7857, %v7788
    %7860 = vst.msk [vmem:[#allocation3 + $0x2c] sm:$0xf] %vm7857, %v7790
    %7861 = vst.msk [vmem:[#allocation3 + $0x3c] sm:$0xf] %vm7857, %v7792
    %7862 = vst.msk [vmem:[#allocation3 + $0x4c] sm:$0xf] %vm7857, %v7794
    %7863 = vst.msk [vmem:[#allocation3 + $0x5c] sm:$0xf] %vm7857, %v7796
    %7864 = vst.msk [vmem:[#allocation3 + $0x6c] sm:$0xf] %vm7857, %v7798
    %7865 = vst.msk [vmem:[#allocation3 + $0x7c] sm:$0xf] %vm7857, %v7800
    %7866 = vst.msk [vmem:[#allocation3 + $0x8c] sm:$0xf] %vm7857, %v7802
    %7867 = vst.msk [vmem:[#allocation3 + $0x9c] sm:$0xf] %vm7857, %v7804
    %7868 = vst.msk [vmem:[#allocation3 + $0xac] sm:$0xf] %vm7857, %v7806
    %7869 = vst.msk [vmem:[#allocation3 + $0xbc] sm:$0xf] %vm7857, %v7808
    %7870 = vst.msk [vmem:[#allocation3 + $0xcc] sm:$0xf] %vm7857, %v7810
    %7871 = vst.msk [vmem:[#allocation3 + $0xdc] sm:$0xf] %vm7857, %v7812
    %7872 = vst.msk [vmem:[#allocation3 + $0xec] sm:$0xf] %vm7857, %v7814
    %7873 = vst.msk [vmem:[#allocation3 + $0xfc] sm:$0xf] %vm7857, %v7816
    %7874 = vst.msk [vmem:[#allocation3 + $0x10c] sm:$0xf] %vm7857, %v7818
    %7875 = vst.msk [vmem:[#allocation3 + $0x11c] sm:$0xf] %vm7857, %v7820
    %7876 = vst.msk [vmem:[#allocation3 + $0x12c] sm:$0xf] %vm7857, %v7822
    %7877 = vst.msk [vmem:[#allocation3 + $0x13c] sm:$0xf] %vm7857, %v7824
    %7878 = vst.msk [vmem:[#allocation3 + $0x14c] sm:$0xf] %vm7857, %v7826
    %7879 = vst.msk [vmem:[#allocation3 + $0x15c] sm:$0xf] %vm7857, %v7828
    %7880 = vst.msk [vmem:[#allocation3 + $0x16c] sm:$0xf] %vm7857, %v7830
    %7881 = vst.msk [vmem:[#allocation3 + $0x17c] sm:$0xf] %vm7857, %v7832
    %v7882 = vld [vmem:[#allocation2 + $0x18] sm:$0xe]
    %v7883 = vld [vmem:[#allocation2 + $0x1c] sm:$0xf]
    %v7884 = vld [vmem:[#allocation2 + $0x20] sm:$0xf]
    %v7885 = vld [vmem:[#allocation2 + $0x24] sm:$0xf]
    %v7886 = vld [vmem:[#allocation2 + $0x28] sm:$0xf]
    %v7887 = vld [vmem:[#allocation2 + $0x2c] sm:$0xf]
    %v7888 = vld [vmem:[#allocation2 + $0x30] sm:$0xf]
    %v7889 = vld [vmem:[#allocation2 + $0x34] sm:$0xf]
    %v7890 = vld [vmem:[#allocation2 + $0x38] sm:$0xf]
    %v7891 = vld [vmem:[#allocation2 + $0x3c] sm:$0xf]
    %v7892 = vld [vmem:[#allocation2 + $0x40] sm:$0xf]
    %v7893 = vld [vmem:[#allocation2 + $0x44] sm:$0xf]
    %v7894 = vld [vmem:[#allocation2 + $0x48] sm:$0x3]
    %v7895 = vld [vmem:[#allocation2 + $0x64] sm:$0xe]
    %v7896 = vld [vmem:[#allocation2 + $0x68] sm:$0xf]
    %v7897 = vld [vmem:[#allocation2 + $0x6c] sm:$0xf]
    %v7898 = vld [vmem:[#allocation2 + $0x70] sm:$0xf]
    %v7899 = vld [vmem:[#allocation2 + $0x74] sm:$0xf]
    %v7900 = vld [vmem:[#allocation2 + $0x78] sm:$0xf]
    %v7901 = vld [vmem:[#allocation2 + $0x7c] sm:$0xf]
    %v7902 = vld [vmem:[#allocation2 + $0x80] sm:$0xf]
    %v7903 = vld [vmem:[#allocation2 + $0x84] sm:$0xf]
    %v7904 = vld [vmem:[#allocation2 + $0x88] sm:$0xf]
    %v7905 = vld [vmem:[#allocation2 + $0x8c] sm:$0xf]
    %v7906 = vld [vmem:[#allocation2 + $0x90] sm:$0xf]
    %v7907 = vld [vmem:[#allocation2 + $0x94] sm:$0x3]
    %v7909 = vshrl.u32 %v7882, 16
    %v7911 = vrot.slane %v7909, 5
    %v7912 = vshll.u32 %v7882, 16
    %v7914 = vrot.slane %v7912, 6
    %v7915 = vor.u32 %v7911, %v7914
    %v7916 = vrot.slane %v7915, 4
    %v7918 = vshrl.u32 %v7883, 16
    %v7920 = vrot.slane %v7918, 5
    %v7921 = vshll.u32 %v7883, 16
    %v7923 = vrot.slane %v7921, 6
    %v7924 = vor.u32 %v7920, %v7923
    %v7925 = vsel %vm2426, %v7916, %v7924
    %v7926 = vrot.slane %v7924, 4
    %v7928 = vshrl.u32 %v7884, 16
    %v7930 = vrot.slane %v7928, 5
    %v7931 = vshll.u32 %v7884, 16
    %v7933 = vrot.slane %v7931, 6
    %v7934 = vor.u32 %v7930, %v7933
    %v7935 = vsel %vm2426, %v7926, %v7934
    %v7936 = vrot.slane %v7934, 4
    %v7938 = vshrl.u32 %v7885, 16
    %v7940 = vrot.slane %v7938, 5
    %v7941 = vshll.u32 %v7885, 16
    %v7943 = vrot.slane %v7941, 6
    %v7944 = vor.u32 %v7940, %v7943
    %v7945 = vsel %vm2426, %v7936, %v7944
    %v7946 = vrot.slane %v7944, 4
    %v7948 = vshrl.u32 %v7886, 16
    %v7950 = vrot.slane %v7948, 5
    %v7951 = vshll.u32 %v7886, 16
    %v7953 = vrot.slane %v7951, 6
    %v7954 = vor.u32 %v7950, %v7953
    %v7955 = vsel %vm2426, %v7946, %v7954
    %v7956 = vrot.slane %v7954, 4
    %v7958 = vshrl.u32 %v7887, 16
    %v7960 = vrot.slane %v7958, 5
    %v7961 = vshll.u32 %v7887, 16
    %v7963 = vrot.slane %v7961, 6
    %v7964 = vor.u32 %v7960, %v7963
    %v7965 = vsel %vm2426, %v7956, %v7964
    %v7966 = vrot.slane %v7964, 4
    %v7968 = vshrl.u32 %v7888, 16
    %v7970 = vrot.slane %v7968, 5
    %v7971 = vshll.u32 %v7888, 16
    %v7973 = vrot.slane %v7971, 6
    %v7974 = vor.u32 %v7970, %v7973
    %v7975 = vsel %vm2426, %v7966, %v7974
    %v7976 = vrot.slane %v7974, 4
    %v7978 = vshrl.u32 %v7889, 16
    %v7980 = vrot.slane %v7978, 5
    %v7981 = vshll.u32 %v7889, 16
    %v7983 = vrot.slane %v7981, 6
    %v7984 = vor.u32 %v7980, %v7983
    %v7985 = vsel %vm2426, %v7976, %v7984
    %v7986 = vrot.slane %v7984, 4
    %v7988 = vshrl.u32 %v7890, 16
    %v7990 = vrot.slane %v7988, 5
    %v7991 = vshll.u32 %v7890, 16
    %v7993 = vrot.slane %v7991, 6
    %v7994 = vor.u32 %v7990, %v7993
    %v7995 = vsel %vm2426, %v7986, %v7994
    %v7996 = vrot.slane %v7994, 4
    %v7998 = vshrl.u32 %v7891, 16
    %v8000 = vrot.slane %v7998, 5
    %v8001 = vshll.u32 %v7891, 16
    %v8003 = vrot.slane %v8001, 6
    %v8004 = vor.u32 %v8000, %v8003
    %v8005 = vsel %vm2426, %v7996, %v8004
    %v8006 = vrot.slane %v8004, 4
    %v8008 = vshrl.u32 %v7892, 16
    %v8010 = vrot.slane %v8008, 5
    %v8011 = vshll.u32 %v7892, 16
    %v8013 = vrot.slane %v8011, 6
    %v8014 = vor.u32 %v8010, %v8013
    %v8015 = vsel %vm2426, %v8006, %v8014
    %v8016 = vrot.slane %v8014, 4
    %v8018 = vshrl.u32 %v7893, 16
    %v8020 = vrot.slane %v8018, 5
    %v8021 = vshll.u32 %v7893, 16
    %v8023 = vrot.slane %v8021, 6
    %v8024 = vor.u32 %v8020, %v8023
    %v8025 = vsel %vm2426, %v8016, %v8024
    %v8026 = vrot.slane %v8024, 4
    %v8028 = vshrl.u32 %v7894, 16
    %v8030 = vrot.slane %v8028, 5
    %v8031 = vshll.u32 %v7894, 16
    %v8033 = vrot.slane %v8031, 6
    %v8034 = vor.u32 %v8030, %v8033
    %v8035 = vsel %vm2426, %v8026, %v8034
    %v8037 = vshrl.u32 %v7895, 16
    %v8039 = vrot.slane %v8037, 5
    %v8040 = vshll.u32 %v7895, 16
    %v8042 = vrot.slane %v8040, 6
    %v8043 = vor.u32 %v8039, %v8042
    %v8044 = vrot.slane %v8043, 4
    %v8046 = vshrl.u32 %v7896, 16
    %v8048 = vrot.slane %v8046, 5
    %v8049 = vshll.u32 %v7896, 16
    %v8051 = vrot.slane %v8049, 6
    %v8052 = vor.u32 %v8048, %v8051
    %v8053 = vsel %vm2426, %v8044, %v8052
    %v8054 = vrot.slane %v8052, 4
    %v8056 = vshrl.u32 %v7897, 16
    %v8058 = vrot.slane %v8056, 5
    %v8059 = vshll.u32 %v7897, 16
    %v8061 = vrot.slane %v8059, 6
    %v8062 = vor.u32 %v8058, %v8061
    %v8063 = vsel %vm2426, %v8054, %v8062
    %v8064 = vrot.slane %v8062, 4
    %v8066 = vshrl.u32 %v7898, 16
    %v8068 = vrot.slane %v8066, 5
    %v8069 = vshll.u32 %v7898, 16
    %v8071 = vrot.slane %v8069, 6
    %v8072 = vor.u32 %v8068, %v8071
    %v8073 = vsel %vm2426, %v8064, %v8072
    %v8074 = vrot.slane %v8072, 4
    %v8076 = vshrl.u32 %v7899, 16
    %v8078 = vrot.slane %v8076, 5
    %v8079 = vshll.u32 %v7899, 16
    %v8081 = vrot.slane %v8079, 6
    %v8082 = vor.u32 %v8078, %v8081
    %v8083 = vsel %vm2426, %v8074, %v8082
    %v8084 = vrot.slane %v8082, 4
    %v8086 = vshrl.u32 %v7900, 16
    %v8088 = vrot.slane %v8086, 5
    %v8089 = vshll.u32 %v7900, 16
    %v8091 = vrot.slane %v8089, 6
    %v8092 = vor.u32 %v8088, %v8091
    %v8093 = vsel %vm2426, %v8084, %v8092
    %v8094 = vrot.slane %v8092, 4
    %v8096 = vshrl.u32 %v7901, 16
    %v8098 = vrot.slane %v8096, 5
    %v8099 = vshll.u32 %v7901, 16
    %v8101 = vrot.slane %v8099, 6
    %v8102 = vor.u32 %v8098, %v8101
    %v8103 = vsel %vm2426, %v8094, %v8102
    %v8104 = vrot.slane %v8102, 4
    %v8106 = vshrl.u32 %v7902, 16
    %v8108 = vrot.slane %v8106, 5
    %v8109 = vshll.u32 %v7902, 16
    %v8111 = vrot.slane %v8109, 6
    %v8112 = vor.u32 %v8108, %v8111
    %v8113 = vsel %vm2426, %v8104, %v8112
    %v8114 = vrot.slane %v8112, 4
    %v8116 = vshrl.u32 %v7903, 16
    %v8118 = vrot.slane %v8116, 5
    %v8119 = vshll.u32 %v7903, 16
    %v8121 = vrot.slane %v8119, 6
    %v8122 = vor.u32 %v8118, %v8121
    %v8123 = vsel %vm2426, %v8114, %v8122
    %v8124 = vrot.slane %v8122, 4
    %v8126 = vshrl.u32 %v7904, 16
    %v8128 = vrot.slane %v8126, 5
    %v8129 = vshll.u32 %v7904, 16
    %v8131 = vrot.slane %v8129, 6
    %v8132 = vor.u32 %v8128, %v8131
    %v8133 = vsel %vm2426, %v8124, %v8132
    %v8134 = vrot.slane %v8132, 4
    %v8136 = vshrl.u32 %v7905, 16
    %v8138 = vrot.slane %v8136, 5
    %v8139 = vshll.u32 %v7905, 16
    %v8141 = vrot.slane %v8139, 6
    %v8142 = vor.u32 %v8138, %v8141
    %v8143 = vsel %vm2426, %v8134, %v8142
    %v8144 = vrot.slane %v8142, 4
    %v8146 = vshrl.u32 %v7906, 16
    %v8148 = vrot.slane %v8146, 5
    %v8149 = vshll.u32 %v7906, 16
    %v8151 = vrot.slane %v8149, 6
    %v8152 = vor.u32 %v8148, %v8151
    %v8153 = vsel %vm2426, %v8144, %v8152
    %v8154 = vrot.slane %v8152, 4
    %v8156 = vshrl.u32 %v7907, 16
    %v8158 = vrot.slane %v8156, 5
    %v8159 = vshll.u32 %v7907, 16
    %v8161 = vrot.slane %v8159, 6
    %v8162 = vor.u32 %v8158, %v8161
    %v8163 = vsel %vm2426, %v8154, %v8162
    %8164 = vrot.lane.b32.xlu0 %v7925, 76
    %v8165 = vpop.permute.xlu0 %8164
    %8166 = vrot.lane.b32.xlu0 %v7935, 76
    %v8167 = vpop.permute.xlu0 %8166
    %8168 = vrot.lane.b32.xlu0 %v7945, 76
    %v8169 = vpop.permute.xlu0 %8168
    %8170 = vrot.lane.b32.xlu0 %v7955, 76
    %v8171 = vpop.permute.xlu0 %8170
    %8172 = vrot.lane.b32.xlu0 %v7965, 76
    %v8173 = vpop.permute.xlu0 %8172
    %8174 = vrot.lane.b32.xlu0 %v7975, 76
    %v8175 = vpop.permute.xlu0 %8174
    %8176 = vrot.lane.b32.xlu0 %v7985, 76
    %v8177 = vpop.permute.xlu0 %8176
    %8178 = vrot.lane.b32.xlu0 %v7995, 76
    %v8179 = vpop.permute.xlu0 %8178
    %8180 = vrot.lane.b32.xlu0 %v8005, 76
    %v8181 = vpop.permute.xlu0 %8180
    %8182 = vrot.lane.b32.xlu0 %v8015, 76
    %v8183 = vpop.permute.xlu0 %8182
    %8184 = vrot.lane.b32.xlu0 %v8025, 76
    %v8185 = vpop.permute.xlu0 %8184
    %8186 = vrot.lane.b32.xlu0 %v8035, 76
    %v8187 = vpop.permute.xlu0 %8186
    %8188 = vrot.lane.b32.xlu0 %v8053, 76
    %v8189 = vpop.permute.xlu0 %8188
    %8190 = vrot.lane.b32.xlu0 %v8063, 76
    %v8191 = vpop.permute.xlu0 %8190
    %8192 = vrot.lane.b32.xlu0 %v8073, 76
    %v8193 = vpop.permute.xlu0 %8192
    %8194 = vrot.lane.b32.xlu0 %v8083, 76
    %v8195 = vpop.permute.xlu0 %8194
    %8196 = vrot.lane.b32.xlu0 %v8093, 76
    %v8197 = vpop.permute.xlu0 %8196
    %8198 = vrot.lane.b32.xlu0 %v8103, 76
    %v8199 = vpop.permute.xlu0 %8198
    %8200 = vrot.lane.b32.xlu0 %v8113, 76
    %v8201 = vpop.permute.xlu0 %8200
    %8202 = vrot.lane.b32.xlu0 %v8123, 76
    %v8203 = vpop.permute.xlu0 %8202
    %8204 = vrot.lane.b32.xlu0 %v8133, 76
    %v8205 = vpop.permute.xlu0 %8204
    %8206 = vrot.lane.b32.xlu0 %v8143, 76
    %v8207 = vpop.permute.xlu0 %8206
    %8208 = vrot.lane.b32.xlu0 %v8153, 76
    %v8209 = vpop.permute.xlu0 %8208
    %8210 = vrot.lane.b32.xlu0 %v8163, 76
    %v8211 = vpop.permute.xlu0 %8210
    %vm8236 = vcmask 781920
    %8237 = vst.msk [vmem:[#allocation3 + $0xc] sm:$0xf] %vm8236, %v8165
    %8238 = vst.msk [vmem:[#allocation3 + $0x1c] sm:$0xf] %vm8236, %v8167
    %8239 = vst.msk [vmem:[#allocation3 + $0x2c] sm:$0xf] %vm8236, %v8169
    %8240 = vst.msk [vmem:[#allocation3 + $0x3c] sm:$0xf] %vm8236, %v8171
    %8241 = vst.msk [vmem:[#allocation3 + $0x4c] sm:$0xf] %vm8236, %v8173
    %8242 = vst.msk [vmem:[#allocation3 + $0x5c] sm:$0xf] %vm8236, %v8175
    %8243 = vst.msk [vmem:[#allocation3 + $0x6c] sm:$0xf] %vm8236, %v8177
    %8244 = vst.msk [vmem:[#allocation3 + $0x7c] sm:$0xf] %vm8236, %v8179
    %8245 = vst.msk [vmem:[#allocation3 + $0x8c] sm:$0xf] %vm8236, %v8181
    %8246 = vst.msk [vmem:[#allocation3 + $0x9c] sm:$0xf] %vm8236, %v8183
    %8247 = vst.msk [vmem:[#allocation3 + $0xac] sm:$0xf] %vm8236, %v8185
    %8248 = vst.msk [vmem:[#allocation3 + $0xbc] sm:$0xf] %vm8236, %v8187
    %8249 = vst.msk [vmem:[#allocation3 + $0xcc] sm:$0xf] %vm8236, %v8189
    %8250 = vst.msk [vmem:[#allocation3 + $0xdc] sm:$0xf] %vm8236, %v8191
    %8251 = vst.msk [vmem:[#allocation3 + $0xec] sm:$0xf] %vm8236, %v8193
    %8252 = vst.msk [vmem:[#allocation3 + $0xfc] sm:$0xf] %vm8236, %v8195
    %8253 = vst.msk [vmem:[#allocation3 + $0x10c] sm:$0xf] %vm8236, %v8197
    %8254 = vst.msk [vmem:[#allocation3 + $0x11c] sm:$0xf] %vm8236, %v8199
    %8255 = vst.msk [vmem:[#allocation3 + $0x12c] sm:$0xf] %vm8236, %v8201
    %8256 = vst.msk [vmem:[#allocation3 + $0x13c] sm:$0xf] %vm8236, %v8203
    %8257 = vst.msk [vmem:[#allocation3 + $0x14c] sm:$0xf] %vm8236, %v8205
    %8258 = vst.msk [vmem:[#allocation3 + $0x15c] sm:$0xf] %vm8236, %v8207
    %8259 = vst.msk [vmem:[#allocation3 + $0x16c] sm:$0xf] %vm8236, %v8209
    %8260 = vst.msk [vmem:[#allocation3 + $0x17c] sm:$0xf] %vm8236, %v8211
    %v8261 = vld [vmem:[#allocation2 + $0x18] sm:$0xc]
    %v8262 = vld [vmem:[#allocation2 + $0x1c] sm:$0xf]
    %v8263 = vld [vmem:[#allocation2 + $0x20] sm:$0xf]
    %v8264 = vld [vmem:[#allocation2 + $0x24] sm:$0xf]
    %v8265 = vld [vmem:[#allocation2 + $0x28] sm:$0xf]
    %v8266 = vld [vmem:[#allocation2 + $0x2c] sm:$0xf]
    %v8267 = vld [vmem:[#allocation2 + $0x30] sm:$0xf]
    %v8268 = vld [vmem:[#allocation2 + $0x34] sm:$0xf]
    %v8269 = vld [vmem:[#allocation2 + $0x38] sm:$0xf]
    %v8270 = vld [vmem:[#allocation2 + $0x3c] sm:$0xf]
    %v8271 = vld [vmem:[#allocation2 + $0x40] sm:$0xf]
    %v8272 = vld [vmem:[#allocation2 + $0x44] sm:$0xf]
    %v8273 = vld [vmem:[#allocation2 + $0x48] sm:$0x3]
    %v8274 = vld [vmem:[#allocation2 + $0x64] sm:$0xc]
    %v8275 = vld [vmem:[#allocation2 + $0x68] sm:$0xf]
    %v8276 = vld [vmem:[#allocation2 + $0x6c] sm:$0xf]
    %v8277 = vld [vmem:[#allocation2 + $0x70] sm:$0xf]
    %v8278 = vld [vmem:[#allocation2 + $0x74] sm:$0xf]
    %v8279 = vld [vmem:[#allocation2 + $0x78] sm:$0xf]
    %v8280 = vld [vmem:[#allocation2 + $0x7c] sm:$0xf]
    %v8281 = vld [vmem:[#allocation2 + $0x80] sm:$0xf]
    %v8282 = vld [vmem:[#allocation2 + $0x84] sm:$0xf]
    %v8283 = vld [vmem:[#allocation2 + $0x88] sm:$0xf]
    %v8284 = vld [vmem:[#allocation2 + $0x8c] sm:$0xf]
    %v8285 = vld [vmem:[#allocation2 + $0x90] sm:$0xf]
    %v8286 = vld [vmem:[#allocation2 + $0x94] sm:$0x3]
    %v8313 = vrot.slane %v8261, 6
    %v8314 = vrot.slane %v8313, 4
    %v8315 = vrot.slane %v8262, 6
    %v8316 = vsel %vm2834, %v8314, %v8315
    %v8317 = vrot.slane %v8315, 4
    %v8318 = vrot.slane %v8263, 6
    %v8319 = vsel %vm2834, %v8317, %v8318
    %v8320 = vrot.slane %v8318, 4
    %v8321 = vrot.slane %v8264, 6
    %v8322 = vsel %vm2834, %v8320, %v8321
    %v8323 = vrot.slane %v8321, 4
    %v8324 = vrot.slane %v8265, 6
    %v8325 = vsel %vm2834, %v8323, %v8324
    %v8326 = vrot.slane %v8324, 4
    %v8327 = vrot.slane %v8266, 6
    %v8328 = vsel %vm2834, %v8326, %v8327
    %v8329 = vrot.slane %v8327, 4
    %v8330 = vrot.slane %v8267, 6
    %v8331 = vsel %vm2834, %v8329, %v8330
    %v8332 = vrot.slane %v8330, 4
    %v8333 = vrot.slane %v8268, 6
    %v8334 = vsel %vm2834, %v8332, %v8333
    %v8335 = vrot.slane %v8333, 4
    %v8336 = vrot.slane %v8269, 6
    %v8337 = vsel %vm2834, %v8335, %v8336
    %v8338 = vrot.slane %v8336, 4
    %v8339 = vrot.slane %v8270, 6
    %v8340 = vsel %vm2834, %v8338, %v8339
    %v8341 = vrot.slane %v8339, 4
    %v8342 = vrot.slane %v8271, 6
    %v8343 = vsel %vm2834, %v8341, %v8342
    %v8344 = vrot.slane %v8342, 4
    %v8345 = vrot.slane %v8272, 6
    %v8346 = vsel %vm2834, %v8344, %v8345
    %v8347 = vrot.slane %v8345, 4
    %v8348 = vrot.slane %v8273, 6
    %v8349 = vsel %vm2834, %v8347, %v8348
    %v8350 = vrot.slane %v8274, 6
    %v8351 = vrot.slane %v8350, 4
    %v8352 = vrot.slane %v8275, 6
    %v8353 = vsel %vm2834, %v8351, %v8352
    %v8354 = vrot.slane %v8352, 4
    %v8355 = vrot.slane %v8276, 6
    %v8356 = vsel %vm2834, %v8354, %v8355
    %v8357 = vrot.slane %v8355, 4
    %v8358 = vrot.slane %v8277, 6
    %v8359 = vsel %vm2834, %v8357, %v8358
    %v8360 = vrot.slane %v8358, 4
    %v8361 = vrot.slane %v8278, 6
    %v8362 = vsel %vm2834, %v8360, %v8361
    %v8363 = vrot.slane %v8361, 4
    %v8364 = vrot.slane %v8279, 6
    %v8365 = vsel %vm2834, %v8363, %v8364
    %v8366 = vrot.slane %v8364, 4
    %v8367 = vrot.slane %v8280, 6
    %v8368 = vsel %vm2834, %v8366, %v8367
    %v8369 = vrot.slane %v8367, 4
    %v8370 = vrot.slane %v8281, 6
    %v8371 = vsel %vm2834, %v8369, %v8370
    %v8372 = vrot.slane %v8370, 4
    %v8373 = vrot.slane %v8282, 6
    %v8374 = vsel %vm2834, %v8372, %v8373
    %v8375 = vrot.slane %v8373, 4
    %v8376 = vrot.slane %v8283, 6
    %v8377 = vsel %vm2834, %v8375, %v8376
    %v8378 = vrot.slane %v8376, 4
    %v8379 = vrot.slane %v8284, 6
    %v8380 = vsel %vm2834, %v8378, %v8379
    %v8381 = vrot.slane %v8379, 4
    %v8382 = vrot.slane %v8285, 6
    %v8383 = vsel %vm2834, %v8381, %v8382
    %v8384 = vrot.slane %v8382, 4
    %v8385 = vrot.slane %v8286, 6
    %v8386 = vsel %vm2834, %v8384, %v8385
    %8387 = vrot.lane.b32.xlu0 %v8316, 96
    %v8388 = vpop.permute.xlu0 %8387
    %8389 = vrot.lane.b32.xlu0 %v8319, 96
    %v8390 = vpop.permute.xlu0 %8389
    %8391 = vrot.lane.b32.xlu0 %v8322, 96
    %v8392 = vpop.permute.xlu0 %8391
    %8393 = vrot.lane.b32.xlu0 %v8325, 96
    %v8394 = vpop.permute.xlu0 %8393
    %8395 = vrot.lane.b32.xlu0 %v8328, 96
    %v8396 = vpop.permute.xlu0 %8395
    %8397 = vrot.lane.b32.xlu0 %v8331, 96
    %v8398 = vpop.permute.xlu0 %8397
    %8399 = vrot.lane.b32.xlu0 %v8334, 96
    %v8400 = vpop.permute.xlu0 %8399
    %8401 = vrot.lane.b32.xlu0 %v8337, 96
    %v8402 = vpop.permute.xlu0 %8401
    %8403 = vrot.lane.b32.xlu0 %v8340, 96
    %v8404 = vpop.permute.xlu0 %8403
    %8405 = vrot.lane.b32.xlu0 %v8343, 96
    %v8406 = vpop.permute.xlu0 %8405
    %8407 = vrot.lane.b32.xlu0 %v8346, 96
    %v8408 = vpop.permute.xlu0 %8407
    %8409 = vrot.lane.b32.xlu0 %v8349, 96
    %v8410 = vpop.permute.xlu0 %8409
    %8411 = vrot.lane.b32.xlu0 %v8353, 96
    %v8412 = vpop.permute.xlu0 %8411
    %8413 = vrot.lane.b32.xlu0 %v8356, 96
    %v8414 = vpop.permute.xlu0 %8413
    %8415 = vrot.lane.b32.xlu0 %v8359, 96
    %v8416 = vpop.permute.xlu0 %8415
    %8417 = vrot.lane.b32.xlu0 %v8362, 96
    %v8418 = vpop.permute.xlu0 %8417
    %8419 = vrot.lane.b32.xlu0 %v8365, 96
    %v8420 = vpop.permute.xlu0 %8419
    %8421 = vrot.lane.b32.xlu0 %v8368, 96
    %v8422 = vpop.permute.xlu0 %8421
    %8423 = vrot.lane.b32.xlu0 %v8371, 96
    %v8424 = vpop.permute.xlu0 %8423
    %8425 = vrot.lane.b32.xlu0 %v8374, 96
    %v8426 = vpop.permute.xlu0 %8425
    %8427 = vrot.lane.b32.xlu0 %v8377, 96
    %v8428 = vpop.permute.xlu0 %8427
    %8429 = vrot.lane.b32.xlu0 %v8380, 96
    %v8430 = vpop.permute.xlu0 %8429
    %8431 = vrot.lane.b32.xlu0 %v8383, 96
    %v8432 = vpop.permute.xlu0 %8431
    %8433 = vrot.lane.b32.xlu0 %v8386, 96
    %v8434 = vpop.permute.xlu0 %8433
    %vm8459 = vcmask 945920
    %8460 = vst.msk [vmem:[#allocation3 + $0xc] sm:$0xf] %vm8459, %v8388
    %8461 = vst.msk [vmem:[#allocation3 + $0x1c] sm:$0xf] %vm8459, %v8390
    %8462 = vst.msk [vmem:[#allocation3 + $0x2c] sm:$0xf] %vm8459, %v8392
    %8463 = vst.msk [vmem:[#allocation3 + $0x3c] sm:$0xf] %vm8459, %v8394
    %8464 = vst.msk [vmem:[#allocation3 + $0x4c] sm:$0xf] %vm8459, %v8396
    %8465 = vst.msk [vmem:[#allocation3 + $0x5c] sm:$0xf] %vm8459, %v8398
    %8466 = vst.msk [vmem:[#allocation3 + $0x6c] sm:$0xf] %vm8459, %v8400
    %8467 = vst.msk [vmem:[#allocation3 + $0x7c] sm:$0xf] %vm8459, %v8402
    %8468 = vst.msk [vmem:[#allocation3 + $0x8c] sm:$0xf] %vm8459, %v8404
    %8469 = vst.msk [vmem:[#allocation3 + $0x9c] sm:$0xf] %vm8459, %v8406
    %8470 = vst.msk [vmem:[#allocation3 + $0xac] sm:$0xf] %vm8459, %v8408
    %8471 = vst.msk [vmem:[#allocation3 + $0xbc] sm:$0xf] %vm8459, %v8410
    %8472 = vst.msk [vmem:[#allocation3 + $0xcc] sm:$0xf] %vm8459, %v8412
    %8473 = vst.msk [vmem:[#allocation3 + $0xdc] sm:$0xf] %vm8459, %v8414
    %8474 = vst.msk [vmem:[#allocation3 + $0xec] sm:$0xf] %vm8459, %v8416
    %8475 = vst.msk [vmem:[#allocation3 + $0xfc] sm:$0xf] %vm8459, %v8418
    %8476 = vst.msk [vmem:[#allocation3 + $0x10c] sm:$0xf] %vm8459, %v8420
    %8477 = vst.msk [vmem:[#allocation3 + $0x11c] sm:$0xf] %vm8459, %v8422
    %8478 = vst.msk [vmem:[#allocation3 + $0x12c] sm:$0xf] %vm8459, %v8424
    %8479 = vst.msk [vmem:[#allocation3 + $0x13c] sm:$0xf] %vm8459, %v8426
    %8480 = vst.msk [vmem:[#allocation3 + $0x14c] sm:$0xf] %vm8459, %v8428
    %8481 = vst.msk [vmem:[#allocation3 + $0x15c] sm:$0xf] %vm8459, %v8430
    %8482 = vst.msk [vmem:[#allocation3 + $0x16c] sm:$0xf] %vm8459, %v8432
    %8483 = vst.msk [vmem:[#allocation3 + $0x17c] sm:$0xf] %vm8459, %v8434
    %vm8484 = vcmask 1044384
    %8485 = vst.msk [vmem:[#allocation3 + $0xc] sm:$0xf] %vm8484, 0
    %8486 = vst.msk [vmem:[#allocation3 + $0x1c] sm:$0xf] %vm8484, 0
    %8487 = vst.msk [vmem:[#allocation3 + $0x2c] sm:$0xf] %vm8484, 0
    %8488 = vst.msk [vmem:[#allocation3 + $0x3c] sm:$0xf] %vm8484, 0
    %8489 = vst.msk [vmem:[#allocation3 + $0x4c] sm:$0xf] %vm8484, 0
    %8490 = vst.msk [vmem:[#allocation3 + $0x5c] sm:$0xf] %vm8484, 0
    %8491 = vst.msk [vmem:[#allocation3 + $0x6c] sm:$0xf] %vm8484, 0
    %8492 = vst.msk [vmem:[#allocation3 + $0x7c] sm:$0xf] %vm8484, 0
    %8493 = vst.msk [vmem:[#allocation3 + $0x8c] sm:$0xf] %vm8484, 0
    %8494 = vst.msk [vmem:[#allocation3 + $0x9c] sm:$0xf] %vm8484, 0
    %8495 = vst.msk [vmem:[#allocation3 + $0xac] sm:$0xf] %vm8484, 0
    %8496 = vst.msk [vmem:[#allocation3 + $0xbc] sm:$0xf] %vm8484, 0
    %8497 = vst.msk [vmem:[#allocation3 + $0xcc] sm:$0xf] %vm8484, 0
    %8498 = vst.msk [vmem:[#allocation3 + $0xdc] sm:$0xf] %vm8484, 0
    %8499 = vst.msk [vmem:[#allocation3 + $0xec] sm:$0xf] %vm8484, 0
    %8500 = vst.msk [vmem:[#allocation3 + $0xfc] sm:$0xf] %vm8484, 0
    %8501 = vst.msk [vmem:[#allocation3 + $0x10c] sm:$0xf] %vm8484, 0
    %8502 = vst.msk [vmem:[#allocation3 + $0x11c] sm:$0xf] %vm8484, 0
    %8503 = vst.msk [vmem:[#allocation3 + $0x12c] sm:$0xf] %vm8484, 0
    %8504 = vst.msk [vmem:[#allocation3 + $0x13c] sm:$0xf] %vm8484, 0
    %8505 = vst.msk [vmem:[#allocation3 + $0x14c] sm:$0xf] %vm8484, 0
    %8506 = vst.msk [vmem:[#allocation3 + $0x15c] sm:$0xf] %vm8484, 0
    %8507 = vst.msk [vmem:[#allocation3 + $0x16c] sm:$0xf] %vm8484, 0
    %8508 = vst.msk [vmem:[#allocation3 + $0x17c] sm:$0xf] %vm8484, 0
    %v8509 = vld [vmem:[#allocation3] sm:$0xff]
    %v8510 = vld [vmem:[#allocation3 + $0x8] sm:$0xff]
    %v8511 = vld [vmem:[#allocation3 + $0x10] sm:$0xff]
    %v8512 = vld [vmem:[#allocation3 + $0x18] sm:$0xff]
    %v8513 = vld [vmem:[#allocation3 + $0x20] sm:$0xff]
    %v8514 = vld [vmem:[#allocation3 + $0x28] sm:$0xff]
    %v8515 = vld [vmem:[#allocation3 + $0x30] sm:$0xff]
    %v8516 = vld [vmem:[#allocation3 + $0x38] sm:$0xff]
    %v8517 = vld [vmem:[#allocation3 + $0x40] sm:$0xff]
    %v8518 = vld [vmem:[#allocation3 + $0x48] sm:$0xff]
    %v8519 = vld [vmem:[#allocation3 + $0x50] sm:$0xff]
    %v8520 = vld [vmem:[#allocation3 + $0x58] sm:$0xff]
    %v8521 = vld [vmem:[#allocation3 + $0x60] sm:$0xff]
    %v8522 = vld [vmem:[#allocation3 + $0x68] sm:$0xff]
    %v8523 = vld [vmem:[#allocation3 + $0x70] sm:$0xff]
    %v8524 = vld [vmem:[#allocation3 + $0x78] sm:$0xff]
    %v8525 = vld [vmem:[#allocation3 + $0x80] sm:$0xff]
    %v8526 = vld [vmem:[#allocation3 + $0x88] sm:$0xff]
    %v8527 = vld [vmem:[#allocation3 + $0x90] sm:$0xff]
    %v8528 = vld [vmem:[#allocation3 + $0x98] sm:$0xff]
    %v8529 = vld [vmem:[#allocation3 + $0xa0] sm:$0xff]
    %v8530 = vld [vmem:[#allocation3 + $0xa8] sm:$0xff]
    %v8531 = vld [vmem:[#allocation3 + $0xb0] sm:$0xff]
    %v8532 = vld [vmem:[#allocation3 + $0xb8] sm:$0xff]
    %v8533 = vld [vmem:[#allocation3 + $0xc0] sm:$0xff]
    %v8534 = vld [vmem:[#allocation3 + $0xc8] sm:$0xff]
    %v8535 = vld [vmem:[#allocation3 + $0xd0] sm:$0xff]
    %v8536 = vld [vmem:[#allocation3 + $0xd8] sm:$0xff]
    %v8537 = vld [vmem:[#allocation3 + $0xe0] sm:$0xff]
    %v8538 = vld [vmem:[#allocation3 + $0xe8] sm:$0xff]
    %v8539 = vld [vmem:[#allocation3 + $0xf0] sm:$0xff]
    %v8540 = vld [vmem:[#allocation3 + $0xf8] sm:$0xff]
    %v8541 = vld [vmem:[#allocation3 + $0x100] sm:$0xff]
    %v8542 = vld [vmem:[#allocation3 + $0x108] sm:$0xff]
    %v8543 = vld [vmem:[#allocation3 + $0x110] sm:$0xff]
    %v8544 = vld [vmem:[#allocation3 + $0x118] sm:$0xff]
    %v8545 = vld [vmem:[#allocation3 + $0x120] sm:$0xff]
    %v8546 = vld [vmem:[#allocation3 + $0x128] sm:$0xff]
    %v8547 = vld [vmem:[#allocation3 + $0x130] sm:$0xff]
    %v8548 = vld [vmem:[#allocation3 + $0x138] sm:$0xff]
    %v8549 = vld [vmem:[#allocation3 + $0x140] sm:$0xff]
    %v8550 = vld [vmem:[#allocation3 + $0x148] sm:$0xff]
    %v8551 = vld [vmem:[#allocation3 + $0x150] sm:$0xff]
    %v8552 = vld [vmem:[#allocation3 + $0x158] sm:$0xff]
    %v8553 = vld [vmem:[#allocation3 + $0x160] sm:$0xff]
    %v8554 = vld [vmem:[#allocation3 + $0x168] sm:$0xff]
    %v8555 = vld [vmem:[#allocation3 + $0x170] sm:$0xff]
    %v8556 = vld [vmem:[#allocation3 + $0x178] sm:$0xff]
    %v8557 = vld [vmem:[%s3] sm:$0xf]
    %v8558 = vld [vmem:[%s3 + $0x4] sm:$0xf]
    %v8559 = vld [vmem:[%s3 + $0x8] sm:$0xf]
    %v8560 = vld [vmem:[%s3 + $0xc] sm:$0xf]
    %v8561 = vld [vmem:[%s3 + $0x10] sm:$0xf]
    %v8562 = vld [vmem:[%s3 + $0x14] sm:$0xf]
    %v8563 = vld [vmem:[%s3 + $0x18] sm:$0xf]
    %v8564 = vld [vmem:[%s3 + $0x1c] sm:$0xf]
    %v8565 = vld [vmem:[%s3 + $0x20] sm:$0xf]
    %v8566 = vld [vmem:[%s3 + $0x24] sm:$0xf]
    %v8567 = vld [vmem:[%s3 + $0x28] sm:$0xf]
    %v8568 = vld [vmem:[%s3 + $0x2c] sm:$0xf]
    %v8569 = vld [vmem:[%s3 + $0x30] sm:$0xf]
    %v8570 = vld [vmem:[%s3 + $0x34] sm:$0xf]
    %v8571 = vld [vmem:[%s3 + $0x38] sm:$0xf]
    %v8572 = vld [vmem:[%s3 + $0x3c] sm:$0xf]
    %v8573 = vld [vmem:[%s3 + $0x40] sm:$0xf]
    %v8574 = vld [vmem:[%s3 + $0x44] sm:$0xf]
    %v8575 = vld [vmem:[%s3 + $0x48] sm:$0xf]
    %v8576 = vld [vmem:[%s3 + $0x4c] sm:$0xf]
    %v8577 = vld [vmem:[%s3 + $0x50] sm:$0xf]
    %v8578 = vld [vmem:[%s3 + $0x54] sm:$0xf]
    %v8579 = vld [vmem:[%s3 + $0x58] sm:$0xf]
    %v8580 = vld [vmem:[%s3 + $0x5c] sm:$0xf]
    %v8581 = vld [vmem:[%s3 + $0x60] sm:$0xf]
    %v8582 = vld [vmem:[%s3 + $0x64] sm:$0xf]
    %v8583 = vld [vmem:[%s3 + $0x68] sm:$0xf]
    %v8584 = vld [vmem:[%s3 + $0x6c] sm:$0xf]
    %v8585 = vld [vmem:[%s3 + $0x70] sm:$0xf]
    %v8586 = vld [vmem:[%s3 + $0x74] sm:$0xf]
    %v8587 = vld [vmem:[%s3 + $0x78] sm:$0xf]
    %v8588 = vld [vmem:[%s3 + $0x7c] sm:$0xf]
    %v8589 = vld [vmem:[%s3 + $0x80] sm:$0xf]
    %v8590 = vld [vmem:[%s3 + $0x84] sm:$0xf]
    %v8591 = vld [vmem:[%s3 + $0x88] sm:$0xf]
    %v8592 = vld [vmem:[%s3 + $0x8c] sm:$0xf]
    %v8593 = vld [vmem:[%s3 + $0x90] sm:$0xf]
    %v8594 = vld [vmem:[%s3 + $0x94] sm:$0xf]
    %v8595 = vld [vmem:[%s3 + $0x98] sm:$0xf]
    %v8596 = vld [vmem:[%s3 + $0x9c] sm:$0xf]
    %v8597 = vld [vmem:[%s3 + $0xa0] sm:$0xf]
    %v8598 = vld [vmem:[%s3 + $0xa4] sm:$0xf]
    %v8599 = vld [vmem:[%s3 + $0xa8] sm:$0xf]
    %v8600 = vld [vmem:[%s3 + $0xac] sm:$0xf]
    %v8601 = vld [vmem:[%s3 + $0xb0] sm:$0xf]
    %v8602 = vld [vmem:[%s3 + $0xb4] sm:$0xf]
    %v8603 = vld [vmem:[%s3 + $0xb8] sm:$0xf]
    %v8604 = vld [vmem:[%s3 + $0xbc] sm:$0xf]
    %v8605 = vld [vmem:[%s3 + $0xc0] sm:$0xf]
    %v8606 = vld [vmem:[%s3 + $0xc4] sm:$0xf]
    %v8607 = vld [vmem:[%s3 + $0xc8] sm:$0xf]
    %v8608 = vld [vmem:[%s3 + $0xcc] sm:$0xf]
    %v8609 = vld [vmem:[%s3 + $0xd0] sm:$0xf]
    %v8610 = vld [vmem:[%s3 + $0xd4] sm:$0xf]
    %v8611 = vld [vmem:[%s3 + $0xd8] sm:$0xf]
    %v8612 = vld [vmem:[%s3 + $0xdc] sm:$0xf]
    %v8613 = vld [vmem:[%s3 + $0xe0] sm:$0xf]
    %v8614 = vld [vmem:[%s3 + $0xe4] sm:$0xf]
    %v8615 = vld [vmem:[%s3 + $0xe8] sm:$0xf]
    %v8616 = vld [vmem:[%s3 + $0xec] sm:$0xf]
    %v8617 = vld [vmem:[%s3 + $0xf0] sm:$0xf]
    %v8618 = vld [vmem:[%s3 + $0xf4] sm:$0xf]
    %v8619 = vld [vmem:[%s3 + $0xf8] sm:$0xf]
    %v8620 = vld [vmem:[%s3 + $0xfc] sm:$0xf]
    %v8669 = vunpack.c.l.b16 %v8509
    %v8670 = vunpack.c.h.b16 %v8509
    %v8671 = vunpack.c.l.b16 %v8510
    %v8672 = vunpack.c.h.b16 %v8510
    %v8673 = vunpack.c.l.b16 %v8511
    %v8674 = vunpack.c.h.b16 %v8511
    %v8675 = vunpack.c.l.b16 %v8512
    %v8676 = vunpack.c.h.b16 %v8512
    %v8677 = vunpack.c.l.b16 %v8513
    %v8678 = vunpack.c.h.b16 %v8513
    %v8679 = vunpack.c.l.b16 %v8514
    %v8680 = vunpack.c.h.b16 %v8514
    %v8681 = vunpack.c.l.b16 %v8515
    %v8682 = vunpack.c.h.b16 %v8515
    %v8683 = vunpack.c.l.b16 %v8516
    %v8684 = vunpack.c.h.b16 %v8516
    %v8685 = vunpack.c.l.b16 %v8517
    %v8686 = vunpack.c.h.b16 %v8517
    %v8687 = vunpack.c.l.b16 %v8518
    %v8688 = vunpack.c.h.b16 %v8518
    %v8689 = vunpack.c.l.b16 %v8519
    %v8690 = vunpack.c.h.b16 %v8519
    %v8691 = vunpack.c.l.b16 %v8520
    %v8692 = vunpack.c.h.b16 %v8520
    %v8693 = vunpack.c.l.b16 %v8521
    %v8694 = vunpack.c.h.b16 %v8521
    %v8695 = vunpack.c.l.b16 %v8522
    %v8696 = vunpack.c.h.b16 %v8522
    %v8697 = vunpack.c.l.b16 %v8523
    %v8698 = vunpack.c.h.b16 %v8523
    %v8699 = vunpack.c.l.b16 %v8524
    %v8700 = vunpack.c.h.b16 %v8524
    %v8701 = vunpack.c.l.b16 %v8525
    %v8702 = vunpack.c.h.b16 %v8525
    %v8703 = vunpack.c.l.b16 %v8526
    %v8704 = vunpack.c.h.b16 %v8526
    %v8705 = vunpack.c.l.b16 %v8527
    %v8706 = vunpack.c.h.b16 %v8527
    %v8707 = vunpack.c.l.b16 %v8528
    %v8708 = vunpack.c.h.b16 %v8528
    %v8709 = vunpack.c.l.b16 %v8529
    %v8710 = vunpack.c.h.b16 %v8529
    %v8711 = vunpack.c.l.b16 %v8530
    %v8712 = vunpack.c.h.b16 %v8530
    %v8713 = vunpack.c.l.b16 %v8531
    %v8714 = vunpack.c.h.b16 %v8531
    %v8715 = vunpack.c.l.b16 %v8532
    %v8716 = vunpack.c.h.b16 %v8532
    %v8717 = vunpack.c.l.b16 %v8533
    %v8718 = vunpack.c.h.b16 %v8533
    %v8719 = vunpack.c.l.b16 %v8534
    %v8720 = vunpack.c.h.b16 %v8534
    %v8721 = vunpack.c.l.b16 %v8535
    %v8722 = vunpack.c.h.b16 %v8535
    %v8723 = vunpack.c.l.b16 %v8536
    %v8724 = vunpack.c.h.b16 %v8536
    %v8725 = vunpack.c.l.b16 %v8537
    %v8726 = vunpack.c.h.b16 %v8537
    %v8727 = vunpack.c.l.b16 %v8538
    %v8728 = vunpack.c.h.b16 %v8538
    %v8729 = vunpack.c.l.b16 %v8539
    %v8730 = vunpack.c.h.b16 %v8539
    %v8731 = vunpack.c.l.b16 %v8540
    %v8732 = vunpack.c.h.b16 %v8540
    %v8733 = vunpack.c.l.b16 %v8541
    %v8734 = vunpack.c.h.b16 %v8541
    %v8735 = vunpack.c.l.b16 %v8542
    %v8736 = vunpack.c.h.b16 %v8542
    %v8737 = vunpack.c.l.b16 %v8543
    %v8738 = vunpack.c.h.b16 %v8543
    %v8739 = vunpack.c.l.b16 %v8544
    %v8740 = vunpack.c.h.b16 %v8544
    %v8741 = vunpack.c.l.b16 %v8545
    %v8742 = vunpack.c.h.b16 %v8545
    %v8743 = vunpack.c.l.b16 %v8546
    %v8744 = vunpack.c.h.b16 %v8546
    %v8745 = vunpack.c.l.b16 %v8547
    %v8746 = vunpack.c.h.b16 %v8547
    %v8747 = vunpack.c.l.b16 %v8548
    %v8748 = vunpack.c.h.b16 %v8548
    %v8749 = vunpack.c.l.b16 %v8549
    %v8750 = vunpack.c.h.b16 %v8549
    %v8751 = vunpack.c.l.b16 %v8550
    %v8752 = vunpack.c.h.b16 %v8550
    %v8753 = vunpack.c.l.b16 %v8551
    %v8754 = vunpack.c.h.b16 %v8551
    %v8755 = vunpack.c.l.b16 %v8552
    %v8756 = vunpack.c.h.b16 %v8552
    %v8757 = vunpack.c.l.b16 %v8553
    %v8758 = vunpack.c.h.b16 %v8553
    %v8759 = vunpack.c.l.b16 %v8554
    %v8760 = vunpack.c.h.b16 %v8554
    %v8761 = vunpack.c.l.b16 %v8555
    %v8762 = vunpack.c.h.b16 %v8555
    %v8763 = vunpack.c.l.b16 %v8556
    %v8764 = vunpack.c.h.b16 %v8556
    %v8765 = vpack.c.b16 %v8673, %v8669
    %v8766 = vpack.c.b16 %v8674, %v8670
    %v8767 = vpack.c.b16 %v8675, %v8671
    %v8768 = vpack.c.b16 %v8676, %v8672
    %v8769 = vpack.c.b16 %v8681, %v8677
    %v8770 = vpack.c.b16 %v8682, %v8678
    %v8771 = vpack.c.b16 %v8683, %v8679
    %v8772 = vpack.c.b16 %v8684, %v8680
    %v8773 = vpack.c.b16 %v8689, %v8685
    %v8774 = vpack.c.b16 %v8690, %v8686
    %v8775 = vpack.c.b16 %v8691, %v8687
    %v8776 = vpack.c.b16 %v8692, %v8688
    %v8777 = vpack.c.b16 %v8697, %v8693
    %v8778 = vpack.c.b16 %v8698, %v8694
    %v8779 = vpack.c.b16 %v8699, %v8695
    %v8780 = vpack.c.b16 %v8700, %v8696
    %v8781 = vpack.c.b16 %v8705, %v8701
    %v8782 = vpack.c.b16 %v8706, %v8702
    %v8783 = vpack.c.b16 %v8707, %v8703
    %v8784 = vpack.c.b16 %v8708, %v8704
    %v8785 = vpack.c.b16 %v8713, %v8709
    %v8786 = vpack.c.b16 %v8714, %v8710
    %v8787 = vpack.c.b16 %v8715, %v8711
    %v8788 = vpack.c.b16 %v8716, %v8712
    %v8789 = vpack.c.b16 %v8721, %v8717
    %v8790 = vpack.c.b16 %v8722, %v8718
    %v8791 = vpack.c.b16 %v8723, %v8719
    %v8792 = vpack.c.b16 %v8724, %v8720
    %v8793 = vpack.c.b16 %v8729, %v8725
    %v8794 = vpack.c.b16 %v8730, %v8726
    %v8795 = vpack.c.b16 %v8731, %v8727
    %v8796 = vpack.c.b16 %v8732, %v8728
    %v8797 = vpack.c.b16 %v8737, %v8733
    %v8798 = vpack.c.b16 %v8738, %v8734
    %v8799 = vpack.c.b16 %v8739, %v8735
    %v8800 = vpack.c.b16 %v8740, %v8736
    %v8801 = vpack.c.b16 %v8745, %v8741
    %v8802 = vpack.c.b16 %v8746, %v8742
    %v8803 = vpack.c.b16 %v8747, %v8743
    %v8804 = vpack.c.b16 %v8748, %v8744
    %v8805 = vpack.c.b16 %v8753, %v8749
    %v8806 = vpack.c.b16 %v8754, %v8750
    %v8807 = vpack.c.b16 %v8755, %v8751
    %v8808 = vpack.c.b16 %v8756, %v8752
    %v8809 = vpack.c.b16 %v8761, %v8757
    %v8810 = vpack.c.b16 %v8762, %v8758
    %v8811 = vpack.c.b16 %v8763, %v8759
    %v8812 = vpack.c.b16 %v8764, %v8760
    %v8925 = vunpack.c.l.b16 %v8557
    %v8926 = vunpack.c.l.b16 %v8558
    %v8927 = vunpack.c.l.b16 %v8559
    %v8928 = vunpack.c.l.b16 %v8560
    %v8929 = vunpack.c.l.b16 %v8561
    %v8930 = vunpack.c.l.b16 %v8562
    %v8931 = vunpack.c.l.b16 %v8563
    %v8932 = vunpack.c.l.b16 %v8564
    %v8933 = vunpack.c.l.b16 %v8565
    %v8934 = vunpack.c.l.b16 %v8566
    %v8935 = vunpack.c.l.b16 %v8567
    %v8936 = vunpack.c.l.b16 %v8568
    %v8937 = vunpack.c.l.b16 %v8569
    %v8938 = vunpack.c.l.b16 %v8570
    %v8939 = vunpack.c.l.b16 %v8571
    %v8940 = vunpack.c.l.b16 %v8572
    %v8941 = vunpack.c.l.b16 %v8573
    %v8942 = vunpack.c.l.b16 %v8574
    %v8943 = vunpack.c.l.b16 %v8575
    %v8944 = vunpack.c.l.b16 %v8576
    %v8945 = vunpack.c.l.b16 %v8577
    %v8946 = vunpack.c.l.b16 %v8578
    %v8947 = vunpack.c.l.b16 %v8579
    %v8948 = vunpack.c.l.b16 %v8580
    %v8949 = vunpack.c.l.b16 %v8581
    %v8950 = vunpack.c.l.b16 %v8582
    %v8951 = vunpack.c.l.b16 %v8583
    %v8952 = vunpack.c.l.b16 %v8584
    %v8953 = vunpack.c.l.b16 %v8585
    %v8954 = vunpack.c.l.b16 %v8586
    %v8955 = vunpack.c.l.b16 %v8587
    %v8956 = vunpack.c.l.b16 %v8588
    %v8957 = vunpack.c.l.b16 %v8589
    %v8958 = vunpack.c.l.b16 %v8590
    %v8959 = vunpack.c.l.b16 %v8591
    %v8960 = vunpack.c.l.b16 %v8592
    %v8961 = vunpack.c.l.b16 %v8593
    %v8962 = vunpack.c.l.b16 %v8594
    %v8963 = vunpack.c.l.b16 %v8595
    %v8964 = vunpack.c.l.b16 %v8596
    %v8965 = vunpack.c.l.b16 %v8597
    %v8966 = vunpack.c.l.b16 %v8598
    %v8967 = vunpack.c.l.b16 %v8599
    %v8968 = vunpack.c.l.b16 %v8600
    %v8969 = vunpack.c.l.b16 %v8601
    %v8970 = vunpack.c.l.b16 %v8602
    %v8971 = vunpack.c.l.b16 %v8603
    %v8972 = vunpack.c.l.b16 %v8604
    %v8973 = vunpack.c.l.b16 %v8605
    %v8974 = vunpack.c.l.b16 %v8606
    %v8975 = vunpack.c.l.b16 %v8607
    %v8976 = vunpack.c.l.b16 %v8608
    %v8977 = vunpack.c.l.b16 %v8609
    %v8978 = vunpack.c.l.b16 %v8610
    %v8979 = vunpack.c.l.b16 %v8611
    %v8980 = vunpack.c.l.b16 %v8612
    %v8981 = vunpack.c.l.b16 %v8613
    %v8982 = vunpack.c.l.b16 %v8614
    %v8983 = vunpack.c.l.b16 %v8615
    %v8984 = vunpack.c.l.b16 %v8616
    %v8985 = vunpack.c.l.b16 %v8617
    %v8986 = vunpack.c.l.b16 %v8618
    %v8987 = vunpack.c.l.b16 %v8619
    %v8988 = vunpack.c.l.b16 %v8620
    %v8989 = vpack.c.b16 %v8926, %v8925
    %v8990 = vpack.c.b16 %v8928, %v8927
    %v8991 = vpack.c.b16 %v8930, %v8929
    %v8992 = vpack.c.b16 %v8932, %v8931
    %v8993 = vpack.c.b16 %v8934, %v8933
    %v8994 = vpack.c.b16 %v8936, %v8935
    %v8995 = vpack.c.b16 %v8938, %v8937
    %v8996 = vpack.c.b16 %v8940, %v8939
    %v8997 = vpack.c.b16 %v8942, %v8941
    %v8998 = vpack.c.b16 %v8944, %v8943
    %v8999 = vpack.c.b16 %v8946, %v8945
    %v9000 = vpack.c.b16 %v8948, %v8947
    %v9001 = vpack.c.b16 %v8950, %v8949
    %v9002 = vpack.c.b16 %v8952, %v8951
    %v9003 = vpack.c.b16 %v8954, %v8953
    %v9004 = vpack.c.b16 %v8956, %v8955
    %v9005 = vpack.c.b16 %v8958, %v8957
    %v9006 = vpack.c.b16 %v8960, %v8959
    %v9007 = vpack.c.b16 %v8962, %v8961
    %v9008 = vpack.c.b16 %v8964, %v8963
    %v9009 = vpack.c.b16 %v8966, %v8965
    %v9010 = vpack.c.b16 %v8968, %v8967
    %v9011 = vpack.c.b16 %v8970, %v8969
    %v9012 = vpack.c.b16 %v8972, %v8971
    %v9013 = vpack.c.b16 %v8974, %v8973
    %v9014 = vpack.c.b16 %v8976, %v8975
    %v9015 = vpack.c.b16 %v8978, %v8977
    %v9016 = vpack.c.b16 %v8980, %v8979
    %v9017 = vpack.c.b16 %v8982, %v8981
    %v9018 = vpack.c.b16 %v8984, %v8983
    %v9019 = vpack.c.b16 %v8986, %v8985
    %v9020 = vpack.c.b16 %v8988, %v8987
    %9053 = vmatprep.subr.bf16.mxu0 0
    %9054 = vmatpush1.bf16.msra.mxu0 %v8996
    %9055 = vmatprep.subr.bf16.mxu0 0
    %9056 = vmatpush1.bf16.msra.mxu0 %v8995
    %9057 = vmatprep.subr.bf16.mxu0 0
    %9058 = vmatpush1.bf16.msra.mxu0 %v8994
    %9059 = vmatprep.subr.bf16.mxu0 0
    %9060 = vmatpush1.bf16.msra.mxu0 %v8993
    %9061 = vmatprep.subr.bf16.mxu0 0
    %9062 = vmatpush1.bf16.msra.mxu0 %v8992
    %9063 = vmatprep.subr.bf16.mxu0 0
    %9064 = vmatpush1.bf16.msra.mxu0 %v8991
    %9065 = vmatprep.subr.bf16.mxu0 0
    %9066 = vmatpush1.bf16.msra.mxu0 %v8990
    %9067 = vmatprep.subr.bf16.mxu0 0
    %9068 = vmatpush1.bf16.msra.mxu0 %v8989
    %9069 = vmatprep.subr.bf16.mxu0 0
    %9070 = vmatpush2.bf16.msra.mxu0 %v9004
    %9071 = vmatprep.subr.bf16.mxu0 0
    %9072 = vmatpush2.bf16.msra.mxu0 %v9003
    %9073 = vmatprep.subr.bf16.mxu0 0
    %9074 = vmatpush2.bf16.msra.mxu0 %v9002
    %9075 = vmatprep.subr.bf16.mxu0 0
    %9076 = vmatpush2.bf16.msra.mxu0 %v9001
    %9077 = vmatprep.subr.bf16.mxu0 0
    %9078 = vmatpush2.bf16.msra.mxu0 %v9000
    %9079 = vmatprep.subr.bf16.mxu0 0
    %9080 = vmatpush2.bf16.msra.mxu0 %v8999
    %9081 = vmatprep.subr.bf16.mxu0 0
    %9082 = vmatpush2.bf16.msra.mxu0 %v8998
    %9083 = vmatprep.subr.bf16.mxu0 0
    %9084 = vmatpush2.bf16.msra.mxu0 %v8997
    %9085 = vmatprep.mubr.bf16.mxu0 %v8766
    %9086 = vmatmul.mubr.bf16.gmra.mxu0 %v8765
    %v9087 = vpop.f32.mrf.mxu0
    %v9088 = vadd.f32 0.0, %v9087
    %v9089 = vpop.f32.mrf.mxu0
    %v9090 = vpop.f32.mrf.mxu0
    %v9091 = vadd.f32 0.0, %v9090
    %v9092 = vpop.f32.mrf.mxu0
    %9093 = vmatprep.mubr.bf16.mxu0 %v8770
    %9094 = vmatmul.mubr.bf16.gmra.mxu0 %v8769
    %v9095 = vpop.f32.mrf.mxu0
    %v9096 = vadd.f32 0.0, %v9095
    %v9097 = vpop.f32.mrf.mxu0
    %v9098 = vpop.f32.mrf.mxu0
    %v9099 = vadd.f32 0.0, %v9098
    %v9100 = vpop.f32.mrf.mxu0
    %9101 = vmatprep.mubr.bf16.mxu0 %v8774
    %9102 = vmatmul.mubr.bf16.gmra.mxu0 %v8773
    %v9103 = vpop.f32.mrf.mxu0
    %v9104 = vadd.f32 0.0, %v9103
    %v9105 = vpop.f32.mrf.mxu0
    %v9106 = vpop.f32.mrf.mxu0
    %v9107 = vadd.f32 0.0, %v9106
    %v9108 = vpop.f32.mrf.mxu0
    %9109 = vmatprep.mubr.bf16.mxu0 %v8778
    %9110 = vmatmul.mubr.bf16.gmra.mxu0 %v8777
    %v9111 = vpop.f32.mrf.mxu0
    %v9112 = vadd.f32 0.0, %v9111
    %v9113 = vpop.f32.mrf.mxu0
    %v9114 = vpop.f32.mrf.mxu0
    %v9115 = vadd.f32 0.0, %v9114
    %v9116 = vpop.f32.mrf.mxu0
    %9117 = vmatprep.mubr.bf16.mxu0 %v8782
    %9118 = vmatmul.mubr.bf16.gmra.mxu0 %v8781
    %v9119 = vpop.f32.mrf.mxu0
    %v9120 = vadd.f32 0.0, %v9119
    %v9121 = vpop.f32.mrf.mxu0
    %v9122 = vpop.f32.mrf.mxu0
    %v9123 = vadd.f32 0.0, %v9122
    %v9124 = vpop.f32.mrf.mxu0
    %9125 = vmatprep.mubr.bf16.mxu0 %v8786
    %9126 = vmatmul.mubr.bf16.gmra.mxu0 %v8785
    %v9127 = vpop.f32.mrf.mxu0
    %v9128 = vadd.f32 0.0, %v9127
    %v9129 = vpop.f32.mrf.mxu0
    %v9130 = vpop.f32.mrf.mxu0
    %v9131 = vadd.f32 0.0, %v9130
    %v9132 = vpop.f32.mrf.mxu0
    %9133 = vmatprep.mubr.bf16.mxu0 %v8790
    %9134 = vmatmul.mubr.bf16.gmra.mxu0 %v8789
    %v9135 = vpop.f32.mrf.mxu0
    %v9136 = vadd.f32 0.0, %v9135
    %v9137 = vpop.f32.mrf.mxu0
    %v9138 = vpop.f32.mrf.mxu0
    %v9139 = vadd.f32 0.0, %v9138
    %v9140 = vpop.f32.mrf.mxu0
    %9141 = vmatprep.mubr.bf16.mxu0 %v8794
    %9142 = vmatmul.mubr.bf16.gmra.mxu0 %v8793
    %v9143 = vpop.f32.mrf.mxu0
    %v9144 = vadd.f32 0.0, %v9143
    %v9145 = vpop.f32.mrf.mxu0
    %v9146 = vpop.f32.mrf.mxu0
    %v9147 = vadd.f32 0.0, %v9146
    %v9148 = vpop.f32.mrf.mxu0
    %9149 = vmatprep.mubr.bf16.mxu0 %v8798
    %9150 = vmatmul.mubr.bf16.gmra.mxu0 %v8797
    %v9151 = vpop.f32.mrf.mxu0
    %v9152 = vadd.f32 0.0, %v9151
    %v9153 = vpop.f32.mrf.mxu0
    %v9154 = vpop.f32.mrf.mxu0
    %v9155 = vadd.f32 0.0, %v9154
    %v9156 = vpop.f32.mrf.mxu0
    %9157 = vmatprep.mubr.bf16.mxu0 %v8802
    %9158 = vmatmul.mubr.bf16.gmra.mxu0 %v8801
    %v9159 = vpop.f32.mrf.mxu0
    %v9160 = vadd.f32 0.0, %v9159
    %v9161 = vpop.f32.mrf.mxu0
    %v9162 = vpop.f32.mrf.mxu0
    %v9163 = vadd.f32 0.0, %v9162
    %v9164 = vpop.f32.mrf.mxu0
    %9165 = vmatprep.mubr.bf16.mxu0 %v8806
    %9166 = vmatmul.mubr.bf16.gmra.mxu0 %v8805
    %v9167 = vpop.f32.mrf.mxu0
    %v9168 = vadd.f32 0.0, %v9167
    %v9169 = vpop.f32.mrf.mxu0
    %v9170 = vpop.f32.mrf.mxu0
    %v9171 = vadd.f32 0.0, %v9170
    %v9172 = vpop.f32.mrf.mxu0
    %9173 = vmatprep.mubr.bf16.mxu0 %v8810
    %9174 = vmatmul.mubr.bf16.gmra.mxu0 %v8809
    %v9175 = vpop.f32.mrf.mxu0
    %v9176 = vadd.f32 0.0, %v9175
    %v9177 = vpop.f32.mrf.mxu0
    %v9178 = vpop.f32.mrf.mxu0
    %v9179 = vadd.f32 0.0, %v9178
    %v9180 = vpop.f32.mrf.mxu0
    %9181 = vdwg.mxu0
    %9182 = vmatprep.subr.bf16.mxu0 0
    %9183 = vmatpush1.bf16.msra.mxu0 %v9012
    %9184 = vmatprep.subr.bf16.mxu0 0
    %9185 = vmatpush1.bf16.msra.mxu0 %v9011
    %9186 = vmatprep.subr.bf16.mxu0 0
    %9187 = vmatpush1.bf16.msra.mxu0 %v9010
    %9188 = vmatprep.subr.bf16.mxu0 0
    %9189 = vmatpush1.bf16.msra.mxu0 %v9009
    %9190 = vmatprep.subr.bf16.mxu0 0
    %9191 = vmatpush1.bf16.msra.mxu0 %v9008
    %9192 = vmatprep.subr.bf16.mxu0 0
    %9193 = vmatpush1.bf16.msra.mxu0 %v9007
    %9194 = vmatprep.subr.bf16.mxu0 0
    %9195 = vmatpush1.bf16.msra.mxu0 %v9006
    %9196 = vmatprep.subr.bf16.mxu0 0
    %9197 = vmatpush1.bf16.msra.mxu0 %v9005
    %9198 = vmatprep.subr.bf16.mxu0 0
    %9199 = vmatpush2.bf16.msra.mxu0 %v9020
    %9200 = vmatprep.subr.bf16.mxu0 0
    %9201 = vmatpush2.bf16.msra.mxu0 %v9019
    %9202 = vmatprep.subr.bf16.mxu0 0
    %9203 = vmatpush2.bf16.msra.mxu0 %v9018
    %9204 = vmatprep.subr.bf16.mxu0 0
    %9205 = vmatpush2.bf16.msra.mxu0 %v9017
    %9206 = vmatprep.subr.bf16.mxu0 0
    %9207 = vmatpush2.bf16.msra.mxu0 %v9016
    %9208 = vmatprep.subr.bf16.mxu0 0
    %9209 = vmatpush2.bf16.msra.mxu0 %v9015
    %9210 = vmatprep.subr.bf16.mxu0 0
    %9211 = vmatpush2.bf16.msra.mxu0 %v9014
    %9212 = vmatprep.subr.bf16.mxu0 0
    %9213 = vmatpush2.bf16.msra.mxu0 %v9013
    %9214 = vmatprep.mubr.bf16.mxu0 %v8768
    %9215 = vmatmul.mubr.bf16.gmra.mxu0 %v8767
    %v9216 = vpop.f32.mrf.mxu0
    %v9217 = vadd.f32 %v9088, %v9216
    %v9218 = vpop.f32.mrf.mxu0
    %v9219 = vpop.f32.mrf.mxu0
    %v9220 = vadd.f32 %v9091, %v9219
    %v9221 = vpop.f32.mrf.mxu0
    %9222 = vmatprep.mubr.bf16.mxu0 %v8772
    %9223 = vmatmul.mubr.bf16.gmra.mxu0 %v8771
    %v9224 = vpop.f32.mrf.mxu0
    %v9225 = vadd.f32 %v9096, %v9224
    %v9226 = vpop.f32.mrf.mxu0
    %v9227 = vpop.f32.mrf.mxu0
    %v9228 = vadd.f32 %v9099, %v9227
    %v9229 = vpop.f32.mrf.mxu0
    %9230 = vmatprep.mubr.bf16.mxu0 %v8776
    %9231 = vmatmul.mubr.bf16.gmra.mxu0 %v8775
    %v9232 = vpop.f32.mrf.mxu0
    %v9233 = vadd.f32 %v9104, %v9232
    %v9234 = vpop.f32.mrf.mxu0
    %v9235 = vpop.f32.mrf.mxu0
    %v9236 = vadd.f32 %v9107, %v9235
    %v9237 = vpop.f32.mrf.mxu0
    %9238 = vmatprep.mubr.bf16.mxu0 %v8780
    %9239 = vmatmul.mubr.bf16.gmra.mxu0 %v8779
    %v9240 = vpop.f32.mrf.mxu0
    %v9241 = vadd.f32 %v9112, %v9240
    %v9242 = vpop.f32.mrf.mxu0
    %v9243 = vpop.f32.mrf.mxu0
    %v9244 = vadd.f32 %v9115, %v9243
    %v9245 = vpop.f32.mrf.mxu0
    %9246 = vmatprep.mubr.bf16.mxu0 %v8784
    %9247 = vmatmul.mubr.bf16.gmra.mxu0 %v8783
    %v9248 = vpop.f32.mrf.mxu0
    %v9249 = vadd.f32 %v9120, %v9248
    %v9250 = vpop.f32.mrf.mxu0
    %v9251 = vpop.f32.mrf.mxu0
    %v9252 = vadd.f32 %v9123, %v9251
    %v9253 = vpop.f32.mrf.mxu0
    %9254 = vmatprep.mubr.bf16.mxu0 %v8788
    %9255 = vmatmul.mubr.bf16.gmra.mxu0 %v8787
    %v9256 = vpop.f32.mrf.mxu0
    %v9257 = vadd.f32 %v9128, %v9256
    %v9258 = vpop.f32.mrf.mxu0
    %v9259 = vpop.f32.mrf.mxu0
    %v9260 = vadd.f32 %v9131, %v9259
    %v9261 = vpop.f32.mrf.mxu0
    %9262 = vmatprep.mubr.bf16.mxu0 %v8792
    %9263 = vmatmul.mubr.bf16.gmra.mxu0 %v8791
    %v9264 = vpop.f32.mrf.mxu0
    %v9265 = vadd.f32 %v9136, %v9264
    %v9266 = vpop.f32.mrf.mxu0
    %v9267 = vpop.f32.mrf.mxu0
    %v9268 = vadd.f32 %v9139, %v9267
    %v9269 = vpop.f32.mrf.mxu0
    %9270 = vmatprep.mubr.bf16.mxu0 %v8796
    %9271 = vmatmul.mubr.bf16.gmra.mxu0 %v8795
    %v9272 = vpop.f32.mrf.mxu0
    %v9273 = vadd.f32 %v9144, %v9272
    %v9274 = vpop.f32.mrf.mxu0
    %v9275 = vpop.f32.mrf.mxu0
    %v9276 = vadd.f32 %v9147, %v9275
    %v9277 = vpop.f32.mrf.mxu0
    %9278 = vmatprep.mubr.bf16.mxu0 %v8800
    %9279 = vmatmul.mubr.bf16.gmra.mxu0 %v8799
    %v9280 = vpop.f32.mrf.mxu0
    %v9281 = vadd.f32 %v9152, %v9280
    %v9282 = vpop.f32.mrf.mxu0
    %v9283 = vpop.f32.mrf.mxu0
    %v9284 = vadd.f32 %v9155, %v9283
    %v9285 = vpop.f32.mrf.mxu0
    %9286 = vmatprep.mubr.bf16.mxu0 %v8804
    %9287 = vmatmul.mubr.bf16.gmra.mxu0 %v8803
    %v9288 = vpop.f32.mrf.mxu0
    %v9289 = vadd.f32 %v9160, %v9288
    %v9290 = vpop.f32.mrf.mxu0
    %v9291 = vpop.f32.mrf.mxu0
    %v9292 = vadd.f32 %v9163, %v9291
    %v9293 = vpop.f32.mrf.mxu0
    %9294 = vmatprep.mubr.bf16.mxu0 %v8808
    %9295 = vmatmul.mubr.bf16.gmra.mxu0 %v8807
    %v9296 = vpop.f32.mrf.mxu0
    %v9297 = vadd.f32 %v9168, %v9296
    %v9298 = vpop.f32.mrf.mxu0
    %v9299 = vpop.f32.mrf.mxu0
    %v9300 = vadd.f32 %v9171, %v9299
    %v9301 = vpop.f32.mrf.mxu0
    %9302 = vmatprep.mubr.bf16.mxu0 %v8812
    %9303 = vmatmul.mubr.bf16.gmra.mxu0 %v8811
    %v9304 = vpop.f32.mrf.mxu0
    %v9305 = vadd.f32 %v9176, %v9304
    %v9306 = vpop.f32.mrf.mxu0
    %v9307 = vpop.f32.mrf.mxu0
    %v9308 = vadd.f32 %v9179, %v9307
    %v9309 = vpop.f32.mrf.mxu0
    %9310 = vdwg.mxu0
    %vm9311 = vcmask 408576
    %9312 = vst.msk [vmem:[#allocation4] sm:$0xff] %vm9311, %v9217
    %9313 = vst.msk [vmem:[#allocation4 + $0x8] sm:$0xff] %vm9311, %v9220
    %9314 = vst.msk [vmem:[#allocation4 + $0x10] sm:$0xff] %vm9311, %v9225
    %9315 = vst.msk [vmem:[#allocation4 + $0x18] sm:$0xff] %vm9311, %v9228
    %9316 = vst.msk [vmem:[#allocation4 + $0x20] sm:$0xff] %vm9311, %v9233
    %9317 = vst.msk [vmem:[#allocation4 + $0x28] sm:$0xff] %vm9311, %v9236
    %9318 = vst.msk [vmem:[#allocation4 + $0x30] sm:$0xff] %vm9311, %v9241
    %9319 = vst.msk [vmem:[#allocation4 + $0x38] sm:$0xff] %vm9311, %v9244
    %9320 = vst.msk [vmem:[#allocation4 + $0x40] sm:$0xff] %vm9311, %v9249
    %9321 = vst.msk [vmem:[#allocation4 + $0x48] sm:$0xff] %vm9311, %v9252
    %9322 = vst.msk [vmem:[#allocation4 + $0x50] sm:$0xff] %vm9311, %v9257
    %9323 = vst.msk [vmem:[#allocation4 + $0x58] sm:$0xff] %vm9311, %v9260
    %9324 = vst.msk [vmem:[#allocation4 + $0x60] sm:$0xff] %vm9311, %v9265
    %9325 = vst.msk [vmem:[#allocation4 + $0x68] sm:$0xff] %vm9311, %v9268
    %9326 = vst.msk [vmem:[#allocation4 + $0x70] sm:$0xff] %vm9311, %v9273
    %9327 = vst.msk [vmem:[#allocation4 + $0x78] sm:$0xff] %vm9311, %v9276
    %9328 = vst.msk [vmem:[#allocation4 + $0x80] sm:$0xff] %vm9311, %v9281
    %9329 = vst.msk [vmem:[#allocation4 + $0x88] sm:$0xff] %vm9311, %v9284
    %9330 = vst.msk [vmem:[#allocation4 + $0x90] sm:$0xff] %vm9311, %v9289
    %9331 = vst.msk [vmem:[#allocation4 + $0x98] sm:$0xff] %vm9311, %v9292
    %9332 = vst.msk [vmem:[#allocation4 + $0xa0] sm:$0xff] %vm9311, %v9297
    %9333 = vst.msk [vmem:[#allocation4 + $0xa8] sm:$0xff] %vm9311, %v9300
    %9334 = vst.msk [vmem:[#allocation4 + $0xb0] sm:$0xff] %vm9311, %v9305
    %9335 = vst.msk [vmem:[#allocation4 + $0xb8] sm:$0xff] %vm9311, %v9308
    %9336 = vst [vmem:[#allocation5] sm:$0xff] 0
    %v9337 = vld [vmem:[#allocation4] sm:$0xff]
    %v9338 = vld [vmem:[#allocation4 + $0x60] sm:$0xff]
    %v9339 = vld [vmem:[#allocation4 + $0xc] sm:$0xff]
    %v9340 = vld [vmem:[#allocation4 + $0x6c] sm:$0xff]
    %v9341 = vmax.f32 %v9337, %v9339
    %v9342 = vmax.f32 %v9338, %v9340
    %v9345 = vrot.slane %v9341, 1
    %v9346 = vrot.slane %v9342, 1
    %v9349 = vmax.f32 %v9341, %v9345
    %v9350 = vmax.f32 %v9342, %v9346
    %v9351 = vld [vmem:[%s4] sm:$0x1]
    %v9353 = vlaneseq
    %v9354 = vshrl.u32 %v9353, 7
    %v9355 = vsub.s32 0, %v9354
    %v9356 = vrot.slane %v9351, %v9355
    %v9358 = vadd.f32 %v9349, %v9356
    %v9359 = vadd.f32 %v9350, %v9356
    %v9360 = vmax.f32 %v9358, 0.0
    %v9361 = vmax.f32 %v9359, 0.0
    %v9362 = vpack.c.bf16 %v9360, %v9360
    %v9363 = vpack.c.bf16 %v9361, %v9361
    %v9367 = vunpack.c.l.s4 1966171168
    %v9368 = vunpack.c.0.s8 %v9367
    %v9369 = vlaneseq
    %v9370 = vshrl.u32 %v9369, 7
    %v9371 = vsub.s32 %v9368, %v9370
    %v9372 = vrot.slane %v9362, %v9371
    %v9374 = vunpack.c.l.s4 1966171168
    %v9375 = vunpack.c.0.s8 %v9374
    %v9376 = vlaneseq
    %v9377 = vshrl.u32 %v9376, 7
    %v9378 = vsub.s32 %v9375, %v9377
    %v9379 = vrot.slane %v9372, %v9378
    %v9381 = vunpack.c.l.s4 1966171168
    %v9382 = vunpack.c.0.s8 %v9381
    %v9383 = vlaneseq
    %v9384 = vshrl.u32 %v9383, 7
    %v9385 = vsub.s32 %v9382, %v9384
    %v9386 = vrot.slane %v9363, %v9385
    %v9388 = vunpack.c.l.s4 1966171168
    %v9389 = vunpack.c.0.s8 %v9388
    %v9390 = vlaneseq
    %v9391 = vshrl.u32 %v9390, 7
    %v9392 = vsub.s32 %v9389, %v9391
    %v9393 = vrot.slane %v9386, %v9392
    %v9395 = vunpack.c.l.s4 1935823168
    %v9396 = vunpack.c.0.s8 %v9395
    %v9397 = vlaneseq
    %v9398 = vshrl.u32 %v9397, 7
    %v9399 = vsub.s32 %v9396, %v9398
    %v9400 = vrot.slane %v9379, %v9399
    %v9402 = vunpack.c.l.s4 1935823168
    %v9403 = vunpack.c.0.s8 %v9402
    %v9404 = vlaneseq
    %v9405 = vshrl.u32 %v9404, 7
    %v9406 = vsub.s32 %v9403, %v9405
    %v9407 = vrot.slane %v9400, %v9406
    %v9409 = vunpack.c.l.s4 1935823168
    %v9410 = vunpack.c.0.s8 %v9409
    %v9411 = vlaneseq
    %v9412 = vshrl.u32 %v9411, 7
    %v9413 = vsub.s32 %v9410, %v9412
    %v9414 = vrot.slane %v9393, %v9413
    %v9416 = vunpack.c.l.s4 1935823168
    %v9417 = vunpack.c.0.s8 %v9416
    %v9418 = vlaneseq
    %v9419 = vshrl.u32 %v9418, 7
    %v9420 = vsub.s32 %v9417, %v9419
    %v9421 = vrot.slane %v9414, %v9420
    %v9422 = vunpack.c.l.b16 %v9407
    %v9423 = vunpack.c.l.b16 %v9421
    %v9424 = vrot.slane %v9423, 7
    %vm9425 = vcmask 1041409
    %v9426 = vsel %vm9425, %v9424, %v9422
    %v9427 = vpack.c.b16 %v9426, %v9426
    %v9429 = vunpack.c.l.s4 1966171168
    %v9430 = vunpack.c.0.s8 %v9429
    %v9431 = vlaneseq
    %v9432 = vshrl.u32 %v9431, 7
    %v9433 = vsub.s32 %v9430, %v9432
    %v9434 = vrot.slane %v9427, %v9433
    %v9436 = vunpack.c.l.s4 1966171168
    %v9437 = vunpack.c.0.s8 %v9436
    %v9438 = vlaneseq
    %v9439 = vshrl.u32 %v9438, 7
    %v9440 = vsub.s32 %v9437, %v9439
    %v9441 = vrot.slane %v9434, %v9440
    %vm9443 = vcmask 401408
    %9444 = vst.msk [vmem:[#allocation5] sm:$0x1] %vm9443, %v9441
    %v9445 = vcombine.high %v9372, %v9372
    %v9447 = vunpack.c.l.s4 1966171168
    %v9448 = vunpack.c.0.s8 %v9447
    %v9449 = vlaneseq
    %v9450 = vshrl.u32 %v9449, 7
    %v9451 = vsub.s32 %v9448, %v9450
    %v9452 = vrot.slane %v9445, %v9451
    %v9453 = vcombine.high %v9386, %v9386
    %v9455 = vunpack.c.l.s4 1966171168
    %v9456 = vunpack.c.0.s8 %v9455
    %v9457 = vlaneseq
    %v9458 = vshrl.u32 %v9457, 7
    %v9459 = vsub.s32 %v9456, %v9458
    %v9460 = vrot.slane %v9453, %v9459
    %v9462 = vunpack.c.l.s4 1935823168
    %v9463 = vunpack.c.0.s8 %v9462
    %v9464 = vlaneseq
    %v9465 = vshrl.u32 %v9464, 7
    %v9466 = vsub.s32 %v9463, %v9465
    %v9467 = vrot.slane %v9452, %v9466
    %v9469 = vunpack.c.l.s4 1935823168
    %v9470 = vunpack.c.0.s8 %v9469
    %v9471 = vlaneseq
    %v9472 = vshrl.u32 %v9471, 7
    %v9473 = vsub.s32 %v9470, %v9472
    %v9474 = vrot.slane %v9467, %v9473
    %v9476 = vunpack.c.l.s4 1935823168
    %v9477 = vunpack.c.0.s8 %v9476
    %v9478 = vlaneseq
    %v9479 = vshrl.u32 %v9478, 7
    %v9480 = vsub.s32 %v9477, %v9479
    %v9481 = vrot.slane %v9460, %v9480
    %v9483 = vunpack.c.l.s4 1935823168
    %v9484 = vunpack.c.0.s8 %v9483
    %v9485 = vlaneseq
    %v9486 = vshrl.u32 %v9485, 7
    %v9487 = vsub.s32 %v9484, %v9486
    %v9488 = vrot.slane %v9481, %v9487
    %v9489 = vunpack.c.l.b16 %v9474
    %v9490 = vunpack.c.l.b16 %v9488
    %v9491 = vrot.slane %v9490, 7
    %v9492 = vsel %vm9425, %v9491, %v9489
    %v9493 = vpack.c.b16 %v9492, %v9492
    %v9495 = vunpack.c.l.s4 1966171168
    %v9496 = vunpack.c.0.s8 %v9495
    %v9497 = vlaneseq
    %v9498 = vshrl.u32 %v9497, 7
    %v9499 = vsub.s32 %v9496, %v9498
    %v9500 = vrot.slane %v9493, %v9499
    %v9502 = vunpack.c.l.s4 1966171168
    %v9503 = vunpack.c.0.s8 %v9502
    %v9504 = vlaneseq
    %v9505 = vshrl.u32 %v9504, 7
    %v9506 = vsub.s32 %v9503, %v9505
    %v9507 = vrot.slane %v9500, %v9506
    %9508 = vrot.lane.b32.xlu0 %v9507, 64
    %v9509 = vpop.permute.xlu0 %9508
    %vm9511 = vcmask 926208
    %9512 = vst.msk [vmem:[#allocation5] sm:$0x1] %vm9511, %v9509
    %v9513 = vcombine.high %v9379, %v9379
    %v9514 = vcombine.high %v9393, %v9393
    %v9516 = vunpack.c.l.s4 1935823168
    %v9517 = vunpack.c.0.s8 %v9516
    %v9518 = vlaneseq
    %v9519 = vshrl.u32 %v9518, 7
    %v9520 = vsub.s32 %v9517, %v9519
    %v9521 = vrot.slane %v9513, %v9520
    %v9523 = vunpack.c.l.s4 1935823168
    %v9524 = vunpack.c.0.s8 %v9523
    %v9525 = vlaneseq
    %v9526 = vshrl.u32 %v9525, 7
    %v9527 = vsub.s32 %v9524, %v9526
    %v9528 = vrot.slane %v9521, %v9527
    %v9530 = vunpack.c.l.s4 1935823168
    %v9531 = vunpack.c.0.s8 %v9530
    %v9532 = vlaneseq
    %v9533 = vshrl.u32 %v9532, 7
    %v9534 = vsub.s32 %v9531, %v9533
    %v9535 = vrot.slane %v9514, %v9534
    %v9537 = vunpack.c.l.s4 1935823168
    %v9538 = vunpack.c.0.s8 %v9537
    %v9539 = vlaneseq
    %v9540 = vshrl.u32 %v9539, 7
    %v9541 = vsub.s32 %v9538, %v9540
    %v9542 = vrot.slane %v9535, %v9541
    %v9543 = vunpack.c.l.b16 %v9528
    %v9544 = vunpack.c.l.b16 %v9542
    %v9545 = vrot.slane %v9544, 7
    %v9546 = vsel %vm9425, %v9545, %v9543
    %v9547 = vpack.c.b16 %v9546, %v9546
    %v9549 = vunpack.c.l.s4 1966171168
    %v9550 = vunpack.c.0.s8 %v9549
    %v9551 = vlaneseq
    %v9552 = vshrl.u32 %v9551, 7
    %v9553 = vsub.s32 %v9550, %v9552
    %v9554 = vrot.slane %v9547, %v9553
    %v9556 = vunpack.c.l.s4 1966171168
    %v9557 = vunpack.c.0.s8 %v9556
    %v9558 = vlaneseq
    %v9559 = vshrl.u32 %v9558, 7
    %v9560 = vsub.s32 %v9557, %v9559
    %v9561 = vrot.slane %v9554, %v9560
    %9563 = vst.msk [vmem:[#allocation5 + $0x1] sm:$0x1] %vm9443, %v9561
    %v9564 = vcombine.high %v9452, %v9452
    %v9565 = vcombine.high %v9460, %v9460
    %v9567 = vunpack.c.l.s4 1935823168
    %v9568 = vunpack.c.0.s8 %v9567
    %v9569 = vlaneseq
    %v9570 = vshrl.u32 %v9569, 7
    %v9571 = vsub.s32 %v9568, %v9570
    %v9572 = vrot.slane %v9564, %v9571
    %v9574 = vunpack.c.l.s4 1935823168
    %v9575 = vunpack.c.0.s8 %v9574
    %v9576 = vlaneseq
    %v9577 = vshrl.u32 %v9576, 7
    %v9578 = vsub.s32 %v9575, %v9577
    %v9579 = vrot.slane %v9572, %v9578
    %v9581 = vunpack.c.l.s4 1935823168
    %v9582 = vunpack.c.0.s8 %v9581
    %v9583 = vlaneseq
    %v9584 = vshrl.u32 %v9583, 7
    %v9585 = vsub.s32 %v9582, %v9584
    %v9586 = vrot.slane %v9565, %v9585
    %v9588 = vunpack.c.l.s4 1935823168
    %v9589 = vunpack.c.0.s8 %v9588
    %v9590 = vlaneseq
    %v9591 = vshrl.u32 %v9590, 7
    %v9592 = vsub.s32 %v9589, %v9591
    %v9593 = vrot.slane %v9586, %v9592
    %v9594 = vunpack.c.l.b16 %v9579
    %v9595 = vunpack.c.l.b16 %v9593
    %v9596 = vrot.slane %v9595, 7
    %v9597 = vsel %vm9425, %v9596, %v9594
    %v9598 = vpack.c.b16 %v9597, %v9597
    %v9600 = vunpack.c.l.s4 1966171168
    %v9601 = vunpack.c.0.s8 %v9600
    %v9602 = vlaneseq
    %v9603 = vshrl.u32 %v9602, 7
    %v9604 = vsub.s32 %v9601, %v9603
    %v9605 = vrot.slane %v9598, %v9604
    %v9607 = vunpack.c.l.s4 1966171168
    %v9608 = vunpack.c.0.s8 %v9607
    %v9609 = vlaneseq
    %v9610 = vshrl.u32 %v9609, 7
    %v9611 = vsub.s32 %v9608, %v9610
    %v9612 = vrot.slane %v9605, %v9611
    %9613 = vrot.lane.b32.xlu0 %v9612, 64
    %v9614 = vpop.permute.xlu0 %9613
    %9616 = vst.msk [vmem:[#allocation5 + $0x1] sm:$0x1] %vm9511, %v9614
    %v9617 = vld [vmem:[#allocation4 + $0x18] sm:$0xff]
    %v9618 = vld [vmem:[#allocation4 + $0x78] sm:$0xff]
    %v9619 = vld [vmem:[#allocation4 + $0x24] sm:$0xff]
    %v9620 = vld [vmem:[#allocation4 + $0x84] sm:$0xff]
    %v9621 = vmax.f32 %v9617, %v9619
    %v9622 = vmax.f32 %v9618, %v9620
    %v9625 = vrot.slane %v9621, 1
    %v9626 = vrot.slane %v9622, 1
    %v9629 = vmax.f32 %v9621, %v9625
    %v9630 = vmax.f32 %v9622, %v9626
    %v9631 = vld [vmem:[%s4] sm:$0x1]
    %v9633 = vlaneseq
    %v9634 = vshrl.u32 %v9633, 7
    %v9635 = vsub.s32 0, %v9634
    %v9636 = vrot.slane %v9631, %v9635
    %v9638 = vadd.f32 %v9629, %v9636
    %v9639 = vadd.f32 %v9630, %v9636
    %v9640 = vmax.f32 %v9638, 0.0
    %v9641 = vmax.f32 %v9639, 0.0
    %v9642 = vpack.c.bf16 %v9640, %v9640
    %v9643 = vpack.c.bf16 %v9641, %v9641
    %v9647 = vunpack.c.l.s4 1966171168
    %v9648 = vunpack.c.0.s8 %v9647
    %v9649 = vlaneseq
    %v9650 = vshrl.u32 %v9649, 7
    %v9651 = vsub.s32 %v9648, %v9650
    %v9652 = vrot.slane %v9642, %v9651
    %v9654 = vunpack.c.l.s4 1966171168
    %v9655 = vunpack.c.0.s8 %v9654
    %v9656 = vlaneseq
    %v9657 = vshrl.u32 %v9656, 7
    %v9658 = vsub.s32 %v9655, %v9657
    %v9659 = vrot.slane %v9652, %v9658
    %v9661 = vunpack.c.l.s4 1966171168
    %v9662 = vunpack.c.0.s8 %v9661
    %v9663 = vlaneseq
    %v9664 = vshrl.u32 %v9663, 7
    %v9665 = vsub.s32 %v9662, %v9664
    %v9666 = vrot.slane %v9643, %v9665
    %v9668 = vunpack.c.l.s4 1966171168
    %v9669 = vunpack.c.0.s8 %v9668
    %v9670 = vlaneseq
    %v9671 = vshrl.u32 %v9670, 7
    %v9672 = vsub.s32 %v9669, %v9671
    %v9673 = vrot.slane %v9666, %v9672
    %v9675 = vunpack.c.l.s4 1935823168
    %v9676 = vunpack.c.0.s8 %v9675
    %v9677 = vlaneseq
    %v9678 = vshrl.u32 %v9677, 7
    %v9679 = vsub.s32 %v9676, %v9678
    %v9680 = vrot.slane %v9659, %v9679
    %v9682 = vunpack.c.l.s4 1935823168
    %v9683 = vunpack.c.0.s8 %v9682
    %v9684 = vlaneseq
    %v9685 = vshrl.u32 %v9684, 7
    %v9686 = vsub.s32 %v9683, %v9685
    %v9687 = vrot.slane %v9680, %v9686
    %v9689 = vunpack.c.l.s4 1935823168
    %v9690 = vunpack.c.0.s8 %v9689
    %v9691 = vlaneseq
    %v9692 = vshrl.u32 %v9691, 7
    %v9693 = vsub.s32 %v9690, %v9692
    %v9694 = vrot.slane %v9673, %v9693
    %v9696 = vunpack.c.l.s4 1935823168
    %v9697 = vunpack.c.0.s8 %v9696
    %v9698 = vlaneseq
    %v9699 = vshrl.u32 %v9698, 7
    %v9700 = vsub.s32 %v9697, %v9699
    %v9701 = vrot.slane %v9694, %v9700
    %v9702 = vunpack.c.l.b16 %v9687
    %v9703 = vunpack.c.l.b16 %v9701
    %v9704 = vrot.slane %v9703, 7
    %v9705 = vsel %vm9425, %v9704, %v9702
    %v9706 = vpack.c.b16 %v9705, %v9705
    %v9708 = vunpack.c.l.s4 1966171168
    %v9709 = vunpack.c.0.s8 %v9708
    %v9710 = vlaneseq
    %v9711 = vshrl.u32 %v9710, 7
    %v9712 = vsub.s32 %v9709, %v9711
    %v9713 = vrot.slane %v9706, %v9712
    %v9715 = vunpack.c.l.s4 1966171168
    %v9716 = vunpack.c.0.s8 %v9715
    %v9717 = vlaneseq
    %v9718 = vshrl.u32 %v9717, 7
    %v9719 = vsub.s32 %v9716, %v9718
    %v9720 = vrot.slane %v9713, %v9719
    %9722 = vst.msk [vmem:[#allocation5 + $0x2] sm:$0x1] %vm9443, %v9720
    %v9723 = vcombine.high %v9652, %v9652
    %v9725 = vunpack.c.l.s4 1966171168
    %v9726 = vunpack.c.0.s8 %v9725
    %v9727 = vlaneseq
    %v9728 = vshrl.u32 %v9727, 7
    %v9729 = vsub.s32 %v9726, %v9728
    %v9730 = vrot.slane %v9723, %v9729
    %v9731 = vcombine.high %v9666, %v9666
    %v9733 = vunpack.c.l.s4 1966171168
    %v9734 = vunpack.c.0.s8 %v9733
    %v9735 = vlaneseq
    %v9736 = vshrl.u32 %v9735, 7
    %v9737 = vsub.s32 %v9734, %v9736
    %v9738 = vrot.slane %v9731, %v9737
    %v9740 = vunpack.c.l.s4 1935823168
    %v9741 = vunpack.c.0.s8 %v9740
    %v9742 = vlaneseq
    %v9743 = vshrl.u32 %v9742, 7
    %v9744 = vsub.s32 %v9741, %v9743
    %v9745 = vrot.slane %v9730, %v9744
    %v9747 = vunpack.c.l.s4 1935823168
    %v9748 = vunpack.c.0.s8 %v9747
    %v9749 = vlaneseq
    %v9750 = vshrl.u32 %v9749, 7
    %v9751 = vsub.s32 %v9748, %v9750
    %v9752 = vrot.slane %v9745, %v9751
    %v9754 = vunpack.c.l.s4 1935823168
    %v9755 = vunpack.c.0.s8 %v9754
    %v9756 = vlaneseq
    %v9757 = vshrl.u32 %v9756, 7
    %v9758 = vsub.s32 %v9755, %v9757
    %v9759 = vrot.slane %v9738, %v9758
    %v9761 = vunpack.c.l.s4 1935823168
    %v9762 = vunpack.c.0.s8 %v9761
    %v9763 = vlaneseq
    %v9764 = vshrl.u32 %v9763, 7
    %v9765 = vsub.s32 %v9762, %v9764
    %v9766 = vrot.slane %v9759, %v9765
    %v9767 = vunpack.c.l.b16 %v9752
    %v9768 = vunpack.c.l.b16 %v9766
    %v9769 = vrot.slane %v9768, 7
    %v9770 = vsel %vm9425, %v9769, %v9767
    %v9771 = vpack.c.b16 %v9770, %v9770
    %v9773 = vunpack.c.l.s4 1966171168
    %v9774 = vunpack.c.0.s8 %v9773
    %v9775 = vlaneseq
    %v9776 = vshrl.u32 %v9775, 7
    %v9777 = vsub.s32 %v9774, %v9776
    %v9778 = vrot.slane %v9771, %v9777
    %v9780 = vunpack.c.l.s4 1966171168
    %v9781 = vunpack.c.0.s8 %v9780
    %v9782 = vlaneseq
    %v9783 = vshrl.u32 %v9782, 7
    %v9784 = vsub.s32 %v9781, %v9783
    %v9785 = vrot.slane %v9778, %v9784
    %9786 = vrot.lane.b32.xlu0 %v9785, 64
    %v9787 = vpop.permute.xlu0 %9786
    %9789 = vst.msk [vmem:[#allocation5 + $0x2] sm:$0x1] %vm9511, %v9787
    %v9790 = vcombine.high %v9659, %v9659
    %v9791 = vcombine.high %v9673, %v9673
    %v9793 = vunpack.c.l.s4 1935823168
    %v9794 = vunpack.c.0.s8 %v9793
    %v9795 = vlaneseq
    %v9796 = vshrl.u32 %v9795, 7
    %v9797 = vsub.s32 %v9794, %v9796
    %v9798 = vrot.slane %v9790, %v9797
    %v9800 = vunpack.c.l.s4 1935823168
    %v9801 = vunpack.c.0.s8 %v9800
    %v9802 = vlaneseq
    %v9803 = vshrl.u32 %v9802, 7
    %v9804 = vsub.s32 %v9801, %v9803
    %v9805 = vrot.slane %v9798, %v9804
    %v9807 = vunpack.c.l.s4 1935823168
    %v9808 = vunpack.c.0.s8 %v9807
    %v9809 = vlaneseq
    %v9810 = vshrl.u32 %v9809, 7
    %v9811 = vsub.s32 %v9808, %v9810
    %v9812 = vrot.slane %v9791, %v9811
    %v9814 = vunpack.c.l.s4 1935823168
    %v9815 = vunpack.c.0.s8 %v9814
    %v9816 = vlaneseq
    %v9817 = vshrl.u32 %v9816, 7
    %v9818 = vsub.s32 %v9815, %v9817
    %v9819 = vrot.slane %v9812, %v9818
    %v9820 = vunpack.c.l.b16 %v9805
    %v9821 = vunpack.c.l.b16 %v9819
    %v9822 = vrot.slane %v9821, 7
    %v9823 = vsel %vm9425, %v9822, %v9820
    %v9824 = vpack.c.b16 %v9823, %v9823
    %v9826 = vunpack.c.l.s4 1966171168
    %v9827 = vunpack.c.0.s8 %v9826
    %v9828 = vlaneseq
    %v9829 = vshrl.u32 %v9828, 7
    %v9830 = vsub.s32 %v9827, %v9829
    %v9831 = vrot.slane %v9824, %v9830
    %v9833 = vunpack.c.l.s4 1966171168
    %v9834 = vunpack.c.0.s8 %v9833
    %v9835 = vlaneseq
    %v9836 = vshrl.u32 %v9835, 7
    %v9837 = vsub.s32 %v9834, %v9836
    %v9838 = vrot.slane %v9831, %v9837
    %9840 = vst.msk [vmem:[#allocation5 + $0x3] sm:$0x1] %vm9443, %v9838
    %v9841 = vcombine.high %v9730, %v9730
    %v9842 = vcombine.high %v9738, %v9738
    %v9844 = vunpack.c.l.s4 1935823168
    %v9845 = vunpack.c.0.s8 %v9844
    %v9846 = vlaneseq
    %v9847 = vshrl.u32 %v9846, 7
    %v9848 = vsub.s32 %v9845, %v9847
    %v9849 = vrot.slane %v9841, %v9848
    %v9851 = vunpack.c.l.s4 1935823168
    %v9852 = vunpack.c.0.s8 %v9851
    %v9853 = vlaneseq
    %v9854 = vshrl.u32 %v9853, 7
    %v9855 = vsub.s32 %v9852, %v9854
    %v9856 = vrot.slane %v9849, %v9855
    %v9858 = vunpack.c.l.s4 1935823168
    %v9859 = vunpack.c.0.s8 %v9858
    %v9860 = vlaneseq
    %v9861 = vshrl.u32 %v9860, 7
    %v9862 = vsub.s32 %v9859, %v9861
    %v9863 = vrot.slane %v9842, %v9862
    %v9865 = vunpack.c.l.s4 1935823168
    %v9866 = vunpack.c.0.s8 %v9865
    %v9867 = vlaneseq
    %v9868 = vshrl.u32 %v9867, 7
    %v9869 = vsub.s32 %v9866, %v9868
    %v9870 = vrot.slane %v9863, %v9869
    %v9871 = vunpack.c.l.b16 %v9856
    %v9872 = vunpack.c.l.b16 %v9870
    %v9873 = vrot.slane %v9872, 7
    %v9874 = vsel %vm9425, %v9873, %v9871
    %v9875 = vpack.c.b16 %v9874, %v9874
    %v9877 = vunpack.c.l.s4 1966171168
    %v9878 = vunpack.c.0.s8 %v9877
    %v9879 = vlaneseq
    %v9880 = vshrl.u32 %v9879, 7
    %v9881 = vsub.s32 %v9878, %v9880
    %v9882 = vrot.slane %v9875, %v9881
    %v9884 = vunpack.c.l.s4 1966171168
    %v9885 = vunpack.c.0.s8 %v9884
    %v9886 = vlaneseq
    %v9887 = vshrl.u32 %v9886, 7
    %v9888 = vsub.s32 %v9885, %v9887
    %v9889 = vrot.slane %v9882, %v9888
    %9890 = vrot.lane.b32.xlu0 %v9889, 64
    %v9891 = vpop.permute.xlu0 %9890
    %9893 = vst.msk [vmem:[#allocation5 + $0x3] sm:$0x1] %vm9511, %v9891
    %v9894 = vld [vmem:[#allocation4 + $0x30] sm:$0xff]
    %v9895 = vld [vmem:[#allocation4 + $0x90] sm:$0xff]
    %v9896 = vld [vmem:[#allocation4 + $0x3c] sm:$0xff]
    %v9897 = vld [vmem:[#allocation4 + $0x9c] sm:$0xff]
    %v9898 = vmax.f32 %v9894, %v9896
    %v9899 = vmax.f32 %v9895, %v9897
    %v9902 = vrot.slane %v9898, 1
    %v9903 = vrot.slane %v9899, 1
    %v9906 = vmax.f32 %v9898, %v9902
    %v9907 = vmax.f32 %v9899, %v9903
    %v9908 = vld [vmem:[%s4] sm:$0x1]
    %v9910 = vlaneseq
    %v9911 = vshrl.u32 %v9910, 7
    %v9912 = vsub.s32 0, %v9911
    %v9913 = vrot.slane %v9908, %v9912
    %v9915 = vadd.f32 %v9906, %v9913
    %v9916 = vadd.f32 %v9907, %v9913
    %v9917 = vmax.f32 %v9915, 0.0
    %v9918 = vmax.f32 %v9916, 0.0
    %v9919 = vpack.c.bf16 %v9917, %v9917
    %v9920 = vpack.c.bf16 %v9918, %v9918
    %v9924 = vunpack.c.l.s4 1966171168
    %v9925 = vunpack.c.0.s8 %v9924
    %v9926 = vlaneseq
    %v9927 = vshrl.u32 %v9926, 7
    %v9928 = vsub.s32 %v9925, %v9927
    %v9929 = vrot.slane %v9919, %v9928
    %v9931 = vunpack.c.l.s4 1966171168
    %v9932 = vunpack.c.0.s8 %v9931
    %v9933 = vlaneseq
    %v9934 = vshrl.u32 %v9933, 7
    %v9935 = vsub.s32 %v9932, %v9934
    %v9936 = vrot.slane %v9929, %v9935
    %v9938 = vunpack.c.l.s4 1966171168
    %v9939 = vunpack.c.0.s8 %v9938
    %v9940 = vlaneseq
    %v9941 = vshrl.u32 %v9940, 7
    %v9942 = vsub.s32 %v9939, %v9941
    %v9943 = vrot.slane %v9920, %v9942
    %v9945 = vunpack.c.l.s4 1966171168
    %v9946 = vunpack.c.0.s8 %v9945
    %v9947 = vlaneseq
    %v9948 = vshrl.u32 %v9947, 7
    %v9949 = vsub.s32 %v9946, %v9948
    %v9950 = vrot.slane %v9943, %v9949
    %v9952 = vunpack.c.l.s4 1935823168
    %v9953 = vunpack.c.0.s8 %v9952
    %v9954 = vlaneseq
    %v9955 = vshrl.u32 %v9954, 7
    %v9956 = vsub.s32 %v9953, %v9955
    %v9957 = vrot.slane %v9936, %v9956
    %v9959 = vunpack.c.l.s4 1935823168
    %v9960 = vunpack.c.0.s8 %v9959
    %v9961 = vlaneseq
    %v9962 = vshrl.u32 %v9961, 7
    %v9963 = vsub.s32 %v9960, %v9962
    %v9964 = vrot.slane %v9957, %v9963
    %v9966 = vunpack.c.l.s4 1935823168
    %v9967 = vunpack.c.0.s8 %v9966
    %v9968 = vlaneseq
    %v9969 = vshrl.u32 %v9968, 7
    %v9970 = vsub.s32 %v9967, %v9969
    %v9971 = vrot.slane %v9950, %v9970
    %v9973 = vunpack.c.l.s4 1935823168
    %v9974 = vunpack.c.0.s8 %v9973
    %v9975 = vlaneseq
    %v9976 = vshrl.u32 %v9975, 7
    %v9977 = vsub.s32 %v9974, %v9976
    %v9978 = vrot.slane %v9971, %v9977
    %v9979 = vunpack.c.l.b16 %v9964
    %v9980 = vunpack.c.l.b16 %v9978
    %v9981 = vrot.slane %v9980, 7
    %v9982 = vsel %vm9425, %v9981, %v9979
    %v9983 = vpack.c.b16 %v9982, %v9982
    %v9985 = vunpack.c.l.s4 1966171168
    %v9986 = vunpack.c.0.s8 %v9985
    %v9987 = vlaneseq
    %v9988 = vshrl.u32 %v9987, 7
    %v9989 = vsub.s32 %v9986, %v9988
    %v9990 = vrot.slane %v9983, %v9989
    %v9992 = vunpack.c.l.s4 1966171168
    %v9993 = vunpack.c.0.s8 %v9992
    %v9994 = vlaneseq
    %v9995 = vshrl.u32 %v9994, 7
    %v9996 = vsub.s32 %v9993, %v9995
    %v9997 = vrot.slane %v9990, %v9996
    %9999 = vst.msk [vmem:[#allocation5 + $0x4] sm:$0x1] %vm9443, %v9997
    %v10000 = vcombine.high %v9929, %v9929
    %v10002 = vunpack.c.l.s4 1966171168
    %v10003 = vunpack.c.0.s8 %v10002
    %v10004 = vlaneseq
    %v10005 = vshrl.u32 %v10004, 7
    %v10006 = vsub.s32 %v10003, %v10005
    %v10007 = vrot.slane %v10000, %v10006
    %v10008 = vcombine.high %v9943, %v9943
    %v10010 = vunpack.c.l.s4 1966171168
    %v10011 = vunpack.c.0.s8 %v10010
    %v10012 = vlaneseq
    %v10013 = vshrl.u32 %v10012, 7
    %v10014 = vsub.s32 %v10011, %v10013
    %v10015 = vrot.slane %v10008, %v10014
    %v10017 = vunpack.c.l.s4 1935823168
    %v10018 = vunpack.c.0.s8 %v10017
    %v10019 = vlaneseq
    %v10020 = vshrl.u32 %v10019, 7
    %v10021 = vsub.s32 %v10018, %v10020
    %v10022 = vrot.slane %v10007, %v10021
    %v10024 = vunpack.c.l.s4 1935823168
    %v10025 = vunpack.c.0.s8 %v10024
    %v10026 = vlaneseq
    %v10027 = vshrl.u32 %v10026, 7
    %v10028 = vsub.s32 %v10025, %v10027
    %v10029 = vrot.slane %v10022, %v10028
    %v10031 = vunpack.c.l.s4 1935823168
    %v10032 = vunpack.c.0.s8 %v10031
    %v10033 = vlaneseq
    %v10034 = vshrl.u32 %v10033, 7
    %v10035 = vsub.s32 %v10032, %v10034
    %v10036 = vrot.slane %v10015, %v10035
    %v10038 = vunpack.c.l.s4 1935823168
    %v10039 = vunpack.c.0.s8 %v10038
    %v10040 = vlaneseq
    %v10041 = vshrl.u32 %v10040, 7
    %v10042 = vsub.s32 %v10039, %v10041
    %v10043 = vrot.slane %v10036, %v10042
    %v10044 = vunpack.c.l.b16 %v10029
    %v10045 = vunpack.c.l.b16 %v10043
    %v10046 = vrot.slane %v10045, 7
    %v10047 = vsel %vm9425, %v10046, %v10044
    %v10048 = vpack.c.b16 %v10047, %v10047
    %v10050 = vunpack.c.l.s4 1966171168
    %v10051 = vunpack.c.0.s8 %v10050
    %v10052 = vlaneseq
    %v10053 = vshrl.u32 %v10052, 7
    %v10054 = vsub.s32 %v10051, %v10053
    %v10055 = vrot.slane %v10048, %v10054
    %v10057 = vunpack.c.l.s4 1966171168
    %v10058 = vunpack.c.0.s8 %v10057
    %v10059 = vlaneseq
    %v10060 = vshrl.u32 %v10059, 7
    %v10061 = vsub.s32 %v10058, %v10060
    %v10062 = vrot.slane %v10055, %v10061
    %10063 = vrot.lane.b32.xlu0 %v10062, 64
    %v10064 = vpop.permute.xlu0 %10063
    %10066 = vst.msk [vmem:[#allocation5 + $0x4] sm:$0x1] %vm9511, %v10064
    %v10067 = vcombine.high %v9936, %v9936
    %v10068 = vcombine.high %v9950, %v9950
    %v10070 = vunpack.c.l.s4 1935823168
    %v10071 = vunpack.c.0.s8 %v10070
    %v10072 = vlaneseq
    %v10073 = vshrl.u32 %v10072, 7
    %v10074 = vsub.s32 %v10071, %v10073
    %v10075 = vrot.slane %v10067, %v10074
    %v10077 = vunpack.c.l.s4 1935823168
    %v10078 = vunpack.c.0.s8 %v10077
    %v10079 = vlaneseq
    %v10080 = vshrl.u32 %v10079, 7
    %v10081 = vsub.s32 %v10078, %v10080
    %v10082 = vrot.slane %v10075, %v10081
    %v10084 = vunpack.c.l.s4 1935823168
    %v10085 = vunpack.c.0.s8 %v10084
    %v10086 = vlaneseq
    %v10087 = vshrl.u32 %v10086, 7
    %v10088 = vsub.s32 %v10085, %v10087
    %v10089 = vrot.slane %v10068, %v10088
    %v10091 = vunpack.c.l.s4 1935823168
    %v10092 = vunpack.c.0.s8 %v10091
    %v10093 = vlaneseq
    %v10094 = vshrl.u32 %v10093, 7
    %v10095 = vsub.s32 %v10092, %v10094
    %v10096 = vrot.slane %v10089, %v10095
    %v10097 = vunpack.c.l.b16 %v10082
    %v10098 = vunpack.c.l.b16 %v10096
    %v10099 = vrot.slane %v10098, 7
    %v10100 = vsel %vm9425, %v10099, %v10097
    %v10101 = vpack.c.b16 %v10100, %v10100
    %v10103 = vunpack.c.l.s4 1966171168
    %v10104 = vunpack.c.0.s8 %v10103
    %v10105 = vlaneseq
    %v10106 = vshrl.u32 %v10105, 7
    %v10107 = vsub.s32 %v10104, %v10106
    %v10108 = vrot.slane %v10101, %v10107
    %v10110 = vunpack.c.l.s4 1966171168
    %v10111 = vunpack.c.0.s8 %v10110
    %v10112 = vlaneseq
    %v10113 = vshrl.u32 %v10112, 7
    %v10114 = vsub.s32 %v10111, %v10113
    %v10115 = vrot.slane %v10108, %v10114
    %10117 = vst.msk [vmem:[#allocation5 + $0x5] sm:$0x1] %vm9443, %v10115
    %v10118 = vcombine.high %v10007, %v10007
    %v10119 = vcombine.high %v10015, %v10015
    %v10121 = vunpack.c.l.s4 1935823168
    %v10122 = vunpack.c.0.s8 %v10121
    %v10123 = vlaneseq
    %v10124 = vshrl.u32 %v10123, 7
    %v10125 = vsub.s32 %v10122, %v10124
    %v10126 = vrot.slane %v10118, %v10125
    %v10128 = vunpack.c.l.s4 1935823168
    %v10129 = vunpack.c.0.s8 %v10128
    %v10130 = vlaneseq
    %v10131 = vshrl.u32 %v10130, 7
    %v10132 = vsub.s32 %v10129, %v10131
    %v10133 = vrot.slane %v10126, %v10132
    %v10135 = vunpack.c.l.s4 1935823168
    %v10136 = vunpack.c.0.s8 %v10135
    %v10137 = vlaneseq
    %v10138 = vshrl.u32 %v10137, 7
    %v10139 = vsub.s32 %v10136, %v10138
    %v10140 = vrot.slane %v10119, %v10139
    %v10142 = vunpack.c.l.s4 1935823168
    %v10143 = vunpack.c.0.s8 %v10142
    %v10144 = vlaneseq
    %v10145 = vshrl.u32 %v10144, 7
    %v10146 = vsub.s32 %v10143, %v10145
    %v10147 = vrot.slane %v10140, %v10146
    %v10148 = vunpack.c.l.b16 %v10133
    %v10149 = vunpack.c.l.b16 %v10147
    %v10150 = vrot.slane %v10149, 7
    %v10151 = vsel %vm9425, %v10150, %v10148
    %v10152 = vpack.c.b16 %v10151, %v10151
    %v10154 = vunpack.c.l.s4 1966171168
    %v10155 = vunpack.c.0.s8 %v10154
    %v10156 = vlaneseq
    %v10157 = vshrl.u32 %v10156, 7
    %v10158 = vsub.s32 %v10155, %v10157
    %v10159 = vrot.slane %v10152, %v10158
    %v10161 = vunpack.c.l.s4 1966171168
    %v10162 = vunpack.c.0.s8 %v10161
    %v10163 = vlaneseq
    %v10164 = vshrl.u32 %v10163, 7
    %v10165 = vsub.s32 %v10162, %v10164
    %v10166 = vrot.slane %v10159, %v10165
    %10167 = vrot.lane.b32.xlu0 %v10166, 64
    %v10168 = vpop.permute.xlu0 %10167
    %10170 = vst.msk [vmem:[#allocation5 + $0x5] sm:$0x1] %vm9511, %v10168
    %v10171 = vld [vmem:[#allocation4 + $0x48] sm:$0xff]
    %v10172 = vld [vmem:[#allocation4 + $0xa8] sm:$0xff]
    %v10173 = vld [vmem:[#allocation4 + $0x54] sm:$0xff]
    %v10174 = vld [vmem:[#allocation4 + $0xb4] sm:$0xff]
    %v10175 = vmax.f32 %v10171, %v10173
    %v10176 = vmax.f32 %v10172, %v10174
    %v10179 = vrot.slane %v10175, 1
    %v10180 = vrot.slane %v10176, 1
    %v10183 = vmax.f32 %v10175, %v10179
    %v10184 = vmax.f32 %v10176, %v10180
    %v10185 = vld [vmem:[%s4] sm:$0x1]
    %v10187 = vlaneseq
    %v10188 = vshrl.u32 %v10187, 7
    %v10189 = vsub.s32 0, %v10188
    %v10190 = vrot.slane %v10185, %v10189
    %v10192 = vadd.f32 %v10183, %v10190
    %v10193 = vadd.f32 %v10184, %v10190
    %v10194 = vmax.f32 %v10192, 0.0
    %v10195 = vmax.f32 %v10193, 0.0
    %v10196 = vpack.c.bf16 %v10194, %v10194
    %v10197 = vpack.c.bf16 %v10195, %v10195
    %v10201 = vunpack.c.l.s4 1966171168
    %v10202 = vunpack.c.0.s8 %v10201
    %v10203 = vlaneseq
    %v10204 = vshrl.u32 %v10203, 7
    %v10205 = vsub.s32 %v10202, %v10204
    %v10206 = vrot.slane %v10196, %v10205
    %v10208 = vunpack.c.l.s4 1966171168
    %v10209 = vunpack.c.0.s8 %v10208
    %v10210 = vlaneseq
    %v10211 = vshrl.u32 %v10210, 7
    %v10212 = vsub.s32 %v10209, %v10211
    %v10213 = vrot.slane %v10206, %v10212
    %v10215 = vunpack.c.l.s4 1966171168
    %v10216 = vunpack.c.0.s8 %v10215
    %v10217 = vlaneseq
    %v10218 = vshrl.u32 %v10217, 7
    %v10219 = vsub.s32 %v10216, %v10218
    %v10220 = vrot.slane %v10197, %v10219
    %v10222 = vunpack.c.l.s4 1966171168
    %v10223 = vunpack.c.0.s8 %v10222
    %v10224 = vlaneseq
    %v10225 = vshrl.u32 %v10224, 7
    %v10226 = vsub.s32 %v10223, %v10225
    %v10227 = vrot.slane %v10220, %v10226
    %v10229 = vunpack.c.l.s4 1935823168
    %v10230 = vunpack.c.0.s8 %v10229
    %v10231 = vlaneseq
    %v10232 = vshrl.u32 %v10231, 7
    %v10233 = vsub.s32 %v10230, %v10232
    %v10234 = vrot.slane %v10213, %v10233
    %v10236 = vunpack.c.l.s4 1935823168
    %v10237 = vunpack.c.0.s8 %v10236
    %v10238 = vlaneseq
    %v10239 = vshrl.u32 %v10238, 7
    %v10240 = vsub.s32 %v10237, %v10239
    %v10241 = vrot.slane %v10234, %v10240
    %v10243 = vunpack.c.l.s4 1935823168
    %v10244 = vunpack.c.0.s8 %v10243
    %v10245 = vlaneseq
    %v10246 = vshrl.u32 %v10245, 7
    %v10247 = vsub.s32 %v10244, %v10246
    %v10248 = vrot.slane %v10227, %v10247
    %v10250 = vunpack.c.l.s4 1935823168
    %v10251 = vunpack.c.0.s8 %v10250
    %v10252 = vlaneseq
    %v10253 = vshrl.u32 %v10252, 7
    %v10254 = vsub.s32 %v10251, %v10253
    %v10255 = vrot.slane %v10248, %v10254
    %v10256 = vunpack.c.l.b16 %v10241
    %v10257 = vunpack.c.l.b16 %v10255
    %v10258 = vrot.slane %v10257, 7
    %v10259 = vsel %vm9425, %v10258, %v10256
    %v10260 = vpack.c.b16 %v10259, %v10259
    %v10262 = vunpack.c.l.s4 1966171168
    %v10263 = vunpack.c.0.s8 %v10262
    %v10264 = vlaneseq
    %v10265 = vshrl.u32 %v10264, 7
    %v10266 = vsub.s32 %v10263, %v10265
    %v10267 = vrot.slane %v10260, %v10266
    %v10269 = vunpack.c.l.s4 1966171168
    %v10270 = vunpack.c.0.s8 %v10269
    %v10271 = vlaneseq
    %v10272 = vshrl.u32 %v10271, 7
    %v10273 = vsub.s32 %v10270, %v10272
    %v10274 = vrot.slane %v10267, %v10273
    %10276 = vst.msk [vmem:[#allocation5 + $0x6] sm:$0x1] %vm9443, %v10274
    %v10277 = vcombine.high %v10206, %v10206
    %v10279 = vunpack.c.l.s4 1966171168
    %v10280 = vunpack.c.0.s8 %v10279
    %v10281 = vlaneseq
    %v10282 = vshrl.u32 %v10281, 7
    %v10283 = vsub.s32 %v10280, %v10282
    %v10284 = vrot.slane %v10277, %v10283
    %v10285 = vcombine.high %v10220, %v10220
    %v10287 = vunpack.c.l.s4 1966171168
    %v10288 = vunpack.c.0.s8 %v10287
    %v10289 = vlaneseq
    %v10290 = vshrl.u32 %v10289, 7
    %v10291 = vsub.s32 %v10288, %v10290
    %v10292 = vrot.slane %v10285, %v10291
    %v10294 = vunpack.c.l.s4 1935823168
    %v10295 = vunpack.c.0.s8 %v10294
    %v10296 = vlaneseq
    %v10297 = vshrl.u32 %v10296, 7
    %v10298 = vsub.s32 %v10295, %v10297
    %v10299 = vrot.slane %v10284, %v10298
    %v10301 = vunpack.c.l.s4 1935823168
    %v10302 = vunpack.c.0.s8 %v10301
    %v10303 = vlaneseq
    %v10304 = vshrl.u32 %v10303, 7
    %v10305 = vsub.s32 %v10302, %v10304
    %v10306 = vrot.slane %v10299, %v10305
    %v10308 = vunpack.c.l.s4 1935823168
    %v10309 = vunpack.c.0.s8 %v10308
    %v10310 = vlaneseq
    %v10311 = vshrl.u32 %v10310, 7
    %v10312 = vsub.s32 %v10309, %v10311
    %v10313 = vrot.slane %v10292, %v10312
    %v10315 = vunpack.c.l.s4 1935823168
    %v10316 = vunpack.c.0.s8 %v10315
    %v10317 = vlaneseq
    %v10318 = vshrl.u32 %v10317, 7
    %v10319 = vsub.s32 %v10316, %v10318
    %v10320 = vrot.slane %v10313, %v10319
    %v10321 = vunpack.c.l.b16 %v10306
    %v10322 = vunpack.c.l.b16 %v10320
    %v10323 = vrot.slane %v10322, 7
    %v10324 = vsel %vm9425, %v10323, %v10321
    %v10325 = vpack.c.b16 %v10324, %v10324
    %v10327 = vunpack.c.l.s4 1966171168
    %v10328 = vunpack.c.0.s8 %v10327
    %v10329 = vlaneseq
    %v10330 = vshrl.u32 %v10329, 7
    %v10331 = vsub.s32 %v10328, %v10330
    %v10332 = vrot.slane %v10325, %v10331
    %v10334 = vunpack.c.l.s4 1966171168
    %v10335 = vunpack.c.0.s8 %v10334
    %v10336 = vlaneseq
    %v10337 = vshrl.u32 %v10336, 7
    %v10338 = vsub.s32 %v10335, %v10337
    %v10339 = vrot.slane %v10332, %v10338
    %10340 = vrot.lane.b32.xlu0 %v10339, 64
    %v10341 = vpop.permute.xlu0 %10340
    %10343 = vst.msk [vmem:[#allocation5 + $0x6] sm:$0x1] %vm9511, %v10341
    %v10344 = vcombine.high %v10213, %v10213
    %v10345 = vcombine.high %v10227, %v10227
    %v10347 = vunpack.c.l.s4 1935823168
    %v10348 = vunpack.c.0.s8 %v10347
    %v10349 = vlaneseq
    %v10350 = vshrl.u32 %v10349, 7
    %v10351 = vsub.s32 %v10348, %v10350
    %v10352 = vrot.slane %v10344, %v10351
    %v10354 = vunpack.c.l.s4 1935823168
    %v10355 = vunpack.c.0.s8 %v10354
    %v10356 = vlaneseq
    %v10357 = vshrl.u32 %v10356, 7
    %v10358 = vsub.s32 %v10355, %v10357
    %v10359 = vrot.slane %v10352, %v10358
    %v10361 = vunpack.c.l.s4 1935823168
    %v10362 = vunpack.c.0.s8 %v10361
    %v10363 = vlaneseq
    %v10364 = vshrl.u32 %v10363, 7
    %v10365 = vsub.s32 %v10362, %v10364
    %v10366 = vrot.slane %v10345, %v10365
    %v10368 = vunpack.c.l.s4 1935823168
    %v10369 = vunpack.c.0.s8 %v10368
    %v10370 = vlaneseq
    %v10371 = vshrl.u32 %v10370, 7
    %v10372 = vsub.s32 %v10369, %v10371
    %v10373 = vrot.slane %v10366, %v10372
    %v10374 = vunpack.c.l.b16 %v10359
    %v10375 = vunpack.c.l.b16 %v10373
    %v10376 = vrot.slane %v10375, 7
    %v10377 = vsel %vm9425, %v10376, %v10374
    %v10378 = vpack.c.b16 %v10377, %v10377
    %v10380 = vunpack.c.l.s4 1966171168
    %v10381 = vunpack.c.0.s8 %v10380
    %v10382 = vlaneseq
    %v10383 = vshrl.u32 %v10382, 7
    %v10384 = vsub.s32 %v10381, %v10383
    %v10385 = vrot.slane %v10378, %v10384
    %v10387 = vunpack.c.l.s4 1966171168
    %v10388 = vunpack.c.0.s8 %v10387
    %v10389 = vlaneseq
    %v10390 = vshrl.u32 %v10389, 7
    %v10391 = vsub.s32 %v10388, %v10390
    %v10392 = vrot.slane %v10385, %v10391
    %10394 = vst.msk [vmem:[#allocation5 + $0x7] sm:$0x1] %vm9443, %v10392
    %v10395 = vcombine.high %v10284, %v10284
    %v10396 = vcombine.high %v10292, %v10292
    %v10398 = vunpack.c.l.s4 1935823168
    %v10399 = vunpack.c.0.s8 %v10398
    %v10400 = vlaneseq
    %v10401 = vshrl.u32 %v10400, 7
    %v10402 = vsub.s32 %v10399, %v10401
    %v10403 = vrot.slane %v10395, %v10402
    %v10405 = vunpack.c.l.s4 1935823168
    %v10406 = vunpack.c.0.s8 %v10405
    %v10407 = vlaneseq
    %v10408 = vshrl.u32 %v10407, 7
    %v10409 = vsub.s32 %v10406, %v10408
    %v10410 = vrot.slane %v10403, %v10409
    %v10412 = vunpack.c.l.s4 1935823168
    %v10413 = vunpack.c.0.s8 %v10412
    %v10414 = vlaneseq
    %v10415 = vshrl.u32 %v10414, 7
    %v10416 = vsub.s32 %v10413, %v10415
    %v10417 = vrot.slane %v10396, %v10416
    %v10419 = vunpack.c.l.s4 1935823168
    %v10420 = vunpack.c.0.s8 %v10419
    %v10421 = vlaneseq
    %v10422 = vshrl.u32 %v10421, 7
    %v10423 = vsub.s32 %v10420, %v10422
    %v10424 = vrot.slane %v10417, %v10423
    %v10425 = vunpack.c.l.b16 %v10410
    %v10426 = vunpack.c.l.b16 %v10424
    %v10427 = vrot.slane %v10426, 7
    %v10428 = vsel %vm9425, %v10427, %v10425
    %v10429 = vpack.c.b16 %v10428, %v10428
    %v10431 = vunpack.c.l.s4 1966171168
    %v10432 = vunpack.c.0.s8 %v10431
    %v10433 = vlaneseq
    %v10434 = vshrl.u32 %v10433, 7
    %v10435 = vsub.s32 %v10432, %v10434
    %v10436 = vrot.slane %v10429, %v10435
    %v10438 = vunpack.c.l.s4 1966171168
    %v10439 = vunpack.c.0.s8 %v10438
    %v10440 = vlaneseq
    %v10441 = vshrl.u32 %v10440, 7
    %v10442 = vsub.s32 %v10439, %v10441
    %v10443 = vrot.slane %v10436, %v10442
    %10444 = vrot.lane.b32.xlu0 %v10443, 64
    %v10445 = vpop.permute.xlu0 %10444
    %10447 = vst.msk [vmem:[#allocation5 + $0x7] sm:$0x1] %vm9511, %v10445
    %v10448 = vld [vmem:[#allocation5] sm:$0xff]
    %v10449 = vld [vmem:[%s5] sm:$0xff]
    %v10450 = vld [vmem:[%s5 + $0x8] sm:$0xff]
    %v10451 = vld [vmem:[%s5 + $0x10] sm:$0xff]
    %v10452 = vld [vmem:[%s5 + $0x18] sm:$0xff]
    %v10453 = vld [vmem:[%s5 + $0x20] sm:$0xff]
    %v10454 = vld [vmem:[%s5 + $0x28] sm:$0xff]
    %v10455 = vld [vmem:[%s5 + $0x30] sm:$0xff]
    %v10456 = vld [vmem:[%s5 + $0x38] sm:$0xff]
    %v10457 = vld [vmem:[%s5 + $0x40] sm:$0xff]
    %v10458 = vld [vmem:[%s5 + $0x48] sm:$0xff]
    %v10459 = vld [vmem:[%s5 + $0x50] sm:$0xff]
    %v10460 = vld [vmem:[%s5 + $0x58] sm:$0xff]
    %v10461 = vld [vmem:[%s5 + $0x60] sm:$0xff]
    %v10462 = vld [vmem:[%s5 + $0x68] sm:$0xff]
    %v10463 = vld [vmem:[%s5 + $0x70] sm:$0xff]
    %v10464 = vld [vmem:[%s5 + $0x78] sm:$0xff]
    %v10465 = vld [vmem:[%s5 + $0x80] sm:$0xff]
    %v10466 = vld [vmem:[%s5 + $0x88] sm:$0xff]
    %v10467 = vld [vmem:[%s5 + $0x90] sm:$0xff]
    %v10468 = vld [vmem:[%s5 + $0x98] sm:$0xff]
    %v10469 = vld [vmem:[%s5 + $0xa0] sm:$0xff]
    %v10470 = vld [vmem:[%s5 + $0xa8] sm:$0xff]
    %v10471 = vld [vmem:[%s5 + $0xb0] sm:$0xff]
    %v10472 = vld [vmem:[%s5 + $0xb8] sm:$0xff]
    %v10473 = vld [vmem:[%s5 + $0xc0] sm:$0xff]
    %v10474 = vld [vmem:[%s5 + $0xc8] sm:$0xff]
    %v10475 = vld [vmem:[%s5 + $0xd0] sm:$0xff]
    %v10476 = vld [vmem:[%s5 + $0xd8] sm:$0xff]
    %v10477 = vld [vmem:[%s5 + $0xe0] sm:$0xff]
    %v10478 = vld [vmem:[%s5 + $0xe8] sm:$0xff]
    %v10479 = vld [vmem:[%s5 + $0xf0] sm:$0xff]
    %v10480 = vld [vmem:[%s5 + $0xf8] sm:$0xff]
    %v10481 = vld [vmem:[%s5 + $0x100] sm:$0xff]
    %v10482 = vld [vmem:[%s5 + $0x108] sm:$0xff]
    %v10483 = vld [vmem:[%s5 + $0x110] sm:$0xff]
    %v10484 = vld [vmem:[%s5 + $0x118] sm:$0xff]
    %v10485 = vld [vmem:[%s5 + $0x120] sm:$0xff]
    %v10486 = vld [vmem:[%s5 + $0x128] sm:$0xff]
    %v10487 = vld [vmem:[%s5 + $0x130] sm:$0xff]
    %v10488 = vld [vmem:[%s5 + $0x138] sm:$0xff]
    %v10489 = vld [vmem:[%s5 + $0x140] sm:$0xff]
    %v10490 = vld [vmem:[%s5 + $0x148] sm:$0xff]
    %v10491 = vld [vmem:[%s5 + $0x150] sm:$0xff]
    %v10492 = vld [vmem:[%s5 + $0x158] sm:$0xff]
    %v10493 = vld [vmem:[%s5 + $0x160] sm:$0xff]
    %v10494 = vld [vmem:[%s5 + $0x168] sm:$0xff]
    %v10495 = vld [vmem:[%s5 + $0x170] sm:$0xff]
    %v10496 = vld [vmem:[%s5 + $0x178] sm:$0xff]
    %v10497 = vld [vmem:[%s5 + $0x180] sm:$0xff]
    %v10498 = vld [vmem:[%s5 + $0x188] sm:$0xff]
    %v10499 = vld [vmem:[%s5 + $0x190] sm:$0xff]
    %v10500 = vld [vmem:[%s5 + $0x198] sm:$0xff]
    %v10501 = vld [vmem:[%s5 + $0x1a0] sm:$0xff]
    %v10502 = vld [vmem:[%s5 + $0x1a8] sm:$0xff]
    %v10503 = vld [vmem:[%s5 + $0x1b0] sm:$0xff]
    %v10504 = vld [vmem:[%s5 + $0x1b8] sm:$0xff]
    %v10505 = vld [vmem:[%s5 + $0x1c0] sm:$0xff]
    %v10506 = vld [vmem:[%s5 + $0x1c8] sm:$0xff]
    %v10507 = vld [vmem:[%s5 + $0x1d0] sm:$0xff]
    %v10508 = vld [vmem:[%s5 + $0x1d8] sm:$0xff]
    %v10509 = vld [vmem:[%s5 + $0x1e0] sm:$0xff]
    %v10510 = vld [vmem:[%s5 + $0x1e8] sm:$0xff]
    %v10511 = vld [vmem:[%s5 + $0x1f0] sm:$0xff]
    %v10512 = vld [vmem:[%s5 + $0x1f8] sm:$0xff]
    %v10513 = vld [vmem:[%s5 + $0x200] sm:$0xff]
    %v10514 = vld [vmem:[%s5 + $0x208] sm:$0xff]
    %v10515 = vld [vmem:[%s5 + $0x210] sm:$0xff]
    %v10516 = vld [vmem:[%s5 + $0x218] sm:$0xff]
    %v10517 = vld [vmem:[%s5 + $0x220] sm:$0xff]
    %v10518 = vld [vmem:[%s5 + $0x228] sm:$0xff]
    %v10519 = vld [vmem:[%s5 + $0x230] sm:$0xff]
    %v10520 = vld [vmem:[%s5 + $0x238] sm:$0xff]
    %v10521 = vld [vmem:[%s5 + $0x240] sm:$0xff]
    %v10522 = vld [vmem:[%s5 + $0x248] sm:$0xff]
    %v10523 = vld [vmem:[%s5 + $0x250] sm:$0xff]
    %v10524 = vld [vmem:[%s5 + $0x258] sm:$0xff]
    %v10525 = vld [vmem:[%s5 + $0x260] sm:$0xff]
    %v10526 = vld [vmem:[%s5 + $0x268] sm:$0xff]
    %v10527 = vld [vmem:[%s5 + $0x270] sm:$0xff]
    %v10528 = vld [vmem:[%s5 + $0x278] sm:$0xff]
    %v10529 = vld [vmem:[%s5 + $0x280] sm:$0xff]
    %v10530 = vld [vmem:[%s5 + $0x288] sm:$0xff]
    %v10531 = vld [vmem:[%s5 + $0x290] sm:$0xff]
    %v10532 = vld [vmem:[%s5 + $0x298] sm:$0xff]
    %v10533 = vld [vmem:[%s5 + $0x2a0] sm:$0xff]
    %v10534 = vld [vmem:[%s5 + $0x2a8] sm:$0xff]
    %v10535 = vld [vmem:[%s5 + $0x2b0] sm:$0xff]
    %v10536 = vld [vmem:[%s5 + $0x2b8] sm:$0xff]
    %v10537 = vld [vmem:[%s5 + $0x2c0] sm:$0xff]
    %v10538 = vld [vmem:[%s5 + $0x2c8] sm:$0xff]
    %v10539 = vld [vmem:[%s5 + $0x2d0] sm:$0xff]
    %v10540 = vld [vmem:[%s5 + $0x2d8] sm:$0xff]
    %v10541 = vld [vmem:[%s5 + $0x2e0] sm:$0xff]
    %v10542 = vld [vmem:[%s5 + $0x2e8] sm:$0xff]
    %v10543 = vld [vmem:[%s5 + $0x2f0] sm:$0xff]
    %v10544 = vld [vmem:[%s5 + $0x2f8] sm:$0xff]
    %v10545 = vld [vmem:[%s5 + $0x300] sm:$0xff]
    %v10546 = vld [vmem:[%s5 + $0x308] sm:$0xff]
    %v10547 = vld [vmem:[%s5 + $0x310] sm:$0xff]
    %v10548 = vld [vmem:[%s5 + $0x318] sm:$0xff]
    %v10549 = vld [vmem:[%s5 + $0x320] sm:$0xff]
    %v10550 = vld [vmem:[%s5 + $0x328] sm:$0xff]
    %v10551 = vld [vmem:[%s5 + $0x330] sm:$0xff]
    %v10552 = vld [vmem:[%s5 + $0x338] sm:$0xff]
    %v10553 = vld [vmem:[%s5 + $0x340] sm:$0xff]
    %v10554 = vld [vmem:[%s5 + $0x348] sm:$0xff]
    %v10555 = vld [vmem:[%s5 + $0x350] sm:$0xff]
    %v10556 = vld [vmem:[%s5 + $0x358] sm:$0xff]
    %v10557 = vld [vmem:[%s5 + $0x360] sm:$0xff]
    %v10558 = vld [vmem:[%s5 + $0x368] sm:$0xff]
    %v10559 = vld [vmem:[%s5 + $0x370] sm:$0xff]
    %v10560 = vld [vmem:[%s5 + $0x378] sm:$0xff]
    %v10561 = vld [vmem:[%s5 + $0x380] sm:$0xff]
    %v10562 = vld [vmem:[%s5 + $0x388] sm:$0xff]
    %v10563 = vld [vmem:[%s5 + $0x390] sm:$0xff]
    %v10564 = vld [vmem:[%s5 + $0x398] sm:$0xff]
    %v10565 = vld [vmem:[%s5 + $0x3a0] sm:$0xff]
    %v10566 = vld [vmem:[%s5 + $0x3a8] sm:$0xff]
    %v10567 = vld [vmem:[%s5 + $0x3b0] sm:$0xff]
    %v10568 = vld [vmem:[%s5 + $0x3b8] sm:$0xff]
    %v10569 = vld [vmem:[%s5 + $0x3c0] sm:$0xff]
    %v10570 = vld [vmem:[%s5 + $0x3c8] sm:$0xff]
    %v10571 = vld [vmem:[%s5 + $0x3d0] sm:$0xff]
    %v10572 = vld [vmem:[%s5 + $0x3d8] sm:$0xff]
    %v10573 = vld [vmem:[%s5 + $0x3e0] sm:$0xff]
    %v10574 = vld [vmem:[%s5 + $0x3e8] sm:$0xff]
    %v10575 = vld [vmem:[%s5 + $0x3f0] sm:$0xff]
    %v10576 = vld [vmem:[%s5 + $0x3f8] sm:$0xff]
    %v10577 = vld [vmem:[%s5 + $0x400] sm:$0xff]
    %v10578 = vld [vmem:[%s5 + $0x408] sm:$0xff]
    %v10579 = vld [vmem:[%s5 + $0x410] sm:$0xff]
    %v10580 = vld [vmem:[%s5 + $0x418] sm:$0xff]
    %v10581 = vld [vmem:[%s5 + $0x420] sm:$0xff]
    %v10582 = vld [vmem:[%s5 + $0x428] sm:$0xff]
    %v10583 = vld [vmem:[%s5 + $0x430] sm:$0xff]
    %v10584 = vld [vmem:[%s5 + $0x438] sm:$0xff]
    %v10585 = vld [vmem:[%s5 + $0x440] sm:$0xff]
    %v10586 = vld [vmem:[%s5 + $0x448] sm:$0xff]
    %v10587 = vld [vmem:[%s5 + $0x450] sm:$0xff]
    %v10588 = vld [vmem:[%s5 + $0x458] sm:$0xff]
    %v10589 = vld [vmem:[%s5 + $0x460] sm:$0xff]
    %v10590 = vld [vmem:[%s5 + $0x468] sm:$0xff]
    %v10591 = vld [vmem:[%s5 + $0x470] sm:$0xff]
    %v10592 = vld [vmem:[%s5 + $0x478] sm:$0xff]
    %v10593 = vld [vmem:[%s5 + $0x480] sm:$0xff]
    %v10594 = vld [vmem:[%s5 + $0x488] sm:$0xff]
    %v10595 = vld [vmem:[%s5 + $0x490] sm:$0xff]
    %v10596 = vld [vmem:[%s5 + $0x498] sm:$0xff]
    %v10597 = vld [vmem:[%s5 + $0x4a0] sm:$0xff]
    %v10598 = vld [vmem:[%s5 + $0x4a8] sm:$0xff]
    %v10599 = vld [vmem:[%s5 + $0x4b0] sm:$0xff]
    %v10600 = vld [vmem:[%s5 + $0x4b8] sm:$0xff]
    %v10601 = vld [vmem:[%s5 + $0x4c0] sm:$0xff]
    %v10602 = vld [vmem:[%s5 + $0x4c8] sm:$0xff]
    %v10603 = vld [vmem:[%s5 + $0x4d0] sm:$0xff]
    %v10604 = vld [vmem:[%s5 + $0x4d8] sm:$0xff]
    %v10605 = vld [vmem:[%s5 + $0x4e0] sm:$0xff]
    %v10606 = vld [vmem:[%s5 + $0x4e8] sm:$0xff]
    %v10607 = vld [vmem:[%s5 + $0x4f0] sm:$0xff]
    %v10608 = vld [vmem:[%s5 + $0x4f8] sm:$0xff]
    %v10609 = vld [vmem:[%s5 + $0x500] sm:$0xff]
    %v10610 = vld [vmem:[%s5 + $0x508] sm:$0xff]
    %v10611 = vld [vmem:[%s5 + $0x510] sm:$0xff]
    %v10612 = vld [vmem:[%s5 + $0x518] sm:$0xff]
    %v10613 = vld [vmem:[%s5 + $0x520] sm:$0xff]
    %v10614 = vld [vmem:[%s5 + $0x528] sm:$0xff]
    %v10615 = vld [vmem:[%s5 + $0x530] sm:$0xff]
    %v10616 = vld [vmem:[%s5 + $0x538] sm:$0xff]
    %v10617 = vld [vmem:[%s5 + $0x540] sm:$0xff]
    %v10618 = vld [vmem:[%s5 + $0x548] sm:$0xff]
    %v10619 = vld [vmem:[%s5 + $0x550] sm:$0xff]
    %v10620 = vld [vmem:[%s5 + $0x558] sm:$0xff]
    %v10621 = vld [vmem:[%s5 + $0x560] sm:$0xff]
    %v10622 = vld [vmem:[%s5 + $0x568] sm:$0xff]
    %v10623 = vld [vmem:[%s5 + $0x570] sm:$0xff]
    %v10624 = vld [vmem:[%s5 + $0x578] sm:$0xff]
    %v10625 = vld [vmem:[%s5 + $0x580] sm:$0xff]
    %v10626 = vld [vmem:[%s5 + $0x588] sm:$0xff]
    %v10627 = vld [vmem:[%s5 + $0x590] sm:$0xff]
    %v10628 = vld [vmem:[%s5 + $0x598] sm:$0xff]
    %v10629 = vld [vmem:[%s5 + $0x5a0] sm:$0xff]
    %v10630 = vld [vmem:[%s5 + $0x5a8] sm:$0xff]
    %v10631 = vld [vmem:[%s5 + $0x5b0] sm:$0xff]
    %v10632 = vld [vmem:[%s5 + $0x5b8] sm:$0xff]
    %v10633 = vld [vmem:[%s5 + $0x5c0] sm:$0xff]
    %v10634 = vld [vmem:[%s5 + $0x5c8] sm:$0xff]
    %v10635 = vld [vmem:[%s5 + $0x5d0] sm:$0xff]
    %v10636 = vld [vmem:[%s5 + $0x5d8] sm:$0xff]
    %v10637 = vld [vmem:[%s5 + $0x5e0] sm:$0xff]
    %v10638 = vld [vmem:[%s5 + $0x5e8] sm:$0xff]
    %v10639 = vld [vmem:[%s5 + $0x5f0] sm:$0xff]
    %v10640 = vld [vmem:[%s5 + $0x5f8] sm:$0xff]
    %v10641 = vld [vmem:[%s5 + $0x600] sm:$0xff]
    %v10642 = vld [vmem:[%s5 + $0x608] sm:$0xff]
    %v10643 = vld [vmem:[%s5 + $0x610] sm:$0xff]
    %v10644 = vld [vmem:[%s5 + $0x618] sm:$0xff]
    %v10645 = vld [vmem:[%s5 + $0x620] sm:$0xff]
    %v10646 = vld [vmem:[%s5 + $0x628] sm:$0xff]
    %v10647 = vld [vmem:[%s5 + $0x630] sm:$0xff]
    %v10648 = vld [vmem:[%s5 + $0x638] sm:$0xff]
    %v10649 = vld [vmem:[%s5 + $0x640] sm:$0xff]
    %v10650 = vld [vmem:[%s5 + $0x648] sm:$0xff]
    %v10651 = vld [vmem:[%s5 + $0x650] sm:$0xff]
    %v10652 = vld [vmem:[%s5 + $0x658] sm:$0xff]
    %v10653 = vld [vmem:[%s5 + $0x660] sm:$0xff]
    %v10654 = vld [vmem:[%s5 + $0x668] sm:$0xff]
    %v10655 = vld [vmem:[%s5 + $0x670] sm:$0xff]
    %v10656 = vld [vmem:[%s5 + $0x678] sm:$0xff]
    %v10657 = vld [vmem:[%s5 + $0x680] sm:$0xff]
    %v10658 = vld [vmem:[%s5 + $0x688] sm:$0xff]
    %v10659 = vld [vmem:[%s5 + $0x690] sm:$0xff]
    %v10660 = vld [vmem:[%s5 + $0x698] sm:$0xff]
    %v10661 = vld [vmem:[%s5 + $0x6a0] sm:$0xff]
    %v10662 = vld [vmem:[%s5 + $0x6a8] sm:$0xff]
    %v10663 = vld [vmem:[%s5 + $0x6b0] sm:$0xff]
    %v10664 = vld [vmem:[%s5 + $0x6b8] sm:$0xff]
    %v10665 = vld [vmem:[%s5 + $0x6c0] sm:$0xff]
    %v10666 = vld [vmem:[%s5 + $0x6c8] sm:$0xff]
    %v10667 = vld [vmem:[%s5 + $0x6d0] sm:$0xff]
    %v10668 = vld [vmem:[%s5 + $0x6d8] sm:$0xff]
    %v10669 = vld [vmem:[%s5 + $0x6e0] sm:$0xff]
    %v10670 = vld [vmem:[%s5 + $0x6e8] sm:$0xff]
    %v10671 = vld [vmem:[%s5 + $0x6f0] sm:$0xff]
    %v10672 = vld [vmem:[%s5 + $0x6f8] sm:$0xff]
    %v10673 = vld [vmem:[%s5 + $0x700] sm:$0xff]
    %v10674 = vld [vmem:[%s5 + $0x708] sm:$0xff]
    %v10675 = vld [vmem:[%s5 + $0x710] sm:$0xff]
    %v10676 = vld [vmem:[%s5 + $0x718] sm:$0xff]
    %v10677 = vld [vmem:[%s5 + $0x720] sm:$0xff]
    %v10678 = vld [vmem:[%s5 + $0x728] sm:$0xff]
    %v10679 = vld [vmem:[%s5 + $0x730] sm:$0xff]
    %v10680 = vld [vmem:[%s5 + $0x738] sm:$0xff]
    %v10681 = vld [vmem:[%s5 + $0x740] sm:$0xff]
    %v10682 = vld [vmem:[%s5 + $0x748] sm:$0xff]
    %v10683 = vld [vmem:[%s5 + $0x750] sm:$0xff]
    %v10684 = vld [vmem:[%s5 + $0x758] sm:$0xff]
    %v10685 = vld [vmem:[%s5 + $0x760] sm:$0xff]
    %v10686 = vld [vmem:[%s5 + $0x768] sm:$0xff]
    %v10687 = vld [vmem:[%s5 + $0x770] sm:$0xff]
    %v10688 = vld [vmem:[%s5 + $0x778] sm:$0xff]
    %v10689 = vld [vmem:[%s5 + $0x780] sm:$0xff]
    %v10690 = vld [vmem:[%s5 + $0x788] sm:$0xff]
    %v10691 = vld [vmem:[%s5 + $0x790] sm:$0xff]
    %v10692 = vld [vmem:[%s5 + $0x798] sm:$0xff]
    %v10693 = vld [vmem:[%s5 + $0x7a0] sm:$0xff]
    %v10694 = vld [vmem:[%s5 + $0x7a8] sm:$0xff]
    %v10695 = vld [vmem:[%s5 + $0x7b0] sm:$0xff]
    %v10696 = vld [vmem:[%s5 + $0x7b8] sm:$0xff]
    %v10697 = vld [vmem:[%s5 + $0x7c0] sm:$0xff]
    %v10698 = vld [vmem:[%s5 + $0x7c8] sm:$0xff]
    %v10699 = vld [vmem:[%s5 + $0x7d0] sm:$0xff]
    %v10700 = vld [vmem:[%s5 + $0x7d8] sm:$0xff]
    %v10701 = vld [vmem:[%s5 + $0x7e0] sm:$0xff]
    %v10702 = vld [vmem:[%s5 + $0x7e8] sm:$0xff]
    %v10703 = vld [vmem:[%s5 + $0x7f0] sm:$0xff]
    %v10704 = vld [vmem:[%s5 + $0x7f8] sm:$0xff]
    %v10705 = vld [vmem:[%s6] sm:$0xf]
    %v10707 = vlaneseq
    %v10708 = vshrl.u32 %v10707, 7
    %v10709 = vsub.s32 0, %v10708
    %v10710 = vrot.slane %v10705, %v10709
    %v10711 = vlaneseq
    %v10712 = vshrl.u32 %v10711, 7
    %v10713 = vsub.s32 1, %v10712
    %v10714 = vrot.slane %v10705, %v10713
    %v10715 = vlaneseq
    %v10716 = vshrl.u32 %v10715, 7
    %v10717 = vsub.s32 2, %v10716
    %v10718 = vrot.slane %v10705, %v10717
    %v10719 = vlaneseq
    %v10720 = vshrl.u32 %v10719, 7
    %v10721 = vsub.s32 3, %v10720
    %v10722 = vrot.slane %v10705, %v10721
    %v10728 = vcombine.high %v10448, %v10448
    %v10730 = vunpack.c.l.s4 1966171168
    %v10731 = vunpack.c.0.s8 %v10730
    %v10732 = vlaneseq
    %v10733 = vshrl.u32 %v10732, 7
    %v10734 = vsub.s32 %v10731, %v10733
    %v10735 = vrot.slane %v10448, %v10734
    %v10737 = vunpack.c.l.s4 1966171168
    %v10738 = vunpack.c.0.s8 %v10737
    %v10739 = vlaneseq
    %v10740 = vshrl.u32 %v10739, 7
    %v10741 = vsub.s32 %v10738, %v10740
    %v10742 = vrot.slane %v10728, %v10741
    %v10743 = vcombine.high %v10735, %v10735
    %v10744 = vcombine.high %v10742, %v10742
    %v10746 = vunpack.c.l.s4 1966171168
    %v10747 = vunpack.c.0.s8 %v10746
    %v10748 = vlaneseq
    %v10749 = vshrl.u32 %v10748, 7
    %v10750 = vsub.s32 %v10747, %v10749
    %v10751 = vrot.slane %v10735, %v10750
    %v10753 = vunpack.c.l.s4 1966171168
    %v10754 = vunpack.c.0.s8 %v10753
    %v10755 = vlaneseq
    %v10756 = vshrl.u32 %v10755, 7
    %v10757 = vsub.s32 %v10754, %v10756
    %v10758 = vrot.slane %v10742, %v10757
    %v10760 = vunpack.c.l.s4 1966171168
    %v10761 = vunpack.c.0.s8 %v10760
    %v10762 = vlaneseq
    %v10763 = vshrl.u32 %v10762, 7
    %v10764 = vsub.s32 %v10761, %v10763
    %v10765 = vrot.slane %v10743, %v10764
    %v10767 = vunpack.c.l.s4 1966171168
    %v10768 = vunpack.c.0.s8 %v10767
    %v10769 = vlaneseq
    %v10770 = vshrl.u32 %v10769, 7
    %v10771 = vsub.s32 %v10768, %v10770
    %v10772 = vrot.slane %v10744, %v10771
    %v10773 = vcombine.high %v10751, %v10751
    %v10774 = vcombine.high %v10758, %v10758
    %v10775 = vcombine.high %v10765, %v10765
    %v10776 = vcombine.high %v10772, %v10772
    %v11041 = vunpack.c.l.b16 %v10449
    %v11042 = vunpack.c.h.b16 %v10449
    %v11043 = vunpack.c.l.b16 %v10450
    %v11044 = vunpack.c.h.b16 %v10450
    %v11045 = vunpack.c.l.b16 %v10451
    %v11046 = vunpack.c.h.b16 %v10451
    %v11047 = vunpack.c.l.b16 %v10452
    %v11048 = vunpack.c.h.b16 %v10452
    %v11049 = vunpack.c.l.b16 %v10453
    %v11050 = vunpack.c.h.b16 %v10453
    %v11051 = vunpack.c.l.b16 %v10454
    %v11052 = vunpack.c.h.b16 %v10454
    %v11053 = vunpack.c.l.b16 %v10455
    %v11054 = vunpack.c.h.b16 %v10455
    %v11055 = vunpack.c.l.b16 %v10456
    %v11056 = vunpack.c.h.b16 %v10456
    %v11057 = vunpack.c.l.b16 %v10457
    %v11058 = vunpack.c.h.b16 %v10457
    %v11059 = vunpack.c.l.b16 %v10458
    %v11060 = vunpack.c.h.b16 %v10458
    %v11061 = vunpack.c.l.b16 %v10459
    %v11062 = vunpack.c.h.b16 %v10459
    %v11063 = vunpack.c.l.b16 %v10460
    %v11064 = vunpack.c.h.b16 %v10460
    %v11065 = vunpack.c.l.b16 %v10461
    %v11066 = vunpack.c.h.b16 %v10461
    %v11067 = vunpack.c.l.b16 %v10462
    %v11068 = vunpack.c.h.b16 %v10462
    %v11069 = vunpack.c.l.b16 %v10463
    %v11070 = vunpack.c.h.b16 %v10463
    %v11071 = vunpack.c.l.b16 %v10464
    %v11072 = vunpack.c.h.b16 %v10464
    %v11073 = vunpack.c.l.b16 %v10465
    %v11074 = vunpack.c.h.b16 %v10465
    %v11075 = vunpack.c.l.b16 %v10466
    %v11076 = vunpack.c.h.b16 %v10466
    %v11077 = vunpack.c.l.b16 %v10467
    %v11078 = vunpack.c.h.b16 %v10467
    %v11079 = vunpack.c.l.b16 %v10468
    %v11080 = vunpack.c.h.b16 %v10468
    %v11081 = vunpack.c.l.b16 %v10469
    %v11082 = vunpack.c.h.b16 %v10469
    %v11083 = vunpack.c.l.b16 %v10470
    %v11084 = vunpack.c.h.b16 %v10470
    %v11085 = vunpack.c.l.b16 %v10471
    %v11086 = vunpack.c.h.b16 %v10471
    %v11087 = vunpack.c.l.b16 %v10472
    %v11088 = vunpack.c.h.b16 %v10472
    %v11089 = vunpack.c.l.b16 %v10473
    %v11090 = vunpack.c.h.b16 %v10473
    %v11091 = vunpack.c.l.b16 %v10474
    %v11092 = vunpack.c.h.b16 %v10474
    %v11093 = vunpack.c.l.b16 %v10475
    %v11094 = vunpack.c.h.b16 %v10475
    %v11095 = vunpack.c.l.b16 %v10476
    %v11096 = vunpack.c.h.b16 %v10476
    %v11097 = vunpack.c.l.b16 %v10477
    %v11098 = vunpack.c.h.b16 %v10477
    %v11099 = vunpack.c.l.b16 %v10478
    %v11100 = vunpack.c.h.b16 %v10478
    %v11101 = vunpack.c.l.b16 %v10479
    %v11102 = vunpack.c.h.b16 %v10479
    %v11103 = vunpack.c.l.b16 %v10480
    %v11104 = vunpack.c.h.b16 %v10480
    %v11105 = vunpack.c.l.b16 %v10481
    %v11106 = vunpack.c.h.b16 %v10481
    %v11107 = vunpack.c.l.b16 %v10482
    %v11108 = vunpack.c.h.b16 %v10482
    %v11109 = vunpack.c.l.b16 %v10483
    %v11110 = vunpack.c.h.b16 %v10483
    %v11111 = vunpack.c.l.b16 %v10484
    %v11112 = vunpack.c.h.b16 %v10484
    %v11113 = vunpack.c.l.b16 %v10485
    %v11114 = vunpack.c.h.b16 %v10485
    %v11115 = vunpack.c.l.b16 %v10486
    %v11116 = vunpack.c.h.b16 %v10486
    %v11117 = vunpack.c.l.b16 %v10487
    %v11118 = vunpack.c.h.b16 %v10487
    %v11119 = vunpack.c.l.b16 %v10488
    %v11120 = vunpack.c.h.b16 %v10488
    %v11121 = vunpack.c.l.b16 %v10489
    %v11122 = vunpack.c.h.b16 %v10489
    %v11123 = vunpack.c.l.b16 %v10490
    %v11124 = vunpack.c.h.b16 %v10490
    %v11125 = vunpack.c.l.b16 %v10491
    %v11126 = vunpack.c.h.b16 %v10491
    %v11127 = vunpack.c.l.b16 %v10492
    %v11128 = vunpack.c.h.b16 %v10492
    %v11129 = vunpack.c.l.b16 %v10493
    %v11130 = vunpack.c.h.b16 %v10493
    %v11131 = vunpack.c.l.b16 %v10494
    %v11132 = vunpack.c.h.b16 %v10494
    %v11133 = vunpack.c.l.b16 %v10495
    %v11134 = vunpack.c.h.b16 %v10495
    %v11135 = vunpack.c.l.b16 %v10496
    %v11136 = vunpack.c.h.b16 %v10496
    %v11137 = vunpack.c.l.b16 %v10497
    %v11138 = vunpack.c.h.b16 %v10497
    %v11139 = vunpack.c.l.b16 %v10498
    %v11140 = vunpack.c.h.b16 %v10498
    %v11141 = vunpack.c.l.b16 %v10499
    %v11142 = vunpack.c.h.b16 %v10499
    %v11143 = vunpack.c.l.b16 %v10500
    %v11144 = vunpack.c.h.b16 %v10500
    %v11145 = vunpack.c.l.b16 %v10501
    %v11146 = vunpack.c.h.b16 %v10501
    %v11147 = vunpack.c.l.b16 %v10502
    %v11148 = vunpack.c.h.b16 %v10502
    %v11149 = vunpack.c.l.b16 %v10503
    %v11150 = vunpack.c.h.b16 %v10503
    %v11151 = vunpack.c.l.b16 %v10504
    %v11152 = vunpack.c.h.b16 %v10504
    %v11153 = vunpack.c.l.b16 %v10505
    %v11154 = vunpack.c.h.b16 %v10505
    %v11155 = vunpack.c.l.b16 %v10506
    %v11156 = vunpack.c.h.b16 %v10506
    %v11157 = vunpack.c.l.b16 %v10507
    %v11158 = vunpack.c.h.b16 %v10507
    %v11159 = vunpack.c.l.b16 %v10508
    %v11160 = vunpack.c.h.b16 %v10508
    %v11161 = vunpack.c.l.b16 %v10509
    %v11162 = vunpack.c.h.b16 %v10509
    %v11163 = vunpack.c.l.b16 %v10510
    %v11164 = vunpack.c.h.b16 %v10510
    %v11165 = vunpack.c.l.b16 %v10511
    %v11166 = vunpack.c.h.b16 %v10511
    %v11167 = vunpack.c.l.b16 %v10512
    %v11168 = vunpack.c.h.b16 %v10512
    %v11169 = vunpack.c.l.b16 %v10513
    %v11170 = vunpack.c.h.b16 %v10513
    %v11171 = vunpack.c.l.b16 %v10514
    %v11172 = vunpack.c.h.b16 %v10514
    %v11173 = vunpack.c.l.b16 %v10515
    %v11174 = vunpack.c.h.b16 %v10515
    %v11175 = vunpack.c.l.b16 %v10516
    %v11176 = vunpack.c.h.b16 %v10516
    %v11177 = vunpack.c.l.b16 %v10517
    %v11178 = vunpack.c.h.b16 %v10517
    %v11179 = vunpack.c.l.b16 %v10518
    %v11180 = vunpack.c.h.b16 %v10518
    %v11181 = vunpack.c.l.b16 %v10519
    %v11182 = vunpack.c.h.b16 %v10519
    %v11183 = vunpack.c.l.b16 %v10520
    %v11184 = vunpack.c.h.b16 %v10520
    %v11185 = vunpack.c.l.b16 %v10521
    %v11186 = vunpack.c.h.b16 %v10521
    %v11187 = vunpack.c.l.b16 %v10522
    %v11188 = vunpack.c.h.b16 %v10522
    %v11189 = vunpack.c.l.b16 %v10523
    %v11190 = vunpack.c.h.b16 %v10523
    %v11191 = vunpack.c.l.b16 %v10524
    %v11192 = vunpack.c.h.b16 %v10524
    %v11193 = vunpack.c.l.b16 %v10525
    %v11194 = vunpack.c.h.b16 %v10525
    %v11195 = vunpack.c.l.b16 %v10526
    %v11196 = vunpack.c.h.b16 %v10526
    %v11197 = vunpack.c.l.b16 %v10527
    %v11198 = vunpack.c.h.b16 %v10527
    %v11199 = vunpack.c.l.b16 %v10528
    %v11200 = vunpack.c.h.b16 %v10528
    %v11201 = vunpack.c.l.b16 %v10529
    %v11202 = vunpack.c.h.b16 %v10529
    %v11203 = vunpack.c.l.b16 %v10530
    %v11204 = vunpack.c.h.b16 %v10530
    %v11205 = vunpack.c.l.b16 %v10531
    %v11206 = vunpack.c.h.b16 %v10531
    %v11207 = vunpack.c.l.b16 %v10532
    %v11208 = vunpack.c.h.b16 %v10532
    %v11209 = vunpack.c.l.b16 %v10533
    %v11210 = vunpack.c.h.b16 %v10533
    %v11211 = vunpack.c.l.b16 %v10534
    %v11212 = vunpack.c.h.b16 %v10534
    %v11213 = vunpack.c.l.b16 %v10535
    %v11214 = vunpack.c.h.b16 %v10535
    %v11215 = vunpack.c.l.b16 %v10536
    %v11216 = vunpack.c.h.b16 %v10536
    %v11217 = vunpack.c.l.b16 %v10537
    %v11218 = vunpack.c.h.b16 %v10537
    %v11219 = vunpack.c.l.b16 %v10538
    %v11220 = vunpack.c.h.b16 %v10538
    %v11221 = vunpack.c.l.b16 %v10539
    %v11222 = vunpack.c.h.b16 %v10539
    %v11223 = vunpack.c.l.b16 %v10540
    %v11224 = vunpack.c.h.b16 %v10540
    %v11225 = vunpack.c.l.b16 %v10541
    %v11226 = vunpack.c.h.b16 %v10541
    %v11227 = vunpack.c.l.b16 %v10542
    %v11228 = vunpack.c.h.b16 %v10542
    %v11229 = vunpack.c.l.b16 %v10543
    %v11230 = vunpack.c.h.b16 %v10543
    %v11231 = vunpack.c.l.b16 %v10544
    %v11232 = vunpack.c.h.b16 %v10544
    %v11233 = vunpack.c.l.b16 %v10545
    %v11234 = vunpack.c.h.b16 %v10545
    %v11235 = vunpack.c.l.b16 %v10546
    %v11236 = vunpack.c.h.b16 %v10546
    %v11237 = vunpack.c.l.b16 %v10547
    %v11238 = vunpack.c.h.b16 %v10547
    %v11239 = vunpack.c.l.b16 %v10548
    %v11240 = vunpack.c.h.b16 %v10548
    %v11241 = vunpack.c.l.b16 %v10549
    %v11242 = vunpack.c.h.b16 %v10549
    %v11243 = vunpack.c.l.b16 %v10550
    %v11244 = vunpack.c.h.b16 %v10550
    %v11245 = vunpack.c.l.b16 %v10551
    %v11246 = vunpack.c.h.b16 %v10551
    %v11247 = vunpack.c.l.b16 %v10552
    %v11248 = vunpack.c.h.b16 %v10552
    %v11249 = vunpack.c.l.b16 %v10553
    %v11250 = vunpack.c.h.b16 %v10553
    %v11251 = vunpack.c.l.b16 %v10554
    %v11252 = vunpack.c.h.b16 %v10554
    %v11253 = vunpack.c.l.b16 %v10555
    %v11254 = vunpack.c.h.b16 %v10555
    %v11255 = vunpack.c.l.b16 %v10556
    %v11256 = vunpack.c.h.b16 %v10556
    %v11257 = vunpack.c.l.b16 %v10557
    %v11258 = vunpack.c.h.b16 %v10557
    %v11259 = vunpack.c.l.b16 %v10558
    %v11260 = vunpack.c.h.b16 %v10558
    %v11261 = vunpack.c.l.b16 %v10559
    %v11262 = vunpack.c.h.b16 %v10559
    %v11263 = vunpack.c.l.b16 %v10560
    %v11264 = vunpack.c.h.b16 %v10560
    %v11265 = vunpack.c.l.b16 %v10561
    %v11266 = vunpack.c.h.b16 %v10561
    %v11267 = vunpack.c.l.b16 %v10562
    %v11268 = vunpack.c.h.b16 %v10562
    %v11269 = vunpack.c.l.b16 %v10563
    %v11270 = vunpack.c.h.b16 %v10563
    %v11271 = vunpack.c.l.b16 %v10564
    %v11272 = vunpack.c.h.b16 %v10564
    %v11273 = vunpack.c.l.b16 %v10565
    %v11274 = vunpack.c.h.b16 %v10565
    %v11275 = vunpack.c.l.b16 %v10566
    %v11276 = vunpack.c.h.b16 %v10566
    %v11277 = vunpack.c.l.b16 %v10567
    %v11278 = vunpack.c.h.b16 %v10567
    %v11279 = vunpack.c.l.b16 %v10568
    %v11280 = vunpack.c.h.b16 %v10568
    %v11281 = vunpack.c.l.b16 %v10569
    %v11282 = vunpack.c.h.b16 %v10569
    %v11283 = vunpack.c.l.b16 %v10570
    %v11284 = vunpack.c.h.b16 %v10570
    %v11285 = vunpack.c.l.b16 %v10571
    %v11286 = vunpack.c.h.b16 %v10571
    %v11287 = vunpack.c.l.b16 %v10572
    %v11288 = vunpack.c.h.b16 %v10572
    %v11289 = vunpack.c.l.b16 %v10573
    %v11290 = vunpack.c.h.b16 %v10573
    %v11291 = vunpack.c.l.b16 %v10574
    %v11292 = vunpack.c.h.b16 %v10574
    %v11293 = vunpack.c.l.b16 %v10575
    %v11294 = vunpack.c.h.b16 %v10575
    %v11295 = vunpack.c.l.b16 %v10576
    %v11296 = vunpack.c.h.b16 %v10576
    %v11297 = vunpack.c.l.b16 %v10577
    %v11298 = vunpack.c.h.b16 %v10577
    %v11299 = vunpack.c.l.b16 %v10578
    %v11300 = vunpack.c.h.b16 %v10578
    %v11301 = vunpack.c.l.b16 %v10579
    %v11302 = vunpack.c.h.b16 %v10579
    %v11303 = vunpack.c.l.b16 %v10580
    %v11304 = vunpack.c.h.b16 %v10580
    %v11305 = vunpack.c.l.b16 %v10581
    %v11306 = vunpack.c.h.b16 %v10581
    %v11307 = vunpack.c.l.b16 %v10582
    %v11308 = vunpack.c.h.b16 %v10582
    %v11309 = vunpack.c.l.b16 %v10583
    %v11310 = vunpack.c.h.b16 %v10583
    %v11311 = vunpack.c.l.b16 %v10584
    %v11312 = vunpack.c.h.b16 %v10584
    %v11313 = vunpack.c.l.b16 %v10585
    %v11314 = vunpack.c.h.b16 %v10585
    %v11315 = vunpack.c.l.b16 %v10586
    %v11316 = vunpack.c.h.b16 %v10586
    %v11317 = vunpack.c.l.b16 %v10587
    %v11318 = vunpack.c.h.b16 %v10587
    %v11319 = vunpack.c.l.b16 %v10588
    %v11320 = vunpack.c.h.b16 %v10588
    %v11321 = vunpack.c.l.b16 %v10589
    %v11322 = vunpack.c.h.b16 %v10589
    %v11323 = vunpack.c.l.b16 %v10590
    %v11324 = vunpack.c.h.b16 %v10590
    %v11325 = vunpack.c.l.b16 %v10591
    %v11326 = vunpack.c.h.b16 %v10591
    %v11327 = vunpack.c.l.b16 %v10592
    %v11328 = vunpack.c.h.b16 %v10592
    %v11329 = vunpack.c.l.b16 %v10593
    %v11330 = vunpack.c.h.b16 %v10593
    %v11331 = vunpack.c.l.b16 %v10594
    %v11332 = vunpack.c.h.b16 %v10594
    %v11333 = vunpack.c.l.b16 %v10595
    %v11334 = vunpack.c.h.b16 %v10595
    %v11335 = vunpack.c.l.b16 %v10596
    %v11336 = vunpack.c.h.b16 %v10596
    %v11337 = vunpack.c.l.b16 %v10597
    %v11338 = vunpack.c.h.b16 %v10597
    %v11339 = vunpack.c.l.b16 %v10598
    %v11340 = vunpack.c.h.b16 %v10598
    %v11341 = vunpack.c.l.b16 %v10599
    %v11342 = vunpack.c.h.b16 %v10599
    %v11343 = vunpack.c.l.b16 %v10600
    %v11344 = vunpack.c.h.b16 %v10600
    %v11345 = vunpack.c.l.b16 %v10601
    %v11346 = vunpack.c.h.b16 %v10601
    %v11347 = vunpack.c.l.b16 %v10602
    %v11348 = vunpack.c.h.b16 %v10602
    %v11349 = vunpack.c.l.b16 %v10603
    %v11350 = vunpack.c.h.b16 %v10603
    %v11351 = vunpack.c.l.b16 %v10604
    %v11352 = vunpack.c.h.b16 %v10604
    %v11353 = vunpack.c.l.b16 %v10605
    %v11354 = vunpack.c.h.b16 %v10605
    %v11355 = vunpack.c.l.b16 %v10606
    %v11356 = vunpack.c.h.b16 %v10606
    %v11357 = vunpack.c.l.b16 %v10607
    %v11358 = vunpack.c.h.b16 %v10607
    %v11359 = vunpack.c.l.b16 %v10608
    %v11360 = vunpack.c.h.b16 %v10608
    %v11361 = vunpack.c.l.b16 %v10609
    %v11362 = vunpack.c.h.b16 %v10609
    %v11363 = vunpack.c.l.b16 %v10610
    %v11364 = vunpack.c.h.b16 %v10610
    %v11365 = vunpack.c.l.b16 %v10611
    %v11366 = vunpack.c.h.b16 %v10611
    %v11367 = vunpack.c.l.b16 %v10612
    %v11368 = vunpack.c.h.b16 %v10612
    %v11369 = vunpack.c.l.b16 %v10613
    %v11370 = vunpack.c.h.b16 %v10613
    %v11371 = vunpack.c.l.b16 %v10614
    %v11372 = vunpack.c.h.b16 %v10614
    %v11373 = vunpack.c.l.b16 %v10615
    %v11374 = vunpack.c.h.b16 %v10615
    %v11375 = vunpack.c.l.b16 %v10616
    %v11376 = vunpack.c.h.b16 %v10616
    %v11377 = vunpack.c.l.b16 %v10617
    %v11378 = vunpack.c.h.b16 %v10617
    %v11379 = vunpack.c.l.b16 %v10618
    %v11380 = vunpack.c.h.b16 %v10618
    %v11381 = vunpack.c.l.b16 %v10619
    %v11382 = vunpack.c.h.b16 %v10619
    %v11383 = vunpack.c.l.b16 %v10620
    %v11384 = vunpack.c.h.b16 %v10620
    %v11385 = vunpack.c.l.b16 %v10621
    %v11386 = vunpack.c.h.b16 %v10621
    %v11387 = vunpack.c.l.b16 %v10622
    %v11388 = vunpack.c.h.b16 %v10622
    %v11389 = vunpack.c.l.b16 %v10623
    %v11390 = vunpack.c.h.b16 %v10623
    %v11391 = vunpack.c.l.b16 %v10624
    %v11392 = vunpack.c.h.b16 %v10624
    %v11393 = vunpack.c.l.b16 %v10625
    %v11394 = vunpack.c.h.b16 %v10625
    %v11395 = vunpack.c.l.b16 %v10626
    %v11396 = vunpack.c.h.b16 %v10626
    %v11397 = vunpack.c.l.b16 %v10627
    %v11398 = vunpack.c.h.b16 %v10627
    %v11399 = vunpack.c.l.b16 %v10628
    %v11400 = vunpack.c.h.b16 %v10628
    %v11401 = vunpack.c.l.b16 %v10629
    %v11402 = vunpack.c.h.b16 %v10629
    %v11403 = vunpack.c.l.b16 %v10630
    %v11404 = vunpack.c.h.b16 %v10630
    %v11405 = vunpack.c.l.b16 %v10631
    %v11406 = vunpack.c.h.b16 %v10631
    %v11407 = vunpack.c.l.b16 %v10632
    %v11408 = vunpack.c.h.b16 %v10632
    %v11409 = vunpack.c.l.b16 %v10633
    %v11410 = vunpack.c.h.b16 %v10633
    %v11411 = vunpack.c.l.b16 %v10634
    %v11412 = vunpack.c.h.b16 %v10634
    %v11413 = vunpack.c.l.b16 %v10635
    %v11414 = vunpack.c.h.b16 %v10635
    %v11415 = vunpack.c.l.b16 %v10636
    %v11416 = vunpack.c.h.b16 %v10636
    %v11417 = vunpack.c.l.b16 %v10637
    %v11418 = vunpack.c.h.b16 %v10637
    %v11419 = vunpack.c.l.b16 %v10638
    %v11420 = vunpack.c.h.b16 %v10638
    %v11421 = vunpack.c.l.b16 %v10639
    %v11422 = vunpack.c.h.b16 %v10639
    %v11423 = vunpack.c.l.b16 %v10640
    %v11424 = vunpack.c.h.b16 %v10640
    %v11425 = vunpack.c.l.b16 %v10641
    %v11426 = vunpack.c.h.b16 %v10641
    %v11427 = vunpack.c.l.b16 %v10642
    %v11428 = vunpack.c.h.b16 %v10642
    %v11429 = vunpack.c.l.b16 %v10643
    %v11430 = vunpack.c.h.b16 %v10643
    %v11431 = vunpack.c.l.b16 %v10644
    %v11432 = vunpack.c.h.b16 %v10644
    %v11433 = vunpack.c.l.b16 %v10645
    %v11434 = vunpack.c.h.b16 %v10645
    %v11435 = vunpack.c.l.b16 %v10646
    %v11436 = vunpack.c.h.b16 %v10646
    %v11437 = vunpack.c.l.b16 %v10647
    %v11438 = vunpack.c.h.b16 %v10647
    %v11439 = vunpack.c.l.b16 %v10648
    %v11440 = vunpack.c.h.b16 %v10648
    %v11441 = vunpack.c.l.b16 %v10649
    %v11442 = vunpack.c.h.b16 %v10649
    %v11443 = vunpack.c.l.b16 %v10650
    %v11444 = vunpack.c.h.b16 %v10650
    %v11445 = vunpack.c.l.b16 %v10651
    %v11446 = vunpack.c.h.b16 %v10651
    %v11447 = vunpack.c.l.b16 %v10652
    %v11448 = vunpack.c.h.b16 %v10652
    %v11449 = vunpack.c.l.b16 %v10653
    %v11450 = vunpack.c.h.b16 %v10653
    %v11451 = vunpack.c.l.b16 %v10654
    %v11452 = vunpack.c.h.b16 %v10654
    %v11453 = vunpack.c.l.b16 %v10655
    %v11454 = vunpack.c.h.b16 %v10655
    %v11455 = vunpack.c.l.b16 %v10656
    %v11456 = vunpack.c.h.b16 %v10656
    %v11457 = vunpack.c.l.b16 %v10657
    %v11458 = vunpack.c.h.b16 %v10657
    %v11459 = vunpack.c.l.b16 %v10658
    %v11460 = vunpack.c.h.b16 %v10658
    %v11461 = vunpack.c.l.b16 %v10659
    %v11462 = vunpack.c.h.b16 %v10659
    %v11463 = vunpack.c.l.b16 %v10660
    %v11464 = vunpack.c.h.b16 %v10660
    %v11465 = vunpack.c.l.b16 %v10661
    %v11466 = vunpack.c.h.b16 %v10661
    %v11467 = vunpack.c.l.b16 %v10662
    %v11468 = vunpack.c.h.b16 %v10662
    %v11469 = vunpack.c.l.b16 %v10663
    %v11470 = vunpack.c.h.b16 %v10663
    %v11471 = vunpack.c.l.b16 %v10664
    %v11472 = vunpack.c.h.b16 %v10664
    %v11473 = vunpack.c.l.b16 %v10665
    %v11474 = vunpack.c.h.b16 %v10665
    %v11475 = vunpack.c.l.b16 %v10666
    %v11476 = vunpack.c.h.b16 %v10666
    %v11477 = vunpack.c.l.b16 %v10667
    %v11478 = vunpack.c.h.b16 %v10667
    %v11479 = vunpack.c.l.b16 %v10668
    %v11480 = vunpack.c.h.b16 %v10668
    %v11481 = vunpack.c.l.b16 %v10669
    %v11482 = vunpack.c.h.b16 %v10669
    %v11483 = vunpack.c.l.b16 %v10670
    %v11484 = vunpack.c.h.b16 %v10670
    %v11485 = vunpack.c.l.b16 %v10671
    %v11486 = vunpack.c.h.b16 %v10671
    %v11487 = vunpack.c.l.b16 %v10672
    %v11488 = vunpack.c.h.b16 %v10672
    %v11489 = vunpack.c.l.b16 %v10673
    %v11490 = vunpack.c.h.b16 %v10673
    %v11491 = vunpack.c.l.b16 %v10674
    %v11492 = vunpack.c.h.b16 %v10674
    %v11493 = vunpack.c.l.b16 %v10675
    %v11494 = vunpack.c.h.b16 %v10675
    %v11495 = vunpack.c.l.b16 %v10676
    %v11496 = vunpack.c.h.b16 %v10676
    %v11497 = vunpack.c.l.b16 %v10677
    %v11498 = vunpack.c.h.b16 %v10677
    %v11499 = vunpack.c.l.b16 %v10678
    %v11500 = vunpack.c.h.b16 %v10678
    %v11501 = vunpack.c.l.b16 %v10679
    %v11502 = vunpack.c.h.b16 %v10679
    %v11503 = vunpack.c.l.b16 %v10680
    %v11504 = vunpack.c.h.b16 %v10680
    %v11505 = vunpack.c.l.b16 %v10681
    %v11506 = vunpack.c.h.b16 %v10681
    %v11507 = vunpack.c.l.b16 %v10682
    %v11508 = vunpack.c.h.b16 %v10682
    %v11509 = vunpack.c.l.b16 %v10683
    %v11510 = vunpack.c.h.b16 %v10683
    %v11511 = vunpack.c.l.b16 %v10684
    %v11512 = vunpack.c.h.b16 %v10684
    %v11513 = vunpack.c.l.b16 %v10685
    %v11514 = vunpack.c.h.b16 %v10685
    %v11515 = vunpack.c.l.b16 %v10686
    %v11516 = vunpack.c.h.b16 %v10686
    %v11517 = vunpack.c.l.b16 %v10687
    %v11518 = vunpack.c.h.b16 %v10687
    %v11519 = vunpack.c.l.b16 %v10688
    %v11520 = vunpack.c.h.b16 %v10688
    %v11521 = vunpack.c.l.b16 %v10689
    %v11522 = vunpack.c.h.b16 %v10689
    %v11523 = vunpack.c.l.b16 %v10690
    %v11524 = vunpack.c.h.b16 %v10690
    %v11525 = vunpack.c.l.b16 %v10691
    %v11526 = vunpack.c.h.b16 %v10691
    %v11527 = vunpack.c.l.b16 %v10692
    %v11528 = vunpack.c.h.b16 %v10692
    %v11529 = vunpack.c.l.b16 %v10693
    %v11530 = vunpack.c.h.b16 %v10693
    %v11531 = vunpack.c.l.b16 %v10694
    %v11532 = vunpack.c.h.b16 %v10694
    %v11533 = vunpack.c.l.b16 %v10695
    %v11534 = vunpack.c.h.b16 %v10695
    %v11535 = vunpack.c.l.b16 %v10696
    %v11536 = vunpack.c.h.b16 %v10696
    %v11537 = vunpack.c.l.b16 %v10697
    %v11538 = vunpack.c.h.b16 %v10697
    %v11539 = vunpack.c.l.b16 %v10698
    %v11540 = vunpack.c.h.b16 %v10698
    %v11541 = vunpack.c.l.b16 %v10699
    %v11542 = vunpack.c.h.b16 %v10699
    %v11543 = vunpack.c.l.b16 %v10700
    %v11544 = vunpack.c.h.b16 %v10700
    %v11545 = vunpack.c.l.b16 %v10701
    %v11546 = vunpack.c.h.b16 %v10701
    %v11547 = vunpack.c.l.b16 %v10702
    %v11548 = vunpack.c.h.b16 %v10702
    %v11549 = vunpack.c.l.b16 %v10703
    %v11550 = vunpack.c.h.b16 %v10703
    %v11551 = vunpack.c.l.b16 %v10704
    %v11552 = vunpack.c.h.b16 %v10704
    %v11553 = vpack.c.b16 %v11045, %v11041
    %v11554 = vpack.c.b16 %v11046, %v11042
    %v11555 = vpack.c.b16 %v11047, %v11043
    %v11556 = vpack.c.b16 %v11048, %v11044
    %v11557 = vpack.c.b16 %v11053, %v11049
    %v11558 = vpack.c.b16 %v11054, %v11050
    %v11559 = vpack.c.b16 %v11055, %v11051
    %v11560 = vpack.c.b16 %v11056, %v11052
    %v11561 = vpack.c.b16 %v11061, %v11057
    %v11562 = vpack.c.b16 %v11062, %v11058
    %v11563 = vpack.c.b16 %v11063, %v11059
    %v11564 = vpack.c.b16 %v11064, %v11060
    %v11565 = vpack.c.b16 %v11069, %v11065
    %v11566 = vpack.c.b16 %v11070, %v11066
    %v11567 = vpack.c.b16 %v11071, %v11067
    %v11568 = vpack.c.b16 %v11072, %v11068
    %v11569 = vpack.c.b16 %v11077, %v11073
    %v11570 = vpack.c.b16 %v11078, %v11074
    %v11571 = vpack.c.b16 %v11079, %v11075
    %v11572 = vpack.c.b16 %v11080, %v11076
    %v11573 = vpack.c.b16 %v11085, %v11081
    %v11574 = vpack.c.b16 %v11086, %v11082
    %v11575 = vpack.c.b16 %v11087, %v11083
    %v11576 = vpack.c.b16 %v11088, %v11084
    %v11577 = vpack.c.b16 %v11093, %v11089
    %v11578 = vpack.c.b16 %v11094, %v11090
    %v11579 = vpack.c.b16 %v11095, %v11091
    %v11580 = vpack.c.b16 %v11096, %v11092
    %v11581 = vpack.c.b16 %v11101, %v11097
    %v11582 = vpack.c.b16 %v11102, %v11098
    %v11583 = vpack.c.b16 %v11103, %v11099
    %v11584 = vpack.c.b16 %v11104, %v11100
    %v11585 = vpack.c.b16 %v11109, %v11105
    %v11586 = vpack.c.b16 %v11110, %v11106
    %v11587 = vpack.c.b16 %v11111, %v11107
    %v11588 = vpack.c.b16 %v11112, %v11108
    %v11589 = vpack.c.b16 %v11117, %v11113
    %v11590 = vpack.c.b16 %v11118, %v11114
    %v11591 = vpack.c.b16 %v11119, %v11115
    %v11592 = vpack.c.b16 %v11120, %v11116
    %v11593 = vpack.c.b16 %v11125, %v11121
    %v11594 = vpack.c.b16 %v11126, %v11122
    %v11595 = vpack.c.b16 %v11127, %v11123
    %v11596 = vpack.c.b16 %v11128, %v11124
    %v11597 = vpack.c.b16 %v11133, %v11129
    %v11598 = vpack.c.b16 %v11134, %v11130
    %v11599 = vpack.c.b16 %v11135, %v11131
    %v11600 = vpack.c.b16 %v11136, %v11132
    %v11601 = vpack.c.b16 %v11141, %v11137
    %v11602 = vpack.c.b16 %v11142, %v11138
    %v11603 = vpack.c.b16 %v11143, %v11139
    %v11604 = vpack.c.b16 %v11144, %v11140
    %v11605 = vpack.c.b16 %v11149, %v11145
    %v11606 = vpack.c.b16 %v11150, %v11146
    %v11607 = vpack.c.b16 %v11151, %v11147
    %v11608 = vpack.c.b16 %v11152, %v11148
    %v11609 = vpack.c.b16 %v11157, %v11153
    %v11610 = vpack.c.b16 %v11158, %v11154
    %v11611 = vpack.c.b16 %v11159, %v11155
    %v11612 = vpack.c.b16 %v11160, %v11156
    %v11613 = vpack.c.b16 %v11165, %v11161
    %v11614 = vpack.c.b16 %v11166, %v11162
    %v11615 = vpack.c.b16 %v11167, %v11163
    %v11616 = vpack.c.b16 %v11168, %v11164
    %v11617 = vpack.c.b16 %v11173, %v11169
    %v11618 = vpack.c.b16 %v11174, %v11170
    %v11619 = vpack.c.b16 %v11175, %v11171
    %v11620 = vpack.c.b16 %v11176, %v11172
    %v11621 = vpack.c.b16 %v11181, %v11177
    %v11622 = vpack.c.b16 %v11182, %v11178
    %v11623 = vpack.c.b16 %v11183, %v11179
    %v11624 = vpack.c.b16 %v11184, %v11180
    %v11625 = vpack.c.b16 %v11189, %v11185
    %v11626 = vpack.c.b16 %v11190, %v11186
    %v11627 = vpack.c.b16 %v11191, %v11187
    %v11628 = vpack.c.b16 %v11192, %v11188
    %v11629 = vpack.c.b16 %v11197, %v11193
    %v11630 = vpack.c.b16 %v11198, %v11194
    %v11631 = vpack.c.b16 %v11199, %v11195
    %v11632 = vpack.c.b16 %v11200, %v11196
    %v11633 = vpack.c.b16 %v11205, %v11201
    %v11634 = vpack.c.b16 %v11206, %v11202
    %v11635 = vpack.c.b16 %v11207, %v11203
    %v11636 = vpack.c.b16 %v11208, %v11204
    %v11637 = vpack.c.b16 %v11213, %v11209
    %v11638 = vpack.c.b16 %v11214, %v11210
    %v11639 = vpack.c.b16 %v11215, %v11211
    %v11640 = vpack.c.b16 %v11216, %v11212
    %v11641 = vpack.c.b16 %v11221, %v11217
    %v11642 = vpack.c.b16 %v11222, %v11218
    %v11643 = vpack.c.b16 %v11223, %v11219
    %v11644 = vpack.c.b16 %v11224, %v11220
    %v11645 = vpack.c.b16 %v11229, %v11225
    %v11646 = vpack.c.b16 %v11230, %v11226
    %v11647 = vpack.c.b16 %v11231, %v11227
    %v11648 = vpack.c.b16 %v11232, %v11228
    %v11649 = vpack.c.b16 %v11237, %v11233
    %v11650 = vpack.c.b16 %v11238, %v11234
    %v11651 = vpack.c.b16 %v11239, %v11235
    %v11652 = vpack.c.b16 %v11240, %v11236
    %v11653 = vpack.c.b16 %v11245, %v11241
    %v11654 = vpack.c.b16 %v11246, %v11242
    %v11655 = vpack.c.b16 %v11247, %v11243
    %v11656 = vpack.c.b16 %v11248, %v11244
    %v11657 = vpack.c.b16 %v11253, %v11249
    %v11658 = vpack.c.b16 %v11254, %v11250
    %v11659 = vpack.c.b16 %v11255, %v11251
    %v11660 = vpack.c.b16 %v11256, %v11252
    %v11661 = vpack.c.b16 %v11261, %v11257
    %v11662 = vpack.c.b16 %v11262, %v11258
    %v11663 = vpack.c.b16 %v11263, %v11259
    %v11664 = vpack.c.b16 %v11264, %v11260
    %v11665 = vpack.c.b16 %v11269, %v11265
    %v11666 = vpack.c.b16 %v11270, %v11266
    %v11667 = vpack.c.b16 %v11271, %v11267
    %v11668 = vpack.c.b16 %v11272, %v11268
    %v11669 = vpack.c.b16 %v11277, %v11273
    %v11670 = vpack.c.b16 %v11278, %v11274
    %v11671 = vpack.c.b16 %v11279, %v11275
    %v11672 = vpack.c.b16 %v11280, %v11276
    %v11673 = vpack.c.b16 %v11285, %v11281
    %v11674 = vpack.c.b16 %v11286, %v11282
    %v11675 = vpack.c.b16 %v11287, %v11283
    %v11676 = vpack.c.b16 %v11288, %v11284
    %v11677 = vpack.c.b16 %v11293, %v11289
    %v11678 = vpack.c.b16 %v11294, %v11290
    %v11679 = vpack.c.b16 %v11295, %v11291
    %v11680 = vpack.c.b16 %v11296, %v11292
    %v11681 = vpack.c.b16 %v11301, %v11297
    %v11682 = vpack.c.b16 %v11302, %v11298
    %v11683 = vpack.c.b16 %v11303, %v11299
    %v11684 = vpack.c.b16 %v11304, %v11300
    %v11685 = vpack.c.b16 %v11309, %v11305
    %v11686 = vpack.c.b16 %v11310, %v11306
    %v11687 = vpack.c.b16 %v11311, %v11307
    %v11688 = vpack.c.b16 %v11312, %v11308
    %v11689 = vpack.c.b16 %v11317, %v11313
    %v11690 = vpack.c.b16 %v11318, %v11314
    %v11691 = vpack.c.b16 %v11319, %v11315
    %v11692 = vpack.c.b16 %v11320, %v11316
    %v11693 = vpack.c.b16 %v11325, %v11321
    %v11694 = vpack.c.b16 %v11326, %v11322
    %v11695 = vpack.c.b16 %v11327, %v11323
    %v11696 = vpack.c.b16 %v11328, %v11324
    %v11697 = vpack.c.b16 %v11333, %v11329
    %v11698 = vpack.c.b16 %v11334, %v11330
    %v11699 = vpack.c.b16 %v11335, %v11331
    %v11700 = vpack.c.b16 %v11336, %v11332
    %v11701 = vpack.c.b16 %v11341, %v11337
    %v11702 = vpack.c.b16 %v11342, %v11338
    %v11703 = vpack.c.b16 %v11343, %v11339
    %v11704 = vpack.c.b16 %v11344, %v11340
    %v11705 = vpack.c.b16 %v11349, %v11345
    %v11706 = vpack.c.b16 %v11350, %v11346
    %v11707 = vpack.c.b16 %v11351, %v11347
    %v11708 = vpack.c.b16 %v11352, %v11348
    %v11709 = vpack.c.b16 %v11357, %v11353
    %v11710 = vpack.c.b16 %v11358, %v11354
    %v11711 = vpack.c.b16 %v11359, %v11355
    %v11712 = vpack.c.b16 %v11360, %v11356
    %v11713 = vpack.c.b16 %v11365, %v11361
    %v11714 = vpack.c.b16 %v11366, %v11362
    %v11715 = vpack.c.b16 %v11367, %v11363
    %v11716 = vpack.c.b16 %v11368, %v11364
    %v11717 = vpack.c.b16 %v11373, %v11369
    %v11718 = vpack.c.b16 %v11374, %v11370
    %v11719 = vpack.c.b16 %v11375, %v11371
    %v11720 = vpack.c.b16 %v11376, %v11372
    %v11721 = vpack.c.b16 %v11381, %v11377
    %v11722 = vpack.c.b16 %v11382, %v11378
    %v11723 = vpack.c.b16 %v11383, %v11379
    %v11724 = vpack.c.b16 %v11384, %v11380
    %v11725 = vpack.c.b16 %v11389, %v11385
    %v11726 = vpack.c.b16 %v11390, %v11386
    %v11727 = vpack.c.b16 %v11391, %v11387
    %v11728 = vpack.c.b16 %v11392, %v11388
    %v11729 = vpack.c.b16 %v11397, %v11393
    %v11730 = vpack.c.b16 %v11398, %v11394
    %v11731 = vpack.c.b16 %v11399, %v11395
    %v11732 = vpack.c.b16 %v11400, %v11396
    %v11733 = vpack.c.b16 %v11405, %v11401
    %v11734 = vpack.c.b16 %v11406, %v11402
    %v11735 = vpack.c.b16 %v11407, %v11403
    %v11736 = vpack.c.b16 %v11408, %v11404
    %v11737 = vpack.c.b16 %v11413, %v11409
    %v11738 = vpack.c.b16 %v11414, %v11410
    %v11739 = vpack.c.b16 %v11415, %v11411
    %v11740 = vpack.c.b16 %v11416, %v11412
    %v11741 = vpack.c.b16 %v11421, %v11417
    %v11742 = vpack.c.b16 %v11422, %v11418
    %v11743 = vpack.c.b16 %v11423, %v11419
    %v11744 = vpack.c.b16 %v11424, %v11420
    %v11745 = vpack.c.b16 %v11429, %v11425
    %v11746 = vpack.c.b16 %v11430, %v11426
    %v11747 = vpack.c.b16 %v11431, %v11427
    %v11748 = vpack.c.b16 %v11432, %v11428
    %v11749 = vpack.c.b16 %v11437, %v11433
    %v11750 = vpack.c.b16 %v11438, %v11434
    %v11751 = vpack.c.b16 %v11439, %v11435
    %v11752 = vpack.c.b16 %v11440, %v11436
    %v11753 = vpack.c.b16 %v11445, %v11441
    %v11754 = vpack.c.b16 %v11446, %v11442
    %v11755 = vpack.c.b16 %v11447, %v11443
    %v11756 = vpack.c.b16 %v11448, %v11444
    %v11757 = vpack.c.b16 %v11453, %v11449
    %v11758 = vpack.c.b16 %v11454, %v11450
    %v11759 = vpack.c.b16 %v11455, %v11451
    %v11760 = vpack.c.b16 %v11456, %v11452
    %v11761 = vpack.c.b16 %v11461, %v11457
    %v11762 = vpack.c.b16 %v11462, %v11458
    %v11763 = vpack.c.b16 %v11463, %v11459
    %v11764 = vpack.c.b16 %v11464, %v11460
    %v11765 = vpack.c.b16 %v11469, %v11465
    %v11766 = vpack.c.b16 %v11470, %v11466
    %v11767 = vpack.c.b16 %v11471, %v11467
    %v11768 = vpack.c.b16 %v11472, %v11468
    %v11769 = vpack.c.b16 %v11477, %v11473
    %v11770 = vpack.c.b16 %v11478, %v11474
    %v11771 = vpack.c.b16 %v11479, %v11475
    %v11772 = vpack.c.b16 %v11480, %v11476
    %v11773 = vpack.c.b16 %v11485, %v11481
    %v11774 = vpack.c.b16 %v11486, %v11482
    %v11775 = vpack.c.b16 %v11487, %v11483
    %v11776 = vpack.c.b16 %v11488, %v11484
    %v11777 = vpack.c.b16 %v11493, %v11489
    %v11778 = vpack.c.b16 %v11494, %v11490
    %v11779 = vpack.c.b16 %v11495, %v11491
    %v11780 = vpack.c.b16 %v11496, %v11492
    %v11781 = vpack.c.b16 %v11501, %v11497
    %v11782 = vpack.c.b16 %v11502, %v11498
    %v11783 = vpack.c.b16 %v11503, %v11499
    %v11784 = vpack.c.b16 %v11504, %v11500
    %v11785 = vpack.c.b16 %v11509, %v11505
    %v11786 = vpack.c.b16 %v11510, %v11506
    %v11787 = vpack.c.b16 %v11511, %v11507
    %v11788 = vpack.c.b16 %v11512, %v11508
    %v11789 = vpack.c.b16 %v11517, %v11513
    %v11790 = vpack.c.b16 %v11518, %v11514
    %v11791 = vpack.c.b16 %v11519, %v11515
    %v11792 = vpack.c.b16 %v11520, %v11516
    %v11793 = vpack.c.b16 %v11525, %v11521
    %v11794 = vpack.c.b16 %v11526, %v11522
    %v11795 = vpack.c.b16 %v11527, %v11523
    %v11796 = vpack.c.b16 %v11528, %v11524
    %v11797 = vpack.c.b16 %v11533, %v11529
    %v11798 = vpack.c.b16 %v11534, %v11530
    %v11799 = vpack.c.b16 %v11535, %v11531
    %v11800 = vpack.c.b16 %v11536, %v11532
    %v11801 = vpack.c.b16 %v11541, %v11537
    %v11802 = vpack.c.b16 %v11542, %v11538
    %v11803 = vpack.c.b16 %v11543, %v11539
    %v11804 = vpack.c.b16 %v11544, %v11540
    %v11805 = vpack.c.b16 %v11549, %v11545
    %v11806 = vpack.c.b16 %v11550, %v11546
    %v11807 = vpack.c.b16 %v11551, %v11547
    %v11808 = vpack.c.b16 %v11552, %v11548
    %12065 = vmatprep.subr.bf16.mxu0 %v11582
    %12066 = vmatpush1.bf16.msra.mxu0 %v11581
    %12067 = vmatprep.subr.bf16.mxu0 %v11578
    %12068 = vmatpush1.bf16.msra.mxu0 %v11577
    %12069 = vmatprep.subr.bf16.mxu0 %v11574
    %12070 = vmatpush1.bf16.msra.mxu0 %v11573
    %12071 = vmatprep.subr.bf16.mxu0 %v11570
    %12072 = vmatpush1.bf16.msra.mxu0 %v11569
    %12073 = vmatprep.subr.bf16.mxu0 %v11566
    %12074 = vmatpush1.bf16.msra.mxu0 %v11565
    %12075 = vmatprep.subr.bf16.mxu0 %v11562
    %12076 = vmatpush1.bf16.msra.mxu0 %v11561
    %12077 = vmatprep.subr.bf16.mxu0 %v11558
    %12078 = vmatpush1.bf16.msra.mxu0 %v11557
    %12079 = vmatprep.subr.bf16.mxu0 %v11554
    %12080 = vmatpush1.bf16.msra.mxu0 %v11553
    %12081 = vmatprep.subr.bf16.mxu0 %v11614
    %12082 = vmatpush2.bf16.msra.mxu0 %v11613
    %12083 = vmatprep.subr.bf16.mxu0 %v11610
    %12084 = vmatpush2.bf16.msra.mxu0 %v11609
    %12085 = vmatprep.subr.bf16.mxu0 %v11606
    %12086 = vmatpush2.bf16.msra.mxu0 %v11605
    %12087 = vmatprep.subr.bf16.mxu0 %v11602
    %12088 = vmatpush2.bf16.msra.mxu0 %v11601
    %12089 = vmatprep.subr.bf16.mxu0 %v11598
    %12090 = vmatpush2.bf16.msra.mxu0 %v11597
    %12091 = vmatprep.subr.bf16.mxu0 %v11594
    %12092 = vmatpush2.bf16.msra.mxu0 %v11593
    %12093 = vmatprep.subr.bf16.mxu0 %v11590
    %12094 = vmatpush2.bf16.msra.mxu0 %v11589
    %12095 = vmatprep.subr.bf16.mxu0 %v11586
    %12096 = vmatpush2.bf16.msra.mxu0 %v11585
    %12097 = vmatprep.mubr.bf16.mxu0 %v10765
    %12098 = vmatmul.mubr.bf16.gmra.mxu0 %v10751
    %v12099 = vpop.f32.mrf.mxu0
    %v12100 = vadd.f32 %v10710, %v12099
    %v12101 = vpop.f32.mrf.mxu0
    %v12102 = vadd.f32 %v10714, %v12101
    %v12103 = vpop.f32.mrf.mxu0
    %v12104 = vpop.f32.mrf.mxu0
    %12105 = vdwg.mxu0
    %12106 = vmatprep.subr.bf16.mxu0 %v11646
    %12107 = vmatpush1.bf16.msra.mxu0 %v11645
    %12108 = vmatprep.subr.bf16.mxu0 %v11642
    %12109 = vmatpush1.bf16.msra.mxu0 %v11641
    %12110 = vmatprep.subr.bf16.mxu0 %v11638
    %12111 = vmatpush1.bf16.msra.mxu0 %v11637
    %12112 = vmatprep.subr.bf16.mxu0 %v11634
    %12113 = vmatpush1.bf16.msra.mxu0 %v11633
    %12114 = vmatprep.subr.bf16.mxu0 %v11630
    %12115 = vmatpush1.bf16.msra.mxu0 %v11629
    %12116 = vmatprep.subr.bf16.mxu0 %v11626
    %12117 = vmatpush1.bf16.msra.mxu0 %v11625
    %12118 = vmatprep.subr.bf16.mxu0 %v11622
    %12119 = vmatpush1.bf16.msra.mxu0 %v11621
    %12120 = vmatprep.subr.bf16.mxu0 %v11618
    %12121 = vmatpush1.bf16.msra.mxu0 %v11617
    %12122 = vmatprep.subr.bf16.mxu0 %v11678
    %12123 = vmatpush2.bf16.msra.mxu0 %v11677
    %12124 = vmatprep.subr.bf16.mxu0 %v11674
    %12125 = vmatpush2.bf16.msra.mxu0 %v11673
    %12126 = vmatprep.subr.bf16.mxu0 %v11670
    %12127 = vmatpush2.bf16.msra.mxu0 %v11669
    %12128 = vmatprep.subr.bf16.mxu0 %v11666
    %12129 = vmatpush2.bf16.msra.mxu0 %v11665
    %12130 = vmatprep.subr.bf16.mxu0 %v11662
    %12131 = vmatpush2.bf16.msra.mxu0 %v11661
    %12132 = vmatprep.subr.bf16.mxu0 %v11658
    %12133 = vmatpush2.bf16.msra.mxu0 %v11657
    %12134 = vmatprep.subr.bf16.mxu0 %v11654
    %12135 = vmatpush2.bf16.msra.mxu0 %v11653
    %12136 = vmatprep.subr.bf16.mxu0 %v11650
    %12137 = vmatpush2.bf16.msra.mxu0 %v11649
    %12138 = vmatprep.mubr.bf16.mxu0 %v10775
    %12139 = vmatmul.mubr.bf16.gmra.mxu0 %v10773
    %v12140 = vpop.f32.mrf.mxu0
    %v12141 = vadd.f32 %v12100, %v12140
    %v12142 = vpop.f32.mrf.mxu0
    %v12143 = vadd.f32 %v12102, %v12142
    %v12144 = vpop.f32.mrf.mxu0
    %v12145 = vpop.f32.mrf.mxu0
    %12146 = vdwg.mxu0
    %12147 = vmatprep.subr.bf16.mxu0 %v11710
    %12148 = vmatpush1.bf16.msra.mxu0 %v11709
    %12149 = vmatprep.subr.bf16.mxu0 %v11706
    %12150 = vmatpush1.bf16.msra.mxu0 %v11705
    %12151 = vmatprep.subr.bf16.mxu0 %v11702
    %12152 = vmatpush1.bf16.msra.mxu0 %v11701
    %12153 = vmatprep.subr.bf16.mxu0 %v11698
    %12154 = vmatpush1.bf16.msra.mxu0 %v11697
    %12155 = vmatprep.subr.bf16.mxu0 %v11694
    %12156 = vmatpush1.bf16.msra.mxu0 %v11693
    %12157 = vmatprep.subr.bf16.mxu0 %v11690
    %12158 = vmatpush1.bf16.msra.mxu0 %v11689
    %12159 = vmatprep.subr.bf16.mxu0 %v11686
    %12160 = vmatpush1.bf16.msra.mxu0 %v11685
    %12161 = vmatprep.subr.bf16.mxu0 %v11682
    %12162 = vmatpush1.bf16.msra.mxu0 %v11681
    %12163 = vmatprep.subr.bf16.mxu0 %v11742
    %12164 = vmatpush2.bf16.msra.mxu0 %v11741
    %12165 = vmatprep.subr.bf16.mxu0 %v11738
    %12166 = vmatpush2.bf16.msra.mxu0 %v11737
    %12167 = vmatprep.subr.bf16.mxu0 %v11734
    %12168 = vmatpush2.bf16.msra.mxu0 %v11733
    %12169 = vmatprep.subr.bf16.mxu0 %v11730
    %12170 = vmatpush2.bf16.msra.mxu0 %v11729
    %12171 = vmatprep.subr.bf16.mxu0 %v11726
    %12172 = vmatpush2.bf16.msra.mxu0 %v11725
    %12173 = vmatprep.subr.bf16.mxu0 %v11722
    %12174 = vmatpush2.bf16.msra.mxu0 %v11721
    %12175 = vmatprep.subr.bf16.mxu0 %v11718
    %12176 = vmatpush2.bf16.msra.mxu0 %v11717
    %12177 = vmatprep.subr.bf16.mxu0 %v11714
    %12178 = vmatpush2.bf16.msra.mxu0 %v11713
    %12179 = vmatprep.mubr.bf16.mxu0 %v10772
    %12180 = vmatmul.mubr.bf16.gmra.mxu0 %v10758
    %v12181 = vpop.f32.mrf.mxu0
    %v12182 = vadd.f32 %v12141, %v12181
    %v12183 = vpop.f32.mrf.mxu0
    %v12184 = vadd.f32 %v12143, %v12183
    %v12185 = vpop.f32.mrf.mxu0
    %v12186 = vpop.f32.mrf.mxu0
    %12187 = vdwg.mxu0
    %12188 = vmatprep.subr.bf16.mxu0 %v11774
    %12189 = vmatpush1.bf16.msra.mxu0 %v11773
    %12190 = vmatprep.subr.bf16.mxu0 %v11770
    %12191 = vmatpush1.bf16.msra.mxu0 %v11769
    %12192 = vmatprep.subr.bf16.mxu0 %v11766
    %12193 = vmatpush1.bf16.msra.mxu0 %v11765
    %12194 = vmatprep.subr.bf16.mxu0 %v11762
    %12195 = vmatpush1.bf16.msra.mxu0 %v11761
    %12196 = vmatprep.subr.bf16.mxu0 %v11758
    %12197 = vmatpush1.bf16.msra.mxu0 %v11757
    %12198 = vmatprep.subr.bf16.mxu0 %v11754
    %12199 = vmatpush1.bf16.msra.mxu0 %v11753
    %12200 = vmatprep.subr.bf16.mxu0 %v11750
    %12201 = vmatpush1.bf16.msra.mxu0 %v11749
    %12202 = vmatprep.subr.bf16.mxu0 %v11746
    %12203 = vmatpush1.bf16.msra.mxu0 %v11745
    %12204 = vmatprep.subr.bf16.mxu0 %v11806
    %12205 = vmatpush2.bf16.msra.mxu0 %v11805
    %12206 = vmatprep.subr.bf16.mxu0 %v11802
    %12207 = vmatpush2.bf16.msra.mxu0 %v11801
    %12208 = vmatprep.subr.bf16.mxu0 %v11798
    %12209 = vmatpush2.bf16.msra.mxu0 %v11797
    %12210 = vmatprep.subr.bf16.mxu0 %v11794
    %12211 = vmatpush2.bf16.msra.mxu0 %v11793
    %12212 = vmatprep.subr.bf16.mxu0 %v11790
    %12213 = vmatpush2.bf16.msra.mxu0 %v11789
    %12214 = vmatprep.subr.bf16.mxu0 %v11786
    %12215 = vmatpush2.bf16.msra.mxu0 %v11785
    %12216 = vmatprep.subr.bf16.mxu0 %v11782
    %12217 = vmatpush2.bf16.msra.mxu0 %v11781
    %12218 = vmatprep.subr.bf16.mxu0 %v11778
    %12219 = vmatpush2.bf16.msra.mxu0 %v11777
    %12220 = vmatprep.mubr.bf16.mxu0 %v10776
    %12221 = vmatmul.mubr.bf16.gmra.mxu0 %v10774
    %v12222 = vpop.f32.mrf.mxu0
    %v12223 = vadd.f32 %v12182, %v12222
    %v12224 = vpop.f32.mrf.mxu0
    %v12225 = vadd.f32 %v12184, %v12224
    %v12226 = vpop.f32.mrf.mxu0
    %v12227 = vpop.f32.mrf.mxu0
    %12228 = vdwg.mxu0
    %12229 = vmatprep.subr.bf16.mxu0 %v11584
    %12230 = vmatpush1.bf16.msra.mxu0 %v11583
    %12231 = vmatprep.subr.bf16.mxu0 %v11580
    %12232 = vmatpush1.bf16.msra.mxu0 %v11579
    %12233 = vmatprep.subr.bf16.mxu0 %v11576
    %12234 = vmatpush1.bf16.msra.mxu0 %v11575
    %12235 = vmatprep.subr.bf16.mxu0 %v11572
    %12236 = vmatpush1.bf16.msra.mxu0 %v11571
    %12237 = vmatprep.subr.bf16.mxu0 %v11568
    %12238 = vmatpush1.bf16.msra.mxu0 %v11567
    %12239 = vmatprep.subr.bf16.mxu0 %v11564
    %12240 = vmatpush1.bf16.msra.mxu0 %v11563
    %12241 = vmatprep.subr.bf16.mxu0 %v11560
    %12242 = vmatpush1.bf16.msra.mxu0 %v11559
    %12243 = vmatprep.subr.bf16.mxu0 %v11556
    %12244 = vmatpush1.bf16.msra.mxu0 %v11555
    %12245 = vmatprep.subr.bf16.mxu0 %v11616
    %12246 = vmatpush2.bf16.msra.mxu0 %v11615
    %12247 = vmatprep.subr.bf16.mxu0 %v11612
    %12248 = vmatpush2.bf16.msra.mxu0 %v11611
    %12249 = vmatprep.subr.bf16.mxu0 %v11608
    %12250 = vmatpush2.bf16.msra.mxu0 %v11607
    %12251 = vmatprep.subr.bf16.mxu0 %v11604
    %12252 = vmatpush2.bf16.msra.mxu0 %v11603
    %12253 = vmatprep.subr.bf16.mxu0 %v11600
    %12254 = vmatpush2.bf16.msra.mxu0 %v11599
    %12255 = vmatprep.subr.bf16.mxu0 %v11596
    %12256 = vmatpush2.bf16.msra.mxu0 %v11595
    %12257 = vmatprep.subr.bf16.mxu0 %v11592
    %12258 = vmatpush2.bf16.msra.mxu0 %v11591
    %12259 = vmatprep.subr.bf16.mxu0 %v11588
    %12260 = vmatpush2.bf16.msra.mxu0 %v11587
    %12261 = vmatprep.mubr.bf16.mxu0 %v10765
    %12262 = vmatmul.mubr.bf16.gmra.mxu0 %v10751
    %v12263 = vpop.f32.mrf.mxu0
    %v12264 = vadd.f32 %v10718, %v12263
    %v12265 = vpop.f32.mrf.mxu0
    %v12266 = vadd.f32 %v10722, %v12265
    %v12267 = vpop.f32.mrf.mxu0
    %v12268 = vpop.f32.mrf.mxu0
    %12269 = vdwg.mxu0
    %12270 = vmatprep.subr.bf16.mxu0 %v11648
    %12271 = vmatpush1.bf16.msra.mxu0 %v11647
    %12272 = vmatprep.subr.bf16.mxu0 %v11644
    %12273 = vmatpush1.bf16.msra.mxu0 %v11643
    %12274 = vmatprep.subr.bf16.mxu0 %v11640
    %12275 = vmatpush1.bf16.msra.mxu0 %v11639
    %12276 = vmatprep.subr.bf16.mxu0 %v11636
    %12277 = vmatpush1.bf16.msra.mxu0 %v11635
    %12278 = vmatprep.subr.bf16.mxu0 %v11632
    %12279 = vmatpush1.bf16.msra.mxu0 %v11631
    %12280 = vmatprep.subr.bf16.mxu0 %v11628
    %12281 = vmatpush1.bf16.msra.mxu0 %v11627
    %12282 = vmatprep.subr.bf16.mxu0 %v11624
    %12283 = vmatpush1.bf16.msra.mxu0 %v11623
    %12284 = vmatprep.subr.bf16.mxu0 %v11620
    %12285 = vmatpush1.bf16.msra.mxu0 %v11619
    %12286 = vmatprep.subr.bf16.mxu0 %v11680
    %12287 = vmatpush2.bf16.msra.mxu0 %v11679
    %12288 = vmatprep.subr.bf16.mxu0 %v11676
    %12289 = vmatpush2.bf16.msra.mxu0 %v11675
    %12290 = vmatprep.subr.bf16.mxu0 %v11672
    %12291 = vmatpush2.bf16.msra.mxu0 %v11671
    %12292 = vmatprep.subr.bf16.mxu0 %v11668
    %12293 = vmatpush2.bf16.msra.mxu0 %v11667
    %12294 = vmatprep.subr.bf16.mxu0 %v11664
    %12295 = vmatpush2.bf16.msra.mxu0 %v11663
    %12296 = vmatprep.subr.bf16.mxu0 %v11660
    %12297 = vmatpush2.bf16.msra.mxu0 %v11659
    %12298 = vmatprep.subr.bf16.mxu0 %v11656
    %12299 = vmatpush2.bf16.msra.mxu0 %v11655
    %12300 = vmatprep.subr.bf16.mxu0 %v11652
    %12301 = vmatpush2.bf16.msra.mxu0 %v11651
    %12302 = vmatprep.mubr.bf16.mxu0 %v10775
    %12303 = vmatmul.mubr.bf16.gmra.mxu0 %v10773
    %v12304 = vpop.f32.mrf.mxu0
    %v12305 = vadd.f32 %v12264, %v12304
    %v12306 = vpop.f32.mrf.mxu0
    %v12307 = vadd.f32 %v12266, %v12306
    %v12308 = vpop.f32.mrf.mxu0
    %v12309 = vpop.f32.mrf.mxu0
    %12310 = vdwg.mxu0
    %12311 = vmatprep.subr.bf16.mxu0 %v11712
    %12312 = vmatpush1.bf16.msra.mxu0 %v11711
    %12313 = vmatprep.subr.bf16.mxu0 %v11708
    %12314 = vmatpush1.bf16.msra.mxu0 %v11707
    %12315 = vmatprep.subr.bf16.mxu0 %v11704
    %12316 = vmatpush1.bf16.msra.mxu0 %v11703
    %12317 = vmatprep.subr.bf16.mxu0 %v11700
    %12318 = vmatpush1.bf16.msra.mxu0 %v11699
    %12319 = vmatprep.subr.bf16.mxu0 %v11696
    %12320 = vmatpush1.bf16.msra.mxu0 %v11695
    %12321 = vmatprep.subr.bf16.mxu0 %v11692
    %12322 = vmatpush1.bf16.msra.mxu0 %v11691
    %12323 = vmatprep.subr.bf16.mxu0 %v11688
    %12324 = vmatpush1.bf16.msra.mxu0 %v11687
    %12325 = vmatprep.subr.bf16.mxu0 %v11684
    %12326 = vmatpush1.bf16.msra.mxu0 %v11683
    %12327 = vmatprep.subr.bf16.mxu0 %v11744
    %12328 = vmatpush2.bf16.msra.mxu0 %v11743
    %12329 = vmatprep.subr.bf16.mxu0 %v11740
    %12330 = vmatpush2.bf16.msra.mxu0 %v11739
    %12331 = vmatprep.subr.bf16.mxu0 %v11736
    %12332 = vmatpush2.bf16.msra.mxu0 %v11735
    %12333 = vmatprep.subr.bf16.mxu0 %v11732
    %12334 = vmatpush2.bf16.msra.mxu0 %v11731
    %12335 = vmatprep.subr.bf16.mxu0 %v11728
    %12336 = vmatpush2.bf16.msra.mxu0 %v11727
    %12337 = vmatprep.subr.bf16.mxu0 %v11724
    %12338 = vmatpush2.bf16.msra.mxu0 %v11723
    %12339 = vmatprep.subr.bf16.mxu0 %v11720
    %12340 = vmatpush2.bf16.msra.mxu0 %v11719
    %12341 = vmatprep.subr.bf16.mxu0 %v11716
    %12342 = vmatpush2.bf16.msra.mxu0 %v11715
    %12343 = vmatprep.mubr.bf16.mxu0 %v10772
    %12344 = vmatmul.mubr.bf16.gmra.mxu0 %v10758
    %v12345 = vpop.f32.mrf.mxu0
    %v12346 = vadd.f32 %v12305, %v12345
    %v12347 = vpop.f32.mrf.mxu0
    %v12348 = vadd.f32 %v12307, %v12347
    %v12349 = vpop.f32.mrf.mxu0
    %v12350 = vpop.f32.mrf.mxu0
    %12351 = vdwg.mxu0
    %12352 = vmatprep.subr.bf16.mxu0 %v11776
    %12353 = vmatpush1.bf16.msra.mxu0 %v11775
    %12354 = vmatprep.subr.bf16.mxu0 %v11772
    %12355 = vmatpush1.bf16.msra.mxu0 %v11771
    %12356 = vmatprep.subr.bf16.mxu0 %v11768
    %12357 = vmatpush1.bf16.msra.mxu0 %v11767
    %12358 = vmatprep.subr.bf16.mxu0 %v11764
    %12359 = vmatpush1.bf16.msra.mxu0 %v11763
    %12360 = vmatprep.subr.bf16.mxu0 %v11760
    %12361 = vmatpush1.bf16.msra.mxu0 %v11759
    %12362 = vmatprep.subr.bf16.mxu0 %v11756
    %12363 = vmatpush1.bf16.msra.mxu0 %v11755
    %12364 = vmatprep.subr.bf16.mxu0 %v11752
    %12365 = vmatpush1.bf16.msra.mxu0 %v11751
    %12366 = vmatprep.subr.bf16.mxu0 %v11748
    %12367 = vmatpush1.bf16.msra.mxu0 %v11747
    %12368 = vmatprep.subr.bf16.mxu0 %v11808
    %12369 = vmatpush2.bf16.msra.mxu0 %v11807
    %12370 = vmatprep.subr.bf16.mxu0 %v11804
    %12371 = vmatpush2.bf16.msra.mxu0 %v11803
    %12372 = vmatprep.subr.bf16.mxu0 %v11800
    %12373 = vmatpush2.bf16.msra.mxu0 %v11799
    %12374 = vmatprep.subr.bf16.mxu0 %v11796
    %12375 = vmatpush2.bf16.msra.mxu0 %v11795
    %12376 = vmatprep.subr.bf16.mxu0 %v11792
    %12377 = vmatpush2.bf16.msra.mxu0 %v11791
    %12378 = vmatprep.subr.bf16.mxu0 %v11788
    %12379 = vmatpush2.bf16.msra.mxu0 %v11787
    %12380 = vmatprep.subr.bf16.mxu0 %v11784
    %12381 = vmatpush2.bf16.msra.mxu0 %v11783
    %12382 = vmatprep.subr.bf16.mxu0 %v11780
    %12383 = vmatpush2.bf16.msra.mxu0 %v11779
    %12384 = vmatprep.mubr.bf16.mxu0 %v10776
    %12385 = vmatmul.mubr.bf16.gmra.mxu0 %v10774
    %v12386 = vpop.f32.mrf.mxu0
    %v12387 = vadd.f32 %v12346, %v12386
    %v12388 = vpop.f32.mrf.mxu0
    %v12389 = vadd.f32 %v12348, %v12388
    %v12390 = vpop.f32.mrf.mxu0
    %v12391 = vpop.f32.mrf.mxu0
    %12392 = vdwg.mxu0
    %v12393 = vmax.f32 %v12223, 0.0
    %v12394 = vmax.f32 %v12225, 0.0
    %v12395 = vmax.f32 %v12387, 0.0
    %v12396 = vmax.f32 %v12389, 0.0
    %v12397 = vpack.c.bf16 %v12393, %v12393
    %v12398 = vpack.c.bf16 %v12394, %v12394
    %v12399 = vpack.c.bf16 %v12395, %v12395
    %v12400 = vpack.c.bf16 %v12396, %v12396
    %v12401 = vld [vmem:[%s7] sm:$0xf]
    %v12402 = vld [vmem:[%s7 + $0x4] sm:$0xf]
    %v12403 = vld [vmem:[%s7 + $0x8] sm:$0xf]
    %v12404 = vld [vmem:[%s7 + $0xc] sm:$0xf]
    %v12405 = vld [vmem:[%s7 + $0x10] sm:$0xf]
    %v12406 = vld [vmem:[%s7 + $0x14] sm:$0xf]
    %v12407 = vld [vmem:[%s7 + $0x18] sm:$0xf]
    %v12408 = vld [vmem:[%s7 + $0x1c] sm:$0xf]
    %v12409 = vld [vmem:[%s7 + $0x20] sm:$0xf]
    %v12410 = vld [vmem:[%s7 + $0x24] sm:$0xf]
    %v12411 = vld [vmem:[%s7 + $0x28] sm:$0xf]
    %v12412 = vld [vmem:[%s7 + $0x2c] sm:$0xf]
    %v12413 = vld [vmem:[%s7 + $0x30] sm:$0xf]
    %v12414 = vld [vmem:[%s7 + $0x34] sm:$0xf]
    %v12415 = vld [vmem:[%s7 + $0x38] sm:$0xf]
    %v12416 = vld [vmem:[%s7 + $0x3c] sm:$0xf]
    %v12417 = vld [vmem:[%s7 + $0x40] sm:$0xf]
    %v12418 = vld [vmem:[%s7 + $0x44] sm:$0xf]
    %v12419 = vld [vmem:[%s7 + $0x48] sm:$0xf]
    %v12420 = vld [vmem:[%s7 + $0x4c] sm:$0xf]
    %v12421 = vld [vmem:[%s7 + $0x50] sm:$0xf]
    %v12422 = vld [vmem:[%s7 + $0x54] sm:$0xf]
    %v12423 = vld [vmem:[%s7 + $0x58] sm:$0xf]
    %v12424 = vld [vmem:[%s7 + $0x5c] sm:$0xf]
    %v12425 = vld [vmem:[%s7 + $0x60] sm:$0xf]
    %v12426 = vld [vmem:[%s7 + $0x64] sm:$0xf]
    %v12427 = vld [vmem:[%s7 + $0x68] sm:$0xf]
    %v12428 = vld [vmem:[%s7 + $0x6c] sm:$0xf]
    %v12429 = vld [vmem:[%s7 + $0x70] sm:$0xf]
    %v12430 = vld [vmem:[%s7 + $0x74] sm:$0xf]
    %v12431 = vld [vmem:[%s7 + $0x78] sm:$0xf]
    %v12432 = vld [vmem:[%s7 + $0x7c] sm:$0xf]
    %v12433 = vld [vmem:[%s7 + $0x80] sm:$0xf]
    %v12434 = vld [vmem:[%s7 + $0x84] sm:$0xf]
    %v12435 = vld [vmem:[%s7 + $0x88] sm:$0xf]
    %v12436 = vld [vmem:[%s7 + $0x8c] sm:$0xf]
    %v12437 = vld [vmem:[%s7 + $0x90] sm:$0xf]
    %v12438 = vld [vmem:[%s7 + $0x94] sm:$0xf]
    %v12439 = vld [vmem:[%s7 + $0x98] sm:$0xf]
    %v12440 = vld [vmem:[%s7 + $0x9c] sm:$0xf]
    %v12441 = vld [vmem:[%s7 + $0xa0] sm:$0xf]
    %v12442 = vld [vmem:[%s7 + $0xa4] sm:$0xf]
    %v12443 = vld [vmem:[%s7 + $0xa8] sm:$0xf]
    %v12444 = vld [vmem:[%s7 + $0xac] sm:$0xf]
    %v12445 = vld [vmem:[%s7 + $0xb0] sm:$0xf]
    %v12446 = vld [vmem:[%s7 + $0xb4] sm:$0xf]
    %v12447 = vld [vmem:[%s7 + $0xb8] sm:$0xf]
    %v12448 = vld [vmem:[%s7 + $0xbc] sm:$0xf]
    %v12449 = vld [vmem:[%s7 + $0xc0] sm:$0xf]
    %v12450 = vld [vmem:[%s7 + $0xc4] sm:$0xf]
    %v12451 = vld [vmem:[%s7 + $0xc8] sm:$0xf]
    %v12452 = vld [vmem:[%s7 + $0xcc] sm:$0xf]
    %v12453 = vld [vmem:[%s7 + $0xd0] sm:$0xf]
    %v12454 = vld [vmem:[%s7 + $0xd4] sm:$0xf]
    %v12455 = vld [vmem:[%s7 + $0xd8] sm:$0xf]
    %v12456 = vld [vmem:[%s7 + $0xdc] sm:$0xf]
    %v12457 = vld [vmem:[%s7 + $0xe0] sm:$0xf]
    %v12458 = vld [vmem:[%s7 + $0xe4] sm:$0xf]
    %v12459 = vld [vmem:[%s7 + $0xe8] sm:$0xf]
    %v12460 = vld [vmem:[%s7 + $0xec] sm:$0xf]
    %v12461 = vld [vmem:[%s7 + $0xf0] sm:$0xf]
    %v12462 = vld [vmem:[%s7 + $0xf4] sm:$0xf]
    %v12463 = vld [vmem:[%s7 + $0xf8] sm:$0xf]
    %v12464 = vld [vmem:[%s7 + $0xfc] sm:$0xf]
    %v12465 = vld [vmem:[%s8] sm:$0x1]
    %v12467 = vlaneseq
    %v12468 = vshrl.u32 %v12467, 7
    %v12469 = vsub.s32 0, %v12468
    %v12470 = vrot.slane %v12465, %v12469
    %v12536 = vunpack.c.l.b16 %v12401
    %v12537 = vunpack.c.l.b16 %v12402
    %v12538 = vunpack.c.l.b16 %v12403
    %v12539 = vunpack.c.l.b16 %v12404
    %v12540 = vunpack.c.l.b16 %v12405
    %v12541 = vunpack.c.l.b16 %v12406
    %v12542 = vunpack.c.l.b16 %v12407
    %v12543 = vunpack.c.l.b16 %v12408
    %v12544 = vunpack.c.l.b16 %v12409
    %v12545 = vunpack.c.l.b16 %v12410
    %v12546 = vunpack.c.l.b16 %v12411
    %v12547 = vunpack.c.l.b16 %v12412
    %v12548 = vunpack.c.l.b16 %v12413
    %v12549 = vunpack.c.l.b16 %v12414
    %v12550 = vunpack.c.l.b16 %v12415
    %v12551 = vunpack.c.l.b16 %v12416
    %v12552 = vunpack.c.l.b16 %v12417
    %v12553 = vunpack.c.l.b16 %v12418
    %v12554 = vunpack.c.l.b16 %v12419
    %v12555 = vunpack.c.l.b16 %v12420
    %v12556 = vunpack.c.l.b16 %v12421
    %v12557 = vunpack.c.l.b16 %v12422
    %v12558 = vunpack.c.l.b16 %v12423
    %v12559 = vunpack.c.l.b16 %v12424
    %v12560 = vunpack.c.l.b16 %v12425
    %v12561 = vunpack.c.l.b16 %v12426
    %v12562 = vunpack.c.l.b16 %v12427
    %v12563 = vunpack.c.l.b16 %v12428
    %v12564 = vunpack.c.l.b16 %v12429
    %v12565 = vunpack.c.l.b16 %v12430
    %v12566 = vunpack.c.l.b16 %v12431
    %v12567 = vunpack.c.l.b16 %v12432
    %v12568 = vunpack.c.l.b16 %v12433
    %v12569 = vunpack.c.l.b16 %v12434
    %v12570 = vunpack.c.l.b16 %v12435
    %v12571 = vunpack.c.l.b16 %v12436
    %v12572 = vunpack.c.l.b16 %v12437
    %v12573 = vunpack.c.l.b16 %v12438
    %v12574 = vunpack.c.l.b16 %v12439
    %v12575 = vunpack.c.l.b16 %v12440
    %v12576 = vunpack.c.l.b16 %v12441
    %v12577 = vunpack.c.l.b16 %v12442
    %v12578 = vunpack.c.l.b16 %v12443
    %v12579 = vunpack.c.l.b16 %v12444
    %v12580 = vunpack.c.l.b16 %v12445
    %v12581 = vunpack.c.l.b16 %v12446
    %v12582 = vunpack.c.l.b16 %v12447
    %v12583 = vunpack.c.l.b16 %v12448
    %v12584 = vunpack.c.l.b16 %v12449
    %v12585 = vunpack.c.l.b16 %v12450
    %v12586 = vunpack.c.l.b16 %v12451
    %v12587 = vunpack.c.l.b16 %v12452
    %v12588 = vunpack.c.l.b16 %v12453
    %v12589 = vunpack.c.l.b16 %v12454
    %v12590 = vunpack.c.l.b16 %v12455
    %v12591 = vunpack.c.l.b16 %v12456
    %v12592 = vunpack.c.l.b16 %v12457
    %v12593 = vunpack.c.l.b16 %v12458
    %v12594 = vunpack.c.l.b16 %v12459
    %v12595 = vunpack.c.l.b16 %v12460
    %v12596 = vunpack.c.l.b16 %v12461
    %v12597 = vunpack.c.l.b16 %v12462
    %v12598 = vunpack.c.l.b16 %v12463
    %v12599 = vunpack.c.l.b16 %v12464
    %v12600 = vpack.c.b16 %v12537, %v12536
    %v12601 = vpack.c.b16 %v12539, %v12538
    %v12602 = vpack.c.b16 %v12541, %v12540
    %v12603 = vpack.c.b16 %v12543, %v12542
    %v12604 = vpack.c.b16 %v12545, %v12544
    %v12605 = vpack.c.b16 %v12547, %v12546
    %v12606 = vpack.c.b16 %v12549, %v12548
    %v12607 = vpack.c.b16 %v12551, %v12550
    %v12608 = vpack.c.b16 %v12553, %v12552
    %v12609 = vpack.c.b16 %v12555, %v12554
    %v12610 = vpack.c.b16 %v12557, %v12556
    %v12611 = vpack.c.b16 %v12559, %v12558
    %v12612 = vpack.c.b16 %v12561, %v12560
    %v12613 = vpack.c.b16 %v12563, %v12562
    %v12614 = vpack.c.b16 %v12565, %v12564
    %v12615 = vpack.c.b16 %v12567, %v12566
    %v12616 = vpack.c.b16 %v12569, %v12568
    %v12617 = vpack.c.b16 %v12571, %v12570
    %v12618 = vpack.c.b16 %v12573, %v12572
    %v12619 = vpack.c.b16 %v12575, %v12574
    %v12620 = vpack.c.b16 %v12577, %v12576
    %v12621 = vpack.c.b16 %v12579, %v12578
    %v12622 = vpack.c.b16 %v12581, %v12580
    %v12623 = vpack.c.b16 %v12583, %v12582
    %v12624 = vpack.c.b16 %v12585, %v12584
    %v12625 = vpack.c.b16 %v12587, %v12586
    %v12626 = vpack.c.b16 %v12589, %v12588
    %v12627 = vpack.c.b16 %v12591, %v12590
    %v12628 = vpack.c.b16 %v12593, %v12592
    %v12629 = vpack.c.b16 %v12595, %v12594
    %v12630 = vpack.c.b16 %v12597, %v12596
    %v12631 = vpack.c.b16 %v12599, %v12598
    %12664 = vmatprep.subr.bf16.mxu0 0
    %12665 = vmatpush1.bf16.msra.mxu0 %v12607
    %12666 = vmatprep.subr.bf16.mxu0 0
    %12667 = vmatpush1.bf16.msra.mxu0 %v12606
    %12668 = vmatprep.subr.bf16.mxu0 0
    %12669 = vmatpush1.bf16.msra.mxu0 %v12605
    %12670 = vmatprep.subr.bf16.mxu0 0
    %12671 = vmatpush1.bf16.msra.mxu0 %v12604
    %12672 = vmatprep.subr.bf16.mxu0 0
    %12673 = vmatpush1.bf16.msra.mxu0 %v12603
    %12674 = vmatprep.subr.bf16.mxu0 0
    %12675 = vmatpush1.bf16.msra.mxu0 %v12602
    %12676 = vmatprep.subr.bf16.mxu0 0
    %12677 = vmatpush1.bf16.msra.mxu0 %v12601
    %12678 = vmatprep.subr.bf16.mxu0 0
    %12679 = vmatpush1.bf16.msra.mxu0 %v12600
    %12680 = vmatprep.subr.bf16.mxu0 0
    %12681 = vmatpush2.bf16.msra.mxu0 %v12615
    %12682 = vmatprep.subr.bf16.mxu0 0
    %12683 = vmatpush2.bf16.msra.mxu0 %v12614
    %12684 = vmatprep.subr.bf16.mxu0 0
    %12685 = vmatpush2.bf16.msra.mxu0 %v12613
    %12686 = vmatprep.subr.bf16.mxu0 0
    %12687 = vmatpush2.bf16.msra.mxu0 %v12612
    %12688 = vmatprep.subr.bf16.mxu0 0
    %12689 = vmatpush2.bf16.msra.mxu0 %v12611
    %12690 = vmatprep.subr.bf16.mxu0 0
    %12691 = vmatpush2.bf16.msra.mxu0 %v12610
    %12692 = vmatprep.subr.bf16.mxu0 0
    %12693 = vmatpush2.bf16.msra.mxu0 %v12609
    %12694 = vmatprep.subr.bf16.mxu0 0
    %12695 = vmatpush2.bf16.msra.mxu0 %v12608
    %12696 = vmatprep.mubr.bf16.mxu0 %v12398
    %12697 = vmatmul.mubr.bf16.gmra.mxu0 %v12397
    %v12698 = vpop.f32.mrf.mxu0
    %v12699 = vadd.f32 %v12470, %v12698
    %v12700 = vpop.f32.mrf.mxu0
    %v12701 = vpop.f32.mrf.mxu0
    %v12702 = vpop.f32.mrf.mxu0
    %12703 = vdwg.mxu0
    %12704 = vmatprep.subr.bf16.mxu0 0
    %12705 = vmatpush1.bf16.msra.mxu0 %v12623
    %12706 = vmatprep.subr.bf16.mxu0 0
    %12707 = vmatpush1.bf16.msra.mxu0 %v12622
    %12708 = vmatprep.subr.bf16.mxu0 0
    %12709 = vmatpush1.bf16.msra.mxu0 %v12621
    %12710 = vmatprep.subr.bf16.mxu0 0
    %12711 = vmatpush1.bf16.msra.mxu0 %v12620
    %12712 = vmatprep.subr.bf16.mxu0 0
    %12713 = vmatpush1.bf16.msra.mxu0 %v12619
    %12714 = vmatprep.subr.bf16.mxu0 0
    %12715 = vmatpush1.bf16.msra.mxu0 %v12618
    %12716 = vmatprep.subr.bf16.mxu0 0
    %12717 = vmatpush1.bf16.msra.mxu0 %v12617
    %12718 = vmatprep.subr.bf16.mxu0 0
    %12719 = vmatpush1.bf16.msra.mxu0 %v12616
    %12720 = vmatprep.subr.bf16.mxu0 0
    %12721 = vmatpush2.bf16.msra.mxu0 %v12631
    %12722 = vmatprep.subr.bf16.mxu0 0
    %12723 = vmatpush2.bf16.msra.mxu0 %v12630
    %12724 = vmatprep.subr.bf16.mxu0 0
    %12725 = vmatpush2.bf16.msra.mxu0 %v12629
    %12726 = vmatprep.subr.bf16.mxu0 0
    %12727 = vmatpush2.bf16.msra.mxu0 %v12628
    %12728 = vmatprep.subr.bf16.mxu0 0
    %12729 = vmatpush2.bf16.msra.mxu0 %v12627
    %12730 = vmatprep.subr.bf16.mxu0 0
    %12731 = vmatpush2.bf16.msra.mxu0 %v12626
    %12732 = vmatprep.subr.bf16.mxu0 0
    %12733 = vmatpush2.bf16.msra.mxu0 %v12625
    %12734 = vmatprep.subr.bf16.mxu0 0
    %12735 = vmatpush2.bf16.msra.mxu0 %v12624
    %12736 = vmatprep.mubr.bf16.mxu0 %v12400
    %12737 = vmatmul.mubr.bf16.gmra.mxu0 %v12399
    %v12738 = vpop.f32.mrf.mxu0
    %v12739 = vadd.f32 %v12699, %v12738
    %v12740 = vpop.f32.mrf.mxu0
    %v12741 = vpop.f32.mrf.mxu0
    %v12742 = vpop.f32.mrf.mxu0
    %12743 = vdwg.mxu0
    %12744 = vst [vmem:[#allocation6] sm:$0x3] %v12739
    // Predicated region
    $region38: #{cnn_forward.1} parent=1 // pred_check
      _
    $region39: #{cnn_forward.1} parent=1 // pred_check_branch
      %12746 = sbr.rel (0) target = $region41
    $region40: #{cnn_forward.1} parent=1 // pred_region
      %s12748 = ssub.s32 32, 32
      %12749 = vsyncadd [#allocation7], %s12748
      %s12751 = sshll.u32 [#allocation6], 4
      %s12752 = int_to_ptr.vmem [resolvable:$true] %s12751
      %12754 = dma.vmem_to_hbm [thread:$0]  %s12752, 32, %s9, [#allocation7]
    $region41: #{cnn_forward.1} parent=1 // pred_fallthru
      _
    // Predicated region
    $region42: #{cnn_forward.1} parent=1 // pred_check
      _
    $region43: #{cnn_forward.1} parent=1 // pred_check_branch
      %12756 = sbr.rel (0) target = $region45
    $region44: #{cnn_forward.1} parent=1 // pred_region
      %12757 = dma.done [#allocation7], 32
    $region45: #{cnn_forward.1} parent=1 // pred_fallthru
      _
    %12758 = vsyncpa [#allocation7], 1

</llo_original>
